<compile_context>
chip_gen: v6e
topology: v6e:2x2x1
jax: 0.10.0
libtpu: 0.0.40
codegen_flags: <defaults>
</compile_context>

<pallas_src>
import jax
import jax.numpy as jnp
from jax.experimental import pallas as pl
from jax.experimental.pallas import tpu as pltpu


def _make_basic_block_kernel(H, W, Cpad):
    Wp = W + 2                      # padded width
    M = H * Wp                      # rows of the flattened conv-output slab
    rows = (H + 3) * Wp             # rows of the flattened padded-input slab
    shifts = [ky * Wp + kx for ky in range(3) for kx in range(3)]
    center = Wp + 1                 # flat offset of real pixel (0, 0) in the padded slab

    def kernel(x_ref, w1_ref, b1_ref, w2_ref, b2_ref, o_ref, mid_ref):
        # x_ref  : (1, rows, Cpad) bf16  -- spatially pre-padded, channel padded
        # w*_ref : (9*Cpad, Cpad) bf16   -- HWIO reshaped, BN scale folded in
        # b*_ref : (1, Cpad) f32         -- folded BN bias
        # o_ref  : (1, M, Cpad) bf16
        # mid_ref: (rows, Cpad) bf16 VMEM scratch (padded intermediate activation)
        x = x_ref[0]                                        # (rows, Cpad) bf16

        def conv3x3(load_slice, w_ref):
            # 9 accumulated MXU matmuls (one per 3x3 tap); no patches slab.
            acc = jnp.zeros((M, Cpad), jnp.float32)
            for k, s in enumerate(shifts):
                acc = acc + jnp.dot(
                    load_slice(s),                          # (M, Cpad) bf16
                    w_ref[k * Cpad:(k + 1) * Cpad, :],      # (Cpad, Cpad) bf16
                    preferred_element_type=jnp.float32)
            return acc                                      # (M, Cpad) f32

        # Column-validity mask: flat row p maps to column j = p % Wp; only j < W
        # are real output pixels (j in {W, W+1} are wrap-around garbage).
        col = jax.lax.broadcasted_iota(jnp.int32, (M, 1), 0) % Wp
        valid = col < W

        # ---- conv1 + bn1 bias + relu -> padded intermediate in VMEM scratch ----
        h1 = conv3x3(lambda s: x[s:s + M, :], w1_ref)
        h1 = jnp.maximum(h1 + b1_ref[...], 0.0)
        # Zeroing the garbage columns is REQUIRED: conv2's left/right padding is
        # realized by these zeroed wrap-around columns in the mid slab.
        h1 = jnp.where(valid, h1, 0.0)

        # Zero only the small halo regions of the scratch (done every step: with a
        # "parallel" grid axis each core owns its own scratch, so a one-time
        # @pl.when(program_id == 0) init would miss cores that never run step 0).
        mid_ref[0:center, :] = jnp.zeros((center, Cpad), mid_ref.dtype)
        mid_ref[center + M:rows, :] = jnp.zeros((rows - center - M, Cpad), mid_ref.dtype)
        mid_ref[center:center + M, :] = h1.astype(mid_ref.dtype)   # bf16 store

        # ---- conv2 + bn2 bias + residual + relu ----
        h2 = conv3x3(lambda s: mid_ref[s:s + M, :], w2_ref)
        residual = x[center:center + M, :].astype(jnp.float32)
        out = jnp.maximum(h2 + b2_ref[...] + residual, 0.0)
        o_ref[0] = out.astype(o_ref.dtype)                  # full-lane, unmasked store

    return kernel


def _vmem_limit_bytes():
    # ~3/4 of physical VMEM (96 MiB on v5e/v6e, 48 MiB on v7x); conservative
    # 48 MiB fallback (safe on every generation) if the query is unavailable.
    try:
        cap = int(pltpu.get_tpu_info().vmem_capacity_bytes)
    except Exception:
        return 48 * 1024 * 1024
    return min((cap * 3) // 4, 96 * 1024 * 1024)


def basic_block_pallas(x_nchw, w1, bn1, w2, bn2, eps=1e-5):
    """x_nchw: (N, C, H, W); w*: (Cout, Cin, 3, 3) OIHW; bn*: (gamma, beta, mean, var)."""
    N, C, H, W = x_nchw.shape
    Wp = W + 2
    M = H * Wp
    Cpad = max(128, -(-C // 128) * 128)          # lane-dense channel padding
    rows = (H + 3) * Wp                          # padded, flattened spatial rows
    out_dtype = x_nchw.dtype

    def fold(w_oihw, bn):
        gamma, beta, mean, var = bn
        scale = gamma / jnp.sqrt(var + eps)                      # (Cout,)
        bias = beta - mean * scale                               # (Cout,)
        w_scaled = w_oihw * scale[:, None, None, None]           # fold BN scale into weights
        w_hwio = jnp.transpose(w_scaled, (2, 3, 1, 0))           # (3, 3, Cin, Cout)
        w_hwio = jnp.pad(w_hwio, ((0, 0), (0, 0), (0, Cpad - C), (0, Cpad - C)))
        w2d = w_hwio.reshape(9 * Cpad, Cpad).astype(jnp.bfloat16)   # tap-stacked weight
        b = jnp.pad(bias, (0, Cpad - C)).reshape(1, Cpad).astype(jnp.float32)
        return w2d, b

    w1_2d, b1 = fold(w1, bn1)
    w2_2d, b2 = fold(w2, bn2)

    # NCHW -> NHWC, channel-pad to Cpad, spatial zero-pad (1 top + 2 bottom rows,
    # 1 col each side -- the extra bottom row keeps the flattened shifted-window
    # slices in bounds), then flatten (H+3, W+2) -> rows.  Activations go to bf16.
    x = jnp.transpose(x_nchw, (0, 2, 3, 1))
    x = jnp.pad(x, ((0, 0), (1, 2), (1, 1), (0, Cpad - C)))
    x = x.reshape(N, rows, Cpad).astype(jnp.bfloat16)

    # Advisory cost estimate so XLA overlaps the wrapper layout ops with the kernel.
    flops = int(2 * 2 * 9 * N * M * Cpad * Cpad)             # 2 convs, 9 taps each
    bytes_accessed = int(
        N * rows * Cpad * 2                                   # x (bf16)
        + 2 * 9 * Cpad * Cpad * 2                             # weights (bf16)
        + 2 * Cpad * 4                                        # biases (f32)
        + N * M * Cpad * 2)                                   # output (bf16)
    cost = pl.CostEstimate(flops=flops, transcendentals=0,
                           bytes_accessed=bytes_accessed)

    kernel = _make_basic_block_kernel(H, W, Cpad)
    out = pl.pallas_call(
        kernel,
        out_shape=jax.ShapeDtypeStruct((N, M, Cpad), jnp.bfloat16),
        grid_spec=pltpu.PrefetchScalarGridSpec(
            num_scalar_prefetch=0,
            grid=(N,),
            in_specs=[
                pl.BlockSpec((1, rows, Cpad), lambda n: (n, 0, 0)),    # x (padded, flat)
                pl.BlockSpec((9 * Cpad, Cpad), lambda n: (0, 0)),      # w1 (tap-stacked)
                pl.BlockSpec((1, Cpad), lambda n: (0, 0)),             # bias1
                pl.BlockSpec((9 * Cpad, Cpad), lambda n: (0, 0)),      # w2 (tap-stacked)
                pl.BlockSpec((1, Cpad), lambda n: (0, 0)),             # bias2
            ],
            out_specs=pl.BlockSpec((1, M, Cpad), lambda n: (n, 0, 0)),
            scratch_shapes=[pltpu.VMEM((rows, Cpad), jnp.bfloat16)],
        ),
        compiler_params=pltpu.CompilerParams(
            dimension_semantics=("parallel",),
            vmem_limit_bytes=_vmem_limit_bytes(),
        ),
        cost_estimate=cost,
    )(x, w1_2d, b1, w2_2d, b2)

    # Drop wrap-around garbage columns and padded channels; NHWC -> NCHW.
    # TODO(synk): for stacks of BasicBlocks, keep the flattened bf16 slab layout
    #             between blocks instead of converting here every call.
    out = out.reshape(N, H, Wp, Cpad)[:, :, :W, :C]
    return jnp.transpose(out, (0, 3, 1, 2)).astype(out_dtype)


def _reference_basic_block(x_nchw, w1, bn1, w2, bn2, eps=1e-5):
    """Pure-JAX f32 (lax.conv) reference for validation."""
    def conv(x, w):
        return jax.lax.conv_general_dilated(
            x, w, window_strides=(1, 1), padding=((1, 1), (1, 1)),
            dimension_numbers=("NCHW", "OIHW", "NCHW"))

    def bn(x, p):
        gamma, beta, mean, var = p
        scale = (gamma / jnp.sqrt(var + eps)).reshape(1, -1, 1, 1)
        bias = (beta - mean * gamma / jnp.sqrt(var + eps)).reshape(1, -1, 1, 1)
        return x * scale + bias

    out = jax.nn.relu(bn(conv(x_nchw, w1), bn1))
    out = bn(conv(out, w2), bn2)
    return jax.nn.relu(out + x_nchw)


if __name__ == "__main__":
    key = jax.random.PRNGKey(0)
    N, C, H, W = 2, 4, 16, 16   # inplanes = planes = 4, stride = 1, downsample = None

    k = jax.random.split(key, 9)
    x = jax.random.normal(k[0], (N, C, H, W), jnp.float32)
    w1 = jax.random.normal(k[1], (C, C, 3, 3), jnp.float32) * 0.1
    w2 = jax.random.normal(k[2], (C, C, 3, 3), jnp.float32) * 0.1
    # BN params: (gamma, beta, running_mean, running_var)  -- inference-mode BN
    bn1 = (jnp.abs(jax.random.normal(k[3], (C,))) + 0.5,
           jax.random.normal(k[4], (C,)) * 0.1,
           jax.random.normal(k[5], (C,)) * 0.1,
           jnp.abs(jax.random.normal(k[6], (C,))) + 0.5)
    bn2 = (jnp.abs(jax.random.normal(k[7], (C,))) + 0.5,
           jax.random.normal(k[8], (C,)) * 0.1,
           jnp.zeros((C,)),
           jnp.ones((C,)))

    out = jax.block_until_ready(basic_block_pallas(x, w1, bn1, w2, bn2))
    ref = jax.block_until_ready(_reference_basic_block(x, w1, bn1, w2, bn2))

    assert out.shape == (N, C, H, W)
    # bf16 MXU operands + bf16 output slab -> compare with bf16-level tolerance.
    assert jnp.allclose(out, ref, atol=5e-2, rtol=5e-2), "mismatch vs reference"

    print("KERNEL_OK")
</pallas_src>

<mosaic_0001>
module attributes {stable_mosaic.version = 11 : i64} {
  func.func @kernel(%arg0: i32, %arg1: memref<1x342x128xbf16, #tpu.memory_space<vmem>>, %arg2: memref<1152x128xbf16, #tpu.memory_space<vmem>>, %arg3: memref<1x128xf32, #tpu.memory_space<vmem>>, %arg4: memref<1152x128xbf16, #tpu.memory_space<vmem>>, %arg5: memref<1x128xf32, #tpu.memory_space<vmem>>, %arg6: memref<1x288x128xbf16, #tpu.memory_space<vmem>>, %arg7: memref<342x128xbf16, #tpu.memory_space<vmem>>) attributes {dimension_semantics = [#tpu.dimension_semantics<parallel>], iteration_bounds = array<i64: 2>, scalar_prefetch = 0 : i64, scratch_operands = 1 : i64, tpu.core_type = #tpu.core_type<tc>, window_params = [{transform_indices = @transform_0, window_bounds = array<i64: 1, 342, 128>}, {pipeline_mode = #tpu.pipeline_mode<synchronous>, transform_indices = @transform_1, window_bounds = array<i64: 1152, 128>}, {pipeline_mode = #tpu.pipeline_mode<synchronous>, transform_indices = @transform_2, window_bounds = array<i64: 1, 128>}, {pipeline_mode = #tpu.pipeline_mode<synchronous>, transform_indices = @transform_3, window_bounds = array<i64: 1152, 128>}, {pipeline_mode = #tpu.pipeline_mode<synchronous>, transform_indices = @transform_4, window_bounds = array<i64: 1, 128>}, {transform_indices = @transform_5, window_bounds = array<i64: 1, 288, 128>}]} {
    %c0 = arith.constant 0 : index
    %c0_0 = arith.constant 0 : index
    %c0_1 = arith.constant 0 : index
    %0 = vector.load %arg1[%c0, %c0_0, %c0_1] : memref<1x342x128xbf16, #tpu.memory_space<vmem>>, vector<1x342x128xbf16>
    %1 = vector.shape_cast %0 : vector<1x342x128xbf16> to vector<342x128xbf16>
    %2 = tpu.iota {dimensions = array<i32: 0>} : vector<288x1xi32>
    %c18_i32 = arith.constant 18 : i32
    %c0_i32 = arith.constant 0 : i32
    %3 = arith.cmpi eq, %c18_i32, %c0_i32 : i32
    %c1_i32 = arith.constant 1 : i32
    %4 = arith.select %3, %c1_i32, %c18_i32 : i32
    %5 = vector.broadcast %4 : i32 to vector<288x1xi32>
    %6 = arith.remsi %2, %5 : vector<288x1xi32>
    %c0_i32_2 = arith.constant 0 : i32
    %7 = vector.broadcast %c0_i32_2 : i32 to vector<288x1xi32>
    %8 = arith.cmpi ne, %6, %7 : vector<288x1xi32>
    %c0_i32_3 = arith.constant 0 : i32
    %9 = vector.broadcast %c0_i32_3 : i32 to vector<288x1xi32>
    %10 = arith.cmpi slt, %6, %9 : vector<288x1xi32>
    %c0_i32_4 = arith.constant 0 : i32
    %11 = arith.cmpi slt, %4, %c0_i32_4 : i32
    %12 = vector.broadcast %11 : i1 to vector<288x1xi1>
    %13 = vector.broadcast %12 : vector<288x1xi1> to vector<288x1xi1>
    %14 = arith.xori %10, %13 : vector<288x1xi1>
    %15 = arith.andi %14, %8 : vector<288x1xi1>
    %16 = vector.broadcast %4 : i32 to vector<288x1xi32>
    %17 = arith.addi %6, %16 : vector<288x1xi32>
    %18 = arith.select %15, %17, %6 : vector<288x1xi1>, vector<288x1xi32>
    %c16_i32 = arith.constant 16 : i32
    %19 = vector.broadcast %c16_i32 : i32 to vector<288x1xi32>
    %20 = arith.cmpi slt, %18, %19 : vector<288x1xi32>
    %cst = arith.constant 0.000000e+00 : f32
    %21 = vector.broadcast %cst : f32 to vector<288x128xf32>
    %22 = vector.extract_strided_slice %1 {offsets = [0, 0], sizes = [288, 128], strides = [1, 1]} : vector<342x128xbf16> to vector<288x128xbf16>
    %c0_5 = arith.constant 0 : index
    %c0_6 = arith.constant 0 : index
    %23 = vector.load %arg2[%c0_5, %c0_6] : memref<1152x128xbf16, #tpu.memory_space<vmem>>, vector<128x128xbf16>
    %cst_7 = arith.constant dense<0.000000e+00> : vector<288x128xf32>
    %24 = tpu.matmul %22, %23, %cst_7 {dimension_numbers = #tpu.dot_dimension_numbers<[1], [0], [0], [1], [0, 0, 1, 1], [], []>} : vector<288x128xbf16>, vector<128x128xbf16>, vector<288x128xf32> -> vector<288x128xf32>
    %25 = arith.addf %21, %24 : vector<288x128xf32>
    %26 = vector.extract_strided_slice %1 {offsets = [1, 0], sizes = [288, 128], strides = [1, 1]} : vector<342x128xbf16> to vector<288x128xbf16>
    %c128 = arith.constant 128 : index
    %c0_8 = arith.constant 0 : index
    %27 = vector.load %arg2[%c128, %c0_8] : memref<1152x128xbf16, #tpu.memory_space<vmem>>, vector<128x128xbf16>
    %cst_9 = arith.constant dense<0.000000e+00> : vector<288x128xf32>
    %28 = tpu.matmul %26, %27, %cst_9 {dimension_numbers = #tpu.dot_dimension_numbers<[1], [0], [0], [1], [0, 0, 1, 1], [], []>} : vector<288x128xbf16>, vector<128x128xbf16>, vector<288x128xf32> -> vector<288x128xf32>
    %29 = arith.addf %25, %28 : vector<288x128xf32>
    %30 = vector.extract_strided_slice %1 {offsets = [2, 0], sizes = [288, 128], strides = [1, 1]} : vector<342x128xbf16> to vector<288x128xbf16>
    %c256 = arith.constant 256 : index
    %c0_10 = arith.constant 0 : index
    %31 = vector.load %arg2[%c256, %c0_10] : memref<1152x128xbf16, #tpu.memory_space<vmem>>, vector<128x128xbf16>
    %cst_11 = arith.constant dense<0.000000e+00> : vector<288x128xf32>
    %32 = tpu.matmul %30, %31, %cst_11 {dimension_numbers = #tpu.dot_dimension_numbers<[1], [0], [0], [1], [0, 0, 1, 1], [], []>} : vector<288x128xbf16>, vector<128x128xbf16>, vector<288x128xf32> -> vector<288x128xf32>
    %33 = arith.addf %29, %32 : vector<288x128xf32>
    %34 = vector.extract_strided_slice %1 {offsets = [18, 0], sizes = [288, 128], strides = [1, 1]} : vector<342x128xbf16> to vector<288x128xbf16>
    %c384 = arith.constant 384 : index
    %c0_12 = arith.constant 0 : index
    %35 = vector.load %arg2[%c384, %c0_12] : memref<1152x128xbf16, #tpu.memory_space<vmem>>, vector<128x128xbf16>
    %cst_13 = arith.constant dense<0.000000e+00> : vector<288x128xf32>
    %36 = tpu.matmul %34, %35, %cst_13 {dimension_numbers = #tpu.dot_dimension_numbers<[1], [0], [0], [1], [0, 0, 1, 1], [], []>} : vector<288x128xbf16>, vector<128x128xbf16>, vector<288x128xf32> -> vector<288x128xf32>
    %37 = arith.addf %33, %36 : vector<288x128xf32>
    %38 = vector.extract_strided_slice %1 {offsets = [19, 0], sizes = [288, 128], strides = [1, 1]} : vector<342x128xbf16> to vector<288x128xbf16>
    %c512 = arith.constant 512 : index
    %c0_14 = arith.constant 0 : index
    %39 = vector.load %arg2[%c512, %c0_14] : memref<1152x128xbf16, #tpu.memory_space<vmem>>, vector<128x128xbf16>
    %cst_15 = arith.constant dense<0.000000e+00> : vector<288x128xf32>
    %40 = tpu.matmul %38, %39, %cst_15 {dimension_numbers = #tpu.dot_dimension_numbers<[1], [0], [0], [1], [0, 0, 1, 1], [], []>} : vector<288x128xbf16>, vector<128x128xbf16>, vector<288x128xf32> -> vector<288x128xf32>
    %41 = arith.addf %37, %40 : vector<288x128xf32>
    %42 = vector.extract_strided_slice %1 {offsets = [20, 0], sizes = [288, 128], strides = [1, 1]} : vector<342x128xbf16> to vector<288x128xbf16>
    %c640 = arith.constant 640 : index
    %c0_16 = arith.constant 0 : index
    %43 = vector.load %arg2[%c640, %c0_16] : memref<1152x128xbf16, #tpu.memory_space<vmem>>, vector<128x128xbf16>
    %cst_17 = arith.constant dense<0.000000e+00> : vector<288x128xf32>
    %44 = tpu.matmul %42, %43, %cst_17 {dimension_numbers = #tpu.dot_dimension_numbers<[1], [0], [0], [1], [0, 0, 1, 1], [], []>} : vector<288x128xbf16>, vector<128x128xbf16>, vector<288x128xf32> -> vector<288x128xf32>
    %45 = arith.addf %41, %44 : vector<288x128xf32>
    %46 = vector.extract_strided_slice %1 {offsets = [36, 0], sizes = [288, 128], strides = [1, 1]} : vector<342x128xbf16> to vector<288x128xbf16>
    %c768 = arith.constant 768 : index
    %c0_18 = arith.constant 0 : index
    %47 = vector.load %arg2[%c768, %c0_18] : memref<1152x128xbf16, #tpu.memory_space<vmem>>, vector<128x128xbf16>
    %cst_19 = arith.constant dense<0.000000e+00> : vector<288x128xf32>
    %48 = tpu.matmul %46, %47, %cst_19 {dimension_numbers = #tpu.dot_dimension_numbers<[1], [0], [0], [1], [0, 0, 1, 1], [], []>} : vector<288x128xbf16>, vector<128x128xbf16>, vector<288x128xf32> -> vector<288x128xf32>
    %49 = arith.addf %45, %48 : vector<288x128xf32>
    %50 = vector.extract_strided_slice %1 {offsets = [37, 0], sizes = [288, 128], strides = [1, 1]} : vector<342x128xbf16> to vector<288x128xbf16>
    %c896 = arith.constant 896 : index
    %c0_20 = arith.constant 0 : index
    %51 = vector.load %arg2[%c896, %c0_20] : memref<1152x128xbf16, #tpu.memory_space<vmem>>, vector<128x128xbf16>
    %cst_21 = arith.constant dense<0.000000e+00> : vector<288x128xf32>
    %52 = tpu.matmul %50, %51, %cst_21 {dimension_numbers = #tpu.dot_dimension_numbers<[1], [0], [0], [1], [0, 0, 1, 1], [], []>} : vector<288x128xbf16>, vector<128x128xbf16>, vector<288x128xf32> -> vector<288x128xf32>
    %53 = arith.addf %49, %52 : vector<288x128xf32>
    %54 = vector.extract_strided_slice %1 {offsets = [38, 0], sizes = [288, 128], strides = [1, 1]} : vector<342x128xbf16> to vector<288x128xbf16>
    %c1024 = arith.constant 1024 : index
    %c0_22 = arith.constant 0 : index
    %55 = vector.load %arg2[%c1024, %c0_22] : memref<1152x128xbf16, #tpu.memory_space<vmem>>, vector<128x128xbf16>
    %cst_23 = arith.constant dense<0.000000e+00> : vector<288x128xf32>
    %56 = tpu.matmul %54, %55, %cst_23 {dimension_numbers = #tpu.dot_dimension_numbers<[1], [0], [0], [1], [0, 0, 1, 1], [], []>} : vector<288x128xbf16>, vector<128x128xbf16>, vector<288x128xf32> -> vector<288x128xf32>
    %57 = arith.addf %53, %56 : vector<288x128xf32>
    %c0_24 = arith.constant 0 : index
    %c0_25 = arith.constant 0 : index
    %58 = vector.load %arg3[%c0_24, %c0_25] : memref<1x128xf32, #tpu.memory_space<vmem>>, vector<1x128xf32>
    %59 = vector.broadcast %58 : vector<1x128xf32> to vector<288x128xf32>
    %60 = arith.addf %57, %59 : vector<288x128xf32>
    %cst_26 = arith.constant 0.000000e+00 : f32
    %61 = vector.broadcast %cst_26 : f32 to vector<288x128xf32>
    %62 = arith.maximumf %60, %61 : vector<288x128xf32>
    %cst_27 = arith.constant 0.000000e+00 : f32
    %63 = vector.shape_cast %20 : vector<288x1xi1> to vector<288x1xi1>
    %64 = vector.broadcast %63 : vector<288x1xi1> to vector<288x128xi1>
    %65 = vector.broadcast %cst_27 : f32 to vector<288x128xf32>
    %66 = arith.select %64, %62, %65 : vector<288x128xi1>, vector<288x128xf32>
    %cst_28 = arith.constant 0.000000e+00 : bf16
    %67 = vector.broadcast %cst_28 : bf16 to vector<19x128xbf16>
    %c0_29 = arith.constant 0 : index
    %c0_30 = arith.constant 0 : index
    %68 = vector.load %arg7[%c0_29, %c0_30] : memref<342x128xbf16, #tpu.memory_space<vmem>>, vector<19x128xbf16>
    tpu.vector_store %arg7[%c0_29, %c0_30], %67 {strides = array<i32>} : memref<342x128xbf16, #tpu.memory_space<vmem>>, vector<19x128xbf16>,
    %cst_31 = arith.constant 0.000000e+00 : bf16
    %69 = vector.broadcast %cst_31 : bf16 to vector<35x128xbf16>
    %c307 = arith.constant 307 : index
    %c0_32 = arith.constant 0 : index
    %70 = vector.load %arg7[%c307, %c0_32] : memref<342x128xbf16, #tpu.memory_space<vmem>>, vector<35x128xbf16>
    tpu.vector_store %arg7[%c307, %c0_32], %69 {strides = array<i32>} : memref<342x128xbf16, #tpu.memory_space<vmem>>, vector<35x128xbf16>,
    %71 = arith.truncf %66 : vector<288x128xf32> to vector<288x128xbf16>
    %c19 = arith.constant 19 : index
    %c0_33 = arith.constant 0 : index
    %72 = vector.load %arg7[%c19, %c0_33] : memref<342x128xbf16, #tpu.memory_space<vmem>>, vector<288x128xbf16>
    tpu.vector_store %arg7[%c19, %c0_33], %71 {strides = array<i32>} : memref<342x128xbf16, #tpu.memory_space<vmem>>, vector<288x128xbf16>,
    %cst_34 = arith.constant 0.000000e+00 : f32
    %73 = vector.broadcast %cst_34 : f32 to vector<288x128xf32>
    %c0_35 = arith.constant 0 : index
    %c0_36 = arith.constant 0 : index
    %74 = vector.load %arg7[%c0_35, %c0_36] : memref<342x128xbf16, #tpu.memory_space<vmem>>, vector<288x128xbf16>
    %c0_37 = arith.constant 0 : index
    %c0_38 = arith.constant 0 : index
    %75 = vector.load %arg4[%c0_37, %c0_38] : memref<1152x128xbf16, #tpu.memory_space<vmem>>, vector<128x128xbf16>
    %cst_39 = arith.constant dense<0.000000e+00> : vector<288x128xf32>
    %76 = tpu.matmul %74, %75, %cst_39 {dimension_numbers = #tpu.dot_dimension_numbers<[1], [0], [0], [1], [0, 0, 1, 1], [], []>} : vector<288x128xbf16>, vector<128x128xbf16>, vector<288x128xf32> -> vector<288x128xf32>
    %77 = arith.addf %73, %76 : vector<288x128xf32>
    %c1 = arith.constant 1 : index
    %c0_40 = arith.constant 0 : index
    %78 = vector.load %arg7[%c1, %c0_40] : memref<342x128xbf16, #tpu.memory_space<vmem>>, vector<288x128xbf16>
    %c128_41 = arith.constant 128 : index
    %c0_42 = arith.constant 0 : index
    %79 = vector.load %arg4[%c128_41, %c0_42] : memref<1152x128xbf16, #tpu.memory_space<vmem>>, vector<128x128xbf16>
    %cst_43 = arith.constant dense<0.000000e+00> : vector<288x128xf32>
    %80 = tpu.matmul %78, %79, %cst_43 {dimension_numbers = #tpu.dot_dimension_numbers<[1], [0], [0], [1], [0, 0, 1, 1], [], []>} : vector<288x128xbf16>, vector<128x128xbf16>, vector<288x128xf32> -> vector<288x128xf32>
    %81 = arith.addf %77, %80 : vector<288x128xf32>
    %c2 = arith.constant 2 : index
    %c0_44 = arith.constant 0 : index
    %82 = vector.load %arg7[%c2, %c0_44] : memref<342x128xbf16, #tpu.memory_space<vmem>>, vector<288x128xbf16>
    %c256_45 = arith.constant 256 : index
    %c0_46 = arith.constant 0 : index
    %83 = vector.load %arg4[%c256_45, %c0_46] : memref<1152x128xbf16, #tpu.memory_space<vmem>>, vector<128x128xbf16>
    %cst_47 = arith.constant dense<0.000000e+00> : vector<288x128xf32>
    %84 = tpu.matmul %82, %83, %cst_47 {dimension_numbers = #tpu.dot_dimension_numbers<[1], [0], [0], [1], [0, 0, 1, 1], [], []>} : vector<288x128xbf16>, vector<128x128xbf16>, vector<288x128xf32> -> vector<288x128xf32>
    %85 = arith.addf %81, %84 : vector<288x128xf32>
    %c18 = arith.constant 18 : index
    %c0_48 = arith.constant 0 : index
    %86 = vector.load %arg7[%c18, %c0_48] : memref<342x128xbf16, #tpu.memory_space<vmem>>, vector<288x128xbf16>
    %c384_49 = arith.constant 384 : index
    %c0_50 = arith.constant 0 : index
    %87 = vector.load %arg4[%c384_49, %c0_50] : memref<1152x128xbf16, #tpu.memory_space<vmem>>, vector<128x128xbf16>
    %cst_51 = arith.constant dense<0.000000e+00> : vector<288x128xf32>
    %88 = tpu.matmul %86, %87, %cst_51 {dimension_numbers = #tpu.dot_dimension_numbers<[1], [0], [0], [1], [0, 0, 1, 1], [], []>} : vector<288x128xbf16>, vector<128x128xbf16>, vector<288x128xf32> -> vector<288x128xf32>
    %89 = arith.addf %85, %88 : vector<288x128xf32>
    %c19_52 = arith.constant 19 : index
    %c0_53 = arith.constant 0 : index
    %90 = vector.load %arg7[%c19_52, %c0_53] : memref<342x128xbf16, #tpu.memory_space<vmem>>, vector<288x128xbf16>
    %c512_54 = arith.constant 512 : index
    %c0_55 = arith.constant 0 : index
    %91 = vector.load %arg4[%c512_54, %c0_55] : memref<1152x128xbf16, #tpu.memory_space<vmem>>, vector<128x128xbf16>
    %cst_56 = arith.constant dense<0.000000e+00> : vector<288x128xf32>
    %92 = tpu.matmul %90, %91, %cst_56 {dimension_numbers = #tpu.dot_dimension_numbers<[1], [0], [0], [1], [0, 0, 1, 1], [], []>} : vector<288x128xbf16>, vector<128x128xbf16>, vector<288x128xf32> -> vector<288x128xf32>
    %93 = arith.addf %89, %92 : vector<288x128xf32>
    %c20 = arith.constant 20 : index
    %c0_57 = arith.constant 0 : index
    %94 = vector.load %arg7[%c20, %c0_57] : memref<342x128xbf16, #tpu.memory_space<vmem>>, vector<288x128xbf16>
    %c640_58 = arith.constant 640 : index
    %c0_59 = arith.constant 0 : index
    %95 = vector.load %arg4[%c640_58, %c0_59] : memref<1152x128xbf16, #tpu.memory_space<vmem>>, vector<128x128xbf16>
    %cst_60 = arith.constant dense<0.000000e+00> : vector<288x128xf32>
    %96 = tpu.matmul %94, %95, %cst_60 {dimension_numbers = #tpu.dot_dimension_numbers<[1], [0], [0], [1], [0, 0, 1, 1], [], []>} : vector<288x128xbf16>, vector<128x128xbf16>, vector<288x128xf32> -> vector<288x128xf32>
    %97 = arith.addf %93, %96 : vector<288x128xf32>
    %c36 = arith.constant 36 : index
    %c0_61 = arith.constant 0 : index
    %98 = vector.load %arg7[%c36, %c0_61] : memref<342x128xbf16, #tpu.memory_space<vmem>>, vector<288x128xbf16>
    %c768_62 = arith.constant 768 : index
    %c0_63 = arith.constant 0 : index
    %99 = vector.load %arg4[%c768_62, %c0_63] : memref<1152x128xbf16, #tpu.memory_space<vmem>>, vector<128x128xbf16>
    %cst_64 = arith.constant dense<0.000000e+00> : vector<288x128xf32>
    %100 = tpu.matmul %98, %99, %cst_64 {dimension_numbers = #tpu.dot_dimension_numbers<[1], [0], [0], [1], [0, 0, 1, 1], [], []>} : vector<288x128xbf16>, vector<128x128xbf16>, vector<288x128xf32> -> vector<288x128xf32>
    %101 = arith.addf %97, %100 : vector<288x128xf32>
    %c37 = arith.constant 37 : index
    %c0_65 = arith.constant 0 : index
    %102 = vector.load %arg7[%c37, %c0_65] : memref<342x128xbf16, #tpu.memory_space<vmem>>, vector<288x128xbf16>
    %c896_66 = arith.constant 896 : index
    %c0_67 = arith.constant 0 : index
    %103 = vector.load %arg4[%c896_66, %c0_67] : memref<1152x128xbf16, #tpu.memory_space<vmem>>, vector<128x128xbf16>
    %cst_68 = arith.constant dense<0.000000e+00> : vector<288x128xf32>
    %104 = tpu.matmul %102, %103, %cst_68 {dimension_numbers = #tpu.dot_dimension_numbers<[1], [0], [0], [1], [0, 0, 1, 1], [], []>} : vector<288x128xbf16>, vector<128x128xbf16>, vector<288x128xf32> -> vector<288x128xf32>
    %105 = arith.addf %101, %104 : vector<288x128xf32>
    %c38 = arith.constant 38 : index
    %c0_69 = arith.constant 0 : index
    %106 = vector.load %arg7[%c38, %c0_69] : memref<342x128xbf16, #tpu.memory_space<vmem>>, vector<288x128xbf16>
    %c1024_70 = arith.constant 1024 : index
    %c0_71 = arith.constant 0 : index
    %107 = vector.load %arg4[%c1024_70, %c0_71] : memref<1152x128xbf16, #tpu.memory_space<vmem>>, vector<128x128xbf16>
    %cst_72 = arith.constant dense<0.000000e+00> : vector<288x128xf32>
    %108 = tpu.matmul %106, %107, %cst_72 {dimension_numbers = #tpu.dot_dimension_numbers<[1], [0], [0], [1], [0, 0, 1, 1], [], []>} : vector<288x128xbf16>, vector<128x128xbf16>, vector<288x128xf32> -> vector<288x128xf32>
    %109 = arith.addf %105, %108 : vector<288x128xf32>
    %110 = vector.extract_strided_slice %1 {offsets = [19, 0], sizes = [288, 128], strides = [1, 1]} : vector<342x128xbf16> to vector<288x128xbf16>
    %111 = arith.extf %110 : vector<288x128xbf16> to vector<288x128xf32>
    %c0_73 = arith.constant 0 : index
    %c0_74 = arith.constant 0 : index
    %112 = vector.load %arg5[%c0_73, %c0_74] : memref<1x128xf32, #tpu.memory_space<vmem>>, vector<1x128xf32>
    %113 = vector.broadcast %112 : vector<1x128xf32> to vector<288x128xf32>
    %114 = arith.addf %109, %113 : vector<288x128xf32>
    %115 = arith.addf %114, %111 : vector<288x128xf32>
    %cst_75 = arith.constant 0.000000e+00 : f32
    %116 = vector.broadcast %cst_75 : f32 to vector<288x128xf32>
    %117 = arith.maximumf %115, %116 : vector<288x128xf32>
    %118 = arith.truncf %117 : vector<288x128xf32> to vector<288x128xbf16>
    %c0_76 = arith.constant 0 : index
    %c0_77 = arith.constant 0 : index
    %c0_78 = arith.constant 0 : index
    %119 = vector.load %arg6[%c0_76, %c0_77, %c0_78] : memref<1x288x128xbf16, #tpu.memory_space<vmem>>, vector<1x288x128xbf16>
    %120 = vector.shape_cast %119 : vector<1x288x128xbf16> to vector<288x128xbf16>
    %121 = vector.shape_cast %118 : vector<288x128xbf16> to vector<1x288x128xbf16>
    tpu.vector_store %arg6[%c0_76, %c0_77, %c0_78], %121 {strides = array<i32>} : memref<1x288x128xbf16, #tpu.memory_space<vmem>>, vector<1x288x128xbf16>,
    return
  }
  func.func @transform_0(%arg0: i32) -> (i32, i32, i32) {
    %c0_i32 = arith.constant 0 : i32
    %c0_i32_0 = arith.constant 0 : i32
    %c0_i32_1 = arith.constant 0 : i32
    return %arg0, %c0_i32, %c0_i32_0 : i32, i32, i32
  }
  func.func @transform_1(%arg0: i32) -> (i32, i32) {
    %c0_i32 = arith.constant 0 : i32
    %c0_i32_0 = arith.constant 0 : i32
    %c0_i32_1 = arith.constant 0 : i32
    return %c0_i32, %c0_i32_0 : i32, i32
  }
  func.func @transform_2(%arg0: i32) -> (i32, i32) {
    %c0_i32 = arith.constant 0 : i32
    %c0_i32_0 = arith.constant 0 : i32
    %c0_i32_1 = arith.constant 0 : i32
    return %c0_i32, %c0_i32_0 : i32, i32
  }
  func.func @transform_3(%arg0: i32) -> (i32, i32) {
    %c0_i32 = arith.constant 0 : i32
    %c0_i32_0 = arith.constant 0 : i32
    %c0_i32_1 = arith.constant 0 : i32
    return %c0_i32, %c0_i32_0 : i32, i32
  }
  func.func @transform_4(%arg0: i32) -> (i32, i32) {
    %c0_i32 = arith.constant 0 : i32
    %c0_i32_0 = arith.constant 0 : i32
    %c0_i32_1 = arith.constant 0 : i32
    return %c0_i32, %c0_i32_0 : i32, i32
  }
  func.func @transform_5(%arg0: i32) -> (i32, i32, i32) {
    %c0_i32 = arith.constant 0 : i32
    %c0_i32_0 = arith.constant 0 : i32
    %c0_i32_1 = arith.constant 0 : i32
    return %arg0, %c0_i32, %c0_i32_0 : i32, i32, i32
  }
}

</mosaic_0001>

<llo_original>
// kernel: tpu_custom_call.1
$region0: #{tpu_custom_call.1}
  #allocation0 [shape = 'u32[]', space=smem, size = 0x4, offset = 0x4, fixed_abs, tag = 'smem constant byte address 0x4 - core index']
  #allocation1 [shape = 'u32[144,128]{1,0:T(1,128)}', space=vmem, size = 0x12000, scoped, tag = 'internal scratch']
  #allocation2 [shape = 'bf16[342,128]{1,0:T(8,128)(2,1)}', space=vmem, size = 0x15800, scoped, tag = 'scratch operand']
  %s0 = inlined_call_operand.vmem [shape: bf16[2,342,128], index: 0, kind: input, shape index: {}]
  %s1 = inlined_call_operand.vmem [shape: bf16[1152,128], index: 1, kind: input, shape index: {}]
  %s2 = inlined_call_operand.vmem [shape: f32[1,128], index: 2, kind: input, shape index: {}]
  %s3 = inlined_call_operand.hbm [shape: bf16[1152,128], index: 3, kind: input, shape index: {}]
  %s4 = inlined_call_operand.vmem [shape: f32[1,128], index: 4, kind: input, shape index: {}]
  %s5 = inlined_call_operand.hbm [shape: bf16[2,288,128], index: 5, kind: output, shape index: {}]
  %s6 = sld [smem:[#allocation0]]
  $region57: #{tpu_custom_call.1} parent=0
    _
  %s8 = ssub.s32 1, %s6
  %s9 = scalar_select 0, %s8, %s6
  $region1: #{tpu_custom_call.1} parent=0
    #allocation3 [shape = 'u8[294912]{0}', space=vmem, size = 0x48000, scoped, tag = 'input window, operand 3, single buffered']
    #allocation4 [shape = 's32[2]{0}', space=sflag, size = 0x8, scoped, tag = 'scoped memory for tpu_custom_call.1']
    #allocation5 [shape = 's32[2]{0}', space=sflag, size = 0x8, scoped, tag = 'scoped memory for tpu_custom_call.1']
    #allocation6 [shape = 'u8[147456]{0}', space=vmem, size = 0x24000, scoped, tag = 'output window, operand 0']
    %10 = vsyncpa [#allocation4], 0
    %11 = vsyncpa [#allocation5], 0
    %s12 = scalar_lea.sflag [#allocation5], 1
    %13 = vsyncpa %s12, 0
    loop: start=0, step=1, limit=4
    $region2: #{tpu_custom_call.1} parent=1 // loop_pre_header
      _
    $region3: #{tpu_custom_call.1} parent=1 // loop_header
      %s15 = sphi 0, %s19
      %p16 = scmp.ge.s32.totalorder %s15, 4
      %s25 = sphi 0, %s27
      %s28 = sphi 0, %s25
      %s29 = sphi 0, %s28
      %s45 = sphi 0, %s29
      %s49 = sphi 0, %s49
      %s51 = sphi 0, %s49
      %s52 = sphi 0, %s51
      %s66 = sphi 0, %s52
      %s70 = sphi 0, %s70
      %s72 = sphi 0, %s70
      %s73 = sphi 0, %s72
      %s87 = sphi 0, %s73
      %s91 = sphi 0, %s91
      %s93 = sphi 0, %s91
      %s94 = sphi 0, %s93
      %s108 = sphi 0, %s94
      %s112 = sphi 0, %s112
      %s114 = sphi 0, %s112
      %s115 = sphi 0, %s114
      %s129 = sphi 0, %s115
      %s135 = sphi 0, %s137
      %s138 = sphi 0, %s135
      %s139 = sphi 0, %s138
      %s155 = sphi 0, %s139
    $region4: #{tpu_custom_call.1} parent=1 // loop_header_branch
      %18 = sbr.rel (%p16) target = $region8
    $region5: #{tpu_custom_call.1} parent=1 // loop_body
      %s20 = ssub.s32 %s15, 1
      %s21 = ssub.s32 %s15, 2
      %s22 = sadd.s32 %s15, 1
      %s23 = ssub.s32 %s15, %s22
      %p24 = scmp.eq.s32.totalorder %s23, 0
      %s26 = sadd.s32 %s25, 1
      %s27 = scalar_select %p24, %s25, %s26
      %p30 = pneg %p24
      %p31 = scmp.eq.s32.totalorder %s15, 1
      %p32 = por %p30, %p31
      %p33 = scmp.ne.s32.totalorder %s25, %s28
      %p34 = scmp.eq.s32.totalorder %s15, 0
      %p35 = por %p33, %p34
      %p36 = scmp.ne.s32.totalorder %s25, %s28
      %p37 = scmp.eq.s32.totalorder %s20, 1
      %p38 = por %p36, %p37
      %p39 = scmp.ne.s32.totalorder %s28, %s29
      %p40 = scmp.eq.s32.totalorder %s20, 0
      %p41 = por %p39, %p40
      %p42 = scmp.ne.s32.totalorder %s28, %s29
      %p43 = scmp.eq.s32.totalorder %s21, 1
      %p44 = por %p42, %p43
      %p46 = scmp.ne.s32.totalorder %s29, %s45
      %p47 = scmp.eq.s32.totalorder %s21, 0
      %p48 = por %p46, %p47
      %s50 = sadd.s32 %s49, 1
      %p53 = scmp.eq.s32.totalorder %s15, 1
      %p54 = scmp.ne.s32.totalorder %s49, %s51
      %p55 = scmp.eq.s32.totalorder %s15, 0
      %p56 = por %p54, %p55
      %p57 = scmp.ne.s32.totalorder %s49, %s51
      %p58 = scmp.eq.s32.totalorder %s20, 1
      %p59 = por %p57, %p58
      %p60 = scmp.ne.s32.totalorder %s51, %s52
      %p61 = scmp.eq.s32.totalorder %s20, 0
      %p62 = por %p60, %p61
      %p63 = scmp.ne.s32.totalorder %s51, %s52
      %p64 = scmp.eq.s32.totalorder %s21, 1
      %p65 = por %p63, %p64
      %p67 = scmp.ne.s32.totalorder %s52, %s66
      %p68 = scmp.eq.s32.totalorder %s21, 0
      %p69 = por %p67, %p68
      %s71 = sadd.s32 %s70, 1
      %p74 = scmp.eq.s32.totalorder %s15, 1
      %p75 = scmp.ne.s32.totalorder %s70, %s72
      %p76 = scmp.eq.s32.totalorder %s15, 0
      %p77 = por %p75, %p76
      %p78 = scmp.ne.s32.totalorder %s70, %s72
      %p79 = scmp.eq.s32.totalorder %s20, 1
      %p80 = por %p78, %p79
      %p81 = scmp.ne.s32.totalorder %s72, %s73
      %p82 = scmp.eq.s32.totalorder %s20, 0
      %p83 = por %p81, %p82
      %p84 = scmp.ne.s32.totalorder %s72, %s73
      %p85 = scmp.eq.s32.totalorder %s21, 1
      %p86 = por %p84, %p85
      %p88 = scmp.ne.s32.totalorder %s73, %s87
      %p89 = scmp.eq.s32.totalorder %s21, 0
      %p90 = por %p88, %p89
      %s92 = sadd.s32 %s91, 1
      %p95 = scmp.eq.s32.totalorder %s15, 1
      %p96 = scmp.ne.s32.totalorder %s91, %s93
      %p97 = scmp.eq.s32.totalorder %s15, 0
      %p98 = por %p96, %p97
      %p99 = scmp.ne.s32.totalorder %s91, %s93
      %p100 = scmp.eq.s32.totalorder %s20, 1
      %p101 = por %p99, %p100
      %p102 = scmp.ne.s32.totalorder %s93, %s94
      %p103 = scmp.eq.s32.totalorder %s20, 0
      %p104 = por %p102, %p103
      %p105 = scmp.ne.s32.totalorder %s93, %s94
      %p106 = scmp.eq.s32.totalorder %s21, 1
      %p107 = por %p105, %p106
      %p109 = scmp.ne.s32.totalorder %s94, %s108
      %p110 = scmp.eq.s32.totalorder %s21, 0
      %p111 = por %p109, %p110
      %s113 = sadd.s32 %s112, 1
      %p116 = scmp.eq.s32.totalorder %s15, 1
      %p117 = scmp.ne.s32.totalorder %s112, %s114
      %p118 = scmp.eq.s32.totalorder %s15, 0
      %p119 = por %p117, %p118
      %p120 = scmp.ne.s32.totalorder %s112, %s114
      %p121 = scmp.eq.s32.totalorder %s20, 1
      %p122 = por %p120, %p121
      %p123 = scmp.ne.s32.totalorder %s114, %s115
      %p124 = scmp.eq.s32.totalorder %s20, 0
      %p125 = por %p123, %p124
      %p126 = scmp.ne.s32.totalorder %s114, %s115
      %p127 = scmp.eq.s32.totalorder %s21, 1
      %p128 = por %p126, %p127
      %p130 = scmp.ne.s32.totalorder %s115, %s129
      %p131 = scmp.eq.s32.totalorder %s21, 0
      %p132 = por %p130, %p131
      %s133 = ssub.s32 %s15, %s22
      %p134 = scmp.eq.s32.totalorder %s133, 0
      %s136 = sadd.s32 %s135, 1
      %s137 = scalar_select %p134, %s135, %s136
      %p140 = pneg %p134
      %p141 = scmp.eq.s32.totalorder %s15, 1
      %p142 = por %p140, %p141
      %p143 = scmp.ne.s32.totalorder %s135, %s138
      %p144 = scmp.eq.s32.totalorder %s15, 0
      %p145 = por %p143, %p144
      %p146 = scmp.ne.s32.totalorder %s135, %s138
      %p147 = scmp.eq.s32.totalorder %s20, 1
      %p148 = por %p146, %p147
      %p149 = scmp.ne.s32.totalorder %s138, %s139
      %p150 = scmp.eq.s32.totalorder %s20, 0
      %p151 = por %p149, %p150
      %p152 = scmp.ne.s32.totalorder %s138, %s139
      %p153 = scmp.eq.s32.totalorder %s21, 1
      %p154 = por %p152, %p153
      %p156 = scmp.ne.s32.totalorder %s139, %s155
      %p157 = scmp.eq.s32.totalorder %s21, 0
      %p158 = por %p156, %p157
      %p159 = scmp.le.s32.totalorder 1, %s15
      %p160 = scmp.lt.s32.totalorder %s15, 3
      %p161 = pnand %p159, %p160
      %p162 = pneg %p161
      // Predicated region
      $region9: #{tpu_custom_call.1} parent=5 // pred_check
        _
      $region10: #{tpu_custom_call.1} parent=5 // pred_check_branch
        %164 = sbr.rel (%p161) target = $region12
      $region11: #{tpu_custom_call.1} parent=5 // pred_region
        %s165 = ssub.s32 %s15, 1
        // Predicated region
        $region13: #{tpu_custom_call.1} parent=11 // pred_check
          %p166 = pneg %p62
        $region14: #{tpu_custom_call.1} parent=11 // pred_check_branch
          %168 = sbr.rel (%p166) target = $region16
        $region15: #{tpu_custom_call.1} parent=11 // pred_region
          _
        $region16: #{tpu_custom_call.1} parent=11 // pred_fallthru
          _
        // Predicated region
        $region17: #{tpu_custom_call.1} parent=11 // pred_check
          %p169 = pneg %p83
        $region18: #{tpu_custom_call.1} parent=11 // pred_check_branch
          %171 = sbr.rel (%p169) target = $region20
        $region19: #{tpu_custom_call.1} parent=11 // pred_region
          _
        $region20: #{tpu_custom_call.1} parent=11 // pred_fallthru
          _
        // Predicated region
        $region21: #{tpu_custom_call.1} parent=11 // pred_check
          %p172 = pneg %p104
        $region22: #{tpu_custom_call.1} parent=11 // pred_check_branch
          %174 = sbr.rel (%p172) target = $region24
        $region23: #{tpu_custom_call.1} parent=11 // pred_region
          %s176 = ssub.s32 9216, 9216
          %177 = vsyncadd [#allocation4], %s176
          %s178 = sshll.u32 [#allocation3], 4
          %s179 = int_to_ptr.vmem [resolvable:$true] %s178
          %184 = dma.hbm_to_vmem [thread:$0]  %s3, 9216, %s179, [#allocation4], 64, 64, 4
        $region24: #{tpu_custom_call.1} parent=11 // pred_fallthru
          _
        // Predicated region
        $region25: #{tpu_custom_call.1} parent=11 // pred_check
          %p185 = pneg %p125
        $region26: #{tpu_custom_call.1} parent=11 // pred_check_branch
          %187 = sbr.rel (%p185) target = $region28
        $region27: #{tpu_custom_call.1} parent=11 // pred_region
          _
        $region28: #{tpu_custom_call.1} parent=11 // pred_fallthru
          _
      $region12: #{tpu_custom_call.1} parent=5 // pred_fallthru
        _
      %p188 = scmp.lt.s32.totalorder %s15, 2
      // Predicated region
      $region29: #{tpu_custom_call.1} parent=5 // pred_check
        %p189 = pneg %p188
      $region30: #{tpu_custom_call.1} parent=5 // pred_check_branch
        %191 = sbr.rel (%p189) target = $region32
      $region31: #{tpu_custom_call.1} parent=5 // pred_region
        // Predicated region
        $region33: #{tpu_custom_call.1} parent=31 // pred_check
          %p192 = pneg %p35
        $region34: #{tpu_custom_call.1} parent=31 // pred_check_branch
          %194 = sbr.rel (%p192) target = $region36
        $region35: #{tpu_custom_call.1} parent=31 // pred_region
          %p195 = scmp.lt.s32.totalorder %s15, 1
          %s196 = scalar_select %p195, %s15, 1
          %s197 = smul.addr %s196, 43
          %s198 = smul.addr %s197, 4
          %s199 = scalar_lea.vmem %s0, %s198
        $region36: #{tpu_custom_call.1} parent=31 // pred_fallthru
          _
      $region32: #{tpu_custom_call.1} parent=5 // pred_fallthru
        _
      %p200 = scmp.le.s32.totalorder 1, %s15
      %p201 = scmp.lt.s32.totalorder %s15, 3
      %p202 = pnand %p200, %p201
      %p203 = pneg %p202
      // Predicated region
      $region37: #{tpu_custom_call.1} parent=5 // pred_check
        _
      $region38: #{tpu_custom_call.1} parent=5 // pred_check_branch
        %205 = sbr.rel (%p202) target = $region40
      $region39: #{tpu_custom_call.1} parent=5 // pred_region
        %s206 = ssub.s32 %s15, 1
        // Predicated region
        $region41: #{tpu_custom_call.1} parent=39 // pred_check
          %p207 = pneg %p104
        $region42: #{tpu_custom_call.1} parent=39 // pred_check_branch
          %209 = sbr.rel (%p207) target = $region44
        $region43: #{tpu_custom_call.1} parent=39 // pred_region
          %210 = dma.done [#allocation4], 9216
        $region44: #{tpu_custom_call.1} parent=39 // pred_fallthru
          _
        %p211 = scmp.lt.s32.totalorder %s20, 1
        %s212 = scalar_select %p211, %s20, 1
        %s213 = smul.addr %s212, 43
        %s214 = smul.addr %s213, 4
        %s215 = scalar_lea.vmem %s0, %s214
        %p216 = pneg %p41
        %p217 = pneg %p38
        %p218 = pneg %p62
        %p219 = pneg %p59
        %p220 = pneg %p83
        %p221 = pneg %p80
        %p222 = pneg %p104
        %p223 = pneg %p101
        %p224 = pneg %p125
        %p225 = pneg %p122
        %p226 = pneg %p151
        %p227 = pneg %p148
        %s228 = sand.u32 %s138, 1
        %s229 = scalar_lea.sflag [#allocation5], %s228
        %s230 = sand.u32 %s138, 1
        %s231 = smul.addr %s230, 144
        %s232 = scalar_lea.vmem [#allocation6], %s231
        %p233 = scmp.lt.s32.totalorder %s20, 1
        %s234 = scalar_select %p233, %s20, 1
        %s235 = smul.addr %s234, 43
        %s236 = smul.addr %s235, 4
        %s237 = scalar_lea.vmem %s0, %s236
        %v239 = vld [vmem:[%s237] sm:$0xf]
        %v240 = vld [vmem:[%s237 + $0x4] sm:$0xf]
        %v241 = vld [vmem:[%s237 + $0x8] sm:$0xf]
        %v242 = vld [vmem:[%s237 + $0xc] sm:$0xf]
        %v243 = vld [vmem:[%s237 + $0x10] sm:$0xf]
        %v244 = vld [vmem:[%s237 + $0x14] sm:$0xf]
        %v245 = vld [vmem:[%s237 + $0x18] sm:$0xf]
        %v246 = vld [vmem:[%s237 + $0x1c] sm:$0xf]
        %v247 = vld [vmem:[%s237 + $0x20] sm:$0xf]
        %v248 = vld [vmem:[%s237 + $0x24] sm:$0xf]
        %v249 = vld [vmem:[%s237 + $0x28] sm:$0xf]
        %v250 = vld [vmem:[%s237 + $0x2c] sm:$0xf]
        %v251 = vld [vmem:[%s237 + $0x30] sm:$0xf]
        %v252 = vld [vmem:[%s237 + $0x34] sm:$0xf]
        %v253 = vld [vmem:[%s237 + $0x38] sm:$0xf]
        %v254 = vld [vmem:[%s237 + $0x3c] sm:$0xf]
        %v255 = vld [vmem:[%s237 + $0x40] sm:$0xf]
        %v256 = vld [vmem:[%s237 + $0x44] sm:$0xf]
        %v257 = vld [vmem:[%s237 + $0x48] sm:$0xf]
        %v258 = vld [vmem:[%s237 + $0x4c] sm:$0xf]
        %v259 = vld [vmem:[%s237 + $0x50] sm:$0xf]
        %v260 = vld [vmem:[%s237 + $0x54] sm:$0xf]
        %v261 = vld [vmem:[%s237 + $0x58] sm:$0xf]
        %v262 = vld [vmem:[%s237 + $0x5c] sm:$0xf]
        %v263 = vld [vmem:[%s237 + $0x60] sm:$0xf]
        %v264 = vld [vmem:[%s237 + $0x64] sm:$0xf]
        %v265 = vld [vmem:[%s237 + $0x68] sm:$0xf]
        %v266 = vld [vmem:[%s237 + $0x6c] sm:$0xf]
        %v267 = vld [vmem:[%s237 + $0x70] sm:$0xf]
        %v268 = vld [vmem:[%s237 + $0x74] sm:$0xf]
        %v269 = vld [vmem:[%s237 + $0x78] sm:$0xf]
        %v270 = vld [vmem:[%s237 + $0x7c] sm:$0xf]
        %v271 = vld [vmem:[%s237 + $0x80] sm:$0xf]
        %v272 = vld [vmem:[%s237 + $0x84] sm:$0xf]
        %v273 = vld [vmem:[%s237 + $0x88] sm:$0xf]
        %v274 = vld [vmem:[%s237 + $0x8c] sm:$0xf]
        %v275 = vld [vmem:[%s237 + $0x90] sm:$0xf]
        %v276 = vld [vmem:[%s237 + $0x94] sm:$0xf]
        %v277 = vld [vmem:[%s237 + $0x98] sm:$0xf]
        %v278 = vld [vmem:[%s237 + $0x9c] sm:$0xf]
        %v279 = vld [vmem:[%s237 + $0xa0] sm:$0xf]
        %v280 = vlaneseq
        %v281 = vshrl.u32 %v280, 7
        %v282 = vadd.s32 %v281, 8
        %v283 = vadd.s32 %v281, 16
        %v284 = vadd.s32 %v281, 24
        %v285 = vadd.s32 %v281, 32
        %v286 = vadd.s32 %v281, 40
        %v287 = vadd.s32 %v281, 48
        %v288 = vadd.s32 %v281, 56
        %v289 = vadd.s32 %v281, 64
        %v290 = vadd.s32 %v281, 72
        %v291 = vadd.s32 %v281, 80
        %v292 = vadd.s32 %v281, 88
        %v293 = vadd.s32 %v281, 96
        %v294 = vadd.s32 %v281, 104
        %v295 = vadd.s32 %v281, 112
        %v296 = vadd.s32 %v281, 120
        %v297 = vadd.s32 %v281, 128
        %v298 = vadd.s32 %v281, 136
        %v299 = vadd.s32 %v281, 144
        %v300 = vadd.s32 %v281, 152
        %v301 = vadd.s32 %v281, 160
        %v302 = vadd.s32 %v281, 168
        %v303 = vadd.s32 %v281, 176
        %v304 = vadd.s32 %v281, 184
        %v305 = vadd.s32 %v281, 192
        %v306 = vadd.s32 %v281, 200
        %v307 = vadd.s32 %v281, 208
        %v308 = vadd.s32 %v281, 216
        %v309 = vadd.s32 %v281, 224
        %v310 = vadd.s32 %v281, 232
        %v311 = vadd.s32 %v281, 240
        %v312 = vadd.s32 %v281, 248
        %v313 = vadd.s32 %v281, 256
        %v314 = vadd.s32 %v281, 264
        %v315 = vadd.s32 %v281, 272
        %v316 = vadd.s32 %v281, 280
        %vm317 = vcmp.lt.s32.totalorder %v281, 0
        %v318 = vsub.s32 0, %v281
        %v319 = vsel %vm317, %v318, %v281
        %v320 = vmul.u32.u64.compose %v319, 3817748708
        %v321 = vextract.low.u32 %v320
        %v322 = vextract.high.u32 %v320
        %v323 = vshrl.u32 %v322, 4
        %v324 = vmul.u32 %v323, 18
        %v325 = vsub.s32 %v319, %v324
        %v326 = vsub.s32 0, %v325
        %v327 = vsel %vm317, %v326, %v325
        %vm328 = vcmp.lt.s32.totalorder %v282, 0
        %v329 = vsub.s32 0, %v282
        %v330 = vsel %vm328, %v329, %v282
        %v331 = vmul.u32.u64.compose %v330, 3817748708
        %v332 = vextract.low.u32 %v331
        %v333 = vextract.high.u32 %v331
        %v334 = vshrl.u32 %v333, 4
        %v335 = vmul.u32 %v334, 18
        %v336 = vsub.s32 %v330, %v335
        %v337 = vsub.s32 0, %v336
        %v338 = vsel %vm328, %v337, %v336
        %vm339 = vcmp.lt.s32.totalorder %v283, 0
        %v340 = vsub.s32 0, %v283
        %v341 = vsel %vm339, %v340, %v283
        %v342 = vmul.u32.u64.compose %v341, 3817748708
        %v343 = vextract.low.u32 %v342
        %v344 = vextract.high.u32 %v342
        %v345 = vshrl.u32 %v344, 4
        %v346 = vmul.u32 %v345, 18
        %v347 = vsub.s32 %v341, %v346
        %v348 = vsub.s32 0, %v347
        %v349 = vsel %vm339, %v348, %v347
        %vm350 = vcmp.lt.s32.totalorder %v284, 0
        %v351 = vsub.s32 0, %v284
        %v352 = vsel %vm350, %v351, %v284
        %v353 = vmul.u32.u64.compose %v352, 3817748708
        %v354 = vextract.low.u32 %v353
        %v355 = vextract.high.u32 %v353
        %v356 = vshrl.u32 %v355, 4
        %v357 = vmul.u32 %v356, 18
        %v358 = vsub.s32 %v352, %v357
        %v359 = vsub.s32 0, %v358
        %v360 = vsel %vm350, %v359, %v358
        %vm361 = vcmp.lt.s32.totalorder %v285, 0
        %v362 = vsub.s32 0, %v285
        %v363 = vsel %vm361, %v362, %v285
        %v364 = vmul.u32.u64.compose %v363, 3817748708
        %v365 = vextract.low.u32 %v364
        %v366 = vextract.high.u32 %v364
        %v367 = vshrl.u32 %v366, 4
        %v368 = vmul.u32 %v367, 18
        %v369 = vsub.s32 %v363, %v368
        %v370 = vsub.s32 0, %v369
        %v371 = vsel %vm361, %v370, %v369
        %vm372 = vcmp.lt.s32.totalorder %v286, 0
        %v373 = vsub.s32 0, %v286
        %v374 = vsel %vm372, %v373, %v286
        %v375 = vmul.u32.u64.compose %v374, 3817748708
        %v376 = vextract.low.u32 %v375
        %v377 = vextract.high.u32 %v375
        %v378 = vshrl.u32 %v377, 4
        %v379 = vmul.u32 %v378, 18
        %v380 = vsub.s32 %v374, %v379
        %v381 = vsub.s32 0, %v380
        %v382 = vsel %vm372, %v381, %v380
        %vm383 = vcmp.lt.s32.totalorder %v287, 0
        %v384 = vsub.s32 0, %v287
        %v385 = vsel %vm383, %v384, %v287
        %v386 = vmul.u32.u64.compose %v385, 3817748708
        %v387 = vextract.low.u32 %v386
        %v388 = vextract.high.u32 %v386
        %v389 = vshrl.u32 %v388, 4
        %v390 = vmul.u32 %v389, 18
        %v391 = vsub.s32 %v385, %v390
        %v392 = vsub.s32 0, %v391
        %v393 = vsel %vm383, %v392, %v391
        %vm394 = vcmp.lt.s32.totalorder %v288, 0
        %v395 = vsub.s32 0, %v288
        %v396 = vsel %vm394, %v395, %v288
        %v397 = vmul.u32.u64.compose %v396, 3817748708
        %v398 = vextract.low.u32 %v397
        %v399 = vextract.high.u32 %v397
        %v400 = vshrl.u32 %v399, 4
        %v401 = vmul.u32 %v400, 18
        %v402 = vsub.s32 %v396, %v401
        %v403 = vsub.s32 0, %v402
        %v404 = vsel %vm394, %v403, %v402
        %vm405 = vcmp.lt.s32.totalorder %v289, 0
        %v406 = vsub.s32 0, %v289
        %v407 = vsel %vm405, %v406, %v289
        %v408 = vmul.u32.u64.compose %v407, 3817748708
        %v409 = vextract.low.u32 %v408
        %v410 = vextract.high.u32 %v408
        %v411 = vshrl.u32 %v410, 4
        %v412 = vmul.u32 %v411, 18
        %v413 = vsub.s32 %v407, %v412
        %v414 = vsub.s32 0, %v413
        %v415 = vsel %vm405, %v414, %v413
        %vm416 = vcmp.lt.s32.totalorder %v290, 0
        %v417 = vsub.s32 0, %v290
        %v418 = vsel %vm416, %v417, %v290
        %v419 = vmul.u32.u64.compose %v418, 3817748708
        %v420 = vextract.low.u32 %v419
        %v421 = vextract.high.u32 %v419
        %v422 = vshrl.u32 %v421, 4
        %v423 = vmul.u32 %v422, 18
        %v424 = vsub.s32 %v418, %v423
        %v425 = vsub.s32 0, %v424
        %v426 = vsel %vm416, %v425, %v424
        %vm427 = vcmp.lt.s32.totalorder %v291, 0
        %v428 = vsub.s32 0, %v291
        %v429 = vsel %vm427, %v428, %v291
        %v430 = vmul.u32.u64.compose %v429, 3817748708
        %v431 = vextract.low.u32 %v430
        %v432 = vextract.high.u32 %v430
        %v433 = vshrl.u32 %v432, 4
        %v434 = vmul.u32 %v433, 18
        %v435 = vsub.s32 %v429, %v434
        %v436 = vsub.s32 0, %v435
        %v437 = vsel %vm427, %v436, %v435
        %vm438 = vcmp.lt.s32.totalorder %v292, 0
        %v439 = vsub.s32 0, %v292
        %v440 = vsel %vm438, %v439, %v292
        %v441 = vmul.u32.u64.compose %v440, 3817748708
        %v442 = vextract.low.u32 %v441
        %v443 = vextract.high.u32 %v441
        %v444 = vshrl.u32 %v443, 4
        %v445 = vmul.u32 %v444, 18
        %v446 = vsub.s32 %v440, %v445
        %v447 = vsub.s32 0, %v446
        %v448 = vsel %vm438, %v447, %v446
        %vm449 = vcmp.lt.s32.totalorder %v293, 0
        %v450 = vsub.s32 0, %v293
        %v451 = vsel %vm449, %v450, %v293
        %v452 = vmul.u32.u64.compose %v451, 3817748708
        %v453 = vextract.low.u32 %v452
        %v454 = vextract.high.u32 %v452
        %v455 = vshrl.u32 %v454, 4
        %v456 = vmul.u32 %v455, 18
        %v457 = vsub.s32 %v451, %v456
        %v458 = vsub.s32 0, %v457
        %v459 = vsel %vm449, %v458, %v457
        %vm460 = vcmp.lt.s32.totalorder %v294, 0
        %v461 = vsub.s32 0, %v294
        %v462 = vsel %vm460, %v461, %v294
        %v463 = vmul.u32.u64.compose %v462, 3817748708
        %v464 = vextract.low.u32 %v463
        %v465 = vextract.high.u32 %v463
        %v466 = vshrl.u32 %v465, 4
        %v467 = vmul.u32 %v466, 18
        %v468 = vsub.s32 %v462, %v467
        %v469 = vsub.s32 0, %v468
        %v470 = vsel %vm460, %v469, %v468
        %vm471 = vcmp.lt.s32.totalorder %v295, 0
        %v472 = vsub.s32 0, %v295
        %v473 = vsel %vm471, %v472, %v295
        %v474 = vmul.u32.u64.compose %v473, 3817748708
        %v475 = vextract.low.u32 %v474
        %v476 = vextract.high.u32 %v474
        %v477 = vshrl.u32 %v476, 4
        %v478 = vmul.u32 %v477, 18
        %v479 = vsub.s32 %v473, %v478
        %v480 = vsub.s32 0, %v479
        %v481 = vsel %vm471, %v480, %v479
        %vm482 = vcmp.lt.s32.totalorder %v296, 0
        %v483 = vsub.s32 0, %v296
        %v484 = vsel %vm482, %v483, %v296
        %v485 = vmul.u32.u64.compose %v484, 3817748708
        %v486 = vextract.low.u32 %v485
        %v487 = vextract.high.u32 %v485
        %v488 = vshrl.u32 %v487, 4
        %v489 = vmul.u32 %v488, 18
        %v490 = vsub.s32 %v484, %v489
        %v491 = vsub.s32 0, %v490
        %v492 = vsel %vm482, %v491, %v490
        %vm493 = vcmp.lt.s32.totalorder %v297, 0
        %v494 = vsub.s32 0, %v297
        %v495 = vsel %vm493, %v494, %v297
        %v496 = vmul.u32.u64.compose %v495, 3817748708
        %v497 = vextract.low.u32 %v496
        %v498 = vextract.high.u32 %v496
        %v499 = vshrl.u32 %v498, 4
        %v500 = vmul.u32 %v499, 18
        %v501 = vsub.s32 %v495, %v500
        %v502 = vsub.s32 0, %v501
        %v503 = vsel %vm493, %v502, %v501
        %vm504 = vcmp.lt.s32.totalorder %v298, 0
        %v505 = vsub.s32 0, %v298
        %v506 = vsel %vm504, %v505, %v298
        %v507 = vmul.u32.u64.compose %v506, 3817748708
        %v508 = vextract.low.u32 %v507
        %v509 = vextract.high.u32 %v507
        %v510 = vshrl.u32 %v509, 4
        %v511 = vmul.u32 %v510, 18
        %v512 = vsub.s32 %v506, %v511
        %v513 = vsub.s32 0, %v512
        %v514 = vsel %vm504, %v513, %v512
        %vm515 = vcmp.lt.s32.totalorder %v299, 0
        %v516 = vsub.s32 0, %v299
        %v517 = vsel %vm515, %v516, %v299
        %v518 = vmul.u32.u64.compose %v517, 3817748708
        %v519 = vextract.low.u32 %v518
        %v520 = vextract.high.u32 %v518
        %v521 = vshrl.u32 %v520, 4
        %v522 = vmul.u32 %v521, 18
        %v523 = vsub.s32 %v517, %v522
        %v524 = vsub.s32 0, %v523
        %v525 = vsel %vm515, %v524, %v523
        %vm526 = vcmp.lt.s32.totalorder %v300, 0
        %v527 = vsub.s32 0, %v300
        %v528 = vsel %vm526, %v527, %v300
        %v529 = vmul.u32.u64.compose %v528, 3817748708
        %v530 = vextract.low.u32 %v529
        %v531 = vextract.high.u32 %v529
        %v532 = vshrl.u32 %v531, 4
        %v533 = vmul.u32 %v532, 18
        %v534 = vsub.s32 %v528, %v533
        %v535 = vsub.s32 0, %v534
        %v536 = vsel %vm526, %v535, %v534
        %vm537 = vcmp.lt.s32.totalorder %v301, 0
        %v538 = vsub.s32 0, %v301
        %v539 = vsel %vm537, %v538, %v301
        %v540 = vmul.u32.u64.compose %v539, 3817748708
        %v541 = vextract.low.u32 %v540
        %v542 = vextract.high.u32 %v540
        %v543 = vshrl.u32 %v542, 4
        %v544 = vmul.u32 %v543, 18
        %v545 = vsub.s32 %v539, %v544
        %v546 = vsub.s32 0, %v545
        %v547 = vsel %vm537, %v546, %v545
        %vm548 = vcmp.lt.s32.totalorder %v302, 0
        %v549 = vsub.s32 0, %v302
        %v550 = vsel %vm548, %v549, %v302
        %v551 = vmul.u32.u64.compose %v550, 3817748708
        %v552 = vextract.low.u32 %v551
        %v553 = vextract.high.u32 %v551
        %v554 = vshrl.u32 %v553, 4
        %v555 = vmul.u32 %v554, 18
        %v556 = vsub.s32 %v550, %v555
        %v557 = vsub.s32 0, %v556
        %v558 = vsel %vm548, %v557, %v556
        %vm559 = vcmp.lt.s32.totalorder %v303, 0
        %v560 = vsub.s32 0, %v303
        %v561 = vsel %vm559, %v560, %v303
        %v562 = vmul.u32.u64.compose %v561, 3817748708
        %v563 = vextract.low.u32 %v562
        %v564 = vextract.high.u32 %v562
        %v565 = vshrl.u32 %v564, 4
        %v566 = vmul.u32 %v565, 18
        %v567 = vsub.s32 %v561, %v566
        %v568 = vsub.s32 0, %v567
        %v569 = vsel %vm559, %v568, %v567
        %vm570 = vcmp.lt.s32.totalorder %v304, 0
        %v571 = vsub.s32 0, %v304
        %v572 = vsel %vm570, %v571, %v304
        %v573 = vmul.u32.u64.compose %v572, 3817748708
        %v574 = vextract.low.u32 %v573
        %v575 = vextract.high.u32 %v573
        %v576 = vshrl.u32 %v575, 4
        %v577 = vmul.u32 %v576, 18
        %v578 = vsub.s32 %v572, %v577
        %v579 = vsub.s32 0, %v578
        %v580 = vsel %vm570, %v579, %v578
        %vm581 = vcmp.lt.s32.totalorder %v305, 0
        %v582 = vsub.s32 0, %v305
        %v583 = vsel %vm581, %v582, %v305
        %v584 = vmul.u32.u64.compose %v583, 3817748708
        %v585 = vextract.low.u32 %v584
        %v586 = vextract.high.u32 %v584
        %v587 = vshrl.u32 %v586, 4
        %v588 = vmul.u32 %v587, 18
        %v589 = vsub.s32 %v583, %v588
        %v590 = vsub.s32 0, %v589
        %v591 = vsel %vm581, %v590, %v589
        %vm592 = vcmp.lt.s32.totalorder %v306, 0
        %v593 = vsub.s32 0, %v306
        %v594 = vsel %vm592, %v593, %v306
        %v595 = vmul.u32.u64.compose %v594, 3817748708
        %v596 = vextract.low.u32 %v595
        %v597 = vextract.high.u32 %v595
        %v598 = vshrl.u32 %v597, 4
        %v599 = vmul.u32 %v598, 18
        %v600 = vsub.s32 %v594, %v599
        %v601 = vsub.s32 0, %v600
        %v602 = vsel %vm592, %v601, %v600
        %vm603 = vcmp.lt.s32.totalorder %v307, 0
        %v604 = vsub.s32 0, %v307
        %v605 = vsel %vm603, %v604, %v307
        %v606 = vmul.u32.u64.compose %v605, 3817748708
        %v607 = vextract.low.u32 %v606
        %v608 = vextract.high.u32 %v606
        %v609 = vshrl.u32 %v608, 4
        %v610 = vmul.u32 %v609, 18
        %v611 = vsub.s32 %v605, %v610
        %v612 = vsub.s32 0, %v611
        %v613 = vsel %vm603, %v612, %v611
        %vm614 = vcmp.lt.s32.totalorder %v308, 0
        %v615 = vsub.s32 0, %v308
        %v616 = vsel %vm614, %v615, %v308
        %v617 = vmul.u32.u64.compose %v616, 3817748708
        %v618 = vextract.low.u32 %v617
        %v619 = vextract.high.u32 %v617
        %v620 = vshrl.u32 %v619, 4
        %v621 = vmul.u32 %v620, 18
        %v622 = vsub.s32 %v616, %v621
        %v623 = vsub.s32 0, %v622
        %v624 = vsel %vm614, %v623, %v622
        %vm625 = vcmp.lt.s32.totalorder %v309, 0
        %v626 = vsub.s32 0, %v309
        %v627 = vsel %vm625, %v626, %v309
        %v628 = vmul.u32.u64.compose %v627, 3817748708
        %v629 = vextract.low.u32 %v628
        %v630 = vextract.high.u32 %v628
        %v631 = vshrl.u32 %v630, 4
        %v632 = vmul.u32 %v631, 18
        %v633 = vsub.s32 %v627, %v632
        %v634 = vsub.s32 0, %v633
        %v635 = vsel %vm625, %v634, %v633
        %vm636 = vcmp.lt.s32.totalorder %v310, 0
        %v637 = vsub.s32 0, %v310
        %v638 = vsel %vm636, %v637, %v310
        %v639 = vmul.u32.u64.compose %v638, 3817748708
        %v640 = vextract.low.u32 %v639
        %v641 = vextract.high.u32 %v639
        %v642 = vshrl.u32 %v641, 4
        %v643 = vmul.u32 %v642, 18
        %v644 = vsub.s32 %v638, %v643
        %v645 = vsub.s32 0, %v644
        %v646 = vsel %vm636, %v645, %v644
        %vm647 = vcmp.lt.s32.totalorder %v311, 0
        %v648 = vsub.s32 0, %v311
        %v649 = vsel %vm647, %v648, %v311
        %v650 = vmul.u32.u64.compose %v649, 3817748708
        %v651 = vextract.low.u32 %v650
        %v652 = vextract.high.u32 %v650
        %v653 = vshrl.u32 %v652, 4
        %v654 = vmul.u32 %v653, 18
        %v655 = vsub.s32 %v649, %v654
        %v656 = vsub.s32 0, %v655
        %v657 = vsel %vm647, %v656, %v655
        %vm658 = vcmp.lt.s32.totalorder %v312, 0
        %v659 = vsub.s32 0, %v312
        %v660 = vsel %vm658, %v659, %v312
        %v661 = vmul.u32.u64.compose %v660, 3817748708
        %v662 = vextract.low.u32 %v661
        %v663 = vextract.high.u32 %v661
        %v664 = vshrl.u32 %v663, 4
        %v665 = vmul.u32 %v664, 18
        %v666 = vsub.s32 %v660, %v665
        %v667 = vsub.s32 0, %v666
        %v668 = vsel %vm658, %v667, %v666
        %vm669 = vcmp.lt.s32.totalorder %v313, 0
        %v670 = vsub.s32 0, %v313
        %v671 = vsel %vm669, %v670, %v313
        %v672 = vmul.u32.u64.compose %v671, 3817748708
        %v673 = vextract.low.u32 %v672
        %v674 = vextract.high.u32 %v672
        %v675 = vshrl.u32 %v674, 4
        %v676 = vmul.u32 %v675, 18
        %v677 = vsub.s32 %v671, %v676
        %v678 = vsub.s32 0, %v677
        %v679 = vsel %vm669, %v678, %v677
        %vm680 = vcmp.lt.s32.totalorder %v314, 0
        %v681 = vsub.s32 0, %v314
        %v682 = vsel %vm680, %v681, %v314
        %v683 = vmul.u32.u64.compose %v682, 3817748708
        %v684 = vextract.low.u32 %v683
        %v685 = vextract.high.u32 %v683
        %v686 = vshrl.u32 %v685, 4
        %v687 = vmul.u32 %v686, 18
        %v688 = vsub.s32 %v682, %v687
        %v689 = vsub.s32 0, %v688
        %v690 = vsel %vm680, %v689, %v688
        %vm691 = vcmp.lt.s32.totalorder %v315, 0
        %v692 = vsub.s32 0, %v315
        %v693 = vsel %vm691, %v692, %v315
        %v694 = vmul.u32.u64.compose %v693, 3817748708
        %v695 = vextract.low.u32 %v694
        %v696 = vextract.high.u32 %v694
        %v697 = vshrl.u32 %v696, 4
        %v698 = vmul.u32 %v697, 18
        %v699 = vsub.s32 %v693, %v698
        %v700 = vsub.s32 0, %v699
        %v701 = vsel %vm691, %v700, %v699
        %vm702 = vcmp.lt.s32.totalorder %v316, 0
        %v703 = vsub.s32 0, %v316
        %v704 = vsel %vm702, %v703, %v316
        %v705 = vmul.u32.u64.compose %v704, 3817748708
        %v706 = vextract.low.u32 %v705
        %v707 = vextract.high.u32 %v705
        %v708 = vshrl.u32 %v707, 4
        %v709 = vmul.u32 %v708, 18
        %v710 = vsub.s32 %v704, %v709
        %v711 = vsub.s32 0, %v710
        %v712 = vsel %vm702, %v711, %v710
        %vm713 = vcmp.ne.s32.totalorder %v327, 0
        %vm714 = vcmp.ne.s32.totalorder %v338, 0
        %vm715 = vcmp.ne.s32.totalorder %v349, 0
        %vm716 = vcmp.ne.s32.totalorder %v360, 0
        %vm717 = vcmp.ne.s32.totalorder %v371, 0
        %vm718 = vcmp.ne.s32.totalorder %v382, 0
        %vm719 = vcmp.ne.s32.totalorder %v393, 0
        %vm720 = vcmp.ne.s32.totalorder %v404, 0
        %vm721 = vcmp.ne.s32.totalorder %v415, 0
        %vm722 = vcmp.ne.s32.totalorder %v426, 0
        %vm723 = vcmp.ne.s32.totalorder %v437, 0
        %vm724 = vcmp.ne.s32.totalorder %v448, 0
        %vm725 = vcmp.ne.s32.totalorder %v459, 0
        %vm726 = vcmp.ne.s32.totalorder %v470, 0
        %vm727 = vcmp.ne.s32.totalorder %v481, 0
        %vm728 = vcmp.ne.s32.totalorder %v492, 0
        %vm729 = vcmp.ne.s32.totalorder %v503, 0
        %vm730 = vcmp.ne.s32.totalorder %v514, 0
        %vm731 = vcmp.ne.s32.totalorder %v525, 0
        %vm732 = vcmp.ne.s32.totalorder %v536, 0
        %vm733 = vcmp.ne.s32.totalorder %v547, 0
        %vm734 = vcmp.ne.s32.totalorder %v558, 0
        %vm735 = vcmp.ne.s32.totalorder %v569, 0
        %vm736 = vcmp.ne.s32.totalorder %v580, 0
        %vm737 = vcmp.ne.s32.totalorder %v591, 0
        %vm738 = vcmp.ne.s32.totalorder %v602, 0
        %vm739 = vcmp.ne.s32.totalorder %v613, 0
        %vm740 = vcmp.ne.s32.totalorder %v624, 0
        %vm741 = vcmp.ne.s32.totalorder %v635, 0
        %vm742 = vcmp.ne.s32.totalorder %v646, 0
        %vm743 = vcmp.ne.s32.totalorder %v657, 0
        %vm744 = vcmp.ne.s32.totalorder %v668, 0
        %vm745 = vcmp.ne.s32.totalorder %v679, 0
        %vm746 = vcmp.ne.s32.totalorder %v690, 0
        %vm747 = vcmp.ne.s32.totalorder %v701, 0
        %vm748 = vcmp.ne.s32.totalorder %v712, 0
        %vm749 = vcmp.lt.s32.totalorder %v327, 0
        %vm750 = vcmp.lt.s32.totalorder %v338, 0
        %vm751 = vcmp.lt.s32.totalorder %v349, 0
        %vm752 = vcmp.lt.s32.totalorder %v360, 0
        %vm753 = vcmp.lt.s32.totalorder %v371, 0
        %vm754 = vcmp.lt.s32.totalorder %v382, 0
        %vm755 = vcmp.lt.s32.totalorder %v393, 0
        %vm756 = vcmp.lt.s32.totalorder %v404, 0
        %vm757 = vcmp.lt.s32.totalorder %v415, 0
        %vm758 = vcmp.lt.s32.totalorder %v426, 0
        %vm759 = vcmp.lt.s32.totalorder %v437, 0
        %vm760 = vcmp.lt.s32.totalorder %v448, 0
        %vm761 = vcmp.lt.s32.totalorder %v459, 0
        %vm762 = vcmp.lt.s32.totalorder %v470, 0
        %vm763 = vcmp.lt.s32.totalorder %v481, 0
        %vm764 = vcmp.lt.s32.totalorder %v492, 0
        %vm765 = vcmp.lt.s32.totalorder %v503, 0
        %vm766 = vcmp.lt.s32.totalorder %v514, 0
        %vm767 = vcmp.lt.s32.totalorder %v525, 0
        %vm768 = vcmp.lt.s32.totalorder %v536, 0
        %vm769 = vcmp.lt.s32.totalorder %v547, 0
        %vm770 = vcmp.lt.s32.totalorder %v558, 0
        %vm771 = vcmp.lt.s32.totalorder %v569, 0
        %vm772 = vcmp.lt.s32.totalorder %v580, 0
        %vm773 = vcmp.lt.s32.totalorder %v591, 0
        %vm774 = vcmp.lt.s32.totalorder %v602, 0
        %vm775 = vcmp.lt.s32.totalorder %v613, 0
        %vm776 = vcmp.lt.s32.totalorder %v624, 0
        %vm777 = vcmp.lt.s32.totalorder %v635, 0
        %vm778 = vcmp.lt.s32.totalorder %v646, 0
        %vm779 = vcmp.lt.s32.totalorder %v657, 0
        %vm780 = vcmp.lt.s32.totalorder %v668, 0
        %vm781 = vcmp.lt.s32.totalorder %v679, 0
        %vm782 = vcmp.lt.s32.totalorder %v690, 0
        %vm783 = vcmp.lt.s32.totalorder %v701, 0
        %vm784 = vcmp.lt.s32.totalorder %v712, 0
        %vm785 = vmand %vm749, %vm713
        %vm786 = vmand %vm750, %vm714
        %vm787 = vmand %vm751, %vm715
        %vm788 = vmand %vm752, %vm716
        %vm789 = vmand %vm753, %vm717
        %vm790 = vmand %vm754, %vm718
        %vm791 = vmand %vm755, %vm719
        %vm792 = vmand %vm756, %vm720
        %vm793 = vmand %vm757, %vm721
        %vm794 = vmand %vm758, %vm722
        %vm795 = vmand %vm759, %vm723
        %vm796 = vmand %vm760, %vm724
        %vm797 = vmand %vm761, %vm725
        %vm798 = vmand %vm762, %vm726
        %vm799 = vmand %vm763, %vm727
        %vm800 = vmand %vm764, %vm728
        %vm801 = vmand %vm765, %vm729
        %vm802 = vmand %vm766, %vm730
        %vm803 = vmand %vm767, %vm731
        %vm804 = vmand %vm768, %vm732
        %vm805 = vmand %vm769, %vm733
        %vm806 = vmand %vm770, %vm734
        %vm807 = vmand %vm771, %vm735
        %vm808 = vmand %vm772, %vm736
        %vm809 = vmand %vm773, %vm737
        %vm810 = vmand %vm774, %vm738
        %vm811 = vmand %vm775, %vm739
        %vm812 = vmand %vm776, %vm740
        %vm813 = vmand %vm777, %vm741
        %vm814 = vmand %vm778, %vm742
        %vm815 = vmand %vm779, %vm743
        %vm816 = vmand %vm780, %vm744
        %vm817 = vmand %vm781, %vm745
        %vm818 = vmand %vm782, %vm746
        %vm819 = vmand %vm783, %vm747
        %vm820 = vmand %vm784, %vm748
        %v821 = vadd.s32 %v327, 18
        %v822 = vadd.s32 %v338, 18
        %v823 = vadd.s32 %v349, 18
        %v824 = vadd.s32 %v360, 18
        %v825 = vadd.s32 %v371, 18
        %v826 = vadd.s32 %v382, 18
        %v827 = vadd.s32 %v393, 18
        %v828 = vadd.s32 %v404, 18
        %v829 = vadd.s32 %v415, 18
        %v830 = vadd.s32 %v426, 18
        %v831 = vadd.s32 %v437, 18
        %v832 = vadd.s32 %v448, 18
        %v833 = vadd.s32 %v459, 18
        %v834 = vadd.s32 %v470, 18
        %v835 = vadd.s32 %v481, 18
        %v836 = vadd.s32 %v492, 18
        %v837 = vadd.s32 %v503, 18
        %v838 = vadd.s32 %v514, 18
        %v839 = vadd.s32 %v525, 18
        %v840 = vadd.s32 %v536, 18
        %v841 = vadd.s32 %v547, 18
        %v842 = vadd.s32 %v558, 18
        %v843 = vadd.s32 %v569, 18
        %v844 = vadd.s32 %v580, 18
        %v845 = vadd.s32 %v591, 18
        %v846 = vadd.s32 %v602, 18
        %v847 = vadd.s32 %v613, 18
        %v848 = vadd.s32 %v624, 18
        %v849 = vadd.s32 %v635, 18
        %v850 = vadd.s32 %v646, 18
        %v851 = vadd.s32 %v657, 18
        %v852 = vadd.s32 %v668, 18
        %v853 = vadd.s32 %v679, 18
        %v854 = vadd.s32 %v690, 18
        %v855 = vadd.s32 %v701, 18
        %v856 = vadd.s32 %v712, 18
        %v857 = vsel %vm785, %v821, %v327
        %v858 = vsel %vm786, %v822, %v338
        %v859 = vsel %vm787, %v823, %v349
        %v860 = vsel %vm788, %v824, %v360
        %v861 = vsel %vm789, %v825, %v371
        %v862 = vsel %vm790, %v826, %v382
        %v863 = vsel %vm791, %v827, %v393
        %v864 = vsel %vm792, %v828, %v404
        %v865 = vsel %vm793, %v829, %v415
        %v866 = vsel %vm794, %v830, %v426
        %v867 = vsel %vm795, %v831, %v437
        %v868 = vsel %vm796, %v832, %v448
        %v869 = vsel %vm797, %v833, %v459
        %v870 = vsel %vm798, %v834, %v470
        %v871 = vsel %vm799, %v835, %v481
        %v872 = vsel %vm800, %v836, %v492
        %v873 = vsel %vm801, %v837, %v503
        %v874 = vsel %vm802, %v838, %v514
        %v875 = vsel %vm803, %v839, %v525
        %v876 = vsel %vm804, %v840, %v536
        %v877 = vsel %vm805, %v841, %v547
        %v878 = vsel %vm806, %v842, %v558
        %v879 = vsel %vm807, %v843, %v569
        %v880 = vsel %vm808, %v844, %v580
        %v881 = vsel %vm809, %v845, %v591
        %v882 = vsel %vm810, %v846, %v602
        %v883 = vsel %vm811, %v847, %v613
        %v884 = vsel %vm812, %v848, %v624
        %v885 = vsel %vm813, %v849, %v635
        %v886 = vsel %vm814, %v850, %v646
        %v887 = vsel %vm815, %v851, %v657
        %v888 = vsel %vm816, %v852, %v668
        %v889 = vsel %vm817, %v853, %v679
        %v890 = vsel %vm818, %v854, %v690
        %v891 = vsel %vm819, %v855, %v701
        %v892 = vsel %vm820, %v856, %v712
        %vm893 = vcmp.lt.s32.totalorder %v857, 16
        %vm894 = vcmp.lt.s32.totalorder %v858, 16
        %vm895 = vcmp.lt.s32.totalorder %v859, 16
        %vm896 = vcmp.lt.s32.totalorder %v860, 16
        %vm897 = vcmp.lt.s32.totalorder %v861, 16
        %vm898 = vcmp.lt.s32.totalorder %v862, 16
        %vm899 = vcmp.lt.s32.totalorder %v863, 16
        %vm900 = vcmp.lt.s32.totalorder %v864, 16
        %vm901 = vcmp.lt.s32.totalorder %v865, 16
        %vm902 = vcmp.lt.s32.totalorder %v866, 16
        %vm903 = vcmp.lt.s32.totalorder %v867, 16
        %vm904 = vcmp.lt.s32.totalorder %v868, 16
        %vm905 = vcmp.lt.s32.totalorder %v869, 16
        %vm906 = vcmp.lt.s32.totalorder %v870, 16
        %vm907 = vcmp.lt.s32.totalorder %v871, 16
        %vm908 = vcmp.lt.s32.totalorder %v872, 16
        %vm909 = vcmp.lt.s32.totalorder %v873, 16
        %vm910 = vcmp.lt.s32.totalorder %v874, 16
        %vm911 = vcmp.lt.s32.totalorder %v875, 16
        %vm912 = vcmp.lt.s32.totalorder %v876, 16
        %vm913 = vcmp.lt.s32.totalorder %v877, 16
        %vm914 = vcmp.lt.s32.totalorder %v878, 16
        %vm915 = vcmp.lt.s32.totalorder %v879, 16
        %vm916 = vcmp.lt.s32.totalorder %v880, 16
        %vm917 = vcmp.lt.s32.totalorder %v881, 16
        %vm918 = vcmp.lt.s32.totalorder %v882, 16
        %vm919 = vcmp.lt.s32.totalorder %v883, 16
        %vm920 = vcmp.lt.s32.totalorder %v884, 16
        %vm921 = vcmp.lt.s32.totalorder %v885, 16
        %vm922 = vcmp.lt.s32.totalorder %v886, 16
        %vm923 = vcmp.lt.s32.totalorder %v887, 16
        %vm924 = vcmp.lt.s32.totalorder %v888, 16
        %vm925 = vcmp.lt.s32.totalorder %v889, 16
        %vm926 = vcmp.lt.s32.totalorder %v890, 16
        %vm927 = vcmp.lt.s32.totalorder %v891, 16
        %vm928 = vcmp.lt.s32.totalorder %v892, 16
        %v929 = vld [vmem:[%s1] sm:$0xf]
        %v930 = vld [vmem:[%s1 + $0x4] sm:$0xf]
        %v931 = vld [vmem:[%s1 + $0x8] sm:$0xf]
        %v932 = vld [vmem:[%s1 + $0xc] sm:$0xf]
        %v933 = vld [vmem:[%s1 + $0x10] sm:$0xf]
        %v934 = vld [vmem:[%s1 + $0x14] sm:$0xf]
        %v935 = vld [vmem:[%s1 + $0x18] sm:$0xf]
        %v936 = vld [vmem:[%s1 + $0x1c] sm:$0xf]
        %v937 = vld [vmem:[%s1 + $0x20] sm:$0xf]
        %v938 = vld [vmem:[%s1 + $0x24] sm:$0xf]
        %v939 = vld [vmem:[%s1 + $0x28] sm:$0xf]
        %v940 = vld [vmem:[%s1 + $0x2c] sm:$0xf]
        %v941 = vld [vmem:[%s1 + $0x30] sm:$0xf]
        %v942 = vld [vmem:[%s1 + $0x34] sm:$0xf]
        %v943 = vld [vmem:[%s1 + $0x38] sm:$0xf]
        %v944 = vld [vmem:[%s1 + $0x3c] sm:$0xf]
        %v945 = vld [vmem:[%s1 + $0x40] sm:$0xf]
        %v946 = vld [vmem:[%s1 + $0x44] sm:$0xf]
        %v947 = vld [vmem:[%s1 + $0x48] sm:$0xf]
        %v948 = vld [vmem:[%s1 + $0x4c] sm:$0xf]
        %v949 = vld [vmem:[%s1 + $0x50] sm:$0xf]
        %v950 = vld [vmem:[%s1 + $0x54] sm:$0xf]
        %v951 = vld [vmem:[%s1 + $0x58] sm:$0xf]
        %v952 = vld [vmem:[%s1 + $0x5c] sm:$0xf]
        %v953 = vld [vmem:[%s1 + $0x60] sm:$0xf]
        %v954 = vld [vmem:[%s1 + $0x64] sm:$0xf]
        %v955 = vld [vmem:[%s1 + $0x68] sm:$0xf]
        %v956 = vld [vmem:[%s1 + $0x6c] sm:$0xf]
        %v957 = vld [vmem:[%s1 + $0x70] sm:$0xf]
        %v958 = vld [vmem:[%s1 + $0x74] sm:$0xf]
        %v959 = vld [vmem:[%s1 + $0x78] sm:$0xf]
        %v960 = vld [vmem:[%s1 + $0x7c] sm:$0xf]
        %v998 = vunpack.c.l.b16 %v239
        %v999 = vunpack.c.l.b16 %v240
        %v1000 = vunpack.c.l.b16 %v241
        %v1001 = vunpack.c.l.b16 %v242
        %v1002 = vunpack.c.l.b16 %v243
        %v1003 = vunpack.c.l.b16 %v244
        %v1004 = vunpack.c.l.b16 %v245
        %v1005 = vunpack.c.l.b16 %v246
        %v1006 = vunpack.c.l.b16 %v247
        %v1007 = vunpack.c.l.b16 %v248
        %v1008 = vunpack.c.l.b16 %v249
        %v1009 = vunpack.c.l.b16 %v250
        %v1010 = vunpack.c.l.b16 %v251
        %v1011 = vunpack.c.l.b16 %v252
        %v1012 = vunpack.c.l.b16 %v253
        %v1013 = vunpack.c.l.b16 %v254
        %v1014 = vunpack.c.l.b16 %v255
        %v1015 = vunpack.c.l.b16 %v256
        %v1016 = vunpack.c.l.b16 %v257
        %v1017 = vunpack.c.l.b16 %v258
        %v1018 = vunpack.c.l.b16 %v259
        %v1019 = vunpack.c.l.b16 %v260
        %v1020 = vunpack.c.l.b16 %v261
        %v1021 = vunpack.c.l.b16 %v262
        %v1022 = vunpack.c.l.b16 %v263
        %v1023 = vunpack.c.l.b16 %v264
        %v1024 = vunpack.c.l.b16 %v265
        %v1025 = vunpack.c.l.b16 %v266
        %v1026 = vunpack.c.l.b16 %v267
        %v1027 = vunpack.c.l.b16 %v268
        %v1028 = vunpack.c.l.b16 %v269
        %v1029 = vunpack.c.l.b16 %v270
        %v1030 = vunpack.c.l.b16 %v271
        %v1031 = vunpack.c.l.b16 %v272
        %v1032 = vunpack.c.l.b16 %v273
        %v1033 = vunpack.c.l.b16 %v274
        %v1034 = vunpack.c.l.b16 %v275
        %v1035 = vpack.c.b16 %v999, %v998
        %v1036 = vpack.c.b16 %v1001, %v1000
        %v1037 = vpack.c.b16 %v1003, %v1002
        %v1038 = vpack.c.b16 %v1005, %v1004
        %v1039 = vpack.c.b16 %v1007, %v1006
        %v1040 = vpack.c.b16 %v1009, %v1008
        %v1041 = vpack.c.b16 %v1011, %v1010
        %v1042 = vpack.c.b16 %v1013, %v1012
        %v1043 = vpack.c.b16 %v1015, %v1014
        %v1044 = vpack.c.b16 %v1017, %v1016
        %v1045 = vpack.c.b16 %v1019, %v1018
        %v1046 = vpack.c.b16 %v1021, %v1020
        %v1047 = vpack.c.b16 %v1023, %v1022
        %v1048 = vpack.c.b16 %v1025, %v1024
        %v1049 = vpack.c.b16 %v1027, %v1026
        %v1050 = vpack.c.b16 %v1029, %v1028
        %v1051 = vpack.c.b16 %v1031, %v1030
        %v1052 = vpack.c.b16 %v1033, %v1032
        %v1053 = vpack.c.b16 %v1034, %v1034
        %vm1054 = vsmask.f32 7424
        %v1056 = vshrl.u32 %v1035, 16
        %v1058 = vshll.u32 %v1035, 16
        %v1060 = vrot.slane %v1058, 1
        %v1061 = vor.u32 %v1056, %v1060
        %v1063 = vshll.u32 %v1036, 16
        %v1065 = vrot.slane %v1063, 1
        %v1066 = vsel %vm1054, %v1061, %v1065
        %v1067 = vshrl.u32 %v1036, 16
        %v1069 = vor.u32 %v1067, %v1065
        %v1071 = vshll.u32 %v1037, 16
        %v1073 = vrot.slane %v1071, 1
        %v1074 = vsel %vm1054, %v1069, %v1073
        %v1075 = vshrl.u32 %v1037, 16
        %v1077 = vor.u32 %v1075, %v1073
        %v1079 = vshll.u32 %v1038, 16
        %v1081 = vrot.slane %v1079, 1
        %v1082 = vsel %vm1054, %v1077, %v1081
        %v1083 = vshrl.u32 %v1038, 16
        %v1085 = vor.u32 %v1083, %v1081
        %v1087 = vshll.u32 %v1039, 16
        %v1089 = vrot.slane %v1087, 1
        %v1090 = vsel %vm1054, %v1085, %v1089
        %v1091 = vshrl.u32 %v1039, 16
        %v1093 = vor.u32 %v1091, %v1089
        %v1095 = vshll.u32 %v1040, 16
        %v1097 = vrot.slane %v1095, 1
        %v1098 = vsel %vm1054, %v1093, %v1097
        %v1099 = vshrl.u32 %v1040, 16
        %v1101 = vor.u32 %v1099, %v1097
        %v1103 = vshll.u32 %v1041, 16
        %v1105 = vrot.slane %v1103, 1
        %v1106 = vsel %vm1054, %v1101, %v1105
        %v1107 = vshrl.u32 %v1041, 16
        %v1109 = vor.u32 %v1107, %v1105
        %v1111 = vshll.u32 %v1042, 16
        %v1113 = vrot.slane %v1111, 1
        %v1114 = vsel %vm1054, %v1109, %v1113
        %v1115 = vshrl.u32 %v1042, 16
        %v1117 = vor.u32 %v1115, %v1113
        %v1119 = vshll.u32 %v1043, 16
        %v1121 = vrot.slane %v1119, 1
        %v1122 = vsel %vm1054, %v1117, %v1121
        %v1123 = vshrl.u32 %v1043, 16
        %v1125 = vor.u32 %v1123, %v1121
        %v1127 = vshll.u32 %v1044, 16
        %v1129 = vrot.slane %v1127, 1
        %v1130 = vsel %vm1054, %v1125, %v1129
        %v1131 = vshrl.u32 %v1044, 16
        %v1133 = vor.u32 %v1131, %v1129
        %v1135 = vshll.u32 %v1045, 16
        %v1137 = vrot.slane %v1135, 1
        %v1138 = vsel %vm1054, %v1133, %v1137
        %v1139 = vshrl.u32 %v1045, 16
        %v1141 = vor.u32 %v1139, %v1137
        %v1143 = vshll.u32 %v1046, 16
        %v1145 = vrot.slane %v1143, 1
        %v1146 = vsel %vm1054, %v1141, %v1145
        %v1147 = vshrl.u32 %v1046, 16
        %v1149 = vor.u32 %v1147, %v1145
        %v1151 = vshll.u32 %v1047, 16
        %v1153 = vrot.slane %v1151, 1
        %v1154 = vsel %vm1054, %v1149, %v1153
        %v1155 = vshrl.u32 %v1047, 16
        %v1157 = vor.u32 %v1155, %v1153
        %v1159 = vshll.u32 %v1048, 16
        %v1161 = vrot.slane %v1159, 1
        %v1162 = vsel %vm1054, %v1157, %v1161
        %v1163 = vshrl.u32 %v1048, 16
        %v1165 = vor.u32 %v1163, %v1161
        %v1167 = vshll.u32 %v1049, 16
        %v1169 = vrot.slane %v1167, 1
        %v1170 = vsel %vm1054, %v1165, %v1169
        %v1171 = vshrl.u32 %v1049, 16
        %v1173 = vor.u32 %v1171, %v1169
        %v1175 = vshll.u32 %v1050, 16
        %v1177 = vrot.slane %v1175, 1
        %v1178 = vsel %vm1054, %v1173, %v1177
        %v1179 = vshrl.u32 %v1050, 16
        %v1181 = vor.u32 %v1179, %v1177
        %v1183 = vshll.u32 %v1051, 16
        %v1185 = vrot.slane %v1183, 1
        %v1186 = vsel %vm1054, %v1181, %v1185
        %v1187 = vshrl.u32 %v1051, 16
        %v1189 = vor.u32 %v1187, %v1185
        %v1191 = vshll.u32 %v1052, 16
        %v1193 = vrot.slane %v1191, 1
        %v1194 = vsel %vm1054, %v1189, %v1193
        %v1195 = vshrl.u32 %v1052, 16
        %v1197 = vor.u32 %v1195, %v1193
        %v1199 = vshll.u32 %v1053, 16
        %v1201 = vrot.slane %v1199, 1
        %v1202 = vsel %vm1054, %v1197, %v1201
        %v1237 = vunpack.c.l.b16 %v945
        %v1238 = vunpack.c.l.b16 %v946
        %v1239 = vunpack.c.l.b16 %v947
        %v1240 = vunpack.c.l.b16 %v948
        %v1241 = vunpack.c.l.b16 %v949
        %v1242 = vunpack.c.l.b16 %v950
        %v1243 = vunpack.c.l.b16 %v951
        %v1244 = vunpack.c.l.b16 %v952
        %v1245 = vunpack.c.l.b16 %v953
        %v1246 = vunpack.c.l.b16 %v954
        %v1247 = vunpack.c.l.b16 %v955
        %v1248 = vunpack.c.l.b16 %v956
        %v1249 = vunpack.c.l.b16 %v957
        %v1250 = vunpack.c.l.b16 %v958
        %v1251 = vunpack.c.l.b16 %v959
        %v1252 = vunpack.c.l.b16 %v960
        %v1253 = vpack.c.b16 %v1238, %v1237
        %v1254 = vpack.c.b16 %v1240, %v1239
        %v1255 = vpack.c.b16 %v1242, %v1241
        %v1256 = vpack.c.b16 %v1244, %v1243
        %v1257 = vpack.c.b16 %v1246, %v1245
        %v1258 = vpack.c.b16 %v1248, %v1247
        %v1259 = vpack.c.b16 %v1250, %v1249
        %v1260 = vpack.c.b16 %v1252, %v1251
        %1269 = vmatprep.subr.bf16.mxu0 0
        %1270 = vmatpush1.bf16.msra.mxu0 %v1260
        %1271 = vmatprep.subr.bf16.mxu0 0
        %1272 = vmatpush1.bf16.msra.mxu0 %v1259
        %1273 = vmatprep.subr.bf16.mxu0 0
        %1274 = vmatpush1.bf16.msra.mxu0 %v1258
        %1275 = vmatprep.subr.bf16.mxu0 0
        %1276 = vmatpush1.bf16.msra.mxu0 %v1257
        %1277 = vmatprep.subr.bf16.mxu0 0
        %1278 = vmatpush1.bf16.msra.mxu0 %v1256
        %1279 = vmatprep.subr.bf16.mxu0 0
        %1280 = vmatpush1.bf16.msra.mxu0 %v1255
        %1281 = vmatprep.subr.bf16.mxu0 0
        %1282 = vmatpush1.bf16.msra.mxu0 %v1254
        %1283 = vmatprep.subr.bf16.mxu0 0
        %1284 = vmatpush1.bf16.msra.mxu0 %v1253
        %1285 = vmatprep.subr.bf16.mxu0 0
        %1286 = vmatpush2.bf16.msra.mxu0 0
        %1287 = vmatprep.subr.bf16.mxu0 0
        %1288 = vmatpush2.bf16.msra.mxu0 0
        %1289 = vmatprep.subr.bf16.mxu0 0
        %1290 = vmatpush2.bf16.msra.mxu0 0
        %1291 = vmatprep.subr.bf16.mxu0 0
        %1292 = vmatpush2.bf16.msra.mxu0 0
        %1293 = vmatprep.subr.bf16.mxu0 0
        %1294 = vmatpush2.bf16.msra.mxu0 0
        %1295 = vmatprep.subr.bf16.mxu0 0
        %1296 = vmatpush2.bf16.msra.mxu0 0
        %1297 = vmatprep.subr.bf16.mxu0 0
        %1298 = vmatpush2.bf16.msra.mxu0 0
        %1299 = vmatprep.subr.bf16.mxu0 0
        %1300 = vmatpush2.bf16.msra.mxu0 0
        %1301 = vmatprep.mubr.bf16.mxu0 0
        %1302 = vmatmul.mubr.bf16.gmra.mxu0 %v1066
        %v1303 = vpop.f32.mrf.mxu0
        %v1304 = vadd.f32 0.0, %v1303
        %v1305 = vpop.f32.mrf.mxu0
        %v1306 = vpop.f32.mrf.mxu0
        %v1307 = vadd.f32 0.0, %v1306
        %v1308 = vpop.f32.mrf.mxu0
        %1309 = vmatprep.mubr.bf16.mxu0 0
        %1310 = vmatmul.mubr.bf16.gmra.mxu0 %v1074
        %v1311 = vpop.f32.mrf.mxu0
        %v1312 = vadd.f32 0.0, %v1311
        %v1313 = vpop.f32.mrf.mxu0
        %v1314 = vpop.f32.mrf.mxu0
        %v1315 = vadd.f32 0.0, %v1314
        %v1316 = vpop.f32.mrf.mxu0
        %1317 = vmatprep.mubr.bf16.mxu0 0
        %1318 = vmatmul.mubr.bf16.gmra.mxu0 %v1082
        %v1319 = vpop.f32.mrf.mxu0
        %v1320 = vadd.f32 0.0, %v1319
        %v1321 = vpop.f32.mrf.mxu0
        %v1322 = vpop.f32.mrf.mxu0
        %v1323 = vadd.f32 0.0, %v1322
        %v1324 = vpop.f32.mrf.mxu0
        %1325 = vmatprep.mubr.bf16.mxu0 0
        %1326 = vmatmul.mubr.bf16.gmra.mxu0 %v1090
        %v1327 = vpop.f32.mrf.mxu0
        %v1328 = vadd.f32 0.0, %v1327
        %v1329 = vpop.f32.mrf.mxu0
        %v1330 = vpop.f32.mrf.mxu0
        %v1331 = vadd.f32 0.0, %v1330
        %v1332 = vpop.f32.mrf.mxu0
        %1333 = vmatprep.mubr.bf16.mxu0 0
        %1334 = vmatmul.mubr.bf16.gmra.mxu0 %v1098
        %v1335 = vpop.f32.mrf.mxu0
        %v1336 = vadd.f32 0.0, %v1335
        %v1337 = vpop.f32.mrf.mxu0
        %v1338 = vpop.f32.mrf.mxu0
        %v1339 = vadd.f32 0.0, %v1338
        %v1340 = vpop.f32.mrf.mxu0
        %1341 = vmatprep.mubr.bf16.mxu0 0
        %1342 = vmatmul.mubr.bf16.gmra.mxu0 %v1106
        %v1343 = vpop.f32.mrf.mxu0
        %v1344 = vadd.f32 0.0, %v1343
        %v1345 = vpop.f32.mrf.mxu0
        %v1346 = vpop.f32.mrf.mxu0
        %v1347 = vadd.f32 0.0, %v1346
        %v1348 = vpop.f32.mrf.mxu0
        %1349 = vmatprep.mubr.bf16.mxu0 0
        %1350 = vmatmul.mubr.bf16.gmra.mxu0 %v1114
        %v1351 = vpop.f32.mrf.mxu0
        %v1352 = vadd.f32 0.0, %v1351
        %v1353 = vpop.f32.mrf.mxu0
        %v1354 = vpop.f32.mrf.mxu0
        %v1355 = vadd.f32 0.0, %v1354
        %v1356 = vpop.f32.mrf.mxu0
        %1357 = vmatprep.mubr.bf16.mxu0 0
        %1358 = vmatmul.mubr.bf16.gmra.mxu0 %v1122
        %v1359 = vpop.f32.mrf.mxu0
        %v1360 = vadd.f32 0.0, %v1359
        %v1361 = vpop.f32.mrf.mxu0
        %v1362 = vpop.f32.mrf.mxu0
        %v1363 = vadd.f32 0.0, %v1362
        %v1364 = vpop.f32.mrf.mxu0
        %1365 = vmatprep.mubr.bf16.mxu0 0
        %1366 = vmatmul.mubr.bf16.gmra.mxu0 %v1130
        %v1367 = vpop.f32.mrf.mxu0
        %v1368 = vadd.f32 0.0, %v1367
        %v1369 = vpop.f32.mrf.mxu0
        %v1370 = vpop.f32.mrf.mxu0
        %v1371 = vadd.f32 0.0, %v1370
        %v1372 = vpop.f32.mrf.mxu0
        %1373 = vmatprep.mubr.bf16.mxu0 0
        %1374 = vmatmul.mubr.bf16.gmra.mxu0 %v1138
        %v1375 = vpop.f32.mrf.mxu0
        %v1376 = vadd.f32 0.0, %v1375
        %v1377 = vpop.f32.mrf.mxu0
        %v1378 = vpop.f32.mrf.mxu0
        %v1379 = vadd.f32 0.0, %v1378
        %v1380 = vpop.f32.mrf.mxu0
        %1381 = vmatprep.mubr.bf16.mxu0 0
        %1382 = vmatmul.mubr.bf16.gmra.mxu0 %v1146
        %v1383 = vpop.f32.mrf.mxu0
        %v1384 = vadd.f32 0.0, %v1383
        %v1385 = vpop.f32.mrf.mxu0
        %v1386 = vpop.f32.mrf.mxu0
        %v1387 = vadd.f32 0.0, %v1386
        %v1388 = vpop.f32.mrf.mxu0
        %1389 = vmatprep.mubr.bf16.mxu0 0
        %1390 = vmatmul.mubr.bf16.gmra.mxu0 %v1154
        %v1391 = vpop.f32.mrf.mxu0
        %v1392 = vadd.f32 0.0, %v1391
        %v1393 = vpop.f32.mrf.mxu0
        %v1394 = vpop.f32.mrf.mxu0
        %v1395 = vadd.f32 0.0, %v1394
        %v1396 = vpop.f32.mrf.mxu0
        %1397 = vmatprep.mubr.bf16.mxu0 0
        %1398 = vmatmul.mubr.bf16.gmra.mxu0 %v1162
        %v1399 = vpop.f32.mrf.mxu0
        %v1400 = vadd.f32 0.0, %v1399
        %v1401 = vpop.f32.mrf.mxu0
        %v1402 = vpop.f32.mrf.mxu0
        %v1403 = vadd.f32 0.0, %v1402
        %v1404 = vpop.f32.mrf.mxu0
        %1405 = vmatprep.mubr.bf16.mxu0 0
        %1406 = vmatmul.mubr.bf16.gmra.mxu0 %v1170
        %v1407 = vpop.f32.mrf.mxu0
        %v1408 = vadd.f32 0.0, %v1407
        %v1409 = vpop.f32.mrf.mxu0
        %v1410 = vpop.f32.mrf.mxu0
        %v1411 = vadd.f32 0.0, %v1410
        %v1412 = vpop.f32.mrf.mxu0
        %1413 = vmatprep.mubr.bf16.mxu0 0
        %1414 = vmatmul.mubr.bf16.gmra.mxu0 %v1178
        %v1415 = vpop.f32.mrf.mxu0
        %v1416 = vadd.f32 0.0, %v1415
        %v1417 = vpop.f32.mrf.mxu0
        %v1418 = vpop.f32.mrf.mxu0
        %v1419 = vadd.f32 0.0, %v1418
        %v1420 = vpop.f32.mrf.mxu0
        %1421 = vmatprep.mubr.bf16.mxu0 0
        %1422 = vmatmul.mubr.bf16.gmra.mxu0 %v1186
        %v1423 = vpop.f32.mrf.mxu0
        %v1424 = vadd.f32 0.0, %v1423
        %v1425 = vpop.f32.mrf.mxu0
        %v1426 = vpop.f32.mrf.mxu0
        %v1427 = vadd.f32 0.0, %v1426
        %v1428 = vpop.f32.mrf.mxu0
        %1429 = vmatprep.mubr.bf16.mxu0 0
        %1430 = vmatmul.mubr.bf16.gmra.mxu0 %v1194
        %v1431 = vpop.f32.mrf.mxu0
        %v1432 = vadd.f32 0.0, %v1431
        %v1433 = vpop.f32.mrf.mxu0
        %v1434 = vpop.f32.mrf.mxu0
        %v1435 = vadd.f32 0.0, %v1434
        %v1436 = vpop.f32.mrf.mxu0
        %1437 = vmatprep.mubr.bf16.mxu0 0
        %1438 = vmatmul.mubr.bf16.gmra.mxu0 %v1202
        %v1439 = vpop.f32.mrf.mxu0
        %v1440 = vadd.f32 0.0, %v1439
        %v1441 = vpop.f32.mrf.mxu0
        %v1442 = vpop.f32.mrf.mxu0
        %v1443 = vadd.f32 0.0, %v1442
        %v1444 = vpop.f32.mrf.mxu0
        %1445 = vdwg.mxu0
        %v1480 = vunpack.c.l.b16 %v929
        %v1481 = vunpack.c.l.b16 %v930
        %v1482 = vunpack.c.l.b16 %v931
        %v1483 = vunpack.c.l.b16 %v932
        %v1484 = vunpack.c.l.b16 %v933
        %v1485 = vunpack.c.l.b16 %v934
        %v1486 = vunpack.c.l.b16 %v935
        %v1487 = vunpack.c.l.b16 %v936
        %v1488 = vunpack.c.l.b16 %v937
        %v1489 = vunpack.c.l.b16 %v938
        %v1490 = vunpack.c.l.b16 %v939
        %v1491 = vunpack.c.l.b16 %v940
        %v1492 = vunpack.c.l.b16 %v941
        %v1493 = vunpack.c.l.b16 %v942
        %v1494 = vunpack.c.l.b16 %v943
        %v1495 = vunpack.c.l.b16 %v944
        %v1496 = vpack.c.b16 %v1481, %v1480
        %v1497 = vpack.c.b16 %v1483, %v1482
        %v1498 = vpack.c.b16 %v1485, %v1484
        %v1499 = vpack.c.b16 %v1487, %v1486
        %v1500 = vpack.c.b16 %v1489, %v1488
        %v1501 = vpack.c.b16 %v1491, %v1490
        %v1502 = vpack.c.b16 %v1493, %v1492
        %v1503 = vpack.c.b16 %v1495, %v1494
        %1512 = vmatprep.subr.bf16.mxu0 0
        %1513 = vmatpush1.bf16.msra.mxu0 %v1503
        %1514 = vmatprep.subr.bf16.mxu0 0
        %1515 = vmatpush1.bf16.msra.mxu0 %v1502
        %1516 = vmatprep.subr.bf16.mxu0 0
        %1517 = vmatpush1.bf16.msra.mxu0 %v1501
        %1518 = vmatprep.subr.bf16.mxu0 0
        %1519 = vmatpush1.bf16.msra.mxu0 %v1500
        %1520 = vmatprep.subr.bf16.mxu0 0
        %1521 = vmatpush1.bf16.msra.mxu0 %v1499
        %1522 = vmatprep.subr.bf16.mxu0 0
        %1523 = vmatpush1.bf16.msra.mxu0 %v1498
        %1524 = vmatprep.subr.bf16.mxu0 0
        %1525 = vmatpush1.bf16.msra.mxu0 %v1497
        %1526 = vmatprep.subr.bf16.mxu0 0
        %1527 = vmatpush1.bf16.msra.mxu0 %v1496
        %1528 = vmatprep.subr.bf16.mxu0 0
        %1529 = vmatpush2.bf16.msra.mxu0 0
        %1530 = vmatprep.subr.bf16.mxu0 0
        %1531 = vmatpush2.bf16.msra.mxu0 0
        %1532 = vmatprep.subr.bf16.mxu0 0
        %1533 = vmatpush2.bf16.msra.mxu0 0
        %1534 = vmatprep.subr.bf16.mxu0 0
        %1535 = vmatpush2.bf16.msra.mxu0 0
        %1536 = vmatprep.subr.bf16.mxu0 0
        %1537 = vmatpush2.bf16.msra.mxu0 0
        %1538 = vmatprep.subr.bf16.mxu0 0
        %1539 = vmatpush2.bf16.msra.mxu0 0
        %1540 = vmatprep.subr.bf16.mxu0 0
        %1541 = vmatpush2.bf16.msra.mxu0 0
        %1542 = vmatprep.subr.bf16.mxu0 0
        %1543 = vmatpush2.bf16.msra.mxu0 0
        %1544 = vmatprep.mubr.bf16.mxu0 0
        %1545 = vmatmul.mubr.bf16.gmra.mxu0 %v1035
        %v1546 = vpop.f32.mrf.mxu0
        %v1547 = vadd.f32 %v1304, %v1546
        %v1548 = vpop.f32.mrf.mxu0
        %v1549 = vpop.f32.mrf.mxu0
        %v1550 = vadd.f32 %v1307, %v1549
        %v1551 = vpop.f32.mrf.mxu0
        %1552 = vmatprep.mubr.bf16.mxu0 0
        %1553 = vmatmul.mubr.bf16.gmra.mxu0 %v1036
        %v1554 = vpop.f32.mrf.mxu0
        %v1555 = vadd.f32 %v1312, %v1554
        %v1556 = vpop.f32.mrf.mxu0
        %v1557 = vpop.f32.mrf.mxu0
        %v1558 = vadd.f32 %v1315, %v1557
        %v1559 = vpop.f32.mrf.mxu0
        %1560 = vmatprep.mubr.bf16.mxu0 0
        %1561 = vmatmul.mubr.bf16.gmra.mxu0 %v1037
        %v1562 = vpop.f32.mrf.mxu0
        %v1563 = vadd.f32 %v1320, %v1562
        %v1564 = vpop.f32.mrf.mxu0
        %v1565 = vpop.f32.mrf.mxu0
        %v1566 = vadd.f32 %v1323, %v1565
        %v1567 = vpop.f32.mrf.mxu0
        %1568 = vmatprep.mubr.bf16.mxu0 0
        %1569 = vmatmul.mubr.bf16.gmra.mxu0 %v1038
        %v1570 = vpop.f32.mrf.mxu0
        %v1571 = vadd.f32 %v1328, %v1570
        %v1572 = vpop.f32.mrf.mxu0
        %v1573 = vpop.f32.mrf.mxu0
        %v1574 = vadd.f32 %v1331, %v1573
        %v1575 = vpop.f32.mrf.mxu0
        %1576 = vmatprep.mubr.bf16.mxu0 0
        %1577 = vmatmul.mubr.bf16.gmra.mxu0 %v1039
        %v1578 = vpop.f32.mrf.mxu0
        %v1579 = vadd.f32 %v1336, %v1578
        %v1580 = vpop.f32.mrf.mxu0
        %v1581 = vpop.f32.mrf.mxu0
        %v1582 = vadd.f32 %v1339, %v1581
        %v1583 = vpop.f32.mrf.mxu0
        %1584 = vmatprep.mubr.bf16.mxu0 0
        %1585 = vmatmul.mubr.bf16.gmra.mxu0 %v1040
        %v1586 = vpop.f32.mrf.mxu0
        %v1587 = vadd.f32 %v1344, %v1586
        %v1588 = vpop.f32.mrf.mxu0
        %v1589 = vpop.f32.mrf.mxu0
        %v1590 = vadd.f32 %v1347, %v1589
        %v1591 = vpop.f32.mrf.mxu0
        %1592 = vmatprep.mubr.bf16.mxu0 0
        %1593 = vmatmul.mubr.bf16.gmra.mxu0 %v1041
        %v1594 = vpop.f32.mrf.mxu0
        %v1595 = vadd.f32 %v1352, %v1594
        %v1596 = vpop.f32.mrf.mxu0
        %v1597 = vpop.f32.mrf.mxu0
        %v1598 = vadd.f32 %v1355, %v1597
        %v1599 = vpop.f32.mrf.mxu0
        %1600 = vmatprep.mubr.bf16.mxu0 0
        %1601 = vmatmul.mubr.bf16.gmra.mxu0 %v1042
        %v1602 = vpop.f32.mrf.mxu0
        %v1603 = vadd.f32 %v1360, %v1602
        %v1604 = vpop.f32.mrf.mxu0
        %v1605 = vpop.f32.mrf.mxu0
        %v1606 = vadd.f32 %v1363, %v1605
        %v1607 = vpop.f32.mrf.mxu0
        %1608 = vmatprep.mubr.bf16.mxu0 0
        %1609 = vmatmul.mubr.bf16.gmra.mxu0 %v1043
        %v1610 = vpop.f32.mrf.mxu0
        %v1611 = vadd.f32 %v1368, %v1610
        %v1612 = vpop.f32.mrf.mxu0
        %v1613 = vpop.f32.mrf.mxu0
        %v1614 = vadd.f32 %v1371, %v1613
        %v1615 = vpop.f32.mrf.mxu0
        %1616 = vmatprep.mubr.bf16.mxu0 0
        %1617 = vmatmul.mubr.bf16.gmra.mxu0 %v1044
        %v1618 = vpop.f32.mrf.mxu0
        %v1619 = vadd.f32 %v1376, %v1618
        %v1620 = vpop.f32.mrf.mxu0
        %v1621 = vpop.f32.mrf.mxu0
        %v1622 = vadd.f32 %v1379, %v1621
        %v1623 = vpop.f32.mrf.mxu0
        %1624 = vmatprep.mubr.bf16.mxu0 0
        %1625 = vmatmul.mubr.bf16.gmra.mxu0 %v1045
        %v1626 = vpop.f32.mrf.mxu0
        %v1627 = vadd.f32 %v1384, %v1626
        %v1628 = vpop.f32.mrf.mxu0
        %v1629 = vpop.f32.mrf.mxu0
        %v1630 = vadd.f32 %v1387, %v1629
        %v1631 = vpop.f32.mrf.mxu0
        %1632 = vmatprep.mubr.bf16.mxu0 0
        %1633 = vmatmul.mubr.bf16.gmra.mxu0 %v1046
        %v1634 = vpop.f32.mrf.mxu0
        %v1635 = vadd.f32 %v1392, %v1634
        %v1636 = vpop.f32.mrf.mxu0
        %v1637 = vpop.f32.mrf.mxu0
        %v1638 = vadd.f32 %v1395, %v1637
        %v1639 = vpop.f32.mrf.mxu0
        %1640 = vmatprep.mubr.bf16.mxu0 0
        %1641 = vmatmul.mubr.bf16.gmra.mxu0 %v1047
        %v1642 = vpop.f32.mrf.mxu0
        %v1643 = vadd.f32 %v1400, %v1642
        %v1644 = vpop.f32.mrf.mxu0
        %v1645 = vpop.f32.mrf.mxu0
        %v1646 = vadd.f32 %v1403, %v1645
        %v1647 = vpop.f32.mrf.mxu0
        %1648 = vmatprep.mubr.bf16.mxu0 0
        %1649 = vmatmul.mubr.bf16.gmra.mxu0 %v1048
        %v1650 = vpop.f32.mrf.mxu0
        %v1651 = vadd.f32 %v1408, %v1650
        %v1652 = vpop.f32.mrf.mxu0
        %v1653 = vpop.f32.mrf.mxu0
        %v1654 = vadd.f32 %v1411, %v1653
        %v1655 = vpop.f32.mrf.mxu0
        %1656 = vmatprep.mubr.bf16.mxu0 0
        %1657 = vmatmul.mubr.bf16.gmra.mxu0 %v1049
        %v1658 = vpop.f32.mrf.mxu0
        %v1659 = vadd.f32 %v1416, %v1658
        %v1660 = vpop.f32.mrf.mxu0
        %v1661 = vpop.f32.mrf.mxu0
        %v1662 = vadd.f32 %v1419, %v1661
        %v1663 = vpop.f32.mrf.mxu0
        %1664 = vmatprep.mubr.bf16.mxu0 0
        %1665 = vmatmul.mubr.bf16.gmra.mxu0 %v1050
        %v1666 = vpop.f32.mrf.mxu0
        %v1667 = vadd.f32 %v1424, %v1666
        %v1668 = vpop.f32.mrf.mxu0
        %v1669 = vpop.f32.mrf.mxu0
        %v1670 = vadd.f32 %v1427, %v1669
        %v1671 = vpop.f32.mrf.mxu0
        %1672 = vmatprep.mubr.bf16.mxu0 0
        %1673 = vmatmul.mubr.bf16.gmra.mxu0 %v1051
        %v1674 = vpop.f32.mrf.mxu0
        %v1675 = vadd.f32 %v1432, %v1674
        %v1676 = vpop.f32.mrf.mxu0
        %v1677 = vpop.f32.mrf.mxu0
        %v1678 = vadd.f32 %v1435, %v1677
        %v1679 = vpop.f32.mrf.mxu0
        %1680 = vmatprep.mubr.bf16.mxu0 0
        %1681 = vmatmul.mubr.bf16.gmra.mxu0 %v1052
        %v1682 = vpop.f32.mrf.mxu0
        %v1683 = vadd.f32 %v1440, %v1682
        %v1684 = vpop.f32.mrf.mxu0
        %v1685 = vpop.f32.mrf.mxu0
        %v1686 = vadd.f32 %v1443, %v1685
        %v1687 = vpop.f32.mrf.mxu0
        %1688 = vdwg.mxu0
        %v1689 = vld [vmem:[%s1 + $0x80] sm:$0xf]
        %v1690 = vld [vmem:[%s1 + $0x84] sm:$0xf]
        %v1691 = vld [vmem:[%s1 + $0x88] sm:$0xf]
        %v1692 = vld [vmem:[%s1 + $0x8c] sm:$0xf]
        %v1693 = vld [vmem:[%s1 + $0x90] sm:$0xf]
        %v1694 = vld [vmem:[%s1 + $0x94] sm:$0xf]
        %v1695 = vld [vmem:[%s1 + $0x98] sm:$0xf]
        %v1696 = vld [vmem:[%s1 + $0x9c] sm:$0xf]
        %v1697 = vld [vmem:[%s1 + $0xa0] sm:$0xf]
        %v1698 = vld [vmem:[%s1 + $0xa4] sm:$0xf]
        %v1699 = vld [vmem:[%s1 + $0xa8] sm:$0xf]
        %v1700 = vld [vmem:[%s1 + $0xac] sm:$0xf]
        %v1701 = vld [vmem:[%s1 + $0xb0] sm:$0xf]
        %v1702 = vld [vmem:[%s1 + $0xb4] sm:$0xf]
        %v1703 = vld [vmem:[%s1 + $0xb8] sm:$0xf]
        %v1704 = vld [vmem:[%s1 + $0xbc] sm:$0xf]
        %vm1705 = vcmask 1046528
        %v1706 = vrot.slane %v1035, 1
        %v1707 = vrot.slane %v1036, 1
        %v1708 = vsel %vm1705, %v1706, %v1707
        %v1709 = vrot.slane %v1037, 1
        %v1710 = vsel %vm1705, %v1707, %v1709
        %v1711 = vrot.slane %v1038, 1
        %v1712 = vsel %vm1705, %v1709, %v1711
        %v1713 = vrot.slane %v1039, 1
        %v1714 = vsel %vm1705, %v1711, %v1713
        %v1715 = vrot.slane %v1040, 1
        %v1716 = vsel %vm1705, %v1713, %v1715
        %v1717 = vrot.slane %v1041, 1
        %v1718 = vsel %vm1705, %v1715, %v1717
        %v1719 = vrot.slane %v1042, 1
        %v1720 = vsel %vm1705, %v1717, %v1719
        %v1721 = vrot.slane %v1043, 1
        %v1722 = vsel %vm1705, %v1719, %v1721
        %v1723 = vrot.slane %v1044, 1
        %v1724 = vsel %vm1705, %v1721, %v1723
        %v1725 = vrot.slane %v1045, 1
        %v1726 = vsel %vm1705, %v1723, %v1725
        %v1727 = vrot.slane %v1046, 1
        %v1728 = vsel %vm1705, %v1725, %v1727
        %v1729 = vrot.slane %v1047, 1
        %v1730 = vsel %vm1705, %v1727, %v1729
        %v1731 = vrot.slane %v1048, 1
        %v1732 = vsel %vm1705, %v1729, %v1731
        %v1733 = vrot.slane %v1049, 1
        %v1734 = vsel %vm1705, %v1731, %v1733
        %v1735 = vrot.slane %v1050, 1
        %v1736 = vsel %vm1705, %v1733, %v1735
        %v1737 = vrot.slane %v1051, 1
        %v1738 = vsel %vm1705, %v1735, %v1737
        %v1739 = vrot.slane %v1052, 1
        %v1740 = vsel %vm1705, %v1737, %v1739
        %v1741 = vrot.slane %v1053, 1
        %v1742 = vsel %vm1705, %v1739, %v1741
        %v1777 = vunpack.c.l.b16 %v1689
        %v1778 = vunpack.c.l.b16 %v1690
        %v1779 = vunpack.c.l.b16 %v1691
        %v1780 = vunpack.c.l.b16 %v1692
        %v1781 = vunpack.c.l.b16 %v1693
        %v1782 = vunpack.c.l.b16 %v1694
        %v1783 = vunpack.c.l.b16 %v1695
        %v1784 = vunpack.c.l.b16 %v1696
        %v1785 = vunpack.c.l.b16 %v1697
        %v1786 = vunpack.c.l.b16 %v1698
        %v1787 = vunpack.c.l.b16 %v1699
        %v1788 = vunpack.c.l.b16 %v1700
        %v1789 = vunpack.c.l.b16 %v1701
        %v1790 = vunpack.c.l.b16 %v1702
        %v1791 = vunpack.c.l.b16 %v1703
        %v1792 = vunpack.c.l.b16 %v1704
        %v1793 = vpack.c.b16 %v1778, %v1777
        %v1794 = vpack.c.b16 %v1780, %v1779
        %v1795 = vpack.c.b16 %v1782, %v1781
        %v1796 = vpack.c.b16 %v1784, %v1783
        %v1797 = vpack.c.b16 %v1786, %v1785
        %v1798 = vpack.c.b16 %v1788, %v1787
        %v1799 = vpack.c.b16 %v1790, %v1789
        %v1800 = vpack.c.b16 %v1792, %v1791
        %1809 = vmatprep.subr.bf16.mxu0 0
        %1810 = vmatpush1.bf16.msra.mxu0 %v1800
        %1811 = vmatprep.subr.bf16.mxu0 0
        %1812 = vmatpush1.bf16.msra.mxu0 %v1799
        %1813 = vmatprep.subr.bf16.mxu0 0
        %1814 = vmatpush1.bf16.msra.mxu0 %v1798
        %1815 = vmatprep.subr.bf16.mxu0 0
        %1816 = vmatpush1.bf16.msra.mxu0 %v1797
        %1817 = vmatprep.subr.bf16.mxu0 0
        %1818 = vmatpush1.bf16.msra.mxu0 %v1796
        %1819 = vmatprep.subr.bf16.mxu0 0
        %1820 = vmatpush1.bf16.msra.mxu0 %v1795
        %1821 = vmatprep.subr.bf16.mxu0 0
        %1822 = vmatpush1.bf16.msra.mxu0 %v1794
        %1823 = vmatprep.subr.bf16.mxu0 0
        %1824 = vmatpush1.bf16.msra.mxu0 %v1793
        %1825 = vmatprep.subr.bf16.mxu0 0
        %1826 = vmatpush2.bf16.msra.mxu0 0
        %1827 = vmatprep.subr.bf16.mxu0 0
        %1828 = vmatpush2.bf16.msra.mxu0 0
        %1829 = vmatprep.subr.bf16.mxu0 0
        %1830 = vmatpush2.bf16.msra.mxu0 0
        %1831 = vmatprep.subr.bf16.mxu0 0
        %1832 = vmatpush2.bf16.msra.mxu0 0
        %1833 = vmatprep.subr.bf16.mxu0 0
        %1834 = vmatpush2.bf16.msra.mxu0 0
        %1835 = vmatprep.subr.bf16.mxu0 0
        %1836 = vmatpush2.bf16.msra.mxu0 0
        %1837 = vmatprep.subr.bf16.mxu0 0
        %1838 = vmatpush2.bf16.msra.mxu0 0
        %1839 = vmatprep.subr.bf16.mxu0 0
        %1840 = vmatpush2.bf16.msra.mxu0 0
        %1841 = vmatprep.mubr.bf16.mxu0 0
        %1842 = vmatmul.mubr.bf16.gmra.mxu0 %v1708
        %v1843 = vpop.f32.mrf.mxu0
        %v1844 = vadd.f32 0.0, %v1843
        %v1845 = vpop.f32.mrf.mxu0
        %v1846 = vpop.f32.mrf.mxu0
        %v1847 = vadd.f32 0.0, %v1846
        %v1848 = vpop.f32.mrf.mxu0
        %1849 = vmatprep.mubr.bf16.mxu0 0
        %1850 = vmatmul.mubr.bf16.gmra.mxu0 %v1710
        %v1851 = vpop.f32.mrf.mxu0
        %v1852 = vadd.f32 0.0, %v1851
        %v1853 = vpop.f32.mrf.mxu0
        %v1854 = vpop.f32.mrf.mxu0
        %v1855 = vadd.f32 0.0, %v1854
        %v1856 = vpop.f32.mrf.mxu0
        %1857 = vmatprep.mubr.bf16.mxu0 0
        %1858 = vmatmul.mubr.bf16.gmra.mxu0 %v1712
        %v1859 = vpop.f32.mrf.mxu0
        %v1860 = vadd.f32 0.0, %v1859
        %v1861 = vpop.f32.mrf.mxu0
        %v1862 = vpop.f32.mrf.mxu0
        %v1863 = vadd.f32 0.0, %v1862
        %v1864 = vpop.f32.mrf.mxu0
        %1865 = vmatprep.mubr.bf16.mxu0 0
        %1866 = vmatmul.mubr.bf16.gmra.mxu0 %v1714
        %v1867 = vpop.f32.mrf.mxu0
        %v1868 = vadd.f32 0.0, %v1867
        %v1869 = vpop.f32.mrf.mxu0
        %v1870 = vpop.f32.mrf.mxu0
        %v1871 = vadd.f32 0.0, %v1870
        %v1872 = vpop.f32.mrf.mxu0
        %1873 = vmatprep.mubr.bf16.mxu0 0
        %1874 = vmatmul.mubr.bf16.gmra.mxu0 %v1716
        %v1875 = vpop.f32.mrf.mxu0
        %v1876 = vadd.f32 0.0, %v1875
        %v1877 = vpop.f32.mrf.mxu0
        %v1878 = vpop.f32.mrf.mxu0
        %v1879 = vadd.f32 0.0, %v1878
        %v1880 = vpop.f32.mrf.mxu0
        %1881 = vmatprep.mubr.bf16.mxu0 0
        %1882 = vmatmul.mubr.bf16.gmra.mxu0 %v1718
        %v1883 = vpop.f32.mrf.mxu0
        %v1884 = vadd.f32 0.0, %v1883
        %v1885 = vpop.f32.mrf.mxu0
        %v1886 = vpop.f32.mrf.mxu0
        %v1887 = vadd.f32 0.0, %v1886
        %v1888 = vpop.f32.mrf.mxu0
        %1889 = vmatprep.mubr.bf16.mxu0 0
        %1890 = vmatmul.mubr.bf16.gmra.mxu0 %v1720
        %v1891 = vpop.f32.mrf.mxu0
        %v1892 = vadd.f32 0.0, %v1891
        %v1893 = vpop.f32.mrf.mxu0
        %v1894 = vpop.f32.mrf.mxu0
        %v1895 = vadd.f32 0.0, %v1894
        %v1896 = vpop.f32.mrf.mxu0
        %1897 = vmatprep.mubr.bf16.mxu0 0
        %1898 = vmatmul.mubr.bf16.gmra.mxu0 %v1722
        %v1899 = vpop.f32.mrf.mxu0
        %v1900 = vadd.f32 0.0, %v1899
        %v1901 = vpop.f32.mrf.mxu0
        %v1902 = vpop.f32.mrf.mxu0
        %v1903 = vadd.f32 0.0, %v1902
        %v1904 = vpop.f32.mrf.mxu0
        %1905 = vmatprep.mubr.bf16.mxu0 0
        %1906 = vmatmul.mubr.bf16.gmra.mxu0 %v1724
        %v1907 = vpop.f32.mrf.mxu0
        %v1908 = vadd.f32 0.0, %v1907
        %v1909 = vpop.f32.mrf.mxu0
        %v1910 = vpop.f32.mrf.mxu0
        %v1911 = vadd.f32 0.0, %v1910
        %v1912 = vpop.f32.mrf.mxu0
        %1913 = vmatprep.mubr.bf16.mxu0 0
        %1914 = vmatmul.mubr.bf16.gmra.mxu0 %v1726
        %v1915 = vpop.f32.mrf.mxu0
        %v1916 = vadd.f32 0.0, %v1915
        %v1917 = vpop.f32.mrf.mxu0
        %v1918 = vpop.f32.mrf.mxu0
        %v1919 = vadd.f32 0.0, %v1918
        %v1920 = vpop.f32.mrf.mxu0
        %1921 = vmatprep.mubr.bf16.mxu0 0
        %1922 = vmatmul.mubr.bf16.gmra.mxu0 %v1728
        %v1923 = vpop.f32.mrf.mxu0
        %v1924 = vadd.f32 0.0, %v1923
        %v1925 = vpop.f32.mrf.mxu0
        %v1926 = vpop.f32.mrf.mxu0
        %v1927 = vadd.f32 0.0, %v1926
        %v1928 = vpop.f32.mrf.mxu0
        %1929 = vmatprep.mubr.bf16.mxu0 0
        %1930 = vmatmul.mubr.bf16.gmra.mxu0 %v1730
        %v1931 = vpop.f32.mrf.mxu0
        %v1932 = vadd.f32 0.0, %v1931
        %v1933 = vpop.f32.mrf.mxu0
        %v1934 = vpop.f32.mrf.mxu0
        %v1935 = vadd.f32 0.0, %v1934
        %v1936 = vpop.f32.mrf.mxu0
        %1937 = vmatprep.mubr.bf16.mxu0 0
        %1938 = vmatmul.mubr.bf16.gmra.mxu0 %v1732
        %v1939 = vpop.f32.mrf.mxu0
        %v1940 = vadd.f32 0.0, %v1939
        %v1941 = vpop.f32.mrf.mxu0
        %v1942 = vpop.f32.mrf.mxu0
        %v1943 = vadd.f32 0.0, %v1942
        %v1944 = vpop.f32.mrf.mxu0
        %1945 = vmatprep.mubr.bf16.mxu0 0
        %1946 = vmatmul.mubr.bf16.gmra.mxu0 %v1734
        %v1947 = vpop.f32.mrf.mxu0
        %v1948 = vadd.f32 0.0, %v1947
        %v1949 = vpop.f32.mrf.mxu0
        %v1950 = vpop.f32.mrf.mxu0
        %v1951 = vadd.f32 0.0, %v1950
        %v1952 = vpop.f32.mrf.mxu0
        %1953 = vmatprep.mubr.bf16.mxu0 0
        %1954 = vmatmul.mubr.bf16.gmra.mxu0 %v1736
        %v1955 = vpop.f32.mrf.mxu0
        %v1956 = vadd.f32 0.0, %v1955
        %v1957 = vpop.f32.mrf.mxu0
        %v1958 = vpop.f32.mrf.mxu0
        %v1959 = vadd.f32 0.0, %v1958
        %v1960 = vpop.f32.mrf.mxu0
        %1961 = vmatprep.mubr.bf16.mxu0 0
        %1962 = vmatmul.mubr.bf16.gmra.mxu0 %v1738
        %v1963 = vpop.f32.mrf.mxu0
        %v1964 = vadd.f32 0.0, %v1963
        %v1965 = vpop.f32.mrf.mxu0
        %v1966 = vpop.f32.mrf.mxu0
        %v1967 = vadd.f32 0.0, %v1966
        %v1968 = vpop.f32.mrf.mxu0
        %1969 = vmatprep.mubr.bf16.mxu0 0
        %1970 = vmatmul.mubr.bf16.gmra.mxu0 %v1740
        %v1971 = vpop.f32.mrf.mxu0
        %v1972 = vadd.f32 0.0, %v1971
        %v1973 = vpop.f32.mrf.mxu0
        %v1974 = vpop.f32.mrf.mxu0
        %v1975 = vadd.f32 0.0, %v1974
        %v1976 = vpop.f32.mrf.mxu0
        %1977 = vmatprep.mubr.bf16.mxu0 0
        %1978 = vmatmul.mubr.bf16.gmra.mxu0 %v1742
        %v1979 = vpop.f32.mrf.mxu0
        %v1980 = vadd.f32 0.0, %v1979
        %v1981 = vpop.f32.mrf.mxu0
        %v1982 = vpop.f32.mrf.mxu0
        %v1983 = vadd.f32 0.0, %v1982
        %v1984 = vpop.f32.mrf.mxu0
        %1985 = vdwg.mxu0
        %v1986 = vadd.f32 %v1547, %v1844
        %v1987 = vadd.f32 %v1550, %v1847
        %v1988 = vadd.f32 %v1555, %v1852
        %v1989 = vadd.f32 %v1558, %v1855
        %v1990 = vadd.f32 %v1563, %v1860
        %v1991 = vadd.f32 %v1566, %v1863
        %v1992 = vadd.f32 %v1571, %v1868
        %v1993 = vadd.f32 %v1574, %v1871
        %v1994 = vadd.f32 %v1579, %v1876
        %v1995 = vadd.f32 %v1582, %v1879
        %v1996 = vadd.f32 %v1587, %v1884
        %v1997 = vadd.f32 %v1590, %v1887
        %v1998 = vadd.f32 %v1595, %v1892
        %v1999 = vadd.f32 %v1598, %v1895
        %v2000 = vadd.f32 %v1603, %v1900
        %v2001 = vadd.f32 %v1606, %v1903
        %v2002 = vadd.f32 %v1611, %v1908
        %v2003 = vadd.f32 %v1614, %v1911
        %v2004 = vadd.f32 %v1619, %v1916
        %v2005 = vadd.f32 %v1622, %v1919
        %v2006 = vadd.f32 %v1627, %v1924
        %v2007 = vadd.f32 %v1630, %v1927
        %v2008 = vadd.f32 %v1635, %v1932
        %v2009 = vadd.f32 %v1638, %v1935
        %v2010 = vadd.f32 %v1643, %v1940
        %v2011 = vadd.f32 %v1646, %v1943
        %v2012 = vadd.f32 %v1651, %v1948
        %v2013 = vadd.f32 %v1654, %v1951
        %v2014 = vadd.f32 %v1659, %v1956
        %v2015 = vadd.f32 %v1662, %v1959
        %v2016 = vadd.f32 %v1667, %v1964
        %v2017 = vadd.f32 %v1670, %v1967
        %v2018 = vadd.f32 %v1675, %v1972
        %v2019 = vadd.f32 %v1678, %v1975
        %v2020 = vadd.f32 %v1683, %v1980
        %v2021 = vadd.f32 %v1686, %v1983
        %v2022 = vld [vmem:[%s1 + $0xc0] sm:$0xf]
        %v2023 = vld [vmem:[%s1 + $0xc4] sm:$0xf]
        %v2024 = vld [vmem:[%s1 + $0xc8] sm:$0xf]
        %v2025 = vld [vmem:[%s1 + $0xcc] sm:$0xf]
        %v2026 = vld [vmem:[%s1 + $0xd0] sm:$0xf]
        %v2027 = vld [vmem:[%s1 + $0xd4] sm:$0xf]
        %v2028 = vld [vmem:[%s1 + $0xd8] sm:$0xf]
        %v2029 = vld [vmem:[%s1 + $0xdc] sm:$0xf]
        %v2030 = vld [vmem:[%s1 + $0xe0] sm:$0xf]
        %v2031 = vld [vmem:[%s1 + $0xe4] sm:$0xf]
        %v2032 = vld [vmem:[%s1 + $0xe8] sm:$0xf]
        %v2033 = vld [vmem:[%s1 + $0xec] sm:$0xf]
        %v2034 = vld [vmem:[%s1 + $0xf0] sm:$0xf]
        %v2035 = vld [vmem:[%s1 + $0xf4] sm:$0xf]
        %v2036 = vld [vmem:[%s1 + $0xf8] sm:$0xf]
        %v2037 = vld [vmem:[%s1 + $0xfc] sm:$0xf]
        %v2040 = vunpack.c.l.b16 %v276
        %v2041 = vunpack.c.l.b16 %v277
        %v2042 = vpack.c.b16 %v2040, %v1034
        %v2043 = vpack.c.b16 %v2041, %v2041
        %v2044 = vrot.slane %v2042, 1
        %v2045 = vsel %vm1705, %v1739, %v2044
        %v2046 = vrot.slane %v2043, 1
        %v2047 = vsel %vm1705, %v2044, %v2046
        %v2066 = vunpack.c.l.b16 %v2022
        %v2067 = vunpack.c.l.b16 %v2023
        %v2068 = vunpack.c.l.b16 %v2024
        %v2069 = vunpack.c.l.b16 %v2025
        %v2070 = vunpack.c.l.b16 %v2026
        %v2071 = vunpack.c.l.b16 %v2027
        %v2072 = vunpack.c.l.b16 %v2028
        %v2073 = vunpack.c.l.b16 %v2029
        %v2074 = vunpack.c.l.b16 %v2030
        %v2075 = vunpack.c.l.b16 %v2031
        %v2076 = vunpack.c.l.b16 %v2032
        %v2077 = vunpack.c.l.b16 %v2033
        %v2078 = vunpack.c.l.b16 %v2034
        %v2079 = vunpack.c.l.b16 %v2035
        %v2080 = vunpack.c.l.b16 %v2036
        %v2081 = vunpack.c.l.b16 %v2037
        %v2082 = vpack.c.b16 %v2067, %v2066
        %v2083 = vpack.c.b16 %v2069, %v2068
        %v2084 = vpack.c.b16 %v2071, %v2070
        %v2085 = vpack.c.b16 %v2073, %v2072
        %v2086 = vpack.c.b16 %v2075, %v2074
        %v2087 = vpack.c.b16 %v2077, %v2076
        %v2088 = vpack.c.b16 %v2079, %v2078
        %v2089 = vpack.c.b16 %v2081, %v2080
        %2098 = vmatprep.subr.bf16.mxu0 0
        %2099 = vmatpush1.bf16.msra.mxu0 %v2089
        %2100 = vmatprep.subr.bf16.mxu0 0
        %2101 = vmatpush1.bf16.msra.mxu0 %v2088
        %2102 = vmatprep.subr.bf16.mxu0 0
        %2103 = vmatpush1.bf16.msra.mxu0 %v2087
        %2104 = vmatprep.subr.bf16.mxu0 0
        %2105 = vmatpush1.bf16.msra.mxu0 %v2086
        %2106 = vmatprep.subr.bf16.mxu0 0
        %2107 = vmatpush1.bf16.msra.mxu0 %v2085
        %2108 = vmatprep.subr.bf16.mxu0 0
        %2109 = vmatpush1.bf16.msra.mxu0 %v2084
        %2110 = vmatprep.subr.bf16.mxu0 0
        %2111 = vmatpush1.bf16.msra.mxu0 %v2083
        %2112 = vmatprep.subr.bf16.mxu0 0
        %2113 = vmatpush1.bf16.msra.mxu0 %v2082
        %2114 = vmatprep.subr.bf16.mxu0 0
        %2115 = vmatpush2.bf16.msra.mxu0 0
        %2116 = vmatprep.subr.bf16.mxu0 0
        %2117 = vmatpush2.bf16.msra.mxu0 0
        %2118 = vmatprep.subr.bf16.mxu0 0
        %2119 = vmatpush2.bf16.msra.mxu0 0
        %2120 = vmatprep.subr.bf16.mxu0 0
        %2121 = vmatpush2.bf16.msra.mxu0 0
        %2122 = vmatprep.subr.bf16.mxu0 0
        %2123 = vmatpush2.bf16.msra.mxu0 0
        %2124 = vmatprep.subr.bf16.mxu0 0
        %2125 = vmatpush2.bf16.msra.mxu0 0
        %2126 = vmatprep.subr.bf16.mxu0 0
        %2127 = vmatpush2.bf16.msra.mxu0 0
        %2128 = vmatprep.subr.bf16.mxu0 0
        %2129 = vmatpush2.bf16.msra.mxu0 0
        %2130 = vmatprep.mubr.bf16.mxu0 0
        %2131 = vmatmul.mubr.bf16.gmra.mxu0 %v1710
        %v2132 = vpop.f32.mrf.mxu0
        %v2133 = vadd.f32 0.0, %v2132
        %v2134 = vpop.f32.mrf.mxu0
        %v2135 = vpop.f32.mrf.mxu0
        %v2136 = vadd.f32 0.0, %v2135
        %v2137 = vpop.f32.mrf.mxu0
        %2138 = vmatprep.mubr.bf16.mxu0 0
        %2139 = vmatmul.mubr.bf16.gmra.mxu0 %v1712
        %v2140 = vpop.f32.mrf.mxu0
        %v2141 = vadd.f32 0.0, %v2140
        %v2142 = vpop.f32.mrf.mxu0
        %v2143 = vpop.f32.mrf.mxu0
        %v2144 = vadd.f32 0.0, %v2143
        %v2145 = vpop.f32.mrf.mxu0
        %2146 = vmatprep.mubr.bf16.mxu0 0
        %2147 = vmatmul.mubr.bf16.gmra.mxu0 %v1714
        %v2148 = vpop.f32.mrf.mxu0
        %v2149 = vadd.f32 0.0, %v2148
        %v2150 = vpop.f32.mrf.mxu0
        %v2151 = vpop.f32.mrf.mxu0
        %v2152 = vadd.f32 0.0, %v2151
        %v2153 = vpop.f32.mrf.mxu0
        %2154 = vmatprep.mubr.bf16.mxu0 0
        %2155 = vmatmul.mubr.bf16.gmra.mxu0 %v1716
        %v2156 = vpop.f32.mrf.mxu0
        %v2157 = vadd.f32 0.0, %v2156
        %v2158 = vpop.f32.mrf.mxu0
        %v2159 = vpop.f32.mrf.mxu0
        %v2160 = vadd.f32 0.0, %v2159
        %v2161 = vpop.f32.mrf.mxu0
        %2162 = vmatprep.mubr.bf16.mxu0 0
        %2163 = vmatmul.mubr.bf16.gmra.mxu0 %v1718
        %v2164 = vpop.f32.mrf.mxu0
        %v2165 = vadd.f32 0.0, %v2164
        %v2166 = vpop.f32.mrf.mxu0
        %v2167 = vpop.f32.mrf.mxu0
        %v2168 = vadd.f32 0.0, %v2167
        %v2169 = vpop.f32.mrf.mxu0
        %2170 = vmatprep.mubr.bf16.mxu0 0
        %2171 = vmatmul.mubr.bf16.gmra.mxu0 %v1720
        %v2172 = vpop.f32.mrf.mxu0
        %v2173 = vadd.f32 0.0, %v2172
        %v2174 = vpop.f32.mrf.mxu0
        %v2175 = vpop.f32.mrf.mxu0
        %v2176 = vadd.f32 0.0, %v2175
        %v2177 = vpop.f32.mrf.mxu0
        %2178 = vmatprep.mubr.bf16.mxu0 0
        %2179 = vmatmul.mubr.bf16.gmra.mxu0 %v1722
        %v2180 = vpop.f32.mrf.mxu0
        %v2181 = vadd.f32 0.0, %v2180
        %v2182 = vpop.f32.mrf.mxu0
        %v2183 = vpop.f32.mrf.mxu0
        %v2184 = vadd.f32 0.0, %v2183
        %v2185 = vpop.f32.mrf.mxu0
        %2186 = vmatprep.mubr.bf16.mxu0 0
        %2187 = vmatmul.mubr.bf16.gmra.mxu0 %v1724
        %v2188 = vpop.f32.mrf.mxu0
        %v2189 = vadd.f32 0.0, %v2188
        %v2190 = vpop.f32.mrf.mxu0
        %v2191 = vpop.f32.mrf.mxu0
        %v2192 = vadd.f32 0.0, %v2191
        %v2193 = vpop.f32.mrf.mxu0
        %2194 = vmatprep.mubr.bf16.mxu0 0
        %2195 = vmatmul.mubr.bf16.gmra.mxu0 %v1726
        %v2196 = vpop.f32.mrf.mxu0
        %v2197 = vadd.f32 0.0, %v2196
        %v2198 = vpop.f32.mrf.mxu0
        %v2199 = vpop.f32.mrf.mxu0
        %v2200 = vadd.f32 0.0, %v2199
        %v2201 = vpop.f32.mrf.mxu0
        %2202 = vmatprep.mubr.bf16.mxu0 0
        %2203 = vmatmul.mubr.bf16.gmra.mxu0 %v1728
        %v2204 = vpop.f32.mrf.mxu0
        %v2205 = vadd.f32 0.0, %v2204
        %v2206 = vpop.f32.mrf.mxu0
        %v2207 = vpop.f32.mrf.mxu0
        %v2208 = vadd.f32 0.0, %v2207
        %v2209 = vpop.f32.mrf.mxu0
        %2210 = vmatprep.mubr.bf16.mxu0 0
        %2211 = vmatmul.mubr.bf16.gmra.mxu0 %v1730
        %v2212 = vpop.f32.mrf.mxu0
        %v2213 = vadd.f32 0.0, %v2212
        %v2214 = vpop.f32.mrf.mxu0
        %v2215 = vpop.f32.mrf.mxu0
        %v2216 = vadd.f32 0.0, %v2215
        %v2217 = vpop.f32.mrf.mxu0
        %2218 = vmatprep.mubr.bf16.mxu0 0
        %2219 = vmatmul.mubr.bf16.gmra.mxu0 %v1732
        %v2220 = vpop.f32.mrf.mxu0
        %v2221 = vadd.f32 0.0, %v2220
        %v2222 = vpop.f32.mrf.mxu0
        %v2223 = vpop.f32.mrf.mxu0
        %v2224 = vadd.f32 0.0, %v2223
        %v2225 = vpop.f32.mrf.mxu0
        %2226 = vmatprep.mubr.bf16.mxu0 0
        %2227 = vmatmul.mubr.bf16.gmra.mxu0 %v1734
        %v2228 = vpop.f32.mrf.mxu0
        %v2229 = vadd.f32 0.0, %v2228
        %v2230 = vpop.f32.mrf.mxu0
        %v2231 = vpop.f32.mrf.mxu0
        %v2232 = vadd.f32 0.0, %v2231
        %v2233 = vpop.f32.mrf.mxu0
        %2234 = vmatprep.mubr.bf16.mxu0 0
        %2235 = vmatmul.mubr.bf16.gmra.mxu0 %v1736
        %v2236 = vpop.f32.mrf.mxu0
        %v2237 = vadd.f32 0.0, %v2236
        %v2238 = vpop.f32.mrf.mxu0
        %v2239 = vpop.f32.mrf.mxu0
        %v2240 = vadd.f32 0.0, %v2239
        %v2241 = vpop.f32.mrf.mxu0
        %2242 = vmatprep.mubr.bf16.mxu0 0
        %2243 = vmatmul.mubr.bf16.gmra.mxu0 %v1738
        %v2244 = vpop.f32.mrf.mxu0
        %v2245 = vadd.f32 0.0, %v2244
        %v2246 = vpop.f32.mrf.mxu0
        %v2247 = vpop.f32.mrf.mxu0
        %v2248 = vadd.f32 0.0, %v2247
        %v2249 = vpop.f32.mrf.mxu0
        %2250 = vmatprep.mubr.bf16.mxu0 0
        %2251 = vmatmul.mubr.bf16.gmra.mxu0 %v1740
        %v2252 = vpop.f32.mrf.mxu0
        %v2253 = vadd.f32 0.0, %v2252
        %v2254 = vpop.f32.mrf.mxu0
        %v2255 = vpop.f32.mrf.mxu0
        %v2256 = vadd.f32 0.0, %v2255
        %v2257 = vpop.f32.mrf.mxu0
        %2258 = vmatprep.mubr.bf16.mxu0 0
        %2259 = vmatmul.mubr.bf16.gmra.mxu0 %v2045
        %v2260 = vpop.f32.mrf.mxu0
        %v2261 = vadd.f32 0.0, %v2260
        %v2262 = vpop.f32.mrf.mxu0
        %v2263 = vpop.f32.mrf.mxu0
        %v2264 = vadd.f32 0.0, %v2263
        %v2265 = vpop.f32.mrf.mxu0
        %2266 = vmatprep.mubr.bf16.mxu0 0
        %2267 = vmatmul.mubr.bf16.gmra.mxu0 %v2047
        %v2268 = vpop.f32.mrf.mxu0
        %v2269 = vadd.f32 0.0, %v2268
        %v2270 = vpop.f32.mrf.mxu0
        %v2271 = vpop.f32.mrf.mxu0
        %v2272 = vadd.f32 0.0, %v2271
        %v2273 = vpop.f32.mrf.mxu0
        %2274 = vdwg.mxu0
        %v2275 = vadd.f32 %v1986, %v2133
        %v2276 = vadd.f32 %v1987, %v2136
        %v2277 = vadd.f32 %v1988, %v2141
        %v2278 = vadd.f32 %v1989, %v2144
        %v2279 = vadd.f32 %v1990, %v2149
        %v2280 = vadd.f32 %v1991, %v2152
        %v2281 = vadd.f32 %v1992, %v2157
        %v2282 = vadd.f32 %v1993, %v2160
        %v2283 = vadd.f32 %v1994, %v2165
        %v2284 = vadd.f32 %v1995, %v2168
        %v2285 = vadd.f32 %v1996, %v2173
        %v2286 = vadd.f32 %v1997, %v2176
        %v2287 = vadd.f32 %v1998, %v2181
        %v2288 = vadd.f32 %v1999, %v2184
        %v2289 = vadd.f32 %v2000, %v2189
        %v2290 = vadd.f32 %v2001, %v2192
        %v2291 = vadd.f32 %v2002, %v2197
        %v2292 = vadd.f32 %v2003, %v2200
        %v2293 = vadd.f32 %v2004, %v2205
        %v2294 = vadd.f32 %v2005, %v2208
        %v2295 = vadd.f32 %v2006, %v2213
        %v2296 = vadd.f32 %v2007, %v2216
        %v2297 = vadd.f32 %v2008, %v2221
        %v2298 = vadd.f32 %v2009, %v2224
        %v2299 = vadd.f32 %v2010, %v2229
        %v2300 = vadd.f32 %v2011, %v2232
        %v2301 = vadd.f32 %v2012, %v2237
        %v2302 = vadd.f32 %v2013, %v2240
        %v2303 = vadd.f32 %v2014, %v2245
        %v2304 = vadd.f32 %v2015, %v2248
        %v2305 = vadd.f32 %v2016, %v2253
        %v2306 = vadd.f32 %v2017, %v2256
        %v2307 = vadd.f32 %v2018, %v2261
        %v2308 = vadd.f32 %v2019, %v2264
        %v2309 = vadd.f32 %v2020, %v2269
        %v2310 = vadd.f32 %v2021, %v2272
        %v2311 = vld [vmem:[%s1 + $0x100] sm:$0xf]
        %v2312 = vld [vmem:[%s1 + $0x104] sm:$0xf]
        %v2313 = vld [vmem:[%s1 + $0x108] sm:$0xf]
        %v2314 = vld [vmem:[%s1 + $0x10c] sm:$0xf]
        %v2315 = vld [vmem:[%s1 + $0x110] sm:$0xf]
        %v2316 = vld [vmem:[%s1 + $0x114] sm:$0xf]
        %v2317 = vld [vmem:[%s1 + $0x118] sm:$0xf]
        %v2318 = vld [vmem:[%s1 + $0x11c] sm:$0xf]
        %v2319 = vld [vmem:[%s1 + $0x120] sm:$0xf]
        %v2320 = vld [vmem:[%s1 + $0x124] sm:$0xf]
        %v2321 = vld [vmem:[%s1 + $0x128] sm:$0xf]
        %v2322 = vld [vmem:[%s1 + $0x12c] sm:$0xf]
        %v2323 = vld [vmem:[%s1 + $0x130] sm:$0xf]
        %v2324 = vld [vmem:[%s1 + $0x134] sm:$0xf]
        %v2325 = vld [vmem:[%s1 + $0x138] sm:$0xf]
        %v2326 = vld [vmem:[%s1 + $0x13c] sm:$0xf]
        %vm2327 = vsmask.f32 6400
        %v2328 = vrot.slane %v1067, 1
        %v2329 = vrot.slane %v1063, 2
        %v2330 = vor.u32 %v2328, %v2329
        %v2331 = vrot.slane %v1075, 1
        %v2332 = vrot.slane %v1071, 2
        %v2333 = vor.u32 %v2331, %v2332
        %v2334 = vsel %vm2327, %v2330, %v2333
        %v2335 = vrot.slane %v1083, 1
        %v2336 = vrot.slane %v1079, 2
        %v2337 = vor.u32 %v2335, %v2336
        %v2338 = vsel %vm2327, %v2333, %v2337
        %v2339 = vrot.slane %v1091, 1
        %v2340 = vrot.slane %v1087, 2
        %v2341 = vor.u32 %v2339, %v2340
        %v2342 = vsel %vm2327, %v2337, %v2341
        %v2343 = vrot.slane %v1099, 1
        %v2344 = vrot.slane %v1095, 2
        %v2345 = vor.u32 %v2343, %v2344
        %v2346 = vsel %vm2327, %v2341, %v2345
        %v2347 = vrot.slane %v1107, 1
        %v2348 = vrot.slane %v1103, 2
        %v2349 = vor.u32 %v2347, %v2348
        %v2350 = vsel %vm2327, %v2345, %v2349
        %v2351 = vrot.slane %v1115, 1
        %v2352 = vrot.slane %v1111, 2
        %v2353 = vor.u32 %v2351, %v2352
        %v2354 = vsel %vm2327, %v2349, %v2353
        %v2355 = vrot.slane %v1123, 1
        %v2356 = vrot.slane %v1119, 2
        %v2357 = vor.u32 %v2355, %v2356
        %v2358 = vsel %vm2327, %v2353, %v2357
        %v2359 = vrot.slane %v1131, 1
        %v2360 = vrot.slane %v1127, 2
        %v2361 = vor.u32 %v2359, %v2360
        %v2362 = vsel %vm2327, %v2357, %v2361
        %v2363 = vrot.slane %v1139, 1
        %v2364 = vrot.slane %v1135, 2
        %v2365 = vor.u32 %v2363, %v2364
        %v2366 = vsel %vm2327, %v2361, %v2365
        %v2367 = vrot.slane %v1147, 1
        %v2368 = vrot.slane %v1143, 2
        %v2369 = vor.u32 %v2367, %v2368
        %v2370 = vsel %vm2327, %v2365, %v2369
        %v2371 = vrot.slane %v1155, 1
        %v2372 = vrot.slane %v1151, 2
        %v2373 = vor.u32 %v2371, %v2372
        %v2374 = vsel %vm2327, %v2369, %v2373
        %v2375 = vrot.slane %v1163, 1
        %v2376 = vrot.slane %v1159, 2
        %v2377 = vor.u32 %v2375, %v2376
        %v2378 = vsel %vm2327, %v2373, %v2377
        %v2379 = vrot.slane %v1171, 1
        %v2380 = vrot.slane %v1167, 2
        %v2381 = vor.u32 %v2379, %v2380
        %v2382 = vsel %vm2327, %v2377, %v2381
        %v2383 = vrot.slane %v1179, 1
        %v2384 = vrot.slane %v1175, 2
        %v2385 = vor.u32 %v2383, %v2384
        %v2386 = vsel %vm2327, %v2381, %v2385
        %v2387 = vrot.slane %v1187, 1
        %v2388 = vrot.slane %v1183, 2
        %v2389 = vor.u32 %v2387, %v2388
        %v2390 = vsel %vm2327, %v2385, %v2389
        %v2391 = vrot.slane %v1195, 1
        %v2392 = vrot.slane %v1191, 2
        %v2393 = vor.u32 %v2391, %v2392
        %v2394 = vsel %vm2327, %v2389, %v2393
        %v2396 = vshrl.u32 %v2042, 16
        %v2398 = vrot.slane %v2396, 1
        %v2399 = vshll.u32 %v2042, 16
        %v2401 = vrot.slane %v2399, 2
        %v2402 = vor.u32 %v2398, %v2401
        %v2403 = vsel %vm2327, %v2393, %v2402
        %v2405 = vshrl.u32 %v2043, 16
        %v2407 = vrot.slane %v2405, 1
        %v2408 = vshll.u32 %v2043, 16
        %v2410 = vrot.slane %v2408, 2
        %v2411 = vor.u32 %v2407, %v2410
        %v2412 = vsel %vm2327, %v2402, %v2411
        %v2447 = vunpack.c.l.b16 %v2311
        %v2448 = vunpack.c.l.b16 %v2312
        %v2449 = vunpack.c.l.b16 %v2313
        %v2450 = vunpack.c.l.b16 %v2314
        %v2451 = vunpack.c.l.b16 %v2315
        %v2452 = vunpack.c.l.b16 %v2316
        %v2453 = vunpack.c.l.b16 %v2317
        %v2454 = vunpack.c.l.b16 %v2318
        %v2455 = vunpack.c.l.b16 %v2319
        %v2456 = vunpack.c.l.b16 %v2320
        %v2457 = vunpack.c.l.b16 %v2321
        %v2458 = vunpack.c.l.b16 %v2322
        %v2459 = vunpack.c.l.b16 %v2323
        %v2460 = vunpack.c.l.b16 %v2324
        %v2461 = vunpack.c.l.b16 %v2325
        %v2462 = vunpack.c.l.b16 %v2326
        %v2463 = vpack.c.b16 %v2448, %v2447
        %v2464 = vpack.c.b16 %v2450, %v2449
        %v2465 = vpack.c.b16 %v2452, %v2451
        %v2466 = vpack.c.b16 %v2454, %v2453
        %v2467 = vpack.c.b16 %v2456, %v2455
        %v2468 = vpack.c.b16 %v2458, %v2457
        %v2469 = vpack.c.b16 %v2460, %v2459
        %v2470 = vpack.c.b16 %v2462, %v2461
        %2479 = vmatprep.subr.bf16.mxu0 0
        %2480 = vmatpush1.bf16.msra.mxu0 %v2470
        %2481 = vmatprep.subr.bf16.mxu0 0
        %2482 = vmatpush1.bf16.msra.mxu0 %v2469
        %2483 = vmatprep.subr.bf16.mxu0 0
        %2484 = vmatpush1.bf16.msra.mxu0 %v2468
        %2485 = vmatprep.subr.bf16.mxu0 0
        %2486 = vmatpush1.bf16.msra.mxu0 %v2467
        %2487 = vmatprep.subr.bf16.mxu0 0
        %2488 = vmatpush1.bf16.msra.mxu0 %v2466
        %2489 = vmatprep.subr.bf16.mxu0 0
        %2490 = vmatpush1.bf16.msra.mxu0 %v2465
        %2491 = vmatprep.subr.bf16.mxu0 0
        %2492 = vmatpush1.bf16.msra.mxu0 %v2464
        %2493 = vmatprep.subr.bf16.mxu0 0
        %2494 = vmatpush1.bf16.msra.mxu0 %v2463
        %2495 = vmatprep.subr.bf16.mxu0 0
        %2496 = vmatpush2.bf16.msra.mxu0 0
        %2497 = vmatprep.subr.bf16.mxu0 0
        %2498 = vmatpush2.bf16.msra.mxu0 0
        %2499 = vmatprep.subr.bf16.mxu0 0
        %2500 = vmatpush2.bf16.msra.mxu0 0
        %2501 = vmatprep.subr.bf16.mxu0 0
        %2502 = vmatpush2.bf16.msra.mxu0 0
        %2503 = vmatprep.subr.bf16.mxu0 0
        %2504 = vmatpush2.bf16.msra.mxu0 0
        %2505 = vmatprep.subr.bf16.mxu0 0
        %2506 = vmatpush2.bf16.msra.mxu0 0
        %2507 = vmatprep.subr.bf16.mxu0 0
        %2508 = vmatpush2.bf16.msra.mxu0 0
        %2509 = vmatprep.subr.bf16.mxu0 0
        %2510 = vmatpush2.bf16.msra.mxu0 0
        %2511 = vmatprep.mubr.bf16.mxu0 0
        %2512 = vmatmul.mubr.bf16.gmra.mxu0 %v2334
        %v2513 = vpop.f32.mrf.mxu0
        %v2514 = vadd.f32 0.0, %v2513
        %v2515 = vpop.f32.mrf.mxu0
        %v2516 = vpop.f32.mrf.mxu0
        %v2517 = vadd.f32 0.0, %v2516
        %v2518 = vpop.f32.mrf.mxu0
        %2519 = vmatprep.mubr.bf16.mxu0 0
        %2520 = vmatmul.mubr.bf16.gmra.mxu0 %v2338
        %v2521 = vpop.f32.mrf.mxu0
        %v2522 = vadd.f32 0.0, %v2521
        %v2523 = vpop.f32.mrf.mxu0
        %v2524 = vpop.f32.mrf.mxu0
        %v2525 = vadd.f32 0.0, %v2524
        %v2526 = vpop.f32.mrf.mxu0
        %2527 = vmatprep.mubr.bf16.mxu0 0
        %2528 = vmatmul.mubr.bf16.gmra.mxu0 %v2342
        %v2529 = vpop.f32.mrf.mxu0
        %v2530 = vadd.f32 0.0, %v2529
        %v2531 = vpop.f32.mrf.mxu0
        %v2532 = vpop.f32.mrf.mxu0
        %v2533 = vadd.f32 0.0, %v2532
        %v2534 = vpop.f32.mrf.mxu0
        %2535 = vmatprep.mubr.bf16.mxu0 0
        %2536 = vmatmul.mubr.bf16.gmra.mxu0 %v2346
        %v2537 = vpop.f32.mrf.mxu0
        %v2538 = vadd.f32 0.0, %v2537
        %v2539 = vpop.f32.mrf.mxu0
        %v2540 = vpop.f32.mrf.mxu0
        %v2541 = vadd.f32 0.0, %v2540
        %v2542 = vpop.f32.mrf.mxu0
        %2543 = vmatprep.mubr.bf16.mxu0 0
        %2544 = vmatmul.mubr.bf16.gmra.mxu0 %v2350
        %v2545 = vpop.f32.mrf.mxu0
        %v2546 = vadd.f32 0.0, %v2545
        %v2547 = vpop.f32.mrf.mxu0
        %v2548 = vpop.f32.mrf.mxu0
        %v2549 = vadd.f32 0.0, %v2548
        %v2550 = vpop.f32.mrf.mxu0
        %2551 = vmatprep.mubr.bf16.mxu0 0
        %2552 = vmatmul.mubr.bf16.gmra.mxu0 %v2354
        %v2553 = vpop.f32.mrf.mxu0
        %v2554 = vadd.f32 0.0, %v2553
        %v2555 = vpop.f32.mrf.mxu0
        %v2556 = vpop.f32.mrf.mxu0
        %v2557 = vadd.f32 0.0, %v2556
        %v2558 = vpop.f32.mrf.mxu0
        %2559 = vmatprep.mubr.bf16.mxu0 0
        %2560 = vmatmul.mubr.bf16.gmra.mxu0 %v2358
        %v2561 = vpop.f32.mrf.mxu0
        %v2562 = vadd.f32 0.0, %v2561
        %v2563 = vpop.f32.mrf.mxu0
        %v2564 = vpop.f32.mrf.mxu0
        %v2565 = vadd.f32 0.0, %v2564
        %v2566 = vpop.f32.mrf.mxu0
        %2567 = vmatprep.mubr.bf16.mxu0 0
        %2568 = vmatmul.mubr.bf16.gmra.mxu0 %v2362
        %v2569 = vpop.f32.mrf.mxu0
        %v2570 = vadd.f32 0.0, %v2569
        %v2571 = vpop.f32.mrf.mxu0
        %v2572 = vpop.f32.mrf.mxu0
        %v2573 = vadd.f32 0.0, %v2572
        %v2574 = vpop.f32.mrf.mxu0
        %2575 = vmatprep.mubr.bf16.mxu0 0
        %2576 = vmatmul.mubr.bf16.gmra.mxu0 %v2366
        %v2577 = vpop.f32.mrf.mxu0
        %v2578 = vadd.f32 0.0, %v2577
        %v2579 = vpop.f32.mrf.mxu0
        %v2580 = vpop.f32.mrf.mxu0
        %v2581 = vadd.f32 0.0, %v2580
        %v2582 = vpop.f32.mrf.mxu0
        %2583 = vmatprep.mubr.bf16.mxu0 0
        %2584 = vmatmul.mubr.bf16.gmra.mxu0 %v2370
        %v2585 = vpop.f32.mrf.mxu0
        %v2586 = vadd.f32 0.0, %v2585
        %v2587 = vpop.f32.mrf.mxu0
        %v2588 = vpop.f32.mrf.mxu0
        %v2589 = vadd.f32 0.0, %v2588
        %v2590 = vpop.f32.mrf.mxu0
        %2591 = vmatprep.mubr.bf16.mxu0 0
        %2592 = vmatmul.mubr.bf16.gmra.mxu0 %v2374
        %v2593 = vpop.f32.mrf.mxu0
        %v2594 = vadd.f32 0.0, %v2593
        %v2595 = vpop.f32.mrf.mxu0
        %v2596 = vpop.f32.mrf.mxu0
        %v2597 = vadd.f32 0.0, %v2596
        %v2598 = vpop.f32.mrf.mxu0
        %2599 = vmatprep.mubr.bf16.mxu0 0
        %2600 = vmatmul.mubr.bf16.gmra.mxu0 %v2378
        %v2601 = vpop.f32.mrf.mxu0
        %v2602 = vadd.f32 0.0, %v2601
        %v2603 = vpop.f32.mrf.mxu0
        %v2604 = vpop.f32.mrf.mxu0
        %v2605 = vadd.f32 0.0, %v2604
        %v2606 = vpop.f32.mrf.mxu0
        %2607 = vmatprep.mubr.bf16.mxu0 0
        %2608 = vmatmul.mubr.bf16.gmra.mxu0 %v2382
        %v2609 = vpop.f32.mrf.mxu0
        %v2610 = vadd.f32 0.0, %v2609
        %v2611 = vpop.f32.mrf.mxu0
        %v2612 = vpop.f32.mrf.mxu0
        %v2613 = vadd.f32 0.0, %v2612
        %v2614 = vpop.f32.mrf.mxu0
        %2615 = vmatprep.mubr.bf16.mxu0 0
        %2616 = vmatmul.mubr.bf16.gmra.mxu0 %v2386
        %v2617 = vpop.f32.mrf.mxu0
        %v2618 = vadd.f32 0.0, %v2617
        %v2619 = vpop.f32.mrf.mxu0
        %v2620 = vpop.f32.mrf.mxu0
        %v2621 = vadd.f32 0.0, %v2620
        %v2622 = vpop.f32.mrf.mxu0
        %2623 = vmatprep.mubr.bf16.mxu0 0
        %2624 = vmatmul.mubr.bf16.gmra.mxu0 %v2390
        %v2625 = vpop.f32.mrf.mxu0
        %v2626 = vadd.f32 0.0, %v2625
        %v2627 = vpop.f32.mrf.mxu0
        %v2628 = vpop.f32.mrf.mxu0
        %v2629 = vadd.f32 0.0, %v2628
        %v2630 = vpop.f32.mrf.mxu0
        %2631 = vmatprep.mubr.bf16.mxu0 0
        %2632 = vmatmul.mubr.bf16.gmra.mxu0 %v2394
        %v2633 = vpop.f32.mrf.mxu0
        %v2634 = vadd.f32 0.0, %v2633
        %v2635 = vpop.f32.mrf.mxu0
        %v2636 = vpop.f32.mrf.mxu0
        %v2637 = vadd.f32 0.0, %v2636
        %v2638 = vpop.f32.mrf.mxu0
        %2639 = vmatprep.mubr.bf16.mxu0 0
        %2640 = vmatmul.mubr.bf16.gmra.mxu0 %v2403
        %v2641 = vpop.f32.mrf.mxu0
        %v2642 = vadd.f32 0.0, %v2641
        %v2643 = vpop.f32.mrf.mxu0
        %v2644 = vpop.f32.mrf.mxu0
        %v2645 = vadd.f32 0.0, %v2644
        %v2646 = vpop.f32.mrf.mxu0
        %2647 = vmatprep.mubr.bf16.mxu0 0
        %2648 = vmatmul.mubr.bf16.gmra.mxu0 %v2412
        %v2649 = vpop.f32.mrf.mxu0
        %v2650 = vadd.f32 0.0, %v2649
        %v2651 = vpop.f32.mrf.mxu0
        %v2652 = vpop.f32.mrf.mxu0
        %v2653 = vadd.f32 0.0, %v2652
        %v2654 = vpop.f32.mrf.mxu0
        %2655 = vdwg.mxu0
        %v2656 = vadd.f32 %v2275, %v2514
        %v2657 = vadd.f32 %v2276, %v2517
        %v2658 = vadd.f32 %v2277, %v2522
        %v2659 = vadd.f32 %v2278, %v2525
        %v2660 = vadd.f32 %v2279, %v2530
        %v2661 = vadd.f32 %v2280, %v2533
        %v2662 = vadd.f32 %v2281, %v2538
        %v2663 = vadd.f32 %v2282, %v2541
        %v2664 = vadd.f32 %v2283, %v2546
        %v2665 = vadd.f32 %v2284, %v2549
        %v2666 = vadd.f32 %v2285, %v2554
        %v2667 = vadd.f32 %v2286, %v2557
        %v2668 = vadd.f32 %v2287, %v2562
        %v2669 = vadd.f32 %v2288, %v2565
        %v2670 = vadd.f32 %v2289, %v2570
        %v2671 = vadd.f32 %v2290, %v2573
        %v2672 = vadd.f32 %v2291, %v2578
        %v2673 = vadd.f32 %v2292, %v2581
        %v2674 = vadd.f32 %v2293, %v2586
        %v2675 = vadd.f32 %v2294, %v2589
        %v2676 = vadd.f32 %v2295, %v2594
        %v2677 = vadd.f32 %v2296, %v2597
        %v2678 = vadd.f32 %v2297, %v2602
        %v2679 = vadd.f32 %v2298, %v2605
        %v2680 = vadd.f32 %v2299, %v2610
        %v2681 = vadd.f32 %v2300, %v2613
        %v2682 = vadd.f32 %v2301, %v2618
        %v2683 = vadd.f32 %v2302, %v2621
        %v2684 = vadd.f32 %v2303, %v2626
        %v2685 = vadd.f32 %v2304, %v2629
        %v2686 = vadd.f32 %v2305, %v2634
        %v2687 = vadd.f32 %v2306, %v2637
        %v2688 = vadd.f32 %v2307, %v2642
        %v2689 = vadd.f32 %v2308, %v2645
        %v2690 = vadd.f32 %v2309, %v2650
        %v2691 = vadd.f32 %v2310, %v2653
        %v2692 = vld [vmem:[%s1 + $0x140] sm:$0xf]
        %v2693 = vld [vmem:[%s1 + $0x144] sm:$0xf]
        %v2694 = vld [vmem:[%s1 + $0x148] sm:$0xf]
        %v2695 = vld [vmem:[%s1 + $0x14c] sm:$0xf]
        %v2696 = vld [vmem:[%s1 + $0x150] sm:$0xf]
        %v2697 = vld [vmem:[%s1 + $0x154] sm:$0xf]
        %v2698 = vld [vmem:[%s1 + $0x158] sm:$0xf]
        %v2699 = vld [vmem:[%s1 + $0x15c] sm:$0xf]
        %v2700 = vld [vmem:[%s1 + $0x160] sm:$0xf]
        %v2701 = vld [vmem:[%s1 + $0x164] sm:$0xf]
        %v2702 = vld [vmem:[%s1 + $0x168] sm:$0xf]
        %v2703 = vld [vmem:[%s1 + $0x16c] sm:$0xf]
        %v2704 = vld [vmem:[%s1 + $0x170] sm:$0xf]
        %v2705 = vld [vmem:[%s1 + $0x174] sm:$0xf]
        %v2706 = vld [vmem:[%s1 + $0x178] sm:$0xf]
        %v2707 = vld [vmem:[%s1 + $0x17c] sm:$0xf]
        %vm2708 = vcmask 1045504
        %v2709 = vrot.slane %v1036, 2
        %v2710 = vrot.slane %v1037, 2
        %v2711 = vsel %vm2708, %v2709, %v2710
        %v2712 = vrot.slane %v1038, 2
        %v2713 = vsel %vm2708, %v2710, %v2712
        %v2714 = vrot.slane %v1039, 2
        %v2715 = vsel %vm2708, %v2712, %v2714
        %v2716 = vrot.slane %v1040, 2
        %v2717 = vsel %vm2708, %v2714, %v2716
        %v2718 = vrot.slane %v1041, 2
        %v2719 = vsel %vm2708, %v2716, %v2718
        %v2720 = vrot.slane %v1042, 2
        %v2721 = vsel %vm2708, %v2718, %v2720
        %v2722 = vrot.slane %v1043, 2
        %v2723 = vsel %vm2708, %v2720, %v2722
        %v2724 = vrot.slane %v1044, 2
        %v2725 = vsel %vm2708, %v2722, %v2724
        %v2726 = vrot.slane %v1045, 2
        %v2727 = vsel %vm2708, %v2724, %v2726
        %v2728 = vrot.slane %v1046, 2
        %v2729 = vsel %vm2708, %v2726, %v2728
        %v2730 = vrot.slane %v1047, 2
        %v2731 = vsel %vm2708, %v2728, %v2730
        %v2732 = vrot.slane %v1048, 2
        %v2733 = vsel %vm2708, %v2730, %v2732
        %v2734 = vrot.slane %v1049, 2
        %v2735 = vsel %vm2708, %v2732, %v2734
        %v2736 = vrot.slane %v1050, 2
        %v2737 = vsel %vm2708, %v2734, %v2736
        %v2738 = vrot.slane %v1051, 2
        %v2739 = vsel %vm2708, %v2736, %v2738
        %v2740 = vrot.slane %v1052, 2
        %v2741 = vsel %vm2708, %v2738, %v2740
        %v2742 = vrot.slane %v2042, 2
        %v2743 = vsel %vm2708, %v2740, %v2742
        %v2744 = vrot.slane %v2043, 2
        %v2745 = vsel %vm2708, %v2742, %v2744
        %v2780 = vunpack.c.l.b16 %v2692
        %v2781 = vunpack.c.l.b16 %v2693
        %v2782 = vunpack.c.l.b16 %v2694
        %v2783 = vunpack.c.l.b16 %v2695
        %v2784 = vunpack.c.l.b16 %v2696
        %v2785 = vunpack.c.l.b16 %v2697
        %v2786 = vunpack.c.l.b16 %v2698
        %v2787 = vunpack.c.l.b16 %v2699
        %v2788 = vunpack.c.l.b16 %v2700
        %v2789 = vunpack.c.l.b16 %v2701
        %v2790 = vunpack.c.l.b16 %v2702
        %v2791 = vunpack.c.l.b16 %v2703
        %v2792 = vunpack.c.l.b16 %v2704
        %v2793 = vunpack.c.l.b16 %v2705
        %v2794 = vunpack.c.l.b16 %v2706
        %v2795 = vunpack.c.l.b16 %v2707
        %v2796 = vpack.c.b16 %v2781, %v2780
        %v2797 = vpack.c.b16 %v2783, %v2782
        %v2798 = vpack.c.b16 %v2785, %v2784
        %v2799 = vpack.c.b16 %v2787, %v2786
        %v2800 = vpack.c.b16 %v2789, %v2788
        %v2801 = vpack.c.b16 %v2791, %v2790
        %v2802 = vpack.c.b16 %v2793, %v2792
        %v2803 = vpack.c.b16 %v2795, %v2794
        %2812 = vmatprep.subr.bf16.mxu0 0
        %2813 = vmatpush1.bf16.msra.mxu0 %v2803
        %2814 = vmatprep.subr.bf16.mxu0 0
        %2815 = vmatpush1.bf16.msra.mxu0 %v2802
        %2816 = vmatprep.subr.bf16.mxu0 0
        %2817 = vmatpush1.bf16.msra.mxu0 %v2801
        %2818 = vmatprep.subr.bf16.mxu0 0
        %2819 = vmatpush1.bf16.msra.mxu0 %v2800
        %2820 = vmatprep.subr.bf16.mxu0 0
        %2821 = vmatpush1.bf16.msra.mxu0 %v2799
        %2822 = vmatprep.subr.bf16.mxu0 0
        %2823 = vmatpush1.bf16.msra.mxu0 %v2798
        %2824 = vmatprep.subr.bf16.mxu0 0
        %2825 = vmatpush1.bf16.msra.mxu0 %v2797
        %2826 = vmatprep.subr.bf16.mxu0 0
        %2827 = vmatpush1.bf16.msra.mxu0 %v2796
        %2828 = vmatprep.subr.bf16.mxu0 0
        %2829 = vmatpush2.bf16.msra.mxu0 0
        %2830 = vmatprep.subr.bf16.mxu0 0
        %2831 = vmatpush2.bf16.msra.mxu0 0
        %2832 = vmatprep.subr.bf16.mxu0 0
        %2833 = vmatpush2.bf16.msra.mxu0 0
        %2834 = vmatprep.subr.bf16.mxu0 0
        %2835 = vmatpush2.bf16.msra.mxu0 0
        %2836 = vmatprep.subr.bf16.mxu0 0
        %2837 = vmatpush2.bf16.msra.mxu0 0
        %2838 = vmatprep.subr.bf16.mxu0 0
        %2839 = vmatpush2.bf16.msra.mxu0 0
        %2840 = vmatprep.subr.bf16.mxu0 0
        %2841 = vmatpush2.bf16.msra.mxu0 0
        %2842 = vmatprep.subr.bf16.mxu0 0
        %2843 = vmatpush2.bf16.msra.mxu0 0
        %2844 = vmatprep.mubr.bf16.mxu0 0
        %2845 = vmatmul.mubr.bf16.gmra.mxu0 %v2711
        %v2846 = vpop.f32.mrf.mxu0
        %v2847 = vadd.f32 0.0, %v2846
        %v2848 = vpop.f32.mrf.mxu0
        %v2849 = vpop.f32.mrf.mxu0
        %v2850 = vadd.f32 0.0, %v2849
        %v2851 = vpop.f32.mrf.mxu0
        %2852 = vmatprep.mubr.bf16.mxu0 0
        %2853 = vmatmul.mubr.bf16.gmra.mxu0 %v2713
        %v2854 = vpop.f32.mrf.mxu0
        %v2855 = vadd.f32 0.0, %v2854
        %v2856 = vpop.f32.mrf.mxu0
        %v2857 = vpop.f32.mrf.mxu0
        %v2858 = vadd.f32 0.0, %v2857
        %v2859 = vpop.f32.mrf.mxu0
        %2860 = vmatprep.mubr.bf16.mxu0 0
        %2861 = vmatmul.mubr.bf16.gmra.mxu0 %v2715
        %v2862 = vpop.f32.mrf.mxu0
        %v2863 = vadd.f32 0.0, %v2862
        %v2864 = vpop.f32.mrf.mxu0
        %v2865 = vpop.f32.mrf.mxu0
        %v2866 = vadd.f32 0.0, %v2865
        %v2867 = vpop.f32.mrf.mxu0
        %2868 = vmatprep.mubr.bf16.mxu0 0
        %2869 = vmatmul.mubr.bf16.gmra.mxu0 %v2717
        %v2870 = vpop.f32.mrf.mxu0
        %v2871 = vadd.f32 0.0, %v2870
        %v2872 = vpop.f32.mrf.mxu0
        %v2873 = vpop.f32.mrf.mxu0
        %v2874 = vadd.f32 0.0, %v2873
        %v2875 = vpop.f32.mrf.mxu0
        %2876 = vmatprep.mubr.bf16.mxu0 0
        %2877 = vmatmul.mubr.bf16.gmra.mxu0 %v2719
        %v2878 = vpop.f32.mrf.mxu0
        %v2879 = vadd.f32 0.0, %v2878
        %v2880 = vpop.f32.mrf.mxu0
        %v2881 = vpop.f32.mrf.mxu0
        %v2882 = vadd.f32 0.0, %v2881
        %v2883 = vpop.f32.mrf.mxu0
        %2884 = vmatprep.mubr.bf16.mxu0 0
        %2885 = vmatmul.mubr.bf16.gmra.mxu0 %v2721
        %v2886 = vpop.f32.mrf.mxu0
        %v2887 = vadd.f32 0.0, %v2886
        %v2888 = vpop.f32.mrf.mxu0
        %v2889 = vpop.f32.mrf.mxu0
        %v2890 = vadd.f32 0.0, %v2889
        %v2891 = vpop.f32.mrf.mxu0
        %2892 = vmatprep.mubr.bf16.mxu0 0
        %2893 = vmatmul.mubr.bf16.gmra.mxu0 %v2723
        %v2894 = vpop.f32.mrf.mxu0
        %v2895 = vadd.f32 0.0, %v2894
        %v2896 = vpop.f32.mrf.mxu0
        %v2897 = vpop.f32.mrf.mxu0
        %v2898 = vadd.f32 0.0, %v2897
        %v2899 = vpop.f32.mrf.mxu0
        %2900 = vmatprep.mubr.bf16.mxu0 0
        %2901 = vmatmul.mubr.bf16.gmra.mxu0 %v2725
        %v2902 = vpop.f32.mrf.mxu0
        %v2903 = vadd.f32 0.0, %v2902
        %v2904 = vpop.f32.mrf.mxu0
        %v2905 = vpop.f32.mrf.mxu0
        %v2906 = vadd.f32 0.0, %v2905
        %v2907 = vpop.f32.mrf.mxu0
        %2908 = vmatprep.mubr.bf16.mxu0 0
        %2909 = vmatmul.mubr.bf16.gmra.mxu0 %v2727
        %v2910 = vpop.f32.mrf.mxu0
        %v2911 = vadd.f32 0.0, %v2910
        %v2912 = vpop.f32.mrf.mxu0
        %v2913 = vpop.f32.mrf.mxu0
        %v2914 = vadd.f32 0.0, %v2913
        %v2915 = vpop.f32.mrf.mxu0
        %2916 = vmatprep.mubr.bf16.mxu0 0
        %2917 = vmatmul.mubr.bf16.gmra.mxu0 %v2729
        %v2918 = vpop.f32.mrf.mxu0
        %v2919 = vadd.f32 0.0, %v2918
        %v2920 = vpop.f32.mrf.mxu0
        %v2921 = vpop.f32.mrf.mxu0
        %v2922 = vadd.f32 0.0, %v2921
        %v2923 = vpop.f32.mrf.mxu0
        %2924 = vmatprep.mubr.bf16.mxu0 0
        %2925 = vmatmul.mubr.bf16.gmra.mxu0 %v2731
        %v2926 = vpop.f32.mrf.mxu0
        %v2927 = vadd.f32 0.0, %v2926
        %v2928 = vpop.f32.mrf.mxu0
        %v2929 = vpop.f32.mrf.mxu0
        %v2930 = vadd.f32 0.0, %v2929
        %v2931 = vpop.f32.mrf.mxu0
        %2932 = vmatprep.mubr.bf16.mxu0 0
        %2933 = vmatmul.mubr.bf16.gmra.mxu0 %v2733
        %v2934 = vpop.f32.mrf.mxu0
        %v2935 = vadd.f32 0.0, %v2934
        %v2936 = vpop.f32.mrf.mxu0
        %v2937 = vpop.f32.mrf.mxu0
        %v2938 = vadd.f32 0.0, %v2937
        %v2939 = vpop.f32.mrf.mxu0
        %2940 = vmatprep.mubr.bf16.mxu0 0
        %2941 = vmatmul.mubr.bf16.gmra.mxu0 %v2735
        %v2942 = vpop.f32.mrf.mxu0
        %v2943 = vadd.f32 0.0, %v2942
        %v2944 = vpop.f32.mrf.mxu0
        %v2945 = vpop.f32.mrf.mxu0
        %v2946 = vadd.f32 0.0, %v2945
        %v2947 = vpop.f32.mrf.mxu0
        %2948 = vmatprep.mubr.bf16.mxu0 0
        %2949 = vmatmul.mubr.bf16.gmra.mxu0 %v2737
        %v2950 = vpop.f32.mrf.mxu0
        %v2951 = vadd.f32 0.0, %v2950
        %v2952 = vpop.f32.mrf.mxu0
        %v2953 = vpop.f32.mrf.mxu0
        %v2954 = vadd.f32 0.0, %v2953
        %v2955 = vpop.f32.mrf.mxu0
        %2956 = vmatprep.mubr.bf16.mxu0 0
        %2957 = vmatmul.mubr.bf16.gmra.mxu0 %v2739
        %v2958 = vpop.f32.mrf.mxu0
        %v2959 = vadd.f32 0.0, %v2958
        %v2960 = vpop.f32.mrf.mxu0
        %v2961 = vpop.f32.mrf.mxu0
        %v2962 = vadd.f32 0.0, %v2961
        %v2963 = vpop.f32.mrf.mxu0
        %2964 = vmatprep.mubr.bf16.mxu0 0
        %2965 = vmatmul.mubr.bf16.gmra.mxu0 %v2741
        %v2966 = vpop.f32.mrf.mxu0
        %v2967 = vadd.f32 0.0, %v2966
        %v2968 = vpop.f32.mrf.mxu0
        %v2969 = vpop.f32.mrf.mxu0
        %v2970 = vadd.f32 0.0, %v2969
        %v2971 = vpop.f32.mrf.mxu0
        %2972 = vmatprep.mubr.bf16.mxu0 0
        %2973 = vmatmul.mubr.bf16.gmra.mxu0 %v2743
        %v2974 = vpop.f32.mrf.mxu0
        %v2975 = vadd.f32 0.0, %v2974
        %v2976 = vpop.f32.mrf.mxu0
        %v2977 = vpop.f32.mrf.mxu0
        %v2978 = vadd.f32 0.0, %v2977
        %v2979 = vpop.f32.mrf.mxu0
        %2980 = vmatprep.mubr.bf16.mxu0 0
        %2981 = vmatmul.mubr.bf16.gmra.mxu0 %v2745
        %v2982 = vpop.f32.mrf.mxu0
        %v2983 = vadd.f32 0.0, %v2982
        %v2984 = vpop.f32.mrf.mxu0
        %v2985 = vpop.f32.mrf.mxu0
        %v2986 = vadd.f32 0.0, %v2985
        %v2987 = vpop.f32.mrf.mxu0
        %2988 = vdwg.mxu0
        %v2989 = vadd.f32 %v2656, %v2847
        %v2990 = vadd.f32 %v2657, %v2850
        %v2991 = vadd.f32 %v2658, %v2855
        %v2992 = vadd.f32 %v2659, %v2858
        %v2993 = vadd.f32 %v2660, %v2863
        %v2994 = vadd.f32 %v2661, %v2866
        %v2995 = vadd.f32 %v2662, %v2871
        %v2996 = vadd.f32 %v2663, %v2874
        %v2997 = vadd.f32 %v2664, %v2879
        %v2998 = vadd.f32 %v2665, %v2882
        %v2999 = vadd.f32 %v2666, %v2887
        %v3000 = vadd.f32 %v2667, %v2890
        %v3001 = vadd.f32 %v2668, %v2895
        %v3002 = vadd.f32 %v2669, %v2898
        %v3003 = vadd.f32 %v2670, %v2903
        %v3004 = vadd.f32 %v2671, %v2906
        %v3005 = vadd.f32 %v2672, %v2911
        %v3006 = vadd.f32 %v2673, %v2914
        %v3007 = vadd.f32 %v2674, %v2919
        %v3008 = vadd.f32 %v2675, %v2922
        %v3009 = vadd.f32 %v2676, %v2927
        %v3010 = vadd.f32 %v2677, %v2930
        %v3011 = vadd.f32 %v2678, %v2935
        %v3012 = vadd.f32 %v2679, %v2938
        %v3013 = vadd.f32 %v2680, %v2943
        %v3014 = vadd.f32 %v2681, %v2946
        %v3015 = vadd.f32 %v2682, %v2951
        %v3016 = vadd.f32 %v2683, %v2954
        %v3017 = vadd.f32 %v2684, %v2959
        %v3018 = vadd.f32 %v2685, %v2962
        %v3019 = vadd.f32 %v2686, %v2967
        %v3020 = vadd.f32 %v2687, %v2970
        %v3021 = vadd.f32 %v2688, %v2975
        %v3022 = vadd.f32 %v2689, %v2978
        %v3023 = vadd.f32 %v2690, %v2983
        %v3024 = vadd.f32 %v2691, %v2986
        %v3025 = vld [vmem:[%s1 + $0x180] sm:$0xf]
        %v3026 = vld [vmem:[%s1 + $0x184] sm:$0xf]
        %v3027 = vld [vmem:[%s1 + $0x188] sm:$0xf]
        %v3028 = vld [vmem:[%s1 + $0x18c] sm:$0xf]
        %v3029 = vld [vmem:[%s1 + $0x190] sm:$0xf]
        %v3030 = vld [vmem:[%s1 + $0x194] sm:$0xf]
        %v3031 = vld [vmem:[%s1 + $0x198] sm:$0xf]
        %v3032 = vld [vmem:[%s1 + $0x19c] sm:$0xf]
        %v3033 = vld [vmem:[%s1 + $0x1a0] sm:$0xf]
        %v3034 = vld [vmem:[%s1 + $0x1a4] sm:$0xf]
        %v3035 = vld [vmem:[%s1 + $0x1a8] sm:$0xf]
        %v3036 = vld [vmem:[%s1 + $0x1ac] sm:$0xf]
        %v3037 = vld [vmem:[%s1 + $0x1b0] sm:$0xf]
        %v3038 = vld [vmem:[%s1 + $0x1b4] sm:$0xf]
        %v3039 = vld [vmem:[%s1 + $0x1b8] sm:$0xf]
        %v3040 = vld [vmem:[%s1 + $0x1bc] sm:$0xf]
        %v3043 = vunpack.c.l.b16 %v278
        %v3044 = vunpack.c.l.b16 %v279
        %v3045 = vpack.c.b16 %v3043, %v2041
        %v3046 = vpack.c.b16 %v3044, %v3044
        %v3047 = vrot.slane %v3045, 2
        %v3048 = vsel %vm2708, %v2742, %v3047
        %v3049 = vrot.slane %v3046, 2
        %v3050 = vsel %vm2708, %v3047, %v3049
        %v3069 = vunpack.c.l.b16 %v3025
        %v3070 = vunpack.c.l.b16 %v3026
        %v3071 = vunpack.c.l.b16 %v3027
        %v3072 = vunpack.c.l.b16 %v3028
        %v3073 = vunpack.c.l.b16 %v3029
        %v3074 = vunpack.c.l.b16 %v3030
        %v3075 = vunpack.c.l.b16 %v3031
        %v3076 = vunpack.c.l.b16 %v3032
        %v3077 = vunpack.c.l.b16 %v3033
        %v3078 = vunpack.c.l.b16 %v3034
        %v3079 = vunpack.c.l.b16 %v3035
        %v3080 = vunpack.c.l.b16 %v3036
        %v3081 = vunpack.c.l.b16 %v3037
        %v3082 = vunpack.c.l.b16 %v3038
        %v3083 = vunpack.c.l.b16 %v3039
        %v3084 = vunpack.c.l.b16 %v3040
        %v3085 = vpack.c.b16 %v3070, %v3069
        %v3086 = vpack.c.b16 %v3072, %v3071
        %v3087 = vpack.c.b16 %v3074, %v3073
        %v3088 = vpack.c.b16 %v3076, %v3075
        %v3089 = vpack.c.b16 %v3078, %v3077
        %v3090 = vpack.c.b16 %v3080, %v3079
        %v3091 = vpack.c.b16 %v3082, %v3081
        %v3092 = vpack.c.b16 %v3084, %v3083
        %3101 = vmatprep.subr.bf16.mxu0 0
        %3102 = vmatpush1.bf16.msra.mxu0 %v3092
        %3103 = vmatprep.subr.bf16.mxu0 0
        %3104 = vmatpush1.bf16.msra.mxu0 %v3091
        %3105 = vmatprep.subr.bf16.mxu0 0
        %3106 = vmatpush1.bf16.msra.mxu0 %v3090
        %3107 = vmatprep.subr.bf16.mxu0 0
        %3108 = vmatpush1.bf16.msra.mxu0 %v3089
        %3109 = vmatprep.subr.bf16.mxu0 0
        %3110 = vmatpush1.bf16.msra.mxu0 %v3088
        %3111 = vmatprep.subr.bf16.mxu0 0
        %3112 = vmatpush1.bf16.msra.mxu0 %v3087
        %3113 = vmatprep.subr.bf16.mxu0 0
        %3114 = vmatpush1.bf16.msra.mxu0 %v3086
        %3115 = vmatprep.subr.bf16.mxu0 0
        %3116 = vmatpush1.bf16.msra.mxu0 %v3085
        %3117 = vmatprep.subr.bf16.mxu0 0
        %3118 = vmatpush2.bf16.msra.mxu0 0
        %3119 = vmatprep.subr.bf16.mxu0 0
        %3120 = vmatpush2.bf16.msra.mxu0 0
        %3121 = vmatprep.subr.bf16.mxu0 0
        %3122 = vmatpush2.bf16.msra.mxu0 0
        %3123 = vmatprep.subr.bf16.mxu0 0
        %3124 = vmatpush2.bf16.msra.mxu0 0
        %3125 = vmatprep.subr.bf16.mxu0 0
        %3126 = vmatpush2.bf16.msra.mxu0 0
        %3127 = vmatprep.subr.bf16.mxu0 0
        %3128 = vmatpush2.bf16.msra.mxu0 0
        %3129 = vmatprep.subr.bf16.mxu0 0
        %3130 = vmatpush2.bf16.msra.mxu0 0
        %3131 = vmatprep.subr.bf16.mxu0 0
        %3132 = vmatpush2.bf16.msra.mxu0 0
        %3133 = vmatprep.mubr.bf16.mxu0 0
        %3134 = vmatmul.mubr.bf16.gmra.mxu0 %v2713
        %v3135 = vpop.f32.mrf.mxu0
        %v3136 = vadd.f32 0.0, %v3135
        %v3137 = vpop.f32.mrf.mxu0
        %v3138 = vpop.f32.mrf.mxu0
        %v3139 = vadd.f32 0.0, %v3138
        %v3140 = vpop.f32.mrf.mxu0
        %3141 = vmatprep.mubr.bf16.mxu0 0
        %3142 = vmatmul.mubr.bf16.gmra.mxu0 %v2715
        %v3143 = vpop.f32.mrf.mxu0
        %v3144 = vadd.f32 0.0, %v3143
        %v3145 = vpop.f32.mrf.mxu0
        %v3146 = vpop.f32.mrf.mxu0
        %v3147 = vadd.f32 0.0, %v3146
        %v3148 = vpop.f32.mrf.mxu0
        %3149 = vmatprep.mubr.bf16.mxu0 0
        %3150 = vmatmul.mubr.bf16.gmra.mxu0 %v2717
        %v3151 = vpop.f32.mrf.mxu0
        %v3152 = vadd.f32 0.0, %v3151
        %v3153 = vpop.f32.mrf.mxu0
        %v3154 = vpop.f32.mrf.mxu0
        %v3155 = vadd.f32 0.0, %v3154
        %v3156 = vpop.f32.mrf.mxu0
        %3157 = vmatprep.mubr.bf16.mxu0 0
        %3158 = vmatmul.mubr.bf16.gmra.mxu0 %v2719
        %v3159 = vpop.f32.mrf.mxu0
        %v3160 = vadd.f32 0.0, %v3159
        %v3161 = vpop.f32.mrf.mxu0
        %v3162 = vpop.f32.mrf.mxu0
        %v3163 = vadd.f32 0.0, %v3162
        %v3164 = vpop.f32.mrf.mxu0
        %3165 = vmatprep.mubr.bf16.mxu0 0
        %3166 = vmatmul.mubr.bf16.gmra.mxu0 %v2721
        %v3167 = vpop.f32.mrf.mxu0
        %v3168 = vadd.f32 0.0, %v3167
        %v3169 = vpop.f32.mrf.mxu0
        %v3170 = vpop.f32.mrf.mxu0
        %v3171 = vadd.f32 0.0, %v3170
        %v3172 = vpop.f32.mrf.mxu0
        %3173 = vmatprep.mubr.bf16.mxu0 0
        %3174 = vmatmul.mubr.bf16.gmra.mxu0 %v2723
        %v3175 = vpop.f32.mrf.mxu0
        %v3176 = vadd.f32 0.0, %v3175
        %v3177 = vpop.f32.mrf.mxu0
        %v3178 = vpop.f32.mrf.mxu0
        %v3179 = vadd.f32 0.0, %v3178
        %v3180 = vpop.f32.mrf.mxu0
        %3181 = vmatprep.mubr.bf16.mxu0 0
        %3182 = vmatmul.mubr.bf16.gmra.mxu0 %v2725
        %v3183 = vpop.f32.mrf.mxu0
        %v3184 = vadd.f32 0.0, %v3183
        %v3185 = vpop.f32.mrf.mxu0
        %v3186 = vpop.f32.mrf.mxu0
        %v3187 = vadd.f32 0.0, %v3186
        %v3188 = vpop.f32.mrf.mxu0
        %3189 = vmatprep.mubr.bf16.mxu0 0
        %3190 = vmatmul.mubr.bf16.gmra.mxu0 %v2727
        %v3191 = vpop.f32.mrf.mxu0
        %v3192 = vadd.f32 0.0, %v3191
        %v3193 = vpop.f32.mrf.mxu0
        %v3194 = vpop.f32.mrf.mxu0
        %v3195 = vadd.f32 0.0, %v3194
        %v3196 = vpop.f32.mrf.mxu0
        %3197 = vmatprep.mubr.bf16.mxu0 0
        %3198 = vmatmul.mubr.bf16.gmra.mxu0 %v2729
        %v3199 = vpop.f32.mrf.mxu0
        %v3200 = vadd.f32 0.0, %v3199
        %v3201 = vpop.f32.mrf.mxu0
        %v3202 = vpop.f32.mrf.mxu0
        %v3203 = vadd.f32 0.0, %v3202
        %v3204 = vpop.f32.mrf.mxu0
        %3205 = vmatprep.mubr.bf16.mxu0 0
        %3206 = vmatmul.mubr.bf16.gmra.mxu0 %v2731
        %v3207 = vpop.f32.mrf.mxu0
        %v3208 = vadd.f32 0.0, %v3207
        %v3209 = vpop.f32.mrf.mxu0
        %v3210 = vpop.f32.mrf.mxu0
        %v3211 = vadd.f32 0.0, %v3210
        %v3212 = vpop.f32.mrf.mxu0
        %3213 = vmatprep.mubr.bf16.mxu0 0
        %3214 = vmatmul.mubr.bf16.gmra.mxu0 %v2733
        %v3215 = vpop.f32.mrf.mxu0
        %v3216 = vadd.f32 0.0, %v3215
        %v3217 = vpop.f32.mrf.mxu0
        %v3218 = vpop.f32.mrf.mxu0
        %v3219 = vadd.f32 0.0, %v3218
        %v3220 = vpop.f32.mrf.mxu0
        %3221 = vmatprep.mubr.bf16.mxu0 0
        %3222 = vmatmul.mubr.bf16.gmra.mxu0 %v2735
        %v3223 = vpop.f32.mrf.mxu0
        %v3224 = vadd.f32 0.0, %v3223
        %v3225 = vpop.f32.mrf.mxu0
        %v3226 = vpop.f32.mrf.mxu0
        %v3227 = vadd.f32 0.0, %v3226
        %v3228 = vpop.f32.mrf.mxu0
        %3229 = vmatprep.mubr.bf16.mxu0 0
        %3230 = vmatmul.mubr.bf16.gmra.mxu0 %v2737
        %v3231 = vpop.f32.mrf.mxu0
        %v3232 = vadd.f32 0.0, %v3231
        %v3233 = vpop.f32.mrf.mxu0
        %v3234 = vpop.f32.mrf.mxu0
        %v3235 = vadd.f32 0.0, %v3234
        %v3236 = vpop.f32.mrf.mxu0
        %3237 = vmatprep.mubr.bf16.mxu0 0
        %3238 = vmatmul.mubr.bf16.gmra.mxu0 %v2739
        %v3239 = vpop.f32.mrf.mxu0
        %v3240 = vadd.f32 0.0, %v3239
        %v3241 = vpop.f32.mrf.mxu0
        %v3242 = vpop.f32.mrf.mxu0
        %v3243 = vadd.f32 0.0, %v3242
        %v3244 = vpop.f32.mrf.mxu0
        %3245 = vmatprep.mubr.bf16.mxu0 0
        %3246 = vmatmul.mubr.bf16.gmra.mxu0 %v2741
        %v3247 = vpop.f32.mrf.mxu0
        %v3248 = vadd.f32 0.0, %v3247
        %v3249 = vpop.f32.mrf.mxu0
        %v3250 = vpop.f32.mrf.mxu0
        %v3251 = vadd.f32 0.0, %v3250
        %v3252 = vpop.f32.mrf.mxu0
        %3253 = vmatprep.mubr.bf16.mxu0 0
        %3254 = vmatmul.mubr.bf16.gmra.mxu0 %v2743
        %v3255 = vpop.f32.mrf.mxu0
        %v3256 = vadd.f32 0.0, %v3255
        %v3257 = vpop.f32.mrf.mxu0
        %v3258 = vpop.f32.mrf.mxu0
        %v3259 = vadd.f32 0.0, %v3258
        %v3260 = vpop.f32.mrf.mxu0
        %3261 = vmatprep.mubr.bf16.mxu0 0
        %3262 = vmatmul.mubr.bf16.gmra.mxu0 %v3048
        %v3263 = vpop.f32.mrf.mxu0
        %v3264 = vadd.f32 0.0, %v3263
        %v3265 = vpop.f32.mrf.mxu0
        %v3266 = vpop.f32.mrf.mxu0
        %v3267 = vadd.f32 0.0, %v3266
        %v3268 = vpop.f32.mrf.mxu0
        %3269 = vmatprep.mubr.bf16.mxu0 0
        %3270 = vmatmul.mubr.bf16.gmra.mxu0 %v3050
        %v3271 = vpop.f32.mrf.mxu0
        %v3272 = vadd.f32 0.0, %v3271
        %v3273 = vpop.f32.mrf.mxu0
        %v3274 = vpop.f32.mrf.mxu0
        %v3275 = vadd.f32 0.0, %v3274
        %v3276 = vpop.f32.mrf.mxu0
        %3277 = vdwg.mxu0
        %v3278 = vadd.f32 %v2989, %v3136
        %v3279 = vadd.f32 %v2990, %v3139
        %v3280 = vadd.f32 %v2991, %v3144
        %v3281 = vadd.f32 %v2992, %v3147
        %v3282 = vadd.f32 %v2993, %v3152
        %v3283 = vadd.f32 %v2994, %v3155
        %v3284 = vadd.f32 %v2995, %v3160
        %v3285 = vadd.f32 %v2996, %v3163
        %v3286 = vadd.f32 %v2997, %v3168
        %v3287 = vadd.f32 %v2998, %v3171
        %v3288 = vadd.f32 %v2999, %v3176
        %v3289 = vadd.f32 %v3000, %v3179
        %v3290 = vadd.f32 %v3001, %v3184
        %v3291 = vadd.f32 %v3002, %v3187
        %v3292 = vadd.f32 %v3003, %v3192
        %v3293 = vadd.f32 %v3004, %v3195
        %v3294 = vadd.f32 %v3005, %v3200
        %v3295 = vadd.f32 %v3006, %v3203
        %v3296 = vadd.f32 %v3007, %v3208
        %v3297 = vadd.f32 %v3008, %v3211
        %v3298 = vadd.f32 %v3009, %v3216
        %v3299 = vadd.f32 %v3010, %v3219
        %v3300 = vadd.f32 %v3011, %v3224
        %v3301 = vadd.f32 %v3012, %v3227
        %v3302 = vadd.f32 %v3013, %v3232
        %v3303 = vadd.f32 %v3014, %v3235
        %v3304 = vadd.f32 %v3015, %v3240
        %v3305 = vadd.f32 %v3016, %v3243
        %v3306 = vadd.f32 %v3017, %v3248
        %v3307 = vadd.f32 %v3018, %v3251
        %v3308 = vadd.f32 %v3019, %v3256
        %v3309 = vadd.f32 %v3020, %v3259
        %v3310 = vadd.f32 %v3021, %v3264
        %v3311 = vadd.f32 %v3022, %v3267
        %v3312 = vadd.f32 %v3023, %v3272
        %v3313 = vadd.f32 %v3024, %v3275
        %v3314 = vld [vmem:[%s1 + $0x1c0] sm:$0xf]
        %v3315 = vld [vmem:[%s1 + $0x1c4] sm:$0xf]
        %v3316 = vld [vmem:[%s1 + $0x1c8] sm:$0xf]
        %v3317 = vld [vmem:[%s1 + $0x1cc] sm:$0xf]
        %v3318 = vld [vmem:[%s1 + $0x1d0] sm:$0xf]
        %v3319 = vld [vmem:[%s1 + $0x1d4] sm:$0xf]
        %v3320 = vld [vmem:[%s1 + $0x1d8] sm:$0xf]
        %v3321 = vld [vmem:[%s1 + $0x1dc] sm:$0xf]
        %v3322 = vld [vmem:[%s1 + $0x1e0] sm:$0xf]
        %v3323 = vld [vmem:[%s1 + $0x1e4] sm:$0xf]
        %v3324 = vld [vmem:[%s1 + $0x1e8] sm:$0xf]
        %v3325 = vld [vmem:[%s1 + $0x1ec] sm:$0xf]
        %v3326 = vld [vmem:[%s1 + $0x1f0] sm:$0xf]
        %v3327 = vld [vmem:[%s1 + $0x1f4] sm:$0xf]
        %v3328 = vld [vmem:[%s1 + $0x1f8] sm:$0xf]
        %v3329 = vld [vmem:[%s1 + $0x1fc] sm:$0xf]
        %vm3330 = vsmask.f32 5376
        %v3331 = vrot.slane %v1075, 2
        %v3332 = vrot.slane %v1071, 3
        %v3333 = vor.u32 %v3331, %v3332
        %v3334 = vrot.slane %v1083, 2
        %v3335 = vrot.slane %v1079, 3
        %v3336 = vor.u32 %v3334, %v3335
        %v3337 = vsel %vm3330, %v3333, %v3336
        %v3338 = vrot.slane %v1091, 2
        %v3339 = vrot.slane %v1087, 3
        %v3340 = vor.u32 %v3338, %v3339
        %v3341 = vsel %vm3330, %v3336, %v3340
        %v3342 = vrot.slane %v1099, 2
        %v3343 = vrot.slane %v1095, 3
        %v3344 = vor.u32 %v3342, %v3343
        %v3345 = vsel %vm3330, %v3340, %v3344
        %v3346 = vrot.slane %v1107, 2
        %v3347 = vrot.slane %v1103, 3
        %v3348 = vor.u32 %v3346, %v3347
        %v3349 = vsel %vm3330, %v3344, %v3348
        %v3350 = vrot.slane %v1115, 2
        %v3351 = vrot.slane %v1111, 3
        %v3352 = vor.u32 %v3350, %v3351
        %v3353 = vsel %vm3330, %v3348, %v3352
        %v3354 = vrot.slane %v1123, 2
        %v3355 = vrot.slane %v1119, 3
        %v3356 = vor.u32 %v3354, %v3355
        %v3357 = vsel %vm3330, %v3352, %v3356
        %v3358 = vrot.slane %v1131, 2
        %v3359 = vrot.slane %v1127, 3
        %v3360 = vor.u32 %v3358, %v3359
        %v3361 = vsel %vm3330, %v3356, %v3360
        %v3362 = vrot.slane %v1139, 2
        %v3363 = vrot.slane %v1135, 3
        %v3364 = vor.u32 %v3362, %v3363
        %v3365 = vsel %vm3330, %v3360, %v3364
        %v3366 = vrot.slane %v1147, 2
        %v3367 = vrot.slane %v1143, 3
        %v3368 = vor.u32 %v3366, %v3367
        %v3369 = vsel %vm3330, %v3364, %v3368
        %v3370 = vrot.slane %v1155, 2
        %v3371 = vrot.slane %v1151, 3
        %v3372 = vor.u32 %v3370, %v3371
        %v3373 = vsel %vm3330, %v3368, %v3372
        %v3374 = vrot.slane %v1163, 2
        %v3375 = vrot.slane %v1159, 3
        %v3376 = vor.u32 %v3374, %v3375
        %v3377 = vsel %vm3330, %v3372, %v3376
        %v3378 = vrot.slane %v1171, 2
        %v3379 = vrot.slane %v1167, 3
        %v3380 = vor.u32 %v3378, %v3379
        %v3381 = vsel %vm3330, %v3376, %v3380
        %v3382 = vrot.slane %v1179, 2
        %v3383 = vrot.slane %v1175, 3
        %v3384 = vor.u32 %v3382, %v3383
        %v3385 = vsel %vm3330, %v3380, %v3384
        %v3386 = vrot.slane %v1187, 2
        %v3387 = vrot.slane %v1183, 3
        %v3388 = vor.u32 %v3386, %v3387
        %v3389 = vsel %vm3330, %v3384, %v3388
        %v3390 = vrot.slane %v1195, 2
        %v3391 = vrot.slane %v1191, 3
        %v3392 = vor.u32 %v3390, %v3391
        %v3393 = vsel %vm3330, %v3388, %v3392
        %v3394 = vrot.slane %v2396, 2
        %v3395 = vrot.slane %v2399, 3
        %v3396 = vor.u32 %v3394, %v3395
        %v3397 = vsel %vm3330, %v3392, %v3396
        %v3399 = vshrl.u32 %v3045, 16
        %v3401 = vrot.slane %v3399, 2
        %v3402 = vshll.u32 %v3045, 16
        %v3404 = vrot.slane %v3402, 3
        %v3405 = vor.u32 %v3401, %v3404
        %v3406 = vsel %vm3330, %v3396, %v3405
        %v3408 = vshrl.u32 %v3046, 16
        %v3410 = vrot.slane %v3408, 2
        %v3411 = vshll.u32 %v3046, 16
        %v3413 = vrot.slane %v3411, 3
        %v3414 = vor.u32 %v3410, %v3413
        %v3415 = vsel %vm3330, %v3405, %v3414
        %v3450 = vunpack.c.l.b16 %v3314
        %v3451 = vunpack.c.l.b16 %v3315
        %v3452 = vunpack.c.l.b16 %v3316
        %v3453 = vunpack.c.l.b16 %v3317
        %v3454 = vunpack.c.l.b16 %v3318
        %v3455 = vunpack.c.l.b16 %v3319
        %v3456 = vunpack.c.l.b16 %v3320
        %v3457 = vunpack.c.l.b16 %v3321
        %v3458 = vunpack.c.l.b16 %v3322
        %v3459 = vunpack.c.l.b16 %v3323
        %v3460 = vunpack.c.l.b16 %v3324
        %v3461 = vunpack.c.l.b16 %v3325
        %v3462 = vunpack.c.l.b16 %v3326
        %v3463 = vunpack.c.l.b16 %v3327
        %v3464 = vunpack.c.l.b16 %v3328
        %v3465 = vunpack.c.l.b16 %v3329
        %v3466 = vpack.c.b16 %v3451, %v3450
        %v3467 = vpack.c.b16 %v3453, %v3452
        %v3468 = vpack.c.b16 %v3455, %v3454
        %v3469 = vpack.c.b16 %v3457, %v3456
        %v3470 = vpack.c.b16 %v3459, %v3458
        %v3471 = vpack.c.b16 %v3461, %v3460
        %v3472 = vpack.c.b16 %v3463, %v3462
        %v3473 = vpack.c.b16 %v3465, %v3464
        %3482 = vmatprep.subr.bf16.mxu0 0
        %3483 = vmatpush1.bf16.msra.mxu0 %v3473
        %3484 = vmatprep.subr.bf16.mxu0 0
        %3485 = vmatpush1.bf16.msra.mxu0 %v3472
        %3486 = vmatprep.subr.bf16.mxu0 0
        %3487 = vmatpush1.bf16.msra.mxu0 %v3471
        %3488 = vmatprep.subr.bf16.mxu0 0
        %3489 = vmatpush1.bf16.msra.mxu0 %v3470
        %3490 = vmatprep.subr.bf16.mxu0 0
        %3491 = vmatpush1.bf16.msra.mxu0 %v3469
        %3492 = vmatprep.subr.bf16.mxu0 0
        %3493 = vmatpush1.bf16.msra.mxu0 %v3468
        %3494 = vmatprep.subr.bf16.mxu0 0
        %3495 = vmatpush1.bf16.msra.mxu0 %v3467
        %3496 = vmatprep.subr.bf16.mxu0 0
        %3497 = vmatpush1.bf16.msra.mxu0 %v3466
        %3498 = vmatprep.subr.bf16.mxu0 0
        %3499 = vmatpush2.bf16.msra.mxu0 0
        %3500 = vmatprep.subr.bf16.mxu0 0
        %3501 = vmatpush2.bf16.msra.mxu0 0
        %3502 = vmatprep.subr.bf16.mxu0 0
        %3503 = vmatpush2.bf16.msra.mxu0 0
        %3504 = vmatprep.subr.bf16.mxu0 0
        %3505 = vmatpush2.bf16.msra.mxu0 0
        %3506 = vmatprep.subr.bf16.mxu0 0
        %3507 = vmatpush2.bf16.msra.mxu0 0
        %3508 = vmatprep.subr.bf16.mxu0 0
        %3509 = vmatpush2.bf16.msra.mxu0 0
        %3510 = vmatprep.subr.bf16.mxu0 0
        %3511 = vmatpush2.bf16.msra.mxu0 0
        %3512 = vmatprep.subr.bf16.mxu0 0
        %3513 = vmatpush2.bf16.msra.mxu0 0
        %3514 = vmatprep.mubr.bf16.mxu0 0
        %3515 = vmatmul.mubr.bf16.gmra.mxu0 %v3337
        %v3516 = vpop.f32.mrf.mxu0
        %v3517 = vadd.f32 0.0, %v3516
        %v3518 = vpop.f32.mrf.mxu0
        %v3519 = vpop.f32.mrf.mxu0
        %v3520 = vadd.f32 0.0, %v3519
        %v3521 = vpop.f32.mrf.mxu0
        %3522 = vmatprep.mubr.bf16.mxu0 0
        %3523 = vmatmul.mubr.bf16.gmra.mxu0 %v3341
        %v3524 = vpop.f32.mrf.mxu0
        %v3525 = vadd.f32 0.0, %v3524
        %v3526 = vpop.f32.mrf.mxu0
        %v3527 = vpop.f32.mrf.mxu0
        %v3528 = vadd.f32 0.0, %v3527
        %v3529 = vpop.f32.mrf.mxu0
        %3530 = vmatprep.mubr.bf16.mxu0 0
        %3531 = vmatmul.mubr.bf16.gmra.mxu0 %v3345
        %v3532 = vpop.f32.mrf.mxu0
        %v3533 = vadd.f32 0.0, %v3532
        %v3534 = vpop.f32.mrf.mxu0
        %v3535 = vpop.f32.mrf.mxu0
        %v3536 = vadd.f32 0.0, %v3535
        %v3537 = vpop.f32.mrf.mxu0
        %3538 = vmatprep.mubr.bf16.mxu0 0
        %3539 = vmatmul.mubr.bf16.gmra.mxu0 %v3349
        %v3540 = vpop.f32.mrf.mxu0
        %v3541 = vadd.f32 0.0, %v3540
        %v3542 = vpop.f32.mrf.mxu0
        %v3543 = vpop.f32.mrf.mxu0
        %v3544 = vadd.f32 0.0, %v3543
        %v3545 = vpop.f32.mrf.mxu0
        %3546 = vmatprep.mubr.bf16.mxu0 0
        %3547 = vmatmul.mubr.bf16.gmra.mxu0 %v3353
        %v3548 = vpop.f32.mrf.mxu0
        %v3549 = vadd.f32 0.0, %v3548
        %v3550 = vpop.f32.mrf.mxu0
        %v3551 = vpop.f32.mrf.mxu0
        %v3552 = vadd.f32 0.0, %v3551
        %v3553 = vpop.f32.mrf.mxu0
        %3554 = vmatprep.mubr.bf16.mxu0 0
        %3555 = vmatmul.mubr.bf16.gmra.mxu0 %v3357
        %v3556 = vpop.f32.mrf.mxu0
        %v3557 = vadd.f32 0.0, %v3556
        %v3558 = vpop.f32.mrf.mxu0
        %v3559 = vpop.f32.mrf.mxu0
        %v3560 = vadd.f32 0.0, %v3559
        %v3561 = vpop.f32.mrf.mxu0
        %3562 = vmatprep.mubr.bf16.mxu0 0
        %3563 = vmatmul.mubr.bf16.gmra.mxu0 %v3361
        %v3564 = vpop.f32.mrf.mxu0
        %v3565 = vadd.f32 0.0, %v3564
        %v3566 = vpop.f32.mrf.mxu0
        %v3567 = vpop.f32.mrf.mxu0
        %v3568 = vadd.f32 0.0, %v3567
        %v3569 = vpop.f32.mrf.mxu0
        %3570 = vmatprep.mubr.bf16.mxu0 0
        %3571 = vmatmul.mubr.bf16.gmra.mxu0 %v3365
        %v3572 = vpop.f32.mrf.mxu0
        %v3573 = vadd.f32 0.0, %v3572
        %v3574 = vpop.f32.mrf.mxu0
        %v3575 = vpop.f32.mrf.mxu0
        %v3576 = vadd.f32 0.0, %v3575
        %v3577 = vpop.f32.mrf.mxu0
        %3578 = vmatprep.mubr.bf16.mxu0 0
        %3579 = vmatmul.mubr.bf16.gmra.mxu0 %v3369
        %v3580 = vpop.f32.mrf.mxu0
        %v3581 = vadd.f32 0.0, %v3580
        %v3582 = vpop.f32.mrf.mxu0
        %v3583 = vpop.f32.mrf.mxu0
        %v3584 = vadd.f32 0.0, %v3583
        %v3585 = vpop.f32.mrf.mxu0
        %3586 = vmatprep.mubr.bf16.mxu0 0
        %3587 = vmatmul.mubr.bf16.gmra.mxu0 %v3373
        %v3588 = vpop.f32.mrf.mxu0
        %v3589 = vadd.f32 0.0, %v3588
        %v3590 = vpop.f32.mrf.mxu0
        %v3591 = vpop.f32.mrf.mxu0
        %v3592 = vadd.f32 0.0, %v3591
        %v3593 = vpop.f32.mrf.mxu0
        %3594 = vmatprep.mubr.bf16.mxu0 0
        %3595 = vmatmul.mubr.bf16.gmra.mxu0 %v3377
        %v3596 = vpop.f32.mrf.mxu0
        %v3597 = vadd.f32 0.0, %v3596
        %v3598 = vpop.f32.mrf.mxu0
        %v3599 = vpop.f32.mrf.mxu0
        %v3600 = vadd.f32 0.0, %v3599
        %v3601 = vpop.f32.mrf.mxu0
        %3602 = vmatprep.mubr.bf16.mxu0 0
        %3603 = vmatmul.mubr.bf16.gmra.mxu0 %v3381
        %v3604 = vpop.f32.mrf.mxu0
        %v3605 = vadd.f32 0.0, %v3604
        %v3606 = vpop.f32.mrf.mxu0
        %v3607 = vpop.f32.mrf.mxu0
        %v3608 = vadd.f32 0.0, %v3607
        %v3609 = vpop.f32.mrf.mxu0
        %3610 = vmatprep.mubr.bf16.mxu0 0
        %3611 = vmatmul.mubr.bf16.gmra.mxu0 %v3385
        %v3612 = vpop.f32.mrf.mxu0
        %v3613 = vadd.f32 0.0, %v3612
        %v3614 = vpop.f32.mrf.mxu0
        %v3615 = vpop.f32.mrf.mxu0
        %v3616 = vadd.f32 0.0, %v3615
        %v3617 = vpop.f32.mrf.mxu0
        %3618 = vmatprep.mubr.bf16.mxu0 0
        %3619 = vmatmul.mubr.bf16.gmra.mxu0 %v3389
        %v3620 = vpop.f32.mrf.mxu0
        %v3621 = vadd.f32 0.0, %v3620
        %v3622 = vpop.f32.mrf.mxu0
        %v3623 = vpop.f32.mrf.mxu0
        %v3624 = vadd.f32 0.0, %v3623
        %v3625 = vpop.f32.mrf.mxu0
        %3626 = vmatprep.mubr.bf16.mxu0 0
        %3627 = vmatmul.mubr.bf16.gmra.mxu0 %v3393
        %v3628 = vpop.f32.mrf.mxu0
        %v3629 = vadd.f32 0.0, %v3628
        %v3630 = vpop.f32.mrf.mxu0
        %v3631 = vpop.f32.mrf.mxu0
        %v3632 = vadd.f32 0.0, %v3631
        %v3633 = vpop.f32.mrf.mxu0
        %3634 = vmatprep.mubr.bf16.mxu0 0
        %3635 = vmatmul.mubr.bf16.gmra.mxu0 %v3397
        %v3636 = vpop.f32.mrf.mxu0
        %v3637 = vadd.f32 0.0, %v3636
        %v3638 = vpop.f32.mrf.mxu0
        %v3639 = vpop.f32.mrf.mxu0
        %v3640 = vadd.f32 0.0, %v3639
        %v3641 = vpop.f32.mrf.mxu0
        %3642 = vmatprep.mubr.bf16.mxu0 0
        %3643 = vmatmul.mubr.bf16.gmra.mxu0 %v3406
        %v3644 = vpop.f32.mrf.mxu0
        %v3645 = vadd.f32 0.0, %v3644
        %v3646 = vpop.f32.mrf.mxu0
        %v3647 = vpop.f32.mrf.mxu0
        %v3648 = vadd.f32 0.0, %v3647
        %v3649 = vpop.f32.mrf.mxu0
        %3650 = vmatprep.mubr.bf16.mxu0 0
        %3651 = vmatmul.mubr.bf16.gmra.mxu0 %v3415
        %v3652 = vpop.f32.mrf.mxu0
        %v3653 = vadd.f32 0.0, %v3652
        %v3654 = vpop.f32.mrf.mxu0
        %v3655 = vpop.f32.mrf.mxu0
        %v3656 = vadd.f32 0.0, %v3655
        %v3657 = vpop.f32.mrf.mxu0
        %3658 = vdwg.mxu0
        %v3659 = vadd.f32 %v3278, %v3517
        %v3660 = vadd.f32 %v3279, %v3520
        %v3661 = vadd.f32 %v3280, %v3525
        %v3662 = vadd.f32 %v3281, %v3528
        %v3663 = vadd.f32 %v3282, %v3533
        %v3664 = vadd.f32 %v3283, %v3536
        %v3665 = vadd.f32 %v3284, %v3541
        %v3666 = vadd.f32 %v3285, %v3544
        %v3667 = vadd.f32 %v3286, %v3549
        %v3668 = vadd.f32 %v3287, %v3552
        %v3669 = vadd.f32 %v3288, %v3557
        %v3670 = vadd.f32 %v3289, %v3560
        %v3671 = vadd.f32 %v3290, %v3565
        %v3672 = vadd.f32 %v3291, %v3568
        %v3673 = vadd.f32 %v3292, %v3573
        %v3674 = vadd.f32 %v3293, %v3576
        %v3675 = vadd.f32 %v3294, %v3581
        %v3676 = vadd.f32 %v3295, %v3584
        %v3677 = vadd.f32 %v3296, %v3589
        %v3678 = vadd.f32 %v3297, %v3592
        %v3679 = vadd.f32 %v3298, %v3597
        %v3680 = vadd.f32 %v3299, %v3600
        %v3681 = vadd.f32 %v3300, %v3605
        %v3682 = vadd.f32 %v3301, %v3608
        %v3683 = vadd.f32 %v3302, %v3613
        %v3684 = vadd.f32 %v3303, %v3616
        %v3685 = vadd.f32 %v3304, %v3621
        %v3686 = vadd.f32 %v3305, %v3624
        %v3687 = vadd.f32 %v3306, %v3629
        %v3688 = vadd.f32 %v3307, %v3632
        %v3689 = vadd.f32 %v3308, %v3637
        %v3690 = vadd.f32 %v3309, %v3640
        %v3691 = vadd.f32 %v3310, %v3645
        %v3692 = vadd.f32 %v3311, %v3648
        %v3693 = vadd.f32 %v3312, %v3653
        %v3694 = vadd.f32 %v3313, %v3656
        %v3695 = vld [vmem:[%s1 + $0x200] sm:$0xf]
        %v3696 = vld [vmem:[%s1 + $0x204] sm:$0xf]
        %v3697 = vld [vmem:[%s1 + $0x208] sm:$0xf]
        %v3698 = vld [vmem:[%s1 + $0x20c] sm:$0xf]
        %v3699 = vld [vmem:[%s1 + $0x210] sm:$0xf]
        %v3700 = vld [vmem:[%s1 + $0x214] sm:$0xf]
        %v3701 = vld [vmem:[%s1 + $0x218] sm:$0xf]
        %v3702 = vld [vmem:[%s1 + $0x21c] sm:$0xf]
        %v3703 = vld [vmem:[%s1 + $0x220] sm:$0xf]
        %v3704 = vld [vmem:[%s1 + $0x224] sm:$0xf]
        %v3705 = vld [vmem:[%s1 + $0x228] sm:$0xf]
        %v3706 = vld [vmem:[%s1 + $0x22c] sm:$0xf]
        %v3707 = vld [vmem:[%s1 + $0x230] sm:$0xf]
        %v3708 = vld [vmem:[%s1 + $0x234] sm:$0xf]
        %v3709 = vld [vmem:[%s1 + $0x238] sm:$0xf]
        %v3710 = vld [vmem:[%s1 + $0x23c] sm:$0xf]
        %vm3711 = vcmask 1044480
        %v3712 = vrot.slane %v1037, 3
        %v3713 = vrot.slane %v1038, 3
        %v3714 = vsel %vm3711, %v3712, %v3713
        %v3715 = vrot.slane %v1039, 3
        %v3716 = vsel %vm3711, %v3713, %v3715
        %v3717 = vrot.slane %v1040, 3
        %v3718 = vsel %vm3711, %v3715, %v3717
        %v3719 = vrot.slane %v1041, 3
        %v3720 = vsel %vm3711, %v3717, %v3719
        %v3721 = vrot.slane %v1042, 3
        %v3722 = vsel %vm3711, %v3719, %v3721
        %v3723 = vrot.slane %v1043, 3
        %v3724 = vsel %vm3711, %v3721, %v3723
        %v3725 = vrot.slane %v1044, 3
        %v3726 = vsel %vm3711, %v3723, %v3725
        %v3727 = vrot.slane %v1045, 3
        %v3728 = vsel %vm3711, %v3725, %v3727
        %v3729 = vrot.slane %v1046, 3
        %v3730 = vsel %vm3711, %v3727, %v3729
        %v3731 = vrot.slane %v1047, 3
        %v3732 = vsel %vm3711, %v3729, %v3731
        %v3733 = vrot.slane %v1048, 3
        %v3734 = vsel %vm3711, %v3731, %v3733
        %v3735 = vrot.slane %v1049, 3
        %v3736 = vsel %vm3711, %v3733, %v3735
        %v3737 = vrot.slane %v1050, 3
        %v3738 = vsel %vm3711, %v3735, %v3737
        %v3739 = vrot.slane %v1051, 3
        %v3740 = vsel %vm3711, %v3737, %v3739
        %v3741 = vrot.slane %v1052, 3
        %v3742 = vsel %vm3711, %v3739, %v3741
        %v3743 = vrot.slane %v2042, 3
        %v3744 = vsel %vm3711, %v3741, %v3743
        %v3745 = vrot.slane %v3045, 3
        %v3746 = vsel %vm3711, %v3743, %v3745
        %v3747 = vrot.slane %v3046, 3
        %v3748 = vsel %vm3711, %v3745, %v3747
        %v3783 = vunpack.c.l.b16 %v3695
        %v3784 = vunpack.c.l.b16 %v3696
        %v3785 = vunpack.c.l.b16 %v3697
        %v3786 = vunpack.c.l.b16 %v3698
        %v3787 = vunpack.c.l.b16 %v3699
        %v3788 = vunpack.c.l.b16 %v3700
        %v3789 = vunpack.c.l.b16 %v3701
        %v3790 = vunpack.c.l.b16 %v3702
        %v3791 = vunpack.c.l.b16 %v3703
        %v3792 = vunpack.c.l.b16 %v3704
        %v3793 = vunpack.c.l.b16 %v3705
        %v3794 = vunpack.c.l.b16 %v3706
        %v3795 = vunpack.c.l.b16 %v3707
        %v3796 = vunpack.c.l.b16 %v3708
        %v3797 = vunpack.c.l.b16 %v3709
        %v3798 = vunpack.c.l.b16 %v3710
        %v3799 = vpack.c.b16 %v3784, %v3783
        %v3800 = vpack.c.b16 %v3786, %v3785
        %v3801 = vpack.c.b16 %v3788, %v3787
        %v3802 = vpack.c.b16 %v3790, %v3789
        %v3803 = vpack.c.b16 %v3792, %v3791
        %v3804 = vpack.c.b16 %v3794, %v3793
        %v3805 = vpack.c.b16 %v3796, %v3795
        %v3806 = vpack.c.b16 %v3798, %v3797
        %3815 = vmatprep.subr.bf16.mxu0 0
        %3816 = vmatpush1.bf16.msra.mxu0 %v3806
        %3817 = vmatprep.subr.bf16.mxu0 0
        %3818 = vmatpush1.bf16.msra.mxu0 %v3805
        %3819 = vmatprep.subr.bf16.mxu0 0
        %3820 = vmatpush1.bf16.msra.mxu0 %v3804
        %3821 = vmatprep.subr.bf16.mxu0 0
        %3822 = vmatpush1.bf16.msra.mxu0 %v3803
        %3823 = vmatprep.subr.bf16.mxu0 0
        %3824 = vmatpush1.bf16.msra.mxu0 %v3802
        %3825 = vmatprep.subr.bf16.mxu0 0
        %3826 = vmatpush1.bf16.msra.mxu0 %v3801
        %3827 = vmatprep.subr.bf16.mxu0 0
        %3828 = vmatpush1.bf16.msra.mxu0 %v3800
        %3829 = vmatprep.subr.bf16.mxu0 0
        %3830 = vmatpush1.bf16.msra.mxu0 %v3799
        %3831 = vmatprep.subr.bf16.mxu0 0
        %3832 = vmatpush2.bf16.msra.mxu0 0
        %3833 = vmatprep.subr.bf16.mxu0 0
        %3834 = vmatpush2.bf16.msra.mxu0 0
        %3835 = vmatprep.subr.bf16.mxu0 0
        %3836 = vmatpush2.bf16.msra.mxu0 0
        %3837 = vmatprep.subr.bf16.mxu0 0
        %3838 = vmatpush2.bf16.msra.mxu0 0
        %3839 = vmatprep.subr.bf16.mxu0 0
        %3840 = vmatpush2.bf16.msra.mxu0 0
        %3841 = vmatprep.subr.bf16.mxu0 0
        %3842 = vmatpush2.bf16.msra.mxu0 0
        %3843 = vmatprep.subr.bf16.mxu0 0
        %3844 = vmatpush2.bf16.msra.mxu0 0
        %3845 = vmatprep.subr.bf16.mxu0 0
        %3846 = vmatpush2.bf16.msra.mxu0 0
        %3847 = vmatprep.mubr.bf16.mxu0 0
        %3848 = vmatmul.mubr.bf16.gmra.mxu0 %v3714
        %v3849 = vpop.f32.mrf.mxu0
        %v3850 = vadd.f32 0.0, %v3849
        %v3851 = vpop.f32.mrf.mxu0
        %v3852 = vpop.f32.mrf.mxu0
        %v3853 = vadd.f32 0.0, %v3852
        %v3854 = vpop.f32.mrf.mxu0
        %3855 = vmatprep.mubr.bf16.mxu0 0
        %3856 = vmatmul.mubr.bf16.gmra.mxu0 %v3716
        %v3857 = vpop.f32.mrf.mxu0
        %v3858 = vadd.f32 0.0, %v3857
        %v3859 = vpop.f32.mrf.mxu0
        %v3860 = vpop.f32.mrf.mxu0
        %v3861 = vadd.f32 0.0, %v3860
        %v3862 = vpop.f32.mrf.mxu0
        %3863 = vmatprep.mubr.bf16.mxu0 0
        %3864 = vmatmul.mubr.bf16.gmra.mxu0 %v3718
        %v3865 = vpop.f32.mrf.mxu0
        %v3866 = vadd.f32 0.0, %v3865
        %v3867 = vpop.f32.mrf.mxu0
        %v3868 = vpop.f32.mrf.mxu0
        %v3869 = vadd.f32 0.0, %v3868
        %v3870 = vpop.f32.mrf.mxu0
        %3871 = vmatprep.mubr.bf16.mxu0 0
        %3872 = vmatmul.mubr.bf16.gmra.mxu0 %v3720
        %v3873 = vpop.f32.mrf.mxu0
        %v3874 = vadd.f32 0.0, %v3873
        %v3875 = vpop.f32.mrf.mxu0
        %v3876 = vpop.f32.mrf.mxu0
        %v3877 = vadd.f32 0.0, %v3876
        %v3878 = vpop.f32.mrf.mxu0
        %3879 = vmatprep.mubr.bf16.mxu0 0
        %3880 = vmatmul.mubr.bf16.gmra.mxu0 %v3722
        %v3881 = vpop.f32.mrf.mxu0
        %v3882 = vadd.f32 0.0, %v3881
        %v3883 = vpop.f32.mrf.mxu0
        %v3884 = vpop.f32.mrf.mxu0
        %v3885 = vadd.f32 0.0, %v3884
        %v3886 = vpop.f32.mrf.mxu0
        %3887 = vmatprep.mubr.bf16.mxu0 0
        %3888 = vmatmul.mubr.bf16.gmra.mxu0 %v3724
        %v3889 = vpop.f32.mrf.mxu0
        %v3890 = vadd.f32 0.0, %v3889
        %v3891 = vpop.f32.mrf.mxu0
        %v3892 = vpop.f32.mrf.mxu0
        %v3893 = vadd.f32 0.0, %v3892
        %v3894 = vpop.f32.mrf.mxu0
        %3895 = vmatprep.mubr.bf16.mxu0 0
        %3896 = vmatmul.mubr.bf16.gmra.mxu0 %v3726
        %v3897 = vpop.f32.mrf.mxu0
        %v3898 = vadd.f32 0.0, %v3897
        %v3899 = vpop.f32.mrf.mxu0
        %v3900 = vpop.f32.mrf.mxu0
        %v3901 = vadd.f32 0.0, %v3900
        %v3902 = vpop.f32.mrf.mxu0
        %3903 = vmatprep.mubr.bf16.mxu0 0
        %3904 = vmatmul.mubr.bf16.gmra.mxu0 %v3728
        %v3905 = vpop.f32.mrf.mxu0
        %v3906 = vadd.f32 0.0, %v3905
        %v3907 = vpop.f32.mrf.mxu0
        %v3908 = vpop.f32.mrf.mxu0
        %v3909 = vadd.f32 0.0, %v3908
        %v3910 = vpop.f32.mrf.mxu0
        %3911 = vmatprep.mubr.bf16.mxu0 0
        %3912 = vmatmul.mubr.bf16.gmra.mxu0 %v3730
        %v3913 = vpop.f32.mrf.mxu0
        %v3914 = vadd.f32 0.0, %v3913
        %v3915 = vpop.f32.mrf.mxu0
        %v3916 = vpop.f32.mrf.mxu0
        %v3917 = vadd.f32 0.0, %v3916
        %v3918 = vpop.f32.mrf.mxu0
        %3919 = vmatprep.mubr.bf16.mxu0 0
        %3920 = vmatmul.mubr.bf16.gmra.mxu0 %v3732
        %v3921 = vpop.f32.mrf.mxu0
        %v3922 = vadd.f32 0.0, %v3921
        %v3923 = vpop.f32.mrf.mxu0
        %v3924 = vpop.f32.mrf.mxu0
        %v3925 = vadd.f32 0.0, %v3924
        %v3926 = vpop.f32.mrf.mxu0
        %3927 = vmatprep.mubr.bf16.mxu0 0
        %3928 = vmatmul.mubr.bf16.gmra.mxu0 %v3734
        %v3929 = vpop.f32.mrf.mxu0
        %v3930 = vadd.f32 0.0, %v3929
        %v3931 = vpop.f32.mrf.mxu0
        %v3932 = vpop.f32.mrf.mxu0
        %v3933 = vadd.f32 0.0, %v3932
        %v3934 = vpop.f32.mrf.mxu0
        %3935 = vmatprep.mubr.bf16.mxu0 0
        %3936 = vmatmul.mubr.bf16.gmra.mxu0 %v3736
        %v3937 = vpop.f32.mrf.mxu0
        %v3938 = vadd.f32 0.0, %v3937
        %v3939 = vpop.f32.mrf.mxu0
        %v3940 = vpop.f32.mrf.mxu0
        %v3941 = vadd.f32 0.0, %v3940
        %v3942 = vpop.f32.mrf.mxu0
        %3943 = vmatprep.mubr.bf16.mxu0 0
        %3944 = vmatmul.mubr.bf16.gmra.mxu0 %v3738
        %v3945 = vpop.f32.mrf.mxu0
        %v3946 = vadd.f32 0.0, %v3945
        %v3947 = vpop.f32.mrf.mxu0
        %v3948 = vpop.f32.mrf.mxu0
        %v3949 = vadd.f32 0.0, %v3948
        %v3950 = vpop.f32.mrf.mxu0
        %3951 = vmatprep.mubr.bf16.mxu0 0
        %3952 = vmatmul.mubr.bf16.gmra.mxu0 %v3740
        %v3953 = vpop.f32.mrf.mxu0
        %v3954 = vadd.f32 0.0, %v3953
        %v3955 = vpop.f32.mrf.mxu0
        %v3956 = vpop.f32.mrf.mxu0
        %v3957 = vadd.f32 0.0, %v3956
        %v3958 = vpop.f32.mrf.mxu0
        %3959 = vmatprep.mubr.bf16.mxu0 0
        %3960 = vmatmul.mubr.bf16.gmra.mxu0 %v3742
        %v3961 = vpop.f32.mrf.mxu0
        %v3962 = vadd.f32 0.0, %v3961
        %v3963 = vpop.f32.mrf.mxu0
        %v3964 = vpop.f32.mrf.mxu0
        %v3965 = vadd.f32 0.0, %v3964
        %v3966 = vpop.f32.mrf.mxu0
        %3967 = vmatprep.mubr.bf16.mxu0 0
        %3968 = vmatmul.mubr.bf16.gmra.mxu0 %v3744
        %v3969 = vpop.f32.mrf.mxu0
        %v3970 = vadd.f32 0.0, %v3969
        %v3971 = vpop.f32.mrf.mxu0
        %v3972 = vpop.f32.mrf.mxu0
        %v3973 = vadd.f32 0.0, %v3972
        %v3974 = vpop.f32.mrf.mxu0
        %3975 = vmatprep.mubr.bf16.mxu0 0
        %3976 = vmatmul.mubr.bf16.gmra.mxu0 %v3746
        %v3977 = vpop.f32.mrf.mxu0
        %v3978 = vadd.f32 0.0, %v3977
        %v3979 = vpop.f32.mrf.mxu0
        %v3980 = vpop.f32.mrf.mxu0
        %v3981 = vadd.f32 0.0, %v3980
        %v3982 = vpop.f32.mrf.mxu0
        %3983 = vmatprep.mubr.bf16.mxu0 0
        %3984 = vmatmul.mubr.bf16.gmra.mxu0 %v3748
        %v3985 = vpop.f32.mrf.mxu0
        %v3986 = vadd.f32 0.0, %v3985
        %v3987 = vpop.f32.mrf.mxu0
        %v3988 = vpop.f32.mrf.mxu0
        %v3989 = vadd.f32 0.0, %v3988
        %v3990 = vpop.f32.mrf.mxu0
        %3991 = vdwg.mxu0
        %v3992 = vadd.f32 %v3659, %v3850
        %v3993 = vadd.f32 %v3660, %v3853
        %v3994 = vadd.f32 %v3661, %v3858
        %v3995 = vadd.f32 %v3662, %v3861
        %v3996 = vadd.f32 %v3663, %v3866
        %v3997 = vadd.f32 %v3664, %v3869
        %v3998 = vadd.f32 %v3665, %v3874
        %v3999 = vadd.f32 %v3666, %v3877
        %v4000 = vadd.f32 %v3667, %v3882
        %v4001 = vadd.f32 %v3668, %v3885
        %v4002 = vadd.f32 %v3669, %v3890
        %v4003 = vadd.f32 %v3670, %v3893
        %v4004 = vadd.f32 %v3671, %v3898
        %v4005 = vadd.f32 %v3672, %v3901
        %v4006 = vadd.f32 %v3673, %v3906
        %v4007 = vadd.f32 %v3674, %v3909
        %v4008 = vadd.f32 %v3675, %v3914
        %v4009 = vadd.f32 %v3676, %v3917
        %v4010 = vadd.f32 %v3677, %v3922
        %v4011 = vadd.f32 %v3678, %v3925
        %v4012 = vadd.f32 %v3679, %v3930
        %v4013 = vadd.f32 %v3680, %v3933
        %v4014 = vadd.f32 %v3681, %v3938
        %v4015 = vadd.f32 %v3682, %v3941
        %v4016 = vadd.f32 %v3683, %v3946
        %v4017 = vadd.f32 %v3684, %v3949
        %v4018 = vadd.f32 %v3685, %v3954
        %v4019 = vadd.f32 %v3686, %v3957
        %v4020 = vadd.f32 %v3687, %v3962
        %v4021 = vadd.f32 %v3688, %v3965
        %v4022 = vadd.f32 %v3689, %v3970
        %v4023 = vadd.f32 %v3690, %v3973
        %v4024 = vadd.f32 %v3691, %v3978
        %v4025 = vadd.f32 %v3692, %v3981
        %v4026 = vadd.f32 %v3693, %v3986
        %v4027 = vadd.f32 %v3694, %v3989
        %v4028 = vld [vmem:[%s2] sm:$0x1]
        %v4030 = vlaneseq
        %v4031 = vshrl.u32 %v4030, 7
        %v4032 = vsub.s32 0, %v4031
        %v4033 = vrot.slane %v4028, %v4032
        %v4035 = vadd.f32 %v3992, %v4033
        %v4036 = vadd.f32 %v3993, %v4033
        %v4037 = vadd.f32 %v3994, %v4033
        %v4038 = vadd.f32 %v3995, %v4033
        %v4039 = vadd.f32 %v3996, %v4033
        %v4040 = vadd.f32 %v3997, %v4033
        %v4041 = vadd.f32 %v3998, %v4033
        %v4042 = vadd.f32 %v3999, %v4033
        %v4043 = vadd.f32 %v4000, %v4033
        %v4044 = vadd.f32 %v4001, %v4033
        %v4045 = vadd.f32 %v4002, %v4033
        %v4046 = vadd.f32 %v4003, %v4033
        %v4047 = vadd.f32 %v4004, %v4033
        %v4048 = vadd.f32 %v4005, %v4033
        %v4049 = vadd.f32 %v4006, %v4033
        %v4050 = vadd.f32 %v4007, %v4033
        %v4051 = vadd.f32 %v4008, %v4033
        %v4052 = vadd.f32 %v4009, %v4033
        %v4053 = vadd.f32 %v4010, %v4033
        %v4054 = vadd.f32 %v4011, %v4033
        %v4055 = vadd.f32 %v4012, %v4033
        %v4056 = vadd.f32 %v4013, %v4033
        %v4057 = vadd.f32 %v4014, %v4033
        %v4058 = vadd.f32 %v4015, %v4033
        %v4059 = vadd.f32 %v4016, %v4033
        %v4060 = vadd.f32 %v4017, %v4033
        %v4061 = vadd.f32 %v4018, %v4033
        %v4062 = vadd.f32 %v4019, %v4033
        %v4063 = vadd.f32 %v4020, %v4033
        %v4064 = vadd.f32 %v4021, %v4033
        %v4065 = vadd.f32 %v4022, %v4033
        %v4066 = vadd.f32 %v4023, %v4033
        %v4067 = vadd.f32 %v4024, %v4033
        %v4068 = vadd.f32 %v4025, %v4033
        %v4069 = vadd.f32 %v4026, %v4033
        %v4070 = vadd.f32 %v4027, %v4033
        %v4071 = vmax.f32 %v4035, 0.0
        %v4072 = vmax.f32 %v4036, 0.0
        %v4073 = vmax.f32 %v4037, 0.0
        %v4074 = vmax.f32 %v4038, 0.0
        %v4075 = vmax.f32 %v4039, 0.0
        %v4076 = vmax.f32 %v4040, 0.0
        %v4077 = vmax.f32 %v4041, 0.0
        %v4078 = vmax.f32 %v4042, 0.0
        %v4079 = vmax.f32 %v4043, 0.0
        %v4080 = vmax.f32 %v4044, 0.0
        %v4081 = vmax.f32 %v4045, 0.0
        %v4082 = vmax.f32 %v4046, 0.0
        %v4083 = vmax.f32 %v4047, 0.0
        %v4084 = vmax.f32 %v4048, 0.0
        %v4085 = vmax.f32 %v4049, 0.0
        %v4086 = vmax.f32 %v4050, 0.0
        %v4087 = vmax.f32 %v4051, 0.0
        %v4088 = vmax.f32 %v4052, 0.0
        %v4089 = vmax.f32 %v4053, 0.0
        %v4090 = vmax.f32 %v4054, 0.0
        %v4091 = vmax.f32 %v4055, 0.0
        %v4092 = vmax.f32 %v4056, 0.0
        %v4093 = vmax.f32 %v4057, 0.0
        %v4094 = vmax.f32 %v4058, 0.0
        %v4095 = vmax.f32 %v4059, 0.0
        %v4096 = vmax.f32 %v4060, 0.0
        %v4097 = vmax.f32 %v4061, 0.0
        %v4098 = vmax.f32 %v4062, 0.0
        %v4099 = vmax.f32 %v4063, 0.0
        %v4100 = vmax.f32 %v4064, 0.0
        %v4101 = vmax.f32 %v4065, 0.0
        %v4102 = vmax.f32 %v4066, 0.0
        %v4103 = vmax.f32 %v4067, 0.0
        %v4104 = vmax.f32 %v4068, 0.0
        %v4105 = vmax.f32 %v4069, 0.0
        %v4106 = vmax.f32 %v4070, 0.0
        %v4107 = vsel %vm893, 1, 0
        %v4108 = vsel %vm894, 1, 0
        %v4109 = vsel %vm895, 1, 0
        %v4110 = vsel %vm896, 1, 0
        %v4111 = vsel %vm897, 1, 0
        %v4112 = vsel %vm898, 1, 0
        %v4113 = vsel %vm899, 1, 0
        %v4114 = vsel %vm900, 1, 0
        %v4115 = vsel %vm901, 1, 0
        %v4116 = vsel %vm902, 1, 0
        %v4117 = vsel %vm903, 1, 0
        %v4118 = vsel %vm904, 1, 0
        %v4119 = vsel %vm905, 1, 0
        %v4120 = vsel %vm906, 1, 0
        %v4121 = vsel %vm907, 1, 0
        %v4122 = vsel %vm908, 1, 0
        %v4123 = vsel %vm909, 1, 0
        %v4124 = vsel %vm910, 1, 0
        %v4125 = vsel %vm911, 1, 0
        %v4126 = vsel %vm912, 1, 0
        %v4127 = vsel %vm913, 1, 0
        %v4128 = vsel %vm914, 1, 0
        %v4129 = vsel %vm915, 1, 0
        %v4130 = vsel %vm916, 1, 0
        %v4131 = vsel %vm917, 1, 0
        %v4132 = vsel %vm918, 1, 0
        %v4133 = vsel %vm919, 1, 0
        %v4134 = vsel %vm920, 1, 0
        %v4135 = vsel %vm921, 1, 0
        %v4136 = vsel %vm922, 1, 0
        %v4137 = vsel %vm923, 1, 0
        %v4138 = vsel %vm924, 1, 0
        %v4139 = vsel %vm925, 1, 0
        %v4140 = vsel %vm926, 1, 0
        %v4141 = vsel %vm927, 1, 0
        %v4142 = vsel %vm928, 1, 0
        %vm4143 = vcmp.eq.s32.totalorder %v4107, 1
        %vm4144 = vcmp.eq.s32.totalorder %v4108, 1
        %vm4145 = vcmp.eq.s32.totalorder %v4109, 1
        %vm4146 = vcmp.eq.s32.totalorder %v4110, 1
        %vm4147 = vcmp.eq.s32.totalorder %v4111, 1
        %vm4148 = vcmp.eq.s32.totalorder %v4112, 1
        %vm4149 = vcmp.eq.s32.totalorder %v4113, 1
        %vm4150 = vcmp.eq.s32.totalorder %v4114, 1
        %vm4151 = vcmp.eq.s32.totalorder %v4115, 1
        %vm4152 = vcmp.eq.s32.totalorder %v4116, 1
        %vm4153 = vcmp.eq.s32.totalorder %v4117, 1
        %vm4154 = vcmp.eq.s32.totalorder %v4118, 1
        %vm4155 = vcmp.eq.s32.totalorder %v4119, 1
        %vm4156 = vcmp.eq.s32.totalorder %v4120, 1
        %vm4157 = vcmp.eq.s32.totalorder %v4121, 1
        %vm4158 = vcmp.eq.s32.totalorder %v4122, 1
        %vm4159 = vcmp.eq.s32.totalorder %v4123, 1
        %vm4160 = vcmp.eq.s32.totalorder %v4124, 1
        %vm4161 = vcmp.eq.s32.totalorder %v4125, 1
        %vm4162 = vcmp.eq.s32.totalorder %v4126, 1
        %vm4163 = vcmp.eq.s32.totalorder %v4127, 1
        %vm4164 = vcmp.eq.s32.totalorder %v4128, 1
        %vm4165 = vcmp.eq.s32.totalorder %v4129, 1
        %vm4166 = vcmp.eq.s32.totalorder %v4130, 1
        %vm4167 = vcmp.eq.s32.totalorder %v4131, 1
        %vm4168 = vcmp.eq.s32.totalorder %v4132, 1
        %vm4169 = vcmp.eq.s32.totalorder %v4133, 1
        %vm4170 = vcmp.eq.s32.totalorder %v4134, 1
        %vm4171 = vcmp.eq.s32.totalorder %v4135, 1
        %vm4172 = vcmp.eq.s32.totalorder %v4136, 1
        %vm4173 = vcmp.eq.s32.totalorder %v4137, 1
        %vm4174 = vcmp.eq.s32.totalorder %v4138, 1
        %vm4175 = vcmp.eq.s32.totalorder %v4139, 1
        %vm4176 = vcmp.eq.s32.totalorder %v4140, 1
        %vm4177 = vcmp.eq.s32.totalorder %v4141, 1
        %vm4178 = vcmp.eq.s32.totalorder %v4142, 1
        %v4179 = vsel %vm4143, %v4071, 0.0
        %v4180 = vsel %vm4144, %v4072, 0.0
        %v4181 = vsel %vm4145, %v4073, 0.0
        %v4182 = vsel %vm4146, %v4074, 0.0
        %v4183 = vsel %vm4147, %v4075, 0.0
        %v4184 = vsel %vm4148, %v4076, 0.0
        %v4185 = vsel %vm4149, %v4077, 0.0
        %v4186 = vsel %vm4150, %v4078, 0.0
        %v4187 = vsel %vm4151, %v4079, 0.0
        %v4188 = vsel %vm4152, %v4080, 0.0
        %v4189 = vsel %vm4153, %v4081, 0.0
        %v4190 = vsel %vm4154, %v4082, 0.0
        %v4191 = vsel %vm4155, %v4083, 0.0
        %v4192 = vsel %vm4156, %v4084, 0.0
        %v4193 = vsel %vm4157, %v4085, 0.0
        %v4194 = vsel %vm4158, %v4086, 0.0
        %v4195 = vsel %vm4159, %v4087, 0.0
        %v4196 = vsel %vm4160, %v4088, 0.0
        %v4197 = vsel %vm4161, %v4089, 0.0
        %v4198 = vsel %vm4162, %v4090, 0.0
        %v4199 = vsel %vm4163, %v4091, 0.0
        %v4200 = vsel %vm4164, %v4092, 0.0
        %v4201 = vsel %vm4165, %v4093, 0.0
        %v4202 = vsel %vm4166, %v4094, 0.0
        %v4203 = vsel %vm4167, %v4095, 0.0
        %v4204 = vsel %vm4168, %v4096, 0.0
        %v4205 = vsel %vm4169, %v4097, 0.0
        %v4206 = vsel %vm4170, %v4098, 0.0
        %v4207 = vsel %vm4171, %v4099, 0.0
        %v4208 = vsel %vm4172, %v4100, 0.0
        %v4209 = vsel %vm4173, %v4101, 0.0
        %v4210 = vsel %vm4174, %v4102, 0.0
        %v4211 = vsel %vm4175, %v4103, 0.0
        %v4212 = vsel %vm4176, %v4104, 0.0
        %v4213 = vsel %vm4177, %v4105, 0.0
        %v4214 = vsel %vm4178, %v4106, 0.0
        %4215 = vst [vmem:[#allocation2] sm:$0xf] 0
        %4216 = vst [vmem:[#allocation2 + $0x4] sm:$0xf] 0
        %vm4217 = vcmask 1041408
        %vm4218 = vsmask.f32 1280
        %vm4219 = vmand %vm4217, %vm4218
        %v4220 = vld [vmem:[#allocation2 + $0x8] sm:$0x3]
        %v4221 = vsel %vm4219, 0, %v4220
        %4222 = vst [vmem:[#allocation2 + $0x8] sm:$0x3] %v4221
        %vm4223 = vcmask 1043457
        %vm4224 = vsmask.f32 7942
        %vm4225 = vmand %vm4223, %vm4224
        %v4226 = vld [vmem:[#allocation2 + $0x98] sm:$0xe]
        %v4227 = vsel %vm4225, 0, %v4226
        %4228 = vst [vmem:[#allocation2 + $0x98] sm:$0xe] %v4227
        %4229 = vst [vmem:[#allocation2 + $0x9c] sm:$0xf] 0
        %4230 = vst [vmem:[#allocation2 + $0xa0] sm:$0xf] 0
        %4231 = vst [vmem:[#allocation2 + $0xa4] sm:$0xf] 0
        %4232 = vst [vmem:[#allocation2 + $0xa8] sm:$0x7] 0
        %v4233 = vpack.c.bf16 %v4180, %v4179
        %v4234 = vpack.c.bf16 %v4182, %v4181
        %v4235 = vpack.c.bf16 %v4184, %v4183
        %v4236 = vpack.c.bf16 %v4186, %v4185
        %v4237 = vpack.c.bf16 %v4188, %v4187
        %v4238 = vpack.c.bf16 %v4190, %v4189
        %v4239 = vpack.c.bf16 %v4192, %v4191
        %v4240 = vpack.c.bf16 %v4194, %v4193
        %v4241 = vpack.c.bf16 %v4196, %v4195
        %v4242 = vpack.c.bf16 %v4198, %v4197
        %v4243 = vpack.c.bf16 %v4200, %v4199
        %v4244 = vpack.c.bf16 %v4202, %v4201
        %v4245 = vpack.c.bf16 %v4204, %v4203
        %v4246 = vpack.c.bf16 %v4206, %v4205
        %v4247 = vpack.c.bf16 %v4208, %v4207
        %v4248 = vpack.c.bf16 %v4210, %v4209
        %v4249 = vpack.c.bf16 %v4212, %v4211
        %v4250 = vpack.c.bf16 %v4214, %v4213
        %v4269 = vunpack.c.l.b16 %v4233
        %v4270 = vunpack.c.h.b16 %v4233
        %v4271 = vunpack.c.l.b16 %v4234
        %v4272 = vunpack.c.h.b16 %v4234
        %v4273 = vunpack.c.l.b16 %v4235
        %v4274 = vunpack.c.h.b16 %v4235
        %v4275 = vunpack.c.l.b16 %v4236
        %v4276 = vunpack.c.h.b16 %v4236
        %v4277 = vunpack.c.l.b16 %v4237
        %v4278 = vunpack.c.h.b16 %v4237
        %v4279 = vunpack.c.l.b16 %v4238
        %v4280 = vunpack.c.h.b16 %v4238
        %v4281 = vunpack.c.l.b16 %v4239
        %v4282 = vunpack.c.h.b16 %v4239
        %v4283 = vunpack.c.l.b16 %v4240
        %v4284 = vunpack.c.h.b16 %v4240
        %v4285 = vunpack.c.l.b16 %v4241
        %v4286 = vunpack.c.h.b16 %v4241
        %v4287 = vunpack.c.l.b16 %v4242
        %v4288 = vunpack.c.h.b16 %v4242
        %v4289 = vunpack.c.l.b16 %v4243
        %v4290 = vunpack.c.h.b16 %v4243
        %v4291 = vunpack.c.l.b16 %v4244
        %v4292 = vunpack.c.h.b16 %v4244
        %v4293 = vunpack.c.l.b16 %v4245
        %v4294 = vunpack.c.h.b16 %v4245
        %v4295 = vunpack.c.l.b16 %v4246
        %v4296 = vunpack.c.h.b16 %v4246
        %v4297 = vunpack.c.l.b16 %v4247
        %v4298 = vunpack.c.h.b16 %v4247
        %v4299 = vunpack.c.l.b16 %v4248
        %v4300 = vunpack.c.h.b16 %v4248
        %v4301 = vunpack.c.l.b16 %v4249
        %v4302 = vunpack.c.h.b16 %v4249
        %v4303 = vunpack.c.l.b16 %v4250
        %v4304 = vunpack.c.h.b16 %v4250
        %v4305 = vpack.c.b16 %v4269, %v4269
        %v4306 = vpack.c.b16 %v4270, %v4270
        %v4307 = vpack.c.b16 %v4271, %v4271
        %v4308 = vpack.c.b16 %v4272, %v4272
        %v4309 = vpack.c.b16 %v4273, %v4273
        %v4310 = vpack.c.b16 %v4274, %v4274
        %v4311 = vpack.c.b16 %v4275, %v4275
        %v4312 = vpack.c.b16 %v4276, %v4276
        %v4313 = vpack.c.b16 %v4277, %v4277
        %v4314 = vpack.c.b16 %v4278, %v4278
        %v4315 = vpack.c.b16 %v4279, %v4279
        %v4316 = vpack.c.b16 %v4280, %v4280
        %v4317 = vpack.c.b16 %v4281, %v4281
        %v4318 = vpack.c.b16 %v4282, %v4282
        %v4319 = vpack.c.b16 %v4283, %v4283
        %v4320 = vpack.c.b16 %v4284, %v4284
        %v4321 = vpack.c.b16 %v4285, %v4285
        %v4322 = vpack.c.b16 %v4286, %v4286
        %v4323 = vpack.c.b16 %v4287, %v4287
        %v4324 = vpack.c.b16 %v4288, %v4288
        %v4325 = vpack.c.b16 %v4289, %v4289
        %v4326 = vpack.c.b16 %v4290, %v4290
        %v4327 = vpack.c.b16 %v4291, %v4291
        %v4328 = vpack.c.b16 %v4292, %v4292
        %v4329 = vpack.c.b16 %v4293, %v4293
        %v4330 = vpack.c.b16 %v4294, %v4294
        %v4331 = vpack.c.b16 %v4295, %v4295
        %v4332 = vpack.c.b16 %v4296, %v4296
        %v4333 = vpack.c.b16 %v4297, %v4297
        %v4334 = vpack.c.b16 %v4298, %v4298
        %v4335 = vpack.c.b16 %v4299, %v4299
        %v4336 = vpack.c.b16 %v4300, %v4300
        %v4337 = vpack.c.b16 %v4301, %v4301
        %v4338 = vpack.c.b16 %v4302, %v4302
        %v4339 = vpack.c.b16 %v4303, %v4303
        %v4340 = vpack.c.b16 %v4304, %v4304
        %vm4341 = vsmask.f32 5392
        %vm4342 = vmor %vm4218, %vm4341
        %v4344 = vshrl.u32 %v4305, 16
        %v4346 = vrot.slane %v4344, 6
        %v4347 = vshll.u32 %v4305, 16
        %v4349 = vrot.slane %v4347, 7
        %v4350 = vor.u32 %v4346, %v4349
        %v4351 = vrot.slane %v4350, 4
        %v4353 = vshrl.u32 %v4306, 16
        %v4355 = vrot.slane %v4353, 6
        %v4356 = vshll.u32 %v4306, 16
        %v4358 = vrot.slane %v4356, 7
        %v4359 = vor.u32 %v4355, %v4358
        %v4360 = vsel %vm4342, %v4351, %v4359
        %v4361 = vrot.slane %v4359, 4
        %v4363 = vshrl.u32 %v4307, 16
        %v4365 = vrot.slane %v4363, 6
        %v4366 = vshll.u32 %v4307, 16
        %v4368 = vrot.slane %v4366, 7
        %v4369 = vor.u32 %v4365, %v4368
        %v4370 = vsel %vm4342, %v4361, %v4369
        %v4371 = vrot.slane %v4369, 4
        %v4373 = vshrl.u32 %v4308, 16
        %v4375 = vrot.slane %v4373, 6
        %v4376 = vshll.u32 %v4308, 16
        %v4378 = vrot.slane %v4376, 7
        %v4379 = vor.u32 %v4375, %v4378
        %v4380 = vsel %vm4342, %v4371, %v4379
        %v4381 = vrot.slane %v4379, 4
        %v4383 = vshrl.u32 %v4309, 16
        %v4385 = vrot.slane %v4383, 6
        %v4386 = vshll.u32 %v4309, 16
        %v4388 = vrot.slane %v4386, 7
        %v4389 = vor.u32 %v4385, %v4388
        %v4390 = vsel %vm4342, %v4381, %v4389
        %v4391 = vrot.slane %v4389, 4
        %v4393 = vshrl.u32 %v4310, 16
        %v4395 = vrot.slane %v4393, 6
        %v4396 = vshll.u32 %v4310, 16
        %v4398 = vrot.slane %v4396, 7
        %v4399 = vor.u32 %v4395, %v4398
        %v4400 = vsel %vm4342, %v4391, %v4399
        %v4401 = vrot.slane %v4399, 4
        %v4403 = vshrl.u32 %v4311, 16
        %v4405 = vrot.slane %v4403, 6
        %v4406 = vshll.u32 %v4311, 16
        %v4408 = vrot.slane %v4406, 7
        %v4409 = vor.u32 %v4405, %v4408
        %v4410 = vsel %vm4342, %v4401, %v4409
        %v4411 = vrot.slane %v4409, 4
        %v4413 = vshrl.u32 %v4312, 16
        %v4415 = vrot.slane %v4413, 6
        %v4416 = vshll.u32 %v4312, 16
        %v4418 = vrot.slane %v4416, 7
        %v4419 = vor.u32 %v4415, %v4418
        %v4420 = vsel %vm4342, %v4411, %v4419
        %v4421 = vrot.slane %v4419, 4
        %v4423 = vshrl.u32 %v4313, 16
        %v4425 = vrot.slane %v4423, 6
        %v4426 = vshll.u32 %v4313, 16
        %v4428 = vrot.slane %v4426, 7
        %v4429 = vor.u32 %v4425, %v4428
        %v4430 = vsel %vm4342, %v4421, %v4429
        %v4431 = vrot.slane %v4429, 4
        %v4433 = vshrl.u32 %v4314, 16
        %v4435 = vrot.slane %v4433, 6
        %v4436 = vshll.u32 %v4314, 16
        %v4438 = vrot.slane %v4436, 7
        %v4439 = vor.u32 %v4435, %v4438
        %v4440 = vsel %vm4342, %v4431, %v4439
        %v4441 = vrot.slane %v4439, 4
        %v4443 = vshrl.u32 %v4315, 16
        %v4445 = vrot.slane %v4443, 6
        %v4446 = vshll.u32 %v4315, 16
        %v4448 = vrot.slane %v4446, 7
        %v4449 = vor.u32 %v4445, %v4448
        %v4450 = vsel %vm4342, %v4441, %v4449
        %v4451 = vrot.slane %v4449, 4
        %v4453 = vshrl.u32 %v4316, 16
        %v4455 = vrot.slane %v4453, 6
        %v4456 = vshll.u32 %v4316, 16
        %v4458 = vrot.slane %v4456, 7
        %v4459 = vor.u32 %v4455, %v4458
        %v4460 = vsel %vm4342, %v4451, %v4459
        %v4461 = vrot.slane %v4459, 4
        %v4463 = vshrl.u32 %v4317, 16
        %v4465 = vrot.slane %v4463, 6
        %v4466 = vshll.u32 %v4317, 16
        %v4468 = vrot.slane %v4466, 7
        %v4469 = vor.u32 %v4465, %v4468
        %v4470 = vsel %vm4342, %v4461, %v4469
        %v4471 = vrot.slane %v4469, 4
        %v4473 = vshrl.u32 %v4318, 16
        %v4475 = vrot.slane %v4473, 6
        %v4476 = vshll.u32 %v4318, 16
        %v4478 = vrot.slane %v4476, 7
        %v4479 = vor.u32 %v4475, %v4478
        %v4480 = vsel %vm4342, %v4471, %v4479
        %v4481 = vrot.slane %v4479, 4
        %v4483 = vshrl.u32 %v4319, 16
        %v4485 = vrot.slane %v4483, 6
        %v4486 = vshll.u32 %v4319, 16
        %v4488 = vrot.slane %v4486, 7
        %v4489 = vor.u32 %v4485, %v4488
        %v4490 = vsel %vm4342, %v4481, %v4489
        %v4491 = vrot.slane %v4489, 4
        %v4493 = vshrl.u32 %v4320, 16
        %v4495 = vrot.slane %v4493, 6
        %v4496 = vshll.u32 %v4320, 16
        %v4498 = vrot.slane %v4496, 7
        %v4499 = vor.u32 %v4495, %v4498
        %v4500 = vsel %vm4342, %v4491, %v4499
        %v4501 = vrot.slane %v4499, 4
        %v4503 = vshrl.u32 %v4321, 16
        %v4505 = vrot.slane %v4503, 6
        %v4506 = vshll.u32 %v4321, 16
        %v4508 = vrot.slane %v4506, 7
        %v4509 = vor.u32 %v4505, %v4508
        %v4510 = vsel %vm4342, %v4501, %v4509
        %v4511 = vrot.slane %v4509, 4
        %v4513 = vshrl.u32 %v4322, 16
        %v4515 = vrot.slane %v4513, 6
        %v4516 = vshll.u32 %v4322, 16
        %v4518 = vrot.slane %v4516, 7
        %v4519 = vor.u32 %v4515, %v4518
        %v4520 = vsel %vm4342, %v4511, %v4519
        %v4521 = vrot.slane %v4519, 4
        %v4523 = vshrl.u32 %v4323, 16
        %v4525 = vrot.slane %v4523, 6
        %v4526 = vshll.u32 %v4323, 16
        %v4528 = vrot.slane %v4526, 7
        %v4529 = vor.u32 %v4525, %v4528
        %v4530 = vsel %vm4342, %v4521, %v4529
        %v4531 = vrot.slane %v4529, 4
        %v4533 = vshrl.u32 %v4324, 16
        %v4535 = vrot.slane %v4533, 6
        %v4536 = vshll.u32 %v4324, 16
        %v4538 = vrot.slane %v4536, 7
        %v4539 = vor.u32 %v4535, %v4538
        %v4540 = vsel %vm4342, %v4531, %v4539
        %v4541 = vrot.slane %v4539, 4
        %v4543 = vshrl.u32 %v4325, 16
        %v4545 = vrot.slane %v4543, 6
        %v4546 = vshll.u32 %v4325, 16
        %v4548 = vrot.slane %v4546, 7
        %v4549 = vor.u32 %v4545, %v4548
        %v4550 = vsel %vm4342, %v4541, %v4549
        %v4551 = vrot.slane %v4549, 4
        %v4553 = vshrl.u32 %v4326, 16
        %v4555 = vrot.slane %v4553, 6
        %v4556 = vshll.u32 %v4326, 16
        %v4558 = vrot.slane %v4556, 7
        %v4559 = vor.u32 %v4555, %v4558
        %v4560 = vsel %vm4342, %v4551, %v4559
        %v4561 = vrot.slane %v4559, 4
        %v4563 = vshrl.u32 %v4327, 16
        %v4565 = vrot.slane %v4563, 6
        %v4566 = vshll.u32 %v4327, 16
        %v4568 = vrot.slane %v4566, 7
        %v4569 = vor.u32 %v4565, %v4568
        %v4570 = vsel %vm4342, %v4561, %v4569
        %v4571 = vrot.slane %v4569, 4
        %v4573 = vshrl.u32 %v4328, 16
        %v4575 = vrot.slane %v4573, 6
        %v4576 = vshll.u32 %v4328, 16
        %v4578 = vrot.slane %v4576, 7
        %v4579 = vor.u32 %v4575, %v4578
        %v4580 = vsel %vm4342, %v4571, %v4579
        %v4581 = vrot.slane %v4579, 4
        %v4583 = vshrl.u32 %v4329, 16
        %v4585 = vrot.slane %v4583, 6
        %v4586 = vshll.u32 %v4329, 16
        %v4588 = vrot.slane %v4586, 7
        %v4589 = vor.u32 %v4585, %v4588
        %v4590 = vsel %vm4342, %v4581, %v4589
        %v4591 = vrot.slane %v4589, 4
        %v4593 = vshrl.u32 %v4330, 16
        %v4595 = vrot.slane %v4593, 6
        %v4596 = vshll.u32 %v4330, 16
        %v4598 = vrot.slane %v4596, 7
        %v4599 = vor.u32 %v4595, %v4598
        %v4600 = vsel %vm4342, %v4591, %v4599
        %v4601 = vrot.slane %v4599, 4
        %v4603 = vshrl.u32 %v4331, 16
        %v4605 = vrot.slane %v4603, 6
        %v4606 = vshll.u32 %v4331, 16
        %v4608 = vrot.slane %v4606, 7
        %v4609 = vor.u32 %v4605, %v4608
        %v4610 = vsel %vm4342, %v4601, %v4609
        %v4611 = vrot.slane %v4609, 4
        %v4613 = vshrl.u32 %v4332, 16
        %v4615 = vrot.slane %v4613, 6
        %v4616 = vshll.u32 %v4332, 16
        %v4618 = vrot.slane %v4616, 7
        %v4619 = vor.u32 %v4615, %v4618
        %v4620 = vsel %vm4342, %v4611, %v4619
        %v4621 = vrot.slane %v4619, 4
        %v4623 = vshrl.u32 %v4333, 16
        %v4625 = vrot.slane %v4623, 6
        %v4626 = vshll.u32 %v4333, 16
        %v4628 = vrot.slane %v4626, 7
        %v4629 = vor.u32 %v4625, %v4628
        %v4630 = vsel %vm4342, %v4621, %v4629
        %v4631 = vrot.slane %v4629, 4
        %v4633 = vshrl.u32 %v4334, 16
        %v4635 = vrot.slane %v4633, 6
        %v4636 = vshll.u32 %v4334, 16
        %v4638 = vrot.slane %v4636, 7
        %v4639 = vor.u32 %v4635, %v4638
        %v4640 = vsel %vm4342, %v4631, %v4639
        %v4641 = vrot.slane %v4639, 4
        %v4643 = vshrl.u32 %v4335, 16
        %v4645 = vrot.slane %v4643, 6
        %v4646 = vshll.u32 %v4335, 16
        %v4648 = vrot.slane %v4646, 7
        %v4649 = vor.u32 %v4645, %v4648
        %v4650 = vsel %vm4342, %v4641, %v4649
        %v4651 = vrot.slane %v4649, 4
        %v4653 = vshrl.u32 %v4336, 16
        %v4655 = vrot.slane %v4653, 6
        %v4656 = vshll.u32 %v4336, 16
        %v4658 = vrot.slane %v4656, 7
        %v4659 = vor.u32 %v4655, %v4658
        %v4660 = vsel %vm4342, %v4651, %v4659
        %v4661 = vrot.slane %v4659, 4
        %v4663 = vshrl.u32 %v4337, 16
        %v4665 = vrot.slane %v4663, 6
        %v4666 = vshll.u32 %v4337, 16
        %v4668 = vrot.slane %v4666, 7
        %v4669 = vor.u32 %v4665, %v4668
        %v4670 = vsel %vm4342, %v4661, %v4669
        %v4671 = vrot.slane %v4669, 4
        %v4673 = vshrl.u32 %v4338, 16
        %v4675 = vrot.slane %v4673, 6
        %v4676 = vshll.u32 %v4338, 16
        %v4678 = vrot.slane %v4676, 7
        %v4679 = vor.u32 %v4675, %v4678
        %v4680 = vsel %vm4342, %v4671, %v4679
        %v4681 = vrot.slane %v4679, 4
        %v4683 = vshrl.u32 %v4339, 16
        %v4685 = vrot.slane %v4683, 6
        %v4686 = vshll.u32 %v4339, 16
        %v4688 = vrot.slane %v4686, 7
        %v4689 = vor.u32 %v4685, %v4688
        %v4690 = vsel %vm4342, %v4681, %v4689
        %v4691 = vrot.slane %v4689, 4
        %v4693 = vshrl.u32 %v4340, 16
        %v4695 = vrot.slane %v4693, 6
        %v4696 = vshll.u32 %v4340, 16
        %v4698 = vrot.slane %v4696, 7
        %v4699 = vor.u32 %v4695, %v4698
        %v4700 = vsel %vm4342, %v4691, %v4699
        %v4701 = vrot.slane %v4699, 4
        %v4739 = vld [vmem:[#allocation2 + $0x8] sm:$0xe]
        %v4740 = vsel %vm4225, %v4350, %v4739
        %4741 = vst [vmem:[#allocation2 + $0x8] sm:$0xe] %v4740
        %4742 = vst [vmem:[#allocation2 + $0xc] sm:$0xf] %v4360
        %4743 = vst [vmem:[#allocation2 + $0x10] sm:$0xf] %v4370
        %4744 = vst [vmem:[#allocation2 + $0x14] sm:$0xf] %v4380
        %4745 = vst [vmem:[#allocation2 + $0x18] sm:$0xf] %v4390
        %4746 = vst [vmem:[#allocation2 + $0x1c] sm:$0xf] %v4400
        %4747 = vst [vmem:[#allocation2 + $0x20] sm:$0xf] %v4410
        %4748 = vst [vmem:[#allocation2 + $0x24] sm:$0xf] %v4420
        %4749 = vst [vmem:[#allocation2 + $0x28] sm:$0xf] %v4430
        %4750 = vst [vmem:[#allocation2 + $0x2c] sm:$0xf] %v4440
        %4751 = vst [vmem:[#allocation2 + $0x30] sm:$0xf] %v4450
        %4752 = vst [vmem:[#allocation2 + $0x34] sm:$0xf] %v4460
        %4753 = vst [vmem:[#allocation2 + $0x38] sm:$0xf] %v4470
        %4754 = vst [vmem:[#allocation2 + $0x3c] sm:$0xf] %v4480
        %4755 = vst [vmem:[#allocation2 + $0x40] sm:$0xf] %v4490
        %4756 = vst [vmem:[#allocation2 + $0x44] sm:$0xf] %v4500
        %4757 = vst [vmem:[#allocation2 + $0x48] sm:$0xf] %v4510
        %4758 = vst [vmem:[#allocation2 + $0x4c] sm:$0xf] %v4520
        %4759 = vst [vmem:[#allocation2 + $0x50] sm:$0xf] %v4530
        %4760 = vst [vmem:[#allocation2 + $0x54] sm:$0xf] %v4540
        %4761 = vst [vmem:[#allocation2 + $0x58] sm:$0xf] %v4550
        %4762 = vst [vmem:[#allocation2 + $0x5c] sm:$0xf] %v4560
        %4763 = vst [vmem:[#allocation2 + $0x60] sm:$0xf] %v4570
        %4764 = vst [vmem:[#allocation2 + $0x64] sm:$0xf] %v4580
        %4765 = vst [vmem:[#allocation2 + $0x68] sm:$0xf] %v4590
        %4766 = vst [vmem:[#allocation2 + $0x6c] sm:$0xf] %v4600
        %4767 = vst [vmem:[#allocation2 + $0x70] sm:$0xf] %v4610
        %4768 = vst [vmem:[#allocation2 + $0x74] sm:$0xf] %v4620
        %4769 = vst [vmem:[#allocation2 + $0x78] sm:$0xf] %v4630
        %4770 = vst [vmem:[#allocation2 + $0x7c] sm:$0xf] %v4640
        %4771 = vst [vmem:[#allocation2 + $0x80] sm:$0xf] %v4650
        %4772 = vst [vmem:[#allocation2 + $0x84] sm:$0xf] %v4660
        %4773 = vst [vmem:[#allocation2 + $0x88] sm:$0xf] %v4670
        %4774 = vst [vmem:[#allocation2 + $0x8c] sm:$0xf] %v4680
        %4775 = vst [vmem:[#allocation2 + $0x90] sm:$0xf] %v4690
        %4776 = vst [vmem:[#allocation2 + $0x94] sm:$0xf] %v4700
        %v4777 = vld [vmem:[#allocation2 + $0x98] sm:$0x3]
        %v4778 = vsel %vm4219, %v4701, %v4777
        %4779 = vst [vmem:[#allocation2 + $0x98] sm:$0x3] %v4778
        %v4780 = vld [vmem:[#allocation2] sm:$0xf]
        %v4781 = vld [vmem:[#allocation2 + $0x4] sm:$0xf]
        %v4782 = vld [vmem:[#allocation2 + $0x8] sm:$0xf]
        %v4783 = vld [vmem:[#allocation2 + $0xc] sm:$0xf]
        %v4784 = vld [vmem:[#allocation2 + $0x10] sm:$0xf]
        %v4785 = vld [vmem:[#allocation2 + $0x14] sm:$0xf]
        %v4786 = vld [vmem:[#allocation2 + $0x18] sm:$0xf]
        %v4787 = vld [vmem:[#allocation2 + $0x1c] sm:$0xf]
        %v4788 = vld [vmem:[#allocation2 + $0x20] sm:$0xf]
        %v4789 = vld [vmem:[#allocation2 + $0x24] sm:$0xf]
        %v4790 = vld [vmem:[#allocation2 + $0x28] sm:$0xf]
        %v4791 = vld [vmem:[#allocation2 + $0x2c] sm:$0xf]
        %v4792 = vld [vmem:[#allocation2 + $0x30] sm:$0xf]
        %v4793 = vld [vmem:[#allocation2 + $0x34] sm:$0xf]
        %v4794 = vld [vmem:[#allocation2 + $0x38] sm:$0xf]
        %v4795 = vld [vmem:[#allocation2 + $0x3c] sm:$0xf]
        %v4796 = vld [vmem:[#allocation2 + $0x40] sm:$0xf]
        %v4797 = vld [vmem:[#allocation2 + $0x44] sm:$0xf]
        %v4798 = vld [vmem:[#allocation2 + $0x48] sm:$0xf]
        %v4799 = vld [vmem:[#allocation2 + $0x4c] sm:$0xf]
        %v4800 = vld [vmem:[#allocation2 + $0x50] sm:$0xf]
        %v4801 = vld [vmem:[#allocation2 + $0x54] sm:$0xf]
        %v4802 = vld [vmem:[#allocation2 + $0x58] sm:$0xf]
        %v4803 = vld [vmem:[#allocation2 + $0x5c] sm:$0xf]
        %v4804 = vld [vmem:[#allocation2 + $0x60] sm:$0xf]
        %v4805 = vld [vmem:[#allocation2 + $0x64] sm:$0xf]
        %v4806 = vld [vmem:[#allocation2 + $0x68] sm:$0xf]
        %v4807 = vld [vmem:[#allocation2 + $0x6c] sm:$0xf]
        %v4808 = vld [vmem:[#allocation2 + $0x70] sm:$0xf]
        %v4809 = vld [vmem:[#allocation2 + $0x74] sm:$0xf]
        %v4810 = vld [vmem:[#allocation2 + $0x78] sm:$0xf]
        %v4811 = vld [vmem:[#allocation2 + $0x7c] sm:$0xf]
        %v4812 = vld [vmem:[#allocation2 + $0x80] sm:$0xf]
        %v4813 = vld [vmem:[#allocation2 + $0x84] sm:$0xf]
        %v4814 = vld [vmem:[#allocation2 + $0x88] sm:$0xf]
        %v4815 = vld [vmem:[#allocation2 + $0x8c] sm:$0xf]
        %v4816 = vld [vmem:[#allocation3] sm:$0xf]
        %v4817 = vld [vmem:[#allocation3 + $0x4] sm:$0xf]
        %v4818 = vld [vmem:[#allocation3 + $0x8] sm:$0xf]
        %v4819 = vld [vmem:[#allocation3 + $0xc] sm:$0xf]
        %v4820 = vld [vmem:[#allocation3 + $0x10] sm:$0xf]
        %v4821 = vld [vmem:[#allocation3 + $0x14] sm:$0xf]
        %v4822 = vld [vmem:[#allocation3 + $0x18] sm:$0xf]
        %v4823 = vld [vmem:[#allocation3 + $0x1c] sm:$0xf]
        %v4824 = vld [vmem:[#allocation3 + $0x20] sm:$0xf]
        %v4825 = vld [vmem:[#allocation3 + $0x24] sm:$0xf]
        %v4826 = vld [vmem:[#allocation3 + $0x28] sm:$0xf]
        %v4827 = vld [vmem:[#allocation3 + $0x2c] sm:$0xf]
        %v4828 = vld [vmem:[#allocation3 + $0x30] sm:$0xf]
        %v4829 = vld [vmem:[#allocation3 + $0x34] sm:$0xf]
        %v4830 = vld [vmem:[#allocation3 + $0x38] sm:$0xf]
        %v4831 = vld [vmem:[#allocation3 + $0x3c] sm:$0xf]
        %v4832 = vld [vmem:[#allocation2 + $0x90] sm:$0x1]
        %v4833 = vld [vmem:[#allocation3 + $0x40] sm:$0xf]
        %v4834 = vld [vmem:[#allocation3 + $0x44] sm:$0xf]
        %v4835 = vld [vmem:[#allocation3 + $0x48] sm:$0xf]
        %v4836 = vld [vmem:[#allocation3 + $0x4c] sm:$0xf]
        %v4837 = vld [vmem:[#allocation3 + $0x50] sm:$0xf]
        %v4838 = vld [vmem:[#allocation3 + $0x54] sm:$0xf]
        %v4839 = vld [vmem:[#allocation3 + $0x58] sm:$0xf]
        %v4840 = vld [vmem:[#allocation3 + $0x5c] sm:$0xf]
        %v4841 = vld [vmem:[#allocation3 + $0x60] sm:$0xf]
        %v4842 = vld [vmem:[#allocation3 + $0x64] sm:$0xf]
        %v4843 = vld [vmem:[#allocation3 + $0x68] sm:$0xf]
        %v4844 = vld [vmem:[#allocation3 + $0x6c] sm:$0xf]
        %v4845 = vld [vmem:[#allocation3 + $0x70] sm:$0xf]
        %v4846 = vld [vmem:[#allocation3 + $0x74] sm:$0xf]
        %v4847 = vld [vmem:[#allocation3 + $0x78] sm:$0xf]
        %v4848 = vld [vmem:[#allocation3 + $0x7c] sm:$0xf]
        %v4886 = vunpack.c.l.b16 %v4780
        %v4887 = vunpack.c.l.b16 %v4781
        %v4888 = vunpack.c.l.b16 %v4782
        %v4889 = vunpack.c.l.b16 %v4783
        %v4890 = vunpack.c.l.b16 %v4784
        %v4891 = vunpack.c.l.b16 %v4785
        %v4892 = vunpack.c.l.b16 %v4786
        %v4893 = vunpack.c.l.b16 %v4787
        %v4894 = vunpack.c.l.b16 %v4788
        %v4895 = vunpack.c.l.b16 %v4789
        %v4896 = vunpack.c.l.b16 %v4790
        %v4897 = vunpack.c.l.b16 %v4791
        %v4898 = vunpack.c.l.b16 %v4792
        %v4899 = vunpack.c.l.b16 %v4793
        %v4900 = vunpack.c.l.b16 %v4794
        %v4901 = vunpack.c.l.b16 %v4795
        %v4902 = vunpack.c.l.b16 %v4796
        %v4903 = vunpack.c.l.b16 %v4797
        %v4904 = vunpack.c.l.b16 %v4798
        %v4905 = vunpack.c.l.b16 %v4799
        %v4906 = vunpack.c.l.b16 %v4800
        %v4907 = vunpack.c.l.b16 %v4801
        %v4908 = vunpack.c.l.b16 %v4802
        %v4909 = vunpack.c.l.b16 %v4803
        %v4910 = vunpack.c.l.b16 %v4804
        %v4911 = vunpack.c.l.b16 %v4805
        %v4912 = vunpack.c.l.b16 %v4806
        %v4913 = vunpack.c.l.b16 %v4807
        %v4914 = vunpack.c.l.b16 %v4808
        %v4915 = vunpack.c.l.b16 %v4809
        %v4916 = vunpack.c.l.b16 %v4810
        %v4917 = vunpack.c.l.b16 %v4811
        %v4918 = vunpack.c.l.b16 %v4812
        %v4919 = vunpack.c.l.b16 %v4813
        %v4920 = vunpack.c.l.b16 %v4814
        %v4921 = vunpack.c.l.b16 %v4815
        %v4922 = vunpack.c.l.b16 %v4832
        %v4923 = vpack.c.b16 %v4887, %v4886
        %v4924 = vpack.c.b16 %v4889, %v4888
        %v4925 = vpack.c.b16 %v4891, %v4890
        %v4926 = vpack.c.b16 %v4893, %v4892
        %v4927 = vpack.c.b16 %v4895, %v4894
        %v4928 = vpack.c.b16 %v4897, %v4896
        %v4929 = vpack.c.b16 %v4899, %v4898
        %v4930 = vpack.c.b16 %v4901, %v4900
        %v4931 = vpack.c.b16 %v4903, %v4902
        %v4932 = vpack.c.b16 %v4905, %v4904
        %v4933 = vpack.c.b16 %v4907, %v4906
        %v4934 = vpack.c.b16 %v4909, %v4908
        %v4935 = vpack.c.b16 %v4911, %v4910
        %v4936 = vpack.c.b16 %v4913, %v4912
        %v4937 = vpack.c.b16 %v4915, %v4914
        %v4938 = vpack.c.b16 %v4917, %v4916
        %v4939 = vpack.c.b16 %v4919, %v4918
        %v4940 = vpack.c.b16 %v4921, %v4920
        %v4941 = vpack.c.b16 %v4922, %v4922
        %v4943 = vshrl.u32 %v4923, 16
        %v4945 = vshll.u32 %v4923, 16
        %v4947 = vrot.slane %v4945, 1
        %v4948 = vor.u32 %v4943, %v4947
        %v4950 = vshll.u32 %v4924, 16
        %v4952 = vrot.slane %v4950, 1
        %v4953 = vsel %vm1054, %v4948, %v4952
        %v4954 = vshrl.u32 %v4924, 16
        %v4956 = vor.u32 %v4954, %v4952
        %v4958 = vshll.u32 %v4925, 16
        %v4960 = vrot.slane %v4958, 1
        %v4961 = vsel %vm1054, %v4956, %v4960
        %v4962 = vshrl.u32 %v4925, 16
        %v4964 = vor.u32 %v4962, %v4960
        %v4966 = vshll.u32 %v4926, 16
        %v4968 = vrot.slane %v4966, 1
        %v4969 = vsel %vm1054, %v4964, %v4968
        %v4970 = vshrl.u32 %v4926, 16
        %v4972 = vor.u32 %v4970, %v4968
        %v4974 = vshll.u32 %v4927, 16
        %v4976 = vrot.slane %v4974, 1
        %v4977 = vsel %vm1054, %v4972, %v4976
        %v4978 = vshrl.u32 %v4927, 16
        %v4980 = vor.u32 %v4978, %v4976
        %v4982 = vshll.u32 %v4928, 16
        %v4984 = vrot.slane %v4982, 1
        %v4985 = vsel %vm1054, %v4980, %v4984
        %v4986 = vshrl.u32 %v4928, 16
        %v4988 = vor.u32 %v4986, %v4984
        %v4990 = vshll.u32 %v4929, 16
        %v4992 = vrot.slane %v4990, 1
        %v4993 = vsel %vm1054, %v4988, %v4992
        %v4994 = vshrl.u32 %v4929, 16
        %v4996 = vor.u32 %v4994, %v4992
        %v4998 = vshll.u32 %v4930, 16
        %v5000 = vrot.slane %v4998, 1
        %v5001 = vsel %vm1054, %v4996, %v5000
        %v5002 = vshrl.u32 %v4930, 16
        %v5004 = vor.u32 %v5002, %v5000
        %v5006 = vshll.u32 %v4931, 16
        %v5008 = vrot.slane %v5006, 1
        %v5009 = vsel %vm1054, %v5004, %v5008
        %v5010 = vshrl.u32 %v4931, 16
        %v5012 = vor.u32 %v5010, %v5008
        %v5014 = vshll.u32 %v4932, 16
        %v5016 = vrot.slane %v5014, 1
        %v5017 = vsel %vm1054, %v5012, %v5016
        %v5018 = vshrl.u32 %v4932, 16
        %v5020 = vor.u32 %v5018, %v5016
        %v5022 = vshll.u32 %v4933, 16
        %v5024 = vrot.slane %v5022, 1
        %v5025 = vsel %vm1054, %v5020, %v5024
        %v5026 = vshrl.u32 %v4933, 16
        %v5028 = vor.u32 %v5026, %v5024
        %v5030 = vshll.u32 %v4934, 16
        %v5032 = vrot.slane %v5030, 1
        %v5033 = vsel %vm1054, %v5028, %v5032
        %v5034 = vshrl.u32 %v4934, 16
        %v5036 = vor.u32 %v5034, %v5032
        %v5038 = vshll.u32 %v4935, 16
        %v5040 = vrot.slane %v5038, 1
        %v5041 = vsel %vm1054, %v5036, %v5040
        %v5042 = vshrl.u32 %v4935, 16
        %v5044 = vor.u32 %v5042, %v5040
        %v5046 = vshll.u32 %v4936, 16
        %v5048 = vrot.slane %v5046, 1
        %v5049 = vsel %vm1054, %v5044, %v5048
        %v5050 = vshrl.u32 %v4936, 16
        %v5052 = vor.u32 %v5050, %v5048
        %v5054 = vshll.u32 %v4937, 16
        %v5056 = vrot.slane %v5054, 1
        %v5057 = vsel %vm1054, %v5052, %v5056
        %v5058 = vshrl.u32 %v4937, 16
        %v5060 = vor.u32 %v5058, %v5056
        %v5062 = vshll.u32 %v4938, 16
        %v5064 = vrot.slane %v5062, 1
        %v5065 = vsel %vm1054, %v5060, %v5064
        %v5066 = vshrl.u32 %v4938, 16
        %v5068 = vor.u32 %v5066, %v5064
        %v5070 = vshll.u32 %v4939, 16
        %v5072 = vrot.slane %v5070, 1
        %v5073 = vsel %vm1054, %v5068, %v5072
        %v5074 = vshrl.u32 %v4939, 16
        %v5076 = vor.u32 %v5074, %v5072
        %v5078 = vshll.u32 %v4940, 16
        %v5080 = vrot.slane %v5078, 1
        %v5081 = vsel %vm1054, %v5076, %v5080
        %v5082 = vshrl.u32 %v4940, 16
        %v5084 = vor.u32 %v5082, %v5080
        %v5086 = vshll.u32 %v4941, 16
        %v5088 = vrot.slane %v5086, 1
        %v5089 = vsel %vm1054, %v5084, %v5088
        %v5124 = vunpack.c.l.b16 %v4833
        %v5125 = vunpack.c.l.b16 %v4834
        %v5126 = vunpack.c.l.b16 %v4835
        %v5127 = vunpack.c.l.b16 %v4836
        %v5128 = vunpack.c.l.b16 %v4837
        %v5129 = vunpack.c.l.b16 %v4838
        %v5130 = vunpack.c.l.b16 %v4839
        %v5131 = vunpack.c.l.b16 %v4840
        %v5132 = vunpack.c.l.b16 %v4841
        %v5133 = vunpack.c.l.b16 %v4842
        %v5134 = vunpack.c.l.b16 %v4843
        %v5135 = vunpack.c.l.b16 %v4844
        %v5136 = vunpack.c.l.b16 %v4845
        %v5137 = vunpack.c.l.b16 %v4846
        %v5138 = vunpack.c.l.b16 %v4847
        %v5139 = vunpack.c.l.b16 %v4848
        %v5140 = vpack.c.b16 %v5125, %v5124
        %v5141 = vpack.c.b16 %v5127, %v5126
        %v5142 = vpack.c.b16 %v5129, %v5128
        %v5143 = vpack.c.b16 %v5131, %v5130
        %v5144 = vpack.c.b16 %v5133, %v5132
        %v5145 = vpack.c.b16 %v5135, %v5134
        %v5146 = vpack.c.b16 %v5137, %v5136
        %v5147 = vpack.c.b16 %v5139, %v5138
        %5156 = vmatprep.subr.bf16.mxu0 0
        %5157 = vmatpush1.bf16.msra.mxu0 %v5147
        %5158 = vmatprep.subr.bf16.mxu0 0
        %5159 = vmatpush1.bf16.msra.mxu0 %v5146
        %5160 = vmatprep.subr.bf16.mxu0 0
        %5161 = vmatpush1.bf16.msra.mxu0 %v5145
        %5162 = vmatprep.subr.bf16.mxu0 0
        %5163 = vmatpush1.bf16.msra.mxu0 %v5144
        %5164 = vmatprep.subr.bf16.mxu0 0
        %5165 = vmatpush1.bf16.msra.mxu0 %v5143
        %5166 = vmatprep.subr.bf16.mxu0 0
        %5167 = vmatpush1.bf16.msra.mxu0 %v5142
        %5168 = vmatprep.subr.bf16.mxu0 0
        %5169 = vmatpush1.bf16.msra.mxu0 %v5141
        %5170 = vmatprep.subr.bf16.mxu0 0
        %5171 = vmatpush1.bf16.msra.mxu0 %v5140
        %5172 = vmatprep.subr.bf16.mxu0 0
        %5173 = vmatpush2.bf16.msra.mxu0 0
        %5174 = vmatprep.subr.bf16.mxu0 0
        %5175 = vmatpush2.bf16.msra.mxu0 0
        %5176 = vmatprep.subr.bf16.mxu0 0
        %5177 = vmatpush2.bf16.msra.mxu0 0
        %5178 = vmatprep.subr.bf16.mxu0 0
        %5179 = vmatpush2.bf16.msra.mxu0 0
        %5180 = vmatprep.subr.bf16.mxu0 0
        %5181 = vmatpush2.bf16.msra.mxu0 0
        %5182 = vmatprep.subr.bf16.mxu0 0
        %5183 = vmatpush2.bf16.msra.mxu0 0
        %5184 = vmatprep.subr.bf16.mxu0 0
        %5185 = vmatpush2.bf16.msra.mxu0 0
        %5186 = vmatprep.subr.bf16.mxu0 0
        %5187 = vmatpush2.bf16.msra.mxu0 0
        %5188 = vmatprep.mubr.bf16.mxu0 0
        %5189 = vmatmul.mubr.bf16.gmra.mxu0 %v4953
        %v5190 = vpop.f32.mrf.mxu0
        %v5191 = vadd.f32 0.0, %v5190
        %v5192 = vpop.f32.mrf.mxu0
        %v5193 = vpop.f32.mrf.mxu0
        %v5194 = vadd.f32 0.0, %v5193
        %v5195 = vpop.f32.mrf.mxu0
        %5196 = vmatprep.mubr.bf16.mxu0 0
        %5197 = vmatmul.mubr.bf16.gmra.mxu0 %v4961
        %v5198 = vpop.f32.mrf.mxu0
        %v5199 = vadd.f32 0.0, %v5198
        %v5200 = vpop.f32.mrf.mxu0
        %v5201 = vpop.f32.mrf.mxu0
        %v5202 = vadd.f32 0.0, %v5201
        %v5203 = vpop.f32.mrf.mxu0
        %5204 = vmatprep.mubr.bf16.mxu0 0
        %5205 = vmatmul.mubr.bf16.gmra.mxu0 %v4969
        %v5206 = vpop.f32.mrf.mxu0
        %v5207 = vadd.f32 0.0, %v5206
        %v5208 = vpop.f32.mrf.mxu0
        %v5209 = vpop.f32.mrf.mxu0
        %v5210 = vadd.f32 0.0, %v5209
        %v5211 = vpop.f32.mrf.mxu0
        %5212 = vmatprep.mubr.bf16.mxu0 0
        %5213 = vmatmul.mubr.bf16.gmra.mxu0 %v4977
        %v5214 = vpop.f32.mrf.mxu0
        %v5215 = vadd.f32 0.0, %v5214
        %v5216 = vpop.f32.mrf.mxu0
        %v5217 = vpop.f32.mrf.mxu0
        %v5218 = vadd.f32 0.0, %v5217
        %v5219 = vpop.f32.mrf.mxu0
        %5220 = vmatprep.mubr.bf16.mxu0 0
        %5221 = vmatmul.mubr.bf16.gmra.mxu0 %v4985
        %v5222 = vpop.f32.mrf.mxu0
        %v5223 = vadd.f32 0.0, %v5222
        %v5224 = vpop.f32.mrf.mxu0
        %v5225 = vpop.f32.mrf.mxu0
        %v5226 = vadd.f32 0.0, %v5225
        %v5227 = vpop.f32.mrf.mxu0
        %5228 = vmatprep.mubr.bf16.mxu0 0
        %5229 = vmatmul.mubr.bf16.gmra.mxu0 %v4993
        %v5230 = vpop.f32.mrf.mxu0
        %v5231 = vadd.f32 0.0, %v5230
        %v5232 = vpop.f32.mrf.mxu0
        %v5233 = vpop.f32.mrf.mxu0
        %v5234 = vadd.f32 0.0, %v5233
        %v5235 = vpop.f32.mrf.mxu0
        %5236 = vmatprep.mubr.bf16.mxu0 0
        %5237 = vmatmul.mubr.bf16.gmra.mxu0 %v5001
        %v5238 = vpop.f32.mrf.mxu0
        %v5239 = vadd.f32 0.0, %v5238
        %v5240 = vpop.f32.mrf.mxu0
        %v5241 = vpop.f32.mrf.mxu0
        %v5242 = vadd.f32 0.0, %v5241
        %v5243 = vpop.f32.mrf.mxu0
        %5244 = vmatprep.mubr.bf16.mxu0 0
        %5245 = vmatmul.mubr.bf16.gmra.mxu0 %v5009
        %v5246 = vpop.f32.mrf.mxu0
        %v5247 = vadd.f32 0.0, %v5246
        %v5248 = vpop.f32.mrf.mxu0
        %v5249 = vpop.f32.mrf.mxu0
        %v5250 = vadd.f32 0.0, %v5249
        %v5251 = vpop.f32.mrf.mxu0
        %5252 = vmatprep.mubr.bf16.mxu0 0
        %5253 = vmatmul.mubr.bf16.gmra.mxu0 %v5017
        %v5254 = vpop.f32.mrf.mxu0
        %v5255 = vadd.f32 0.0, %v5254
        %v5256 = vpop.f32.mrf.mxu0
        %v5257 = vpop.f32.mrf.mxu0
        %v5258 = vadd.f32 0.0, %v5257
        %v5259 = vpop.f32.mrf.mxu0
        %5260 = vmatprep.mubr.bf16.mxu0 0
        %5261 = vmatmul.mubr.bf16.gmra.mxu0 %v5025
        %v5262 = vpop.f32.mrf.mxu0
        %v5263 = vadd.f32 0.0, %v5262
        %v5264 = vpop.f32.mrf.mxu0
        %v5265 = vpop.f32.mrf.mxu0
        %v5266 = vadd.f32 0.0, %v5265
        %v5267 = vpop.f32.mrf.mxu0
        %5268 = vmatprep.mubr.bf16.mxu0 0
        %5269 = vmatmul.mubr.bf16.gmra.mxu0 %v5033
        %v5270 = vpop.f32.mrf.mxu0
        %v5271 = vadd.f32 0.0, %v5270
        %v5272 = vpop.f32.mrf.mxu0
        %v5273 = vpop.f32.mrf.mxu0
        %v5274 = vadd.f32 0.0, %v5273
        %v5275 = vpop.f32.mrf.mxu0
        %5276 = vmatprep.mubr.bf16.mxu0 0
        %5277 = vmatmul.mubr.bf16.gmra.mxu0 %v5041
        %v5278 = vpop.f32.mrf.mxu0
        %v5279 = vadd.f32 0.0, %v5278
        %v5280 = vpop.f32.mrf.mxu0
        %v5281 = vpop.f32.mrf.mxu0
        %v5282 = vadd.f32 0.0, %v5281
        %v5283 = vpop.f32.mrf.mxu0
        %5284 = vmatprep.mubr.bf16.mxu0 0
        %5285 = vmatmul.mubr.bf16.gmra.mxu0 %v5049
        %v5286 = vpop.f32.mrf.mxu0
        %v5287 = vadd.f32 0.0, %v5286
        %v5288 = vpop.f32.mrf.mxu0
        %v5289 = vpop.f32.mrf.mxu0
        %v5290 = vadd.f32 0.0, %v5289
        %v5291 = vpop.f32.mrf.mxu0
        %5292 = vmatprep.mubr.bf16.mxu0 0
        %5293 = vmatmul.mubr.bf16.gmra.mxu0 %v5057
        %v5294 = vpop.f32.mrf.mxu0
        %v5295 = vadd.f32 0.0, %v5294
        %v5296 = vpop.f32.mrf.mxu0
        %v5297 = vpop.f32.mrf.mxu0
        %v5298 = vadd.f32 0.0, %v5297
        %v5299 = vpop.f32.mrf.mxu0
        %5300 = vmatprep.mubr.bf16.mxu0 0
        %5301 = vmatmul.mubr.bf16.gmra.mxu0 %v5065
        %v5302 = vpop.f32.mrf.mxu0
        %v5303 = vadd.f32 0.0, %v5302
        %v5304 = vpop.f32.mrf.mxu0
        %v5305 = vpop.f32.mrf.mxu0
        %v5306 = vadd.f32 0.0, %v5305
        %v5307 = vpop.f32.mrf.mxu0
        %5308 = vmatprep.mubr.bf16.mxu0 0
        %5309 = vmatmul.mubr.bf16.gmra.mxu0 %v5073
        %v5310 = vpop.f32.mrf.mxu0
        %v5311 = vadd.f32 0.0, %v5310
        %v5312 = vpop.f32.mrf.mxu0
        %v5313 = vpop.f32.mrf.mxu0
        %v5314 = vadd.f32 0.0, %v5313
        %v5315 = vpop.f32.mrf.mxu0
        %5316 = vmatprep.mubr.bf16.mxu0 0
        %5317 = vmatmul.mubr.bf16.gmra.mxu0 %v5081
        %v5318 = vpop.f32.mrf.mxu0
        %v5319 = vadd.f32 0.0, %v5318
        %v5320 = vpop.f32.mrf.mxu0
        %v5321 = vpop.f32.mrf.mxu0
        %v5322 = vadd.f32 0.0, %v5321
        %v5323 = vpop.f32.mrf.mxu0
        %5324 = vmatprep.mubr.bf16.mxu0 0
        %5325 = vmatmul.mubr.bf16.gmra.mxu0 %v5089
        %v5326 = vpop.f32.mrf.mxu0
        %v5327 = vadd.f32 0.0, %v5326
        %v5328 = vpop.f32.mrf.mxu0
        %v5329 = vpop.f32.mrf.mxu0
        %v5330 = vadd.f32 0.0, %v5329
        %v5331 = vpop.f32.mrf.mxu0
        %5332 = vdwg.mxu0
        %v5367 = vunpack.c.l.b16 %v4816
        %v5368 = vunpack.c.l.b16 %v4817
        %v5369 = vunpack.c.l.b16 %v4818
        %v5370 = vunpack.c.l.b16 %v4819
        %v5371 = vunpack.c.l.b16 %v4820
        %v5372 = vunpack.c.l.b16 %v4821
        %v5373 = vunpack.c.l.b16 %v4822
        %v5374 = vunpack.c.l.b16 %v4823
        %v5375 = vunpack.c.l.b16 %v4824
        %v5376 = vunpack.c.l.b16 %v4825
        %v5377 = vunpack.c.l.b16 %v4826
        %v5378 = vunpack.c.l.b16 %v4827
        %v5379 = vunpack.c.l.b16 %v4828
        %v5380 = vunpack.c.l.b16 %v4829
        %v5381 = vunpack.c.l.b16 %v4830
        %v5382 = vunpack.c.l.b16 %v4831
        %v5383 = vpack.c.b16 %v5368, %v5367
        %v5384 = vpack.c.b16 %v5370, %v5369
        %v5385 = vpack.c.b16 %v5372, %v5371
        %v5386 = vpack.c.b16 %v5374, %v5373
        %v5387 = vpack.c.b16 %v5376, %v5375
        %v5388 = vpack.c.b16 %v5378, %v5377
        %v5389 = vpack.c.b16 %v5380, %v5379
        %v5390 = vpack.c.b16 %v5382, %v5381
        %5399 = vmatprep.subr.bf16.mxu0 0
        %5400 = vmatpush1.bf16.msra.mxu0 %v5390
        %5401 = vmatprep.subr.bf16.mxu0 0
        %5402 = vmatpush1.bf16.msra.mxu0 %v5389
        %5403 = vmatprep.subr.bf16.mxu0 0
        %5404 = vmatpush1.bf16.msra.mxu0 %v5388
        %5405 = vmatprep.subr.bf16.mxu0 0
        %5406 = vmatpush1.bf16.msra.mxu0 %v5387
        %5407 = vmatprep.subr.bf16.mxu0 0
        %5408 = vmatpush1.bf16.msra.mxu0 %v5386
        %5409 = vmatprep.subr.bf16.mxu0 0
        %5410 = vmatpush1.bf16.msra.mxu0 %v5385
        %5411 = vmatprep.subr.bf16.mxu0 0
        %5412 = vmatpush1.bf16.msra.mxu0 %v5384
        %5413 = vmatprep.subr.bf16.mxu0 0
        %5414 = vmatpush1.bf16.msra.mxu0 %v5383
        %5415 = vmatprep.subr.bf16.mxu0 0
        %5416 = vmatpush2.bf16.msra.mxu0 0
        %5417 = vmatprep.subr.bf16.mxu0 0
        %5418 = vmatpush2.bf16.msra.mxu0 0
        %5419 = vmatprep.subr.bf16.mxu0 0
        %5420 = vmatpush2.bf16.msra.mxu0 0
        %5421 = vmatprep.subr.bf16.mxu0 0
        %5422 = vmatpush2.bf16.msra.mxu0 0
        %5423 = vmatprep.subr.bf16.mxu0 0
        %5424 = vmatpush2.bf16.msra.mxu0 0
        %5425 = vmatprep.subr.bf16.mxu0 0
        %5426 = vmatpush2.bf16.msra.mxu0 0
        %5427 = vmatprep.subr.bf16.mxu0 0
        %5428 = vmatpush2.bf16.msra.mxu0 0
        %5429 = vmatprep.subr.bf16.mxu0 0
        %5430 = vmatpush2.bf16.msra.mxu0 0
        %5431 = vmatprep.mubr.bf16.mxu0 0
        %5432 = vmatmul.mubr.bf16.gmra.mxu0 %v4923
        %v5433 = vpop.f32.mrf.mxu0
        %v5434 = vadd.f32 %v5191, %v5433
        %v5435 = vpop.f32.mrf.mxu0
        %v5436 = vpop.f32.mrf.mxu0
        %v5437 = vadd.f32 %v5194, %v5436
        %v5438 = vpop.f32.mrf.mxu0
        %5439 = vmatprep.mubr.bf16.mxu0 0
        %5440 = vmatmul.mubr.bf16.gmra.mxu0 %v4924
        %v5441 = vpop.f32.mrf.mxu0
        %v5442 = vadd.f32 %v5199, %v5441
        %v5443 = vpop.f32.mrf.mxu0
        %v5444 = vpop.f32.mrf.mxu0
        %v5445 = vadd.f32 %v5202, %v5444
        %v5446 = vpop.f32.mrf.mxu0
        %5447 = vmatprep.mubr.bf16.mxu0 0
        %5448 = vmatmul.mubr.bf16.gmra.mxu0 %v4925
        %v5449 = vpop.f32.mrf.mxu0
        %v5450 = vadd.f32 %v5207, %v5449
        %v5451 = vpop.f32.mrf.mxu0
        %v5452 = vpop.f32.mrf.mxu0
        %v5453 = vadd.f32 %v5210, %v5452
        %v5454 = vpop.f32.mrf.mxu0
        %5455 = vmatprep.mubr.bf16.mxu0 0
        %5456 = vmatmul.mubr.bf16.gmra.mxu0 %v4926
        %v5457 = vpop.f32.mrf.mxu0
        %v5458 = vadd.f32 %v5215, %v5457
        %v5459 = vpop.f32.mrf.mxu0
        %v5460 = vpop.f32.mrf.mxu0
        %v5461 = vadd.f32 %v5218, %v5460
        %v5462 = vpop.f32.mrf.mxu0
        %5463 = vmatprep.mubr.bf16.mxu0 0
        %5464 = vmatmul.mubr.bf16.gmra.mxu0 %v4927
        %v5465 = vpop.f32.mrf.mxu0
        %v5466 = vadd.f32 %v5223, %v5465
        %v5467 = vpop.f32.mrf.mxu0
        %v5468 = vpop.f32.mrf.mxu0
        %v5469 = vadd.f32 %v5226, %v5468
        %v5470 = vpop.f32.mrf.mxu0
        %5471 = vmatprep.mubr.bf16.mxu0 0
        %5472 = vmatmul.mubr.bf16.gmra.mxu0 %v4928
        %v5473 = vpop.f32.mrf.mxu0
        %v5474 = vadd.f32 %v5231, %v5473
        %v5475 = vpop.f32.mrf.mxu0
        %v5476 = vpop.f32.mrf.mxu0
        %v5477 = vadd.f32 %v5234, %v5476
        %v5478 = vpop.f32.mrf.mxu0
        %5479 = vmatprep.mubr.bf16.mxu0 0
        %5480 = vmatmul.mubr.bf16.gmra.mxu0 %v4929
        %v5481 = vpop.f32.mrf.mxu0
        %v5482 = vadd.f32 %v5239, %v5481
        %v5483 = vpop.f32.mrf.mxu0
        %v5484 = vpop.f32.mrf.mxu0
        %v5485 = vadd.f32 %v5242, %v5484
        %v5486 = vpop.f32.mrf.mxu0
        %5487 = vmatprep.mubr.bf16.mxu0 0
        %5488 = vmatmul.mubr.bf16.gmra.mxu0 %v4930
        %v5489 = vpop.f32.mrf.mxu0
        %v5490 = vadd.f32 %v5247, %v5489
        %v5491 = vpop.f32.mrf.mxu0
        %v5492 = vpop.f32.mrf.mxu0
        %v5493 = vadd.f32 %v5250, %v5492
        %v5494 = vpop.f32.mrf.mxu0
        %5495 = vmatprep.mubr.bf16.mxu0 0
        %5496 = vmatmul.mubr.bf16.gmra.mxu0 %v4931
        %v5497 = vpop.f32.mrf.mxu0
        %v5498 = vadd.f32 %v5255, %v5497
        %v5499 = vpop.f32.mrf.mxu0
        %v5500 = vpop.f32.mrf.mxu0
        %v5501 = vadd.f32 %v5258, %v5500
        %v5502 = vpop.f32.mrf.mxu0
        %5503 = vmatprep.mubr.bf16.mxu0 0
        %5504 = vmatmul.mubr.bf16.gmra.mxu0 %v4932
        %v5505 = vpop.f32.mrf.mxu0
        %v5506 = vadd.f32 %v5263, %v5505
        %v5507 = vpop.f32.mrf.mxu0
        %v5508 = vpop.f32.mrf.mxu0
        %v5509 = vadd.f32 %v5266, %v5508
        %v5510 = vpop.f32.mrf.mxu0
        %5511 = vmatprep.mubr.bf16.mxu0 0
        %5512 = vmatmul.mubr.bf16.gmra.mxu0 %v4933
        %v5513 = vpop.f32.mrf.mxu0
        %v5514 = vadd.f32 %v5271, %v5513
        %v5515 = vpop.f32.mrf.mxu0
        %v5516 = vpop.f32.mrf.mxu0
        %v5517 = vadd.f32 %v5274, %v5516
        %v5518 = vpop.f32.mrf.mxu0
        %5519 = vmatprep.mubr.bf16.mxu0 0
        %5520 = vmatmul.mubr.bf16.gmra.mxu0 %v4934
        %v5521 = vpop.f32.mrf.mxu0
        %v5522 = vadd.f32 %v5279, %v5521
        %v5523 = vpop.f32.mrf.mxu0
        %v5524 = vpop.f32.mrf.mxu0
        %v5525 = vadd.f32 %v5282, %v5524
        %v5526 = vpop.f32.mrf.mxu0
        %5527 = vmatprep.mubr.bf16.mxu0 0
        %5528 = vmatmul.mubr.bf16.gmra.mxu0 %v4935
        %v5529 = vpop.f32.mrf.mxu0
        %v5530 = vadd.f32 %v5287, %v5529
        %v5531 = vpop.f32.mrf.mxu0
        %v5532 = vpop.f32.mrf.mxu0
        %v5533 = vadd.f32 %v5290, %v5532
        %v5534 = vpop.f32.mrf.mxu0
        %5535 = vmatprep.mubr.bf16.mxu0 0
        %5536 = vmatmul.mubr.bf16.gmra.mxu0 %v4936
        %v5537 = vpop.f32.mrf.mxu0
        %v5538 = vadd.f32 %v5295, %v5537
        %v5539 = vpop.f32.mrf.mxu0
        %v5540 = vpop.f32.mrf.mxu0
        %v5541 = vadd.f32 %v5298, %v5540
        %v5542 = vpop.f32.mrf.mxu0
        %5543 = vmatprep.mubr.bf16.mxu0 0
        %5544 = vmatmul.mubr.bf16.gmra.mxu0 %v4937
        %v5545 = vpop.f32.mrf.mxu0
        %v5546 = vadd.f32 %v5303, %v5545
        %v5547 = vpop.f32.mrf.mxu0
        %v5548 = vpop.f32.mrf.mxu0
        %v5549 = vadd.f32 %v5306, %v5548
        %v5550 = vpop.f32.mrf.mxu0
        %5551 = vmatprep.mubr.bf16.mxu0 0
        %5552 = vmatmul.mubr.bf16.gmra.mxu0 %v4938
        %v5553 = vpop.f32.mrf.mxu0
        %v5554 = vadd.f32 %v5311, %v5553
        %v5555 = vpop.f32.mrf.mxu0
        %v5556 = vpop.f32.mrf.mxu0
        %v5557 = vadd.f32 %v5314, %v5556
        %v5558 = vpop.f32.mrf.mxu0
        %5559 = vmatprep.mubr.bf16.mxu0 0
        %5560 = vmatmul.mubr.bf16.gmra.mxu0 %v4939
        %v5561 = vpop.f32.mrf.mxu0
        %v5562 = vadd.f32 %v5319, %v5561
        %v5563 = vpop.f32.mrf.mxu0
        %v5564 = vpop.f32.mrf.mxu0
        %v5565 = vadd.f32 %v5322, %v5564
        %v5566 = vpop.f32.mrf.mxu0
        %5567 = vmatprep.mubr.bf16.mxu0 0
        %5568 = vmatmul.mubr.bf16.gmra.mxu0 %v4940
        %v5569 = vpop.f32.mrf.mxu0
        %v5570 = vadd.f32 %v5327, %v5569
        %v5571 = vpop.f32.mrf.mxu0
        %v5572 = vpop.f32.mrf.mxu0
        %v5573 = vadd.f32 %v5330, %v5572
        %v5574 = vpop.f32.mrf.mxu0
        %5575 = vdwg.mxu0
        %v5576 = vld [vmem:[#allocation2] sm:$0xe]
        %v5577 = vld [vmem:[#allocation3 + $0x80] sm:$0xf]
        %v5578 = vld [vmem:[#allocation3 + $0x84] sm:$0xf]
        %v5579 = vld [vmem:[#allocation3 + $0x88] sm:$0xf]
        %v5580 = vld [vmem:[#allocation3 + $0x8c] sm:$0xf]
        %v5581 = vld [vmem:[#allocation3 + $0x90] sm:$0xf]
        %v5582 = vld [vmem:[#allocation3 + $0x94] sm:$0xf]
        %v5583 = vld [vmem:[#allocation3 + $0x98] sm:$0xf]
        %v5584 = vld [vmem:[#allocation3 + $0x9c] sm:$0xf]
        %v5585 = vld [vmem:[#allocation3 + $0xa0] sm:$0xf]
        %v5586 = vld [vmem:[#allocation3 + $0xa4] sm:$0xf]
        %v5587 = vld [vmem:[#allocation3 + $0xa8] sm:$0xf]
        %v5588 = vld [vmem:[#allocation3 + $0xac] sm:$0xf]
        %v5589 = vld [vmem:[#allocation3 + $0xb0] sm:$0xf]
        %v5590 = vld [vmem:[#allocation3 + $0xb4] sm:$0xf]
        %v5591 = vld [vmem:[#allocation3 + $0xb8] sm:$0xf]
        %v5592 = vld [vmem:[#allocation3 + $0xbc] sm:$0xf]
        %v5594 = vunpack.c.l.b16 %v5576
        %v5595 = vpack.c.b16 %v4887, %v5594
        %v5596 = vrot.slane %v5595, 1
        %v5597 = vrot.slane %v4924, 1
        %v5598 = vsel %vm1705, %v5596, %v5597
        %v5599 = vrot.slane %v4925, 1
        %v5600 = vsel %vm1705, %v5597, %v5599
        %v5601 = vrot.slane %v4926, 1
        %v5602 = vsel %vm1705, %v5599, %v5601
        %v5603 = vrot.slane %v4927, 1
        %v5604 = vsel %vm1705, %v5601, %v5603
        %v5605 = vrot.slane %v4928, 1
        %v5606 = vsel %vm1705, %v5603, %v5605
        %v5607 = vrot.slane %v4929, 1
        %v5608 = vsel %vm1705, %v5605, %v5607
        %v5609 = vrot.slane %v4930, 1
        %v5610 = vsel %vm1705, %v5607, %v5609
        %v5611 = vrot.slane %v4931, 1
        %v5612 = vsel %vm1705, %v5609, %v5611
        %v5613 = vrot.slane %v4932, 1
        %v5614 = vsel %vm1705, %v5611, %v5613
        %v5615 = vrot.slane %v4933, 1
        %v5616 = vsel %vm1705, %v5613, %v5615
        %v5617 = vrot.slane %v4934, 1
        %v5618 = vsel %vm1705, %v5615, %v5617
        %v5619 = vrot.slane %v4935, 1
        %v5620 = vsel %vm1705, %v5617, %v5619
        %v5621 = vrot.slane %v4936, 1
        %v5622 = vsel %vm1705, %v5619, %v5621
        %v5623 = vrot.slane %v4937, 1
        %v5624 = vsel %vm1705, %v5621, %v5623
        %v5625 = vrot.slane %v4938, 1
        %v5626 = vsel %vm1705, %v5623, %v5625
        %v5627 = vrot.slane %v4939, 1
        %v5628 = vsel %vm1705, %v5625, %v5627
        %v5629 = vrot.slane %v4940, 1
        %v5630 = vsel %vm1705, %v5627, %v5629
        %v5631 = vrot.slane %v4941, 1
        %v5632 = vsel %vm1705, %v5629, %v5631
        %v5667 = vunpack.c.l.b16 %v5577
        %v5668 = vunpack.c.l.b16 %v5578
        %v5669 = vunpack.c.l.b16 %v5579
        %v5670 = vunpack.c.l.b16 %v5580
        %v5671 = vunpack.c.l.b16 %v5581
        %v5672 = vunpack.c.l.b16 %v5582
        %v5673 = vunpack.c.l.b16 %v5583
        %v5674 = vunpack.c.l.b16 %v5584
        %v5675 = vunpack.c.l.b16 %v5585
        %v5676 = vunpack.c.l.b16 %v5586
        %v5677 = vunpack.c.l.b16 %v5587
        %v5678 = vunpack.c.l.b16 %v5588
        %v5679 = vunpack.c.l.b16 %v5589
        %v5680 = vunpack.c.l.b16 %v5590
        %v5681 = vunpack.c.l.b16 %v5591
        %v5682 = vunpack.c.l.b16 %v5592
        %v5683 = vpack.c.b16 %v5668, %v5667
        %v5684 = vpack.c.b16 %v5670, %v5669
        %v5685 = vpack.c.b16 %v5672, %v5671
        %v5686 = vpack.c.b16 %v5674, %v5673
        %v5687 = vpack.c.b16 %v5676, %v5675
        %v5688 = vpack.c.b16 %v5678, %v5677
        %v5689 = vpack.c.b16 %v5680, %v5679
        %v5690 = vpack.c.b16 %v5682, %v5681
        %5699 = vmatprep.subr.bf16.mxu0 0
        %5700 = vmatpush1.bf16.msra.mxu0 %v5690
        %5701 = vmatprep.subr.bf16.mxu0 0
        %5702 = vmatpush1.bf16.msra.mxu0 %v5689
        %5703 = vmatprep.subr.bf16.mxu0 0
        %5704 = vmatpush1.bf16.msra.mxu0 %v5688
        %5705 = vmatprep.subr.bf16.mxu0 0
        %5706 = vmatpush1.bf16.msra.mxu0 %v5687
        %5707 = vmatprep.subr.bf16.mxu0 0
        %5708 = vmatpush1.bf16.msra.mxu0 %v5686
        %5709 = vmatprep.subr.bf16.mxu0 0
        %5710 = vmatpush1.bf16.msra.mxu0 %v5685
        %5711 = vmatprep.subr.bf16.mxu0 0
        %5712 = vmatpush1.bf16.msra.mxu0 %v5684
        %5713 = vmatprep.subr.bf16.mxu0 0
        %5714 = vmatpush1.bf16.msra.mxu0 %v5683
        %5715 = vmatprep.subr.bf16.mxu0 0
        %5716 = vmatpush2.bf16.msra.mxu0 0
        %5717 = vmatprep.subr.bf16.mxu0 0
        %5718 = vmatpush2.bf16.msra.mxu0 0
        %5719 = vmatprep.subr.bf16.mxu0 0
        %5720 = vmatpush2.bf16.msra.mxu0 0
        %5721 = vmatprep.subr.bf16.mxu0 0
        %5722 = vmatpush2.bf16.msra.mxu0 0
        %5723 = vmatprep.subr.bf16.mxu0 0
        %5724 = vmatpush2.bf16.msra.mxu0 0
        %5725 = vmatprep.subr.bf16.mxu0 0
        %5726 = vmatpush2.bf16.msra.mxu0 0
        %5727 = vmatprep.subr.bf16.mxu0 0
        %5728 = vmatpush2.bf16.msra.mxu0 0
        %5729 = vmatprep.subr.bf16.mxu0 0
        %5730 = vmatpush2.bf16.msra.mxu0 0
        %5731 = vmatprep.mubr.bf16.mxu0 0
        %5732 = vmatmul.mubr.bf16.gmra.mxu0 %v5598
        %v5733 = vpop.f32.mrf.mxu0
        %v5734 = vadd.f32 0.0, %v5733
        %v5735 = vpop.f32.mrf.mxu0
        %v5736 = vpop.f32.mrf.mxu0
        %v5737 = vadd.f32 0.0, %v5736
        %v5738 = vpop.f32.mrf.mxu0
        %5739 = vmatprep.mubr.bf16.mxu0 0
        %5740 = vmatmul.mubr.bf16.gmra.mxu0 %v5600
        %v5741 = vpop.f32.mrf.mxu0
        %v5742 = vadd.f32 0.0, %v5741
        %v5743 = vpop.f32.mrf.mxu0
        %v5744 = vpop.f32.mrf.mxu0
        %v5745 = vadd.f32 0.0, %v5744
        %v5746 = vpop.f32.mrf.mxu0
        %5747 = vmatprep.mubr.bf16.mxu0 0
        %5748 = vmatmul.mubr.bf16.gmra.mxu0 %v5602
        %v5749 = vpop.f32.mrf.mxu0
        %v5750 = vadd.f32 0.0, %v5749
        %v5751 = vpop.f32.mrf.mxu0
        %v5752 = vpop.f32.mrf.mxu0
        %v5753 = vadd.f32 0.0, %v5752
        %v5754 = vpop.f32.mrf.mxu0
        %5755 = vmatprep.mubr.bf16.mxu0 0
        %5756 = vmatmul.mubr.bf16.gmra.mxu0 %v5604
        %v5757 = vpop.f32.mrf.mxu0
        %v5758 = vadd.f32 0.0, %v5757
        %v5759 = vpop.f32.mrf.mxu0
        %v5760 = vpop.f32.mrf.mxu0
        %v5761 = vadd.f32 0.0, %v5760
        %v5762 = vpop.f32.mrf.mxu0
        %5763 = vmatprep.mubr.bf16.mxu0 0
        %5764 = vmatmul.mubr.bf16.gmra.mxu0 %v5606
        %v5765 = vpop.f32.mrf.mxu0
        %v5766 = vadd.f32 0.0, %v5765
        %v5767 = vpop.f32.mrf.mxu0
        %v5768 = vpop.f32.mrf.mxu0
        %v5769 = vadd.f32 0.0, %v5768
        %v5770 = vpop.f32.mrf.mxu0
        %5771 = vmatprep.mubr.bf16.mxu0 0
        %5772 = vmatmul.mubr.bf16.gmra.mxu0 %v5608
        %v5773 = vpop.f32.mrf.mxu0
        %v5774 = vadd.f32 0.0, %v5773
        %v5775 = vpop.f32.mrf.mxu0
        %v5776 = vpop.f32.mrf.mxu0
        %v5777 = vadd.f32 0.0, %v5776
        %v5778 = vpop.f32.mrf.mxu0
        %5779 = vmatprep.mubr.bf16.mxu0 0
        %5780 = vmatmul.mubr.bf16.gmra.mxu0 %v5610
        %v5781 = vpop.f32.mrf.mxu0
        %v5782 = vadd.f32 0.0, %v5781
        %v5783 = vpop.f32.mrf.mxu0
        %v5784 = vpop.f32.mrf.mxu0
        %v5785 = vadd.f32 0.0, %v5784
        %v5786 = vpop.f32.mrf.mxu0
        %5787 = vmatprep.mubr.bf16.mxu0 0
        %5788 = vmatmul.mubr.bf16.gmra.mxu0 %v5612
        %v5789 = vpop.f32.mrf.mxu0
        %v5790 = vadd.f32 0.0, %v5789
        %v5791 = vpop.f32.mrf.mxu0
        %v5792 = vpop.f32.mrf.mxu0
        %v5793 = vadd.f32 0.0, %v5792
        %v5794 = vpop.f32.mrf.mxu0
        %5795 = vmatprep.mubr.bf16.mxu0 0
        %5796 = vmatmul.mubr.bf16.gmra.mxu0 %v5614
        %v5797 = vpop.f32.mrf.mxu0
        %v5798 = vadd.f32 0.0, %v5797
        %v5799 = vpop.f32.mrf.mxu0
        %v5800 = vpop.f32.mrf.mxu0
        %v5801 = vadd.f32 0.0, %v5800
        %v5802 = vpop.f32.mrf.mxu0
        %5803 = vmatprep.mubr.bf16.mxu0 0
        %5804 = vmatmul.mubr.bf16.gmra.mxu0 %v5616
        %v5805 = vpop.f32.mrf.mxu0
        %v5806 = vadd.f32 0.0, %v5805
        %v5807 = vpop.f32.mrf.mxu0
        %v5808 = vpop.f32.mrf.mxu0
        %v5809 = vadd.f32 0.0, %v5808
        %v5810 = vpop.f32.mrf.mxu0
        %5811 = vmatprep.mubr.bf16.mxu0 0
        %5812 = vmatmul.mubr.bf16.gmra.mxu0 %v5618
        %v5813 = vpop.f32.mrf.mxu0
        %v5814 = vadd.f32 0.0, %v5813
        %v5815 = vpop.f32.mrf.mxu0
        %v5816 = vpop.f32.mrf.mxu0
        %v5817 = vadd.f32 0.0, %v5816
        %v5818 = vpop.f32.mrf.mxu0
        %5819 = vmatprep.mubr.bf16.mxu0 0
        %5820 = vmatmul.mubr.bf16.gmra.mxu0 %v5620
        %v5821 = vpop.f32.mrf.mxu0
        %v5822 = vadd.f32 0.0, %v5821
        %v5823 = vpop.f32.mrf.mxu0
        %v5824 = vpop.f32.mrf.mxu0
        %v5825 = vadd.f32 0.0, %v5824
        %v5826 = vpop.f32.mrf.mxu0
        %5827 = vmatprep.mubr.bf16.mxu0 0
        %5828 = vmatmul.mubr.bf16.gmra.mxu0 %v5622
        %v5829 = vpop.f32.mrf.mxu0
        %v5830 = vadd.f32 0.0, %v5829
        %v5831 = vpop.f32.mrf.mxu0
        %v5832 = vpop.f32.mrf.mxu0
        %v5833 = vadd.f32 0.0, %v5832
        %v5834 = vpop.f32.mrf.mxu0
        %5835 = vmatprep.mubr.bf16.mxu0 0
        %5836 = vmatmul.mubr.bf16.gmra.mxu0 %v5624
        %v5837 = vpop.f32.mrf.mxu0
        %v5838 = vadd.f32 0.0, %v5837
        %v5839 = vpop.f32.mrf.mxu0
        %v5840 = vpop.f32.mrf.mxu0
        %v5841 = vadd.f32 0.0, %v5840
        %v5842 = vpop.f32.mrf.mxu0
        %5843 = vmatprep.mubr.bf16.mxu0 0
        %5844 = vmatmul.mubr.bf16.gmra.mxu0 %v5626
        %v5845 = vpop.f32.mrf.mxu0
        %v5846 = vadd.f32 0.0, %v5845
        %v5847 = vpop.f32.mrf.mxu0
        %v5848 = vpop.f32.mrf.mxu0
        %v5849 = vadd.f32 0.0, %v5848
        %v5850 = vpop.f32.mrf.mxu0
        %5851 = vmatprep.mubr.bf16.mxu0 0
        %5852 = vmatmul.mubr.bf16.gmra.mxu0 %v5628
        %v5853 = vpop.f32.mrf.mxu0
        %v5854 = vadd.f32 0.0, %v5853
        %v5855 = vpop.f32.mrf.mxu0
        %v5856 = vpop.f32.mrf.mxu0
        %v5857 = vadd.f32 0.0, %v5856
        %v5858 = vpop.f32.mrf.mxu0
        %5859 = vmatprep.mubr.bf16.mxu0 0
        %5860 = vmatmul.mubr.bf16.gmra.mxu0 %v5630
        %v5861 = vpop.f32.mrf.mxu0
        %v5862 = vadd.f32 0.0, %v5861
        %v5863 = vpop.f32.mrf.mxu0
        %v5864 = vpop.f32.mrf.mxu0
        %v5865 = vadd.f32 0.0, %v5864
        %v5866 = vpop.f32.mrf.mxu0
        %5867 = vmatprep.mubr.bf16.mxu0 0
        %5868 = vmatmul.mubr.bf16.gmra.mxu0 %v5632
        %v5869 = vpop.f32.mrf.mxu0
        %v5870 = vadd.f32 0.0, %v5869
        %v5871 = vpop.f32.mrf.mxu0
        %v5872 = vpop.f32.mrf.mxu0
        %v5873 = vadd.f32 0.0, %v5872
        %v5874 = vpop.f32.mrf.mxu0
        %5875 = vdwg.mxu0
        %v5876 = vadd.f32 %v5434, %v5734
        %v5877 = vadd.f32 %v5437, %v5737
        %v5878 = vadd.f32 %v5442, %v5742
        %v5879 = vadd.f32 %v5445, %v5745
        %v5880 = vadd.f32 %v5450, %v5750
        %v5881 = vadd.f32 %v5453, %v5753
        %v5882 = vadd.f32 %v5458, %v5758
        %v5883 = vadd.f32 %v5461, %v5761
        %v5884 = vadd.f32 %v5466, %v5766
        %v5885 = vadd.f32 %v5469, %v5769
        %v5886 = vadd.f32 %v5474, %v5774
        %v5887 = vadd.f32 %v5477, %v5777
        %v5888 = vadd.f32 %v5482, %v5782
        %v5889 = vadd.f32 %v5485, %v5785
        %v5890 = vadd.f32 %v5490, %v5790
        %v5891 = vadd.f32 %v5493, %v5793
        %v5892 = vadd.f32 %v5498, %v5798
        %v5893 = vadd.f32 %v5501, %v5801
        %v5894 = vadd.f32 %v5506, %v5806
        %v5895 = vadd.f32 %v5509, %v5809
        %v5896 = vadd.f32 %v5514, %v5814
        %v5897 = vadd.f32 %v5517, %v5817
        %v5898 = vadd.f32 %v5522, %v5822
        %v5899 = vadd.f32 %v5525, %v5825
        %v5900 = vadd.f32 %v5530, %v5830
        %v5901 = vadd.f32 %v5533, %v5833
        %v5902 = vadd.f32 %v5538, %v5838
        %v5903 = vadd.f32 %v5541, %v5841
        %v5904 = vadd.f32 %v5546, %v5846
        %v5905 = vadd.f32 %v5549, %v5849
        %v5906 = vadd.f32 %v5554, %v5854
        %v5907 = vadd.f32 %v5557, %v5857
        %v5908 = vadd.f32 %v5562, %v5862
        %v5909 = vadd.f32 %v5565, %v5865
        %v5910 = vadd.f32 %v5570, %v5870
        %v5911 = vadd.f32 %v5573, %v5873
        %v5912 = vld [vmem:[#allocation2 + $0x8] sm:$0xe]
        %v5913 = vld [vmem:[#allocation2 + $0xc] sm:$0xf]
        %v5914 = vld [vmem:[#allocation2 + $0x10] sm:$0xf]
        %v5915 = vld [vmem:[#allocation2 + $0x14] sm:$0xf]
        %v5916 = vld [vmem:[#allocation2 + $0x18] sm:$0xf]
        %v5917 = vld [vmem:[#allocation2 + $0x1c] sm:$0xf]
        %v5918 = vld [vmem:[#allocation2 + $0x20] sm:$0xf]
        %v5919 = vld [vmem:[#allocation2 + $0x24] sm:$0xf]
        %v5920 = vld [vmem:[#allocation2 + $0x28] sm:$0xf]
        %v5921 = vld [vmem:[#allocation2 + $0x2c] sm:$0xf]
        %v5922 = vld [vmem:[#allocation2 + $0x30] sm:$0xf]
        %v5923 = vld [vmem:[#allocation2 + $0x34] sm:$0xf]
        %v5924 = vld [vmem:[#allocation2 + $0x38] sm:$0xf]
        %v5925 = vld [vmem:[#allocation2 + $0x3c] sm:$0xf]
        %v5926 = vld [vmem:[#allocation2 + $0x40] sm:$0xf]
        %v5927 = vld [vmem:[#allocation2 + $0x44] sm:$0xf]
        %v5928 = vld [vmem:[#allocation2 + $0x48] sm:$0xf]
        %v5929 = vld [vmem:[#allocation2 + $0x4c] sm:$0xf]
        %v5930 = vld [vmem:[#allocation2 + $0x50] sm:$0xf]
        %v5931 = vld [vmem:[#allocation2 + $0x54] sm:$0xf]
        %v5932 = vld [vmem:[#allocation2 + $0x58] sm:$0xf]
        %v5933 = vld [vmem:[#allocation2 + $0x5c] sm:$0xf]
        %v5934 = vld [vmem:[#allocation2 + $0x60] sm:$0xf]
        %v5935 = vld [vmem:[#allocation2 + $0x64] sm:$0xf]
        %v5936 = vld [vmem:[#allocation2 + $0x68] sm:$0xf]
        %v5937 = vld [vmem:[#allocation2 + $0x6c] sm:$0xf]
        %v5938 = vld [vmem:[#allocation2 + $0x70] sm:$0xf]
        %v5939 = vld [vmem:[#allocation2 + $0x74] sm:$0xf]
        %v5940 = vld [vmem:[#allocation2 + $0x78] sm:$0xf]
        %v5941 = vld [vmem:[#allocation2 + $0x7c] sm:$0xf]
        %v5942 = vld [vmem:[#allocation2 + $0x80] sm:$0xf]
        %v5943 = vld [vmem:[#allocation2 + $0x84] sm:$0xf]
        %v5944 = vld [vmem:[#allocation2 + $0x88] sm:$0xf]
        %v5945 = vld [vmem:[#allocation2 + $0x8c] sm:$0xf]
        %v5946 = vld [vmem:[#allocation2 + $0x90] sm:$0xf]
        %v5947 = vld [vmem:[#allocation2 + $0x94] sm:$0xf]
        %v5948 = vld [vmem:[#allocation2 + $0x98] sm:$0x1]
        %v5949 = vld [vmem:[#allocation3 + $0xc0] sm:$0xf]
        %v5950 = vld [vmem:[#allocation3 + $0xc4] sm:$0xf]
        %v5951 = vld [vmem:[#allocation3 + $0xc8] sm:$0xf]
        %v5952 = vld [vmem:[#allocation3 + $0xcc] sm:$0xf]
        %v5953 = vld [vmem:[#allocation3 + $0xd0] sm:$0xf]
        %v5954 = vld [vmem:[#allocation3 + $0xd4] sm:$0xf]
        %v5955 = vld [vmem:[#allocation3 + $0xd8] sm:$0xf]
        %v5956 = vld [vmem:[#allocation3 + $0xdc] sm:$0xf]
        %v5957 = vld [vmem:[#allocation3 + $0xe0] sm:$0xf]
        %v5958 = vld [vmem:[#allocation3 + $0xe4] sm:$0xf]
        %v5959 = vld [vmem:[#allocation3 + $0xe8] sm:$0xf]
        %v5960 = vld [vmem:[#allocation3 + $0xec] sm:$0xf]
        %v5961 = vld [vmem:[#allocation3 + $0xf0] sm:$0xf]
        %v5962 = vld [vmem:[#allocation3 + $0xf4] sm:$0xf]
        %v5963 = vld [vmem:[#allocation3 + $0xf8] sm:$0xf]
        %v5964 = vld [vmem:[#allocation3 + $0xfc] sm:$0xf]
        %v6002 = vunpack.c.l.b16 %v5912
        %v6003 = vunpack.c.l.b16 %v5913
        %v6004 = vunpack.c.l.b16 %v5914
        %v6005 = vunpack.c.l.b16 %v5915
        %v6006 = vunpack.c.l.b16 %v5916
        %v6007 = vunpack.c.l.b16 %v5917
        %v6008 = vunpack.c.l.b16 %v5918
        %v6009 = vunpack.c.l.b16 %v5919
        %v6010 = vunpack.c.l.b16 %v5920
        %v6011 = vunpack.c.l.b16 %v5921
        %v6012 = vunpack.c.l.b16 %v5922
        %v6013 = vunpack.c.l.b16 %v5923
        %v6014 = vunpack.c.l.b16 %v5924
        %v6015 = vunpack.c.l.b16 %v5925
        %v6016 = vunpack.c.l.b16 %v5926
        %v6017 = vunpack.c.l.b16 %v5927
        %v6018 = vunpack.c.l.b16 %v5928
        %v6019 = vunpack.c.l.b16 %v5929
        %v6020 = vunpack.c.l.b16 %v5930
        %v6021 = vunpack.c.l.b16 %v5931
        %v6022 = vunpack.c.l.b16 %v5932
        %v6023 = vunpack.c.l.b16 %v5933
        %v6024 = vunpack.c.l.b16 %v5934
        %v6025 = vunpack.c.l.b16 %v5935
        %v6026 = vunpack.c.l.b16 %v5936
        %v6027 = vunpack.c.l.b16 %v5937
        %v6028 = vunpack.c.l.b16 %v5938
        %v6029 = vunpack.c.l.b16 %v5939
        %v6030 = vunpack.c.l.b16 %v5940
        %v6031 = vunpack.c.l.b16 %v5941
        %v6032 = vunpack.c.l.b16 %v5942
        %v6033 = vunpack.c.l.b16 %v5943
        %v6034 = vunpack.c.l.b16 %v5944
        %v6035 = vunpack.c.l.b16 %v5945
        %v6036 = vunpack.c.l.b16 %v5946
        %v6037 = vunpack.c.l.b16 %v5947
        %v6038 = vunpack.c.l.b16 %v5948
        %v6039 = vpack.c.b16 %v6003, %v6002
        %v6040 = vpack.c.b16 %v6005, %v6004
        %v6041 = vpack.c.b16 %v6007, %v6006
        %v6042 = vpack.c.b16 %v6009, %v6008
        %v6043 = vpack.c.b16 %v6011, %v6010
        %v6044 = vpack.c.b16 %v6013, %v6012
        %v6045 = vpack.c.b16 %v6015, %v6014
        %v6046 = vpack.c.b16 %v6017, %v6016
        %v6047 = vpack.c.b16 %v6019, %v6018
        %v6048 = vpack.c.b16 %v6021, %v6020
        %v6049 = vpack.c.b16 %v6023, %v6022
        %v6050 = vpack.c.b16 %v6025, %v6024
        %v6051 = vpack.c.b16 %v6027, %v6026
        %v6052 = vpack.c.b16 %v6029, %v6028
        %v6053 = vpack.c.b16 %v6031, %v6030
        %v6054 = vpack.c.b16 %v6033, %v6032
        %v6055 = vpack.c.b16 %v6035, %v6034
        %v6056 = vpack.c.b16 %v6037, %v6036
        %v6057 = vpack.c.b16 %v6038, %v6038
        %v6058 = vrot.slane %v6039, 1
        %v6059 = vrot.slane %v6040, 1
        %v6060 = vsel %vm1705, %v6058, %v6059
        %v6061 = vrot.slane %v6041, 1
        %v6062 = vsel %vm1705, %v6059, %v6061
        %v6063 = vrot.slane %v6042, 1
        %v6064 = vsel %vm1705, %v6061, %v6063
        %v6065 = vrot.slane %v6043, 1
        %v6066 = vsel %vm1705, %v6063, %v6065
        %v6067 = vrot.slane %v6044, 1
        %v6068 = vsel %vm1705, %v6065, %v6067
        %v6069 = vrot.slane %v6045, 1
        %v6070 = vsel %vm1705, %v6067, %v6069
        %v6071 = vrot.slane %v6046, 1
        %v6072 = vsel %vm1705, %v6069, %v6071
        %v6073 = vrot.slane %v6047, 1
        %v6074 = vsel %vm1705, %v6071, %v6073
        %v6075 = vrot.slane %v6048, 1
        %v6076 = vsel %vm1705, %v6073, %v6075
        %v6077 = vrot.slane %v6049, 1
        %v6078 = vsel %vm1705, %v6075, %v6077
        %v6079 = vrot.slane %v6050, 1
        %v6080 = vsel %vm1705, %v6077, %v6079
        %v6081 = vrot.slane %v6051, 1
        %v6082 = vsel %vm1705, %v6079, %v6081
        %v6083 = vrot.slane %v6052, 1
        %v6084 = vsel %vm1705, %v6081, %v6083
        %v6085 = vrot.slane %v6053, 1
        %v6086 = vsel %vm1705, %v6083, %v6085
        %v6087 = vrot.slane %v6054, 1
        %v6088 = vsel %vm1705, %v6085, %v6087
        %v6089 = vrot.slane %v6055, 1
        %v6090 = vsel %vm1705, %v6087, %v6089
        %v6091 = vrot.slane %v6056, 1
        %v6092 = vsel %vm1705, %v6089, %v6091
        %v6093 = vrot.slane %v6057, 1
        %v6094 = vsel %vm1705, %v6091, %v6093
        %v6129 = vunpack.c.l.b16 %v5949
        %v6130 = vunpack.c.l.b16 %v5950
        %v6131 = vunpack.c.l.b16 %v5951
        %v6132 = vunpack.c.l.b16 %v5952
        %v6133 = vunpack.c.l.b16 %v5953
        %v6134 = vunpack.c.l.b16 %v5954
        %v6135 = vunpack.c.l.b16 %v5955
        %v6136 = vunpack.c.l.b16 %v5956
        %v6137 = vunpack.c.l.b16 %v5957
        %v6138 = vunpack.c.l.b16 %v5958
        %v6139 = vunpack.c.l.b16 %v5959
        %v6140 = vunpack.c.l.b16 %v5960
        %v6141 = vunpack.c.l.b16 %v5961
        %v6142 = vunpack.c.l.b16 %v5962
        %v6143 = vunpack.c.l.b16 %v5963
        %v6144 = vunpack.c.l.b16 %v5964
        %v6145 = vpack.c.b16 %v6130, %v6129
        %v6146 = vpack.c.b16 %v6132, %v6131
        %v6147 = vpack.c.b16 %v6134, %v6133
        %v6148 = vpack.c.b16 %v6136, %v6135
        %v6149 = vpack.c.b16 %v6138, %v6137
        %v6150 = vpack.c.b16 %v6140, %v6139
        %v6151 = vpack.c.b16 %v6142, %v6141
        %v6152 = vpack.c.b16 %v6144, %v6143
        %6161 = vmatprep.subr.bf16.mxu0 0
        %6162 = vmatpush1.bf16.msra.mxu0 %v6152
        %6163 = vmatprep.subr.bf16.mxu0 0
        %6164 = vmatpush1.bf16.msra.mxu0 %v6151
        %6165 = vmatprep.subr.bf16.mxu0 0
        %6166 = vmatpush1.bf16.msra.mxu0 %v6150
        %6167 = vmatprep.subr.bf16.mxu0 0
        %6168 = vmatpush1.bf16.msra.mxu0 %v6149
        %6169 = vmatprep.subr.bf16.mxu0 0
        %6170 = vmatpush1.bf16.msra.mxu0 %v6148
        %6171 = vmatprep.subr.bf16.mxu0 0
        %6172 = vmatpush1.bf16.msra.mxu0 %v6147
        %6173 = vmatprep.subr.bf16.mxu0 0
        %6174 = vmatpush1.bf16.msra.mxu0 %v6146
        %6175 = vmatprep.subr.bf16.mxu0 0
        %6176 = vmatpush1.bf16.msra.mxu0 %v6145
        %6177 = vmatprep.subr.bf16.mxu0 0
        %6178 = vmatpush2.bf16.msra.mxu0 0
        %6179 = vmatprep.subr.bf16.mxu0 0
        %6180 = vmatpush2.bf16.msra.mxu0 0
        %6181 = vmatprep.subr.bf16.mxu0 0
        %6182 = vmatpush2.bf16.msra.mxu0 0
        %6183 = vmatprep.subr.bf16.mxu0 0
        %6184 = vmatpush2.bf16.msra.mxu0 0
        %6185 = vmatprep.subr.bf16.mxu0 0
        %6186 = vmatpush2.bf16.msra.mxu0 0
        %6187 = vmatprep.subr.bf16.mxu0 0
        %6188 = vmatpush2.bf16.msra.mxu0 0
        %6189 = vmatprep.subr.bf16.mxu0 0
        %6190 = vmatpush2.bf16.msra.mxu0 0
        %6191 = vmatprep.subr.bf16.mxu0 0
        %6192 = vmatpush2.bf16.msra.mxu0 0
        %6193 = vmatprep.mubr.bf16.mxu0 0
        %6194 = vmatmul.mubr.bf16.gmra.mxu0 %v6060
        %v6195 = vpop.f32.mrf.mxu0
        %v6196 = vadd.f32 0.0, %v6195
        %v6197 = vpop.f32.mrf.mxu0
        %v6198 = vpop.f32.mrf.mxu0
        %v6199 = vadd.f32 0.0, %v6198
        %v6200 = vpop.f32.mrf.mxu0
        %6201 = vmatprep.mubr.bf16.mxu0 0
        %6202 = vmatmul.mubr.bf16.gmra.mxu0 %v6062
        %v6203 = vpop.f32.mrf.mxu0
        %v6204 = vadd.f32 0.0, %v6203
        %v6205 = vpop.f32.mrf.mxu0
        %v6206 = vpop.f32.mrf.mxu0
        %v6207 = vadd.f32 0.0, %v6206
        %v6208 = vpop.f32.mrf.mxu0
        %6209 = vmatprep.mubr.bf16.mxu0 0
        %6210 = vmatmul.mubr.bf16.gmra.mxu0 %v6064
        %v6211 = vpop.f32.mrf.mxu0
        %v6212 = vadd.f32 0.0, %v6211
        %v6213 = vpop.f32.mrf.mxu0
        %v6214 = vpop.f32.mrf.mxu0
        %v6215 = vadd.f32 0.0, %v6214
        %v6216 = vpop.f32.mrf.mxu0
        %6217 = vmatprep.mubr.bf16.mxu0 0
        %6218 = vmatmul.mubr.bf16.gmra.mxu0 %v6066
        %v6219 = vpop.f32.mrf.mxu0
        %v6220 = vadd.f32 0.0, %v6219
        %v6221 = vpop.f32.mrf.mxu0
        %v6222 = vpop.f32.mrf.mxu0
        %v6223 = vadd.f32 0.0, %v6222
        %v6224 = vpop.f32.mrf.mxu0
        %6225 = vmatprep.mubr.bf16.mxu0 0
        %6226 = vmatmul.mubr.bf16.gmra.mxu0 %v6068
        %v6227 = vpop.f32.mrf.mxu0
        %v6228 = vadd.f32 0.0, %v6227
        %v6229 = vpop.f32.mrf.mxu0
        %v6230 = vpop.f32.mrf.mxu0
        %v6231 = vadd.f32 0.0, %v6230
        %v6232 = vpop.f32.mrf.mxu0
        %6233 = vmatprep.mubr.bf16.mxu0 0
        %6234 = vmatmul.mubr.bf16.gmra.mxu0 %v6070
        %v6235 = vpop.f32.mrf.mxu0
        %v6236 = vadd.f32 0.0, %v6235
        %v6237 = vpop.f32.mrf.mxu0
        %v6238 = vpop.f32.mrf.mxu0
        %v6239 = vadd.f32 0.0, %v6238
        %v6240 = vpop.f32.mrf.mxu0
        %6241 = vmatprep.mubr.bf16.mxu0 0
        %6242 = vmatmul.mubr.bf16.gmra.mxu0 %v6072
        %v6243 = vpop.f32.mrf.mxu0
        %v6244 = vadd.f32 0.0, %v6243
        %v6245 = vpop.f32.mrf.mxu0
        %v6246 = vpop.f32.mrf.mxu0
        %v6247 = vadd.f32 0.0, %v6246
        %v6248 = vpop.f32.mrf.mxu0
        %6249 = vmatprep.mubr.bf16.mxu0 0
        %6250 = vmatmul.mubr.bf16.gmra.mxu0 %v6074
        %v6251 = vpop.f32.mrf.mxu0
        %v6252 = vadd.f32 0.0, %v6251
        %v6253 = vpop.f32.mrf.mxu0
        %v6254 = vpop.f32.mrf.mxu0
        %v6255 = vadd.f32 0.0, %v6254
        %v6256 = vpop.f32.mrf.mxu0
        %6257 = vmatprep.mubr.bf16.mxu0 0
        %6258 = vmatmul.mubr.bf16.gmra.mxu0 %v6076
        %v6259 = vpop.f32.mrf.mxu0
        %v6260 = vadd.f32 0.0, %v6259
        %v6261 = vpop.f32.mrf.mxu0
        %v6262 = vpop.f32.mrf.mxu0
        %v6263 = vadd.f32 0.0, %v6262
        %v6264 = vpop.f32.mrf.mxu0
        %6265 = vmatprep.mubr.bf16.mxu0 0
        %6266 = vmatmul.mubr.bf16.gmra.mxu0 %v6078
        %v6267 = vpop.f32.mrf.mxu0
        %v6268 = vadd.f32 0.0, %v6267
        %v6269 = vpop.f32.mrf.mxu0
        %v6270 = vpop.f32.mrf.mxu0
        %v6271 = vadd.f32 0.0, %v6270
        %v6272 = vpop.f32.mrf.mxu0
        %6273 = vmatprep.mubr.bf16.mxu0 0
        %6274 = vmatmul.mubr.bf16.gmra.mxu0 %v6080
        %v6275 = vpop.f32.mrf.mxu0
        %v6276 = vadd.f32 0.0, %v6275
        %v6277 = vpop.f32.mrf.mxu0
        %v6278 = vpop.f32.mrf.mxu0
        %v6279 = vadd.f32 0.0, %v6278
        %v6280 = vpop.f32.mrf.mxu0
        %6281 = vmatprep.mubr.bf16.mxu0 0
        %6282 = vmatmul.mubr.bf16.gmra.mxu0 %v6082
        %v6283 = vpop.f32.mrf.mxu0
        %v6284 = vadd.f32 0.0, %v6283
        %v6285 = vpop.f32.mrf.mxu0
        %v6286 = vpop.f32.mrf.mxu0
        %v6287 = vadd.f32 0.0, %v6286
        %v6288 = vpop.f32.mrf.mxu0
        %6289 = vmatprep.mubr.bf16.mxu0 0
        %6290 = vmatmul.mubr.bf16.gmra.mxu0 %v6084
        %v6291 = vpop.f32.mrf.mxu0
        %v6292 = vadd.f32 0.0, %v6291
        %v6293 = vpop.f32.mrf.mxu0
        %v6294 = vpop.f32.mrf.mxu0
        %v6295 = vadd.f32 0.0, %v6294
        %v6296 = vpop.f32.mrf.mxu0
        %6297 = vmatprep.mubr.bf16.mxu0 0
        %6298 = vmatmul.mubr.bf16.gmra.mxu0 %v6086
        %v6299 = vpop.f32.mrf.mxu0
        %v6300 = vadd.f32 0.0, %v6299
        %v6301 = vpop.f32.mrf.mxu0
        %v6302 = vpop.f32.mrf.mxu0
        %v6303 = vadd.f32 0.0, %v6302
        %v6304 = vpop.f32.mrf.mxu0
        %6305 = vmatprep.mubr.bf16.mxu0 0
        %6306 = vmatmul.mubr.bf16.gmra.mxu0 %v6088
        %v6307 = vpop.f32.mrf.mxu0
        %v6308 = vadd.f32 0.0, %v6307
        %v6309 = vpop.f32.mrf.mxu0
        %v6310 = vpop.f32.mrf.mxu0
        %v6311 = vadd.f32 0.0, %v6310
        %v6312 = vpop.f32.mrf.mxu0
        %6313 = vmatprep.mubr.bf16.mxu0 0
        %6314 = vmatmul.mubr.bf16.gmra.mxu0 %v6090
        %v6315 = vpop.f32.mrf.mxu0
        %v6316 = vadd.f32 0.0, %v6315
        %v6317 = vpop.f32.mrf.mxu0
        %v6318 = vpop.f32.mrf.mxu0
        %v6319 = vadd.f32 0.0, %v6318
        %v6320 = vpop.f32.mrf.mxu0
        %6321 = vmatprep.mubr.bf16.mxu0 0
        %6322 = vmatmul.mubr.bf16.gmra.mxu0 %v6092
        %v6323 = vpop.f32.mrf.mxu0
        %v6324 = vadd.f32 0.0, %v6323
        %v6325 = vpop.f32.mrf.mxu0
        %v6326 = vpop.f32.mrf.mxu0
        %v6327 = vadd.f32 0.0, %v6326
        %v6328 = vpop.f32.mrf.mxu0
        %6329 = vmatprep.mubr.bf16.mxu0 0
        %6330 = vmatmul.mubr.bf16.gmra.mxu0 %v6094
        %v6331 = vpop.f32.mrf.mxu0
        %v6332 = vadd.f32 0.0, %v6331
        %v6333 = vpop.f32.mrf.mxu0
        %v6334 = vpop.f32.mrf.mxu0
        %v6335 = vadd.f32 0.0, %v6334
        %v6336 = vpop.f32.mrf.mxu0
        %6337 = vdwg.mxu0
        %v6338 = vadd.f32 %v5876, %v6196
        %v6339 = vadd.f32 %v5877, %v6199
        %v6340 = vadd.f32 %v5878, %v6204
        %v6341 = vadd.f32 %v5879, %v6207
        %v6342 = vadd.f32 %v5880, %v6212
        %v6343 = vadd.f32 %v5881, %v6215
        %v6344 = vadd.f32 %v5882, %v6220
        %v6345 = vadd.f32 %v5883, %v6223
        %v6346 = vadd.f32 %v5884, %v6228
        %v6347 = vadd.f32 %v5885, %v6231
        %v6348 = vadd.f32 %v5886, %v6236
        %v6349 = vadd.f32 %v5887, %v6239
        %v6350 = vadd.f32 %v5888, %v6244
        %v6351 = vadd.f32 %v5889, %v6247
        %v6352 = vadd.f32 %v5890, %v6252
        %v6353 = vadd.f32 %v5891, %v6255
        %v6354 = vadd.f32 %v5892, %v6260
        %v6355 = vadd.f32 %v5893, %v6263
        %v6356 = vadd.f32 %v5894, %v6268
        %v6357 = vadd.f32 %v5895, %v6271
        %v6358 = vadd.f32 %v5896, %v6276
        %v6359 = vadd.f32 %v5897, %v6279
        %v6360 = vadd.f32 %v5898, %v6284
        %v6361 = vadd.f32 %v5899, %v6287
        %v6362 = vadd.f32 %v5900, %v6292
        %v6363 = vadd.f32 %v5901, %v6295
        %v6364 = vadd.f32 %v5902, %v6300
        %v6365 = vadd.f32 %v5903, %v6303
        %v6366 = vadd.f32 %v5904, %v6308
        %v6367 = vadd.f32 %v5905, %v6311
        %v6368 = vadd.f32 %v5906, %v6316
        %v6369 = vadd.f32 %v5907, %v6319
        %v6370 = vadd.f32 %v5908, %v6324
        %v6371 = vadd.f32 %v5909, %v6327
        %v6372 = vadd.f32 %v5910, %v6332
        %v6373 = vadd.f32 %v5911, %v6335
        %v6374 = vld [vmem:[#allocation2 + $0x98] sm:$0x3]
        %v6375 = vld [vmem:[#allocation3 + $0x100] sm:$0xf]
        %v6376 = vld [vmem:[#allocation3 + $0x104] sm:$0xf]
        %v6377 = vld [vmem:[#allocation3 + $0x108] sm:$0xf]
        %v6378 = vld [vmem:[#allocation3 + $0x10c] sm:$0xf]
        %v6379 = vld [vmem:[#allocation3 + $0x110] sm:$0xf]
        %v6380 = vld [vmem:[#allocation3 + $0x114] sm:$0xf]
        %v6381 = vld [vmem:[#allocation3 + $0x118] sm:$0xf]
        %v6382 = vld [vmem:[#allocation3 + $0x11c] sm:$0xf]
        %v6383 = vld [vmem:[#allocation3 + $0x120] sm:$0xf]
        %v6384 = vld [vmem:[#allocation3 + $0x124] sm:$0xf]
        %v6385 = vld [vmem:[#allocation3 + $0x128] sm:$0xf]
        %v6386 = vld [vmem:[#allocation3 + $0x12c] sm:$0xf]
        %v6387 = vld [vmem:[#allocation3 + $0x130] sm:$0xf]
        %v6388 = vld [vmem:[#allocation3 + $0x134] sm:$0xf]
        %v6389 = vld [vmem:[#allocation3 + $0x138] sm:$0xf]
        %v6390 = vld [vmem:[#allocation3 + $0x13c] sm:$0xf]
        %v6392 = vunpack.c.l.b16 %v6374
        %v6393 = vpack.c.b16 %v6392, %v6392
        %v6395 = vshrl.u32 %v6039, 16
        %v6397 = vrot.slane %v6395, 1
        %v6398 = vshll.u32 %v6039, 16
        %v6400 = vrot.slane %v6398, 2
        %v6401 = vor.u32 %v6397, %v6400
        %v6403 = vshrl.u32 %v6040, 16
        %v6405 = vrot.slane %v6403, 1
        %v6406 = vshll.u32 %v6040, 16
        %v6408 = vrot.slane %v6406, 2
        %v6409 = vor.u32 %v6405, %v6408
        %v6410 = vsel %vm2327, %v6401, %v6409
        %v6412 = vshrl.u32 %v6041, 16
        %v6414 = vrot.slane %v6412, 1
        %v6415 = vshll.u32 %v6041, 16
        %v6417 = vrot.slane %v6415, 2
        %v6418 = vor.u32 %v6414, %v6417
        %v6419 = vsel %vm2327, %v6409, %v6418
        %v6421 = vshrl.u32 %v6042, 16
        %v6423 = vrot.slane %v6421, 1
        %v6424 = vshll.u32 %v6042, 16
        %v6426 = vrot.slane %v6424, 2
        %v6427 = vor.u32 %v6423, %v6426
        %v6428 = vsel %vm2327, %v6418, %v6427
        %v6430 = vshrl.u32 %v6043, 16
        %v6432 = vrot.slane %v6430, 1
        %v6433 = vshll.u32 %v6043, 16
        %v6435 = vrot.slane %v6433, 2
        %v6436 = vor.u32 %v6432, %v6435
        %v6437 = vsel %vm2327, %v6427, %v6436
        %v6439 = vshrl.u32 %v6044, 16
        %v6441 = vrot.slane %v6439, 1
        %v6442 = vshll.u32 %v6044, 16
        %v6444 = vrot.slane %v6442, 2
        %v6445 = vor.u32 %v6441, %v6444
        %v6446 = vsel %vm2327, %v6436, %v6445
        %v6448 = vshrl.u32 %v6045, 16
        %v6450 = vrot.slane %v6448, 1
        %v6451 = vshll.u32 %v6045, 16
        %v6453 = vrot.slane %v6451, 2
        %v6454 = vor.u32 %v6450, %v6453
        %v6455 = vsel %vm2327, %v6445, %v6454
        %v6457 = vshrl.u32 %v6046, 16
        %v6459 = vrot.slane %v6457, 1
        %v6460 = vshll.u32 %v6046, 16
        %v6462 = vrot.slane %v6460, 2
        %v6463 = vor.u32 %v6459, %v6462
        %v6464 = vsel %vm2327, %v6454, %v6463
        %v6466 = vshrl.u32 %v6047, 16
        %v6468 = vrot.slane %v6466, 1
        %v6469 = vshll.u32 %v6047, 16
        %v6471 = vrot.slane %v6469, 2
        %v6472 = vor.u32 %v6468, %v6471
        %v6473 = vsel %vm2327, %v6463, %v6472
        %v6475 = vshrl.u32 %v6048, 16
        %v6477 = vrot.slane %v6475, 1
        %v6478 = vshll.u32 %v6048, 16
        %v6480 = vrot.slane %v6478, 2
        %v6481 = vor.u32 %v6477, %v6480
        %v6482 = vsel %vm2327, %v6472, %v6481
        %v6484 = vshrl.u32 %v6049, 16
        %v6486 = vrot.slane %v6484, 1
        %v6487 = vshll.u32 %v6049, 16
        %v6489 = vrot.slane %v6487, 2
        %v6490 = vor.u32 %v6486, %v6489
        %v6491 = vsel %vm2327, %v6481, %v6490
        %v6493 = vshrl.u32 %v6050, 16
        %v6495 = vrot.slane %v6493, 1
        %v6496 = vshll.u32 %v6050, 16
        %v6498 = vrot.slane %v6496, 2
        %v6499 = vor.u32 %v6495, %v6498
        %v6500 = vsel %vm2327, %v6490, %v6499
        %v6502 = vshrl.u32 %v6051, 16
        %v6504 = vrot.slane %v6502, 1
        %v6505 = vshll.u32 %v6051, 16
        %v6507 = vrot.slane %v6505, 2
        %v6508 = vor.u32 %v6504, %v6507
        %v6509 = vsel %vm2327, %v6499, %v6508
        %v6511 = vshrl.u32 %v6052, 16
        %v6513 = vrot.slane %v6511, 1
        %v6514 = vshll.u32 %v6052, 16
        %v6516 = vrot.slane %v6514, 2
        %v6517 = vor.u32 %v6513, %v6516
        %v6518 = vsel %vm2327, %v6508, %v6517
        %v6520 = vshrl.u32 %v6053, 16
        %v6522 = vrot.slane %v6520, 1
        %v6523 = vshll.u32 %v6053, 16
        %v6525 = vrot.slane %v6523, 2
        %v6526 = vor.u32 %v6522, %v6525
        %v6527 = vsel %vm2327, %v6517, %v6526
        %v6529 = vshrl.u32 %v6054, 16
        %v6531 = vrot.slane %v6529, 1
        %v6532 = vshll.u32 %v6054, 16
        %v6534 = vrot.slane %v6532, 2
        %v6535 = vor.u32 %v6531, %v6534
        %v6536 = vsel %vm2327, %v6526, %v6535
        %v6538 = vshrl.u32 %v6055, 16
        %v6540 = vrot.slane %v6538, 1
        %v6541 = vshll.u32 %v6055, 16
        %v6543 = vrot.slane %v6541, 2
        %v6544 = vor.u32 %v6540, %v6543
        %v6545 = vsel %vm2327, %v6535, %v6544
        %v6547 = vshrl.u32 %v6056, 16
        %v6549 = vrot.slane %v6547, 1
        %v6550 = vshll.u32 %v6056, 16
        %v6552 = vrot.slane %v6550, 2
        %v6553 = vor.u32 %v6549, %v6552
        %v6554 = vsel %vm2327, %v6544, %v6553
        %v6556 = vshrl.u32 %v6393, 16
        %v6558 = vrot.slane %v6556, 1
        %v6559 = vshll.u32 %v6393, 16
        %v6561 = vrot.slane %v6559, 2
        %v6562 = vor.u32 %v6558, %v6561
        %v6563 = vsel %vm2327, %v6553, %v6562
        %v6598 = vunpack.c.l.b16 %v6375
        %v6599 = vunpack.c.l.b16 %v6376
        %v6600 = vunpack.c.l.b16 %v6377
        %v6601 = vunpack.c.l.b16 %v6378
        %v6602 = vunpack.c.l.b16 %v6379
        %v6603 = vunpack.c.l.b16 %v6380
        %v6604 = vunpack.c.l.b16 %v6381
        %v6605 = vunpack.c.l.b16 %v6382
        %v6606 = vunpack.c.l.b16 %v6383
        %v6607 = vunpack.c.l.b16 %v6384
        %v6608 = vunpack.c.l.b16 %v6385
        %v6609 = vunpack.c.l.b16 %v6386
        %v6610 = vunpack.c.l.b16 %v6387
        %v6611 = vunpack.c.l.b16 %v6388
        %v6612 = vunpack.c.l.b16 %v6389
        %v6613 = vunpack.c.l.b16 %v6390
        %v6614 = vpack.c.b16 %v6599, %v6598
        %v6615 = vpack.c.b16 %v6601, %v6600
        %v6616 = vpack.c.b16 %v6603, %v6602
        %v6617 = vpack.c.b16 %v6605, %v6604
        %v6618 = vpack.c.b16 %v6607, %v6606
        %v6619 = vpack.c.b16 %v6609, %v6608
        %v6620 = vpack.c.b16 %v6611, %v6610
        %v6621 = vpack.c.b16 %v6613, %v6612
        %6630 = vmatprep.subr.bf16.mxu0 0
        %6631 = vmatpush1.bf16.msra.mxu0 %v6621
        %6632 = vmatprep.subr.bf16.mxu0 0
        %6633 = vmatpush1.bf16.msra.mxu0 %v6620
        %6634 = vmatprep.subr.bf16.mxu0 0
        %6635 = vmatpush1.bf16.msra.mxu0 %v6619
        %6636 = vmatprep.subr.bf16.mxu0 0
        %6637 = vmatpush1.bf16.msra.mxu0 %v6618
        %6638 = vmatprep.subr.bf16.mxu0 0
        %6639 = vmatpush1.bf16.msra.mxu0 %v6617
        %6640 = vmatprep.subr.bf16.mxu0 0
        %6641 = vmatpush1.bf16.msra.mxu0 %v6616
        %6642 = vmatprep.subr.bf16.mxu0 0
        %6643 = vmatpush1.bf16.msra.mxu0 %v6615
        %6644 = vmatprep.subr.bf16.mxu0 0
        %6645 = vmatpush1.bf16.msra.mxu0 %v6614
        %6646 = vmatprep.subr.bf16.mxu0 0
        %6647 = vmatpush2.bf16.msra.mxu0 0
        %6648 = vmatprep.subr.bf16.mxu0 0
        %6649 = vmatpush2.bf16.msra.mxu0 0
        %6650 = vmatprep.subr.bf16.mxu0 0
        %6651 = vmatpush2.bf16.msra.mxu0 0
        %6652 = vmatprep.subr.bf16.mxu0 0
        %6653 = vmatpush2.bf16.msra.mxu0 0
        %6654 = vmatprep.subr.bf16.mxu0 0
        %6655 = vmatpush2.bf16.msra.mxu0 0
        %6656 = vmatprep.subr.bf16.mxu0 0
        %6657 = vmatpush2.bf16.msra.mxu0 0
        %6658 = vmatprep.subr.bf16.mxu0 0
        %6659 = vmatpush2.bf16.msra.mxu0 0
        %6660 = vmatprep.subr.bf16.mxu0 0
        %6661 = vmatpush2.bf16.msra.mxu0 0
        %6662 = vmatprep.mubr.bf16.mxu0 0
        %6663 = vmatmul.mubr.bf16.gmra.mxu0 %v6410
        %v6664 = vpop.f32.mrf.mxu0
        %v6665 = vadd.f32 0.0, %v6664
        %v6666 = vpop.f32.mrf.mxu0
        %v6667 = vpop.f32.mrf.mxu0
        %v6668 = vadd.f32 0.0, %v6667
        %v6669 = vpop.f32.mrf.mxu0
        %6670 = vmatprep.mubr.bf16.mxu0 0
        %6671 = vmatmul.mubr.bf16.gmra.mxu0 %v6419
        %v6672 = vpop.f32.mrf.mxu0
        %v6673 = vadd.f32 0.0, %v6672
        %v6674 = vpop.f32.mrf.mxu0
        %v6675 = vpop.f32.mrf.mxu0
        %v6676 = vadd.f32 0.0, %v6675
        %v6677 = vpop.f32.mrf.mxu0
        %6678 = vmatprep.mubr.bf16.mxu0 0
        %6679 = vmatmul.mubr.bf16.gmra.mxu0 %v6428
        %v6680 = vpop.f32.mrf.mxu0
        %v6681 = vadd.f32 0.0, %v6680
        %v6682 = vpop.f32.mrf.mxu0
        %v6683 = vpop.f32.mrf.mxu0
        %v6684 = vadd.f32 0.0, %v6683
        %v6685 = vpop.f32.mrf.mxu0
        %6686 = vmatprep.mubr.bf16.mxu0 0
        %6687 = vmatmul.mubr.bf16.gmra.mxu0 %v6437
        %v6688 = vpop.f32.mrf.mxu0
        %v6689 = vadd.f32 0.0, %v6688
        %v6690 = vpop.f32.mrf.mxu0
        %v6691 = vpop.f32.mrf.mxu0
        %v6692 = vadd.f32 0.0, %v6691
        %v6693 = vpop.f32.mrf.mxu0
        %6694 = vmatprep.mubr.bf16.mxu0 0
        %6695 = vmatmul.mubr.bf16.gmra.mxu0 %v6446
        %v6696 = vpop.f32.mrf.mxu0
        %v6697 = vadd.f32 0.0, %v6696
        %v6698 = vpop.f32.mrf.mxu0
        %v6699 = vpop.f32.mrf.mxu0
        %v6700 = vadd.f32 0.0, %v6699
        %v6701 = vpop.f32.mrf.mxu0
        %6702 = vmatprep.mubr.bf16.mxu0 0
        %6703 = vmatmul.mubr.bf16.gmra.mxu0 %v6455
        %v6704 = vpop.f32.mrf.mxu0
        %v6705 = vadd.f32 0.0, %v6704
        %v6706 = vpop.f32.mrf.mxu0
        %v6707 = vpop.f32.mrf.mxu0
        %v6708 = vadd.f32 0.0, %v6707
        %v6709 = vpop.f32.mrf.mxu0
        %6710 = vmatprep.mubr.bf16.mxu0 0
        %6711 = vmatmul.mubr.bf16.gmra.mxu0 %v6464
        %v6712 = vpop.f32.mrf.mxu0
        %v6713 = vadd.f32 0.0, %v6712
        %v6714 = vpop.f32.mrf.mxu0
        %v6715 = vpop.f32.mrf.mxu0
        %v6716 = vadd.f32 0.0, %v6715
        %v6717 = vpop.f32.mrf.mxu0
        %6718 = vmatprep.mubr.bf16.mxu0 0
        %6719 = vmatmul.mubr.bf16.gmra.mxu0 %v6473
        %v6720 = vpop.f32.mrf.mxu0
        %v6721 = vadd.f32 0.0, %v6720
        %v6722 = vpop.f32.mrf.mxu0
        %v6723 = vpop.f32.mrf.mxu0
        %v6724 = vadd.f32 0.0, %v6723
        %v6725 = vpop.f32.mrf.mxu0
        %6726 = vmatprep.mubr.bf16.mxu0 0
        %6727 = vmatmul.mubr.bf16.gmra.mxu0 %v6482
        %v6728 = vpop.f32.mrf.mxu0
        %v6729 = vadd.f32 0.0, %v6728
        %v6730 = vpop.f32.mrf.mxu0
        %v6731 = vpop.f32.mrf.mxu0
        %v6732 = vadd.f32 0.0, %v6731
        %v6733 = vpop.f32.mrf.mxu0
        %6734 = vmatprep.mubr.bf16.mxu0 0
        %6735 = vmatmul.mubr.bf16.gmra.mxu0 %v6491
        %v6736 = vpop.f32.mrf.mxu0
        %v6737 = vadd.f32 0.0, %v6736
        %v6738 = vpop.f32.mrf.mxu0
        %v6739 = vpop.f32.mrf.mxu0
        %v6740 = vadd.f32 0.0, %v6739
        %v6741 = vpop.f32.mrf.mxu0
        %6742 = vmatprep.mubr.bf16.mxu0 0
        %6743 = vmatmul.mubr.bf16.gmra.mxu0 %v6500
        %v6744 = vpop.f32.mrf.mxu0
        %v6745 = vadd.f32 0.0, %v6744
        %v6746 = vpop.f32.mrf.mxu0
        %v6747 = vpop.f32.mrf.mxu0
        %v6748 = vadd.f32 0.0, %v6747
        %v6749 = vpop.f32.mrf.mxu0
        %6750 = vmatprep.mubr.bf16.mxu0 0
        %6751 = vmatmul.mubr.bf16.gmra.mxu0 %v6509
        %v6752 = vpop.f32.mrf.mxu0
        %v6753 = vadd.f32 0.0, %v6752
        %v6754 = vpop.f32.mrf.mxu0
        %v6755 = vpop.f32.mrf.mxu0
        %v6756 = vadd.f32 0.0, %v6755
        %v6757 = vpop.f32.mrf.mxu0
        %6758 = vmatprep.mubr.bf16.mxu0 0
        %6759 = vmatmul.mubr.bf16.gmra.mxu0 %v6518
        %v6760 = vpop.f32.mrf.mxu0
        %v6761 = vadd.f32 0.0, %v6760
        %v6762 = vpop.f32.mrf.mxu0
        %v6763 = vpop.f32.mrf.mxu0
        %v6764 = vadd.f32 0.0, %v6763
        %v6765 = vpop.f32.mrf.mxu0
        %6766 = vmatprep.mubr.bf16.mxu0 0
        %6767 = vmatmul.mubr.bf16.gmra.mxu0 %v6527
        %v6768 = vpop.f32.mrf.mxu0
        %v6769 = vadd.f32 0.0, %v6768
        %v6770 = vpop.f32.mrf.mxu0
        %v6771 = vpop.f32.mrf.mxu0
        %v6772 = vadd.f32 0.0, %v6771
        %v6773 = vpop.f32.mrf.mxu0
        %6774 = vmatprep.mubr.bf16.mxu0 0
        %6775 = vmatmul.mubr.bf16.gmra.mxu0 %v6536
        %v6776 = vpop.f32.mrf.mxu0
        %v6777 = vadd.f32 0.0, %v6776
        %v6778 = vpop.f32.mrf.mxu0
        %v6779 = vpop.f32.mrf.mxu0
        %v6780 = vadd.f32 0.0, %v6779
        %v6781 = vpop.f32.mrf.mxu0
        %6782 = vmatprep.mubr.bf16.mxu0 0
        %6783 = vmatmul.mubr.bf16.gmra.mxu0 %v6545
        %v6784 = vpop.f32.mrf.mxu0
        %v6785 = vadd.f32 0.0, %v6784
        %v6786 = vpop.f32.mrf.mxu0
        %v6787 = vpop.f32.mrf.mxu0
        %v6788 = vadd.f32 0.0, %v6787
        %v6789 = vpop.f32.mrf.mxu0
        %6790 = vmatprep.mubr.bf16.mxu0 0
        %6791 = vmatmul.mubr.bf16.gmra.mxu0 %v6554
        %v6792 = vpop.f32.mrf.mxu0
        %v6793 = vadd.f32 0.0, %v6792
        %v6794 = vpop.f32.mrf.mxu0
        %v6795 = vpop.f32.mrf.mxu0
        %v6796 = vadd.f32 0.0, %v6795
        %v6797 = vpop.f32.mrf.mxu0
        %6798 = vmatprep.mubr.bf16.mxu0 0
        %6799 = vmatmul.mubr.bf16.gmra.mxu0 %v6563
        %v6800 = vpop.f32.mrf.mxu0
        %v6801 = vadd.f32 0.0, %v6800
        %v6802 = vpop.f32.mrf.mxu0
        %v6803 = vpop.f32.mrf.mxu0
        %v6804 = vadd.f32 0.0, %v6803
        %v6805 = vpop.f32.mrf.mxu0
        %6806 = vdwg.mxu0
        %v6807 = vadd.f32 %v6338, %v6665
        %v6808 = vadd.f32 %v6339, %v6668
        %v6809 = vadd.f32 %v6340, %v6673
        %v6810 = vadd.f32 %v6341, %v6676
        %v6811 = vadd.f32 %v6342, %v6681
        %v6812 = vadd.f32 %v6343, %v6684
        %v6813 = vadd.f32 %v6344, %v6689
        %v6814 = vadd.f32 %v6345, %v6692
        %v6815 = vadd.f32 %v6346, %v6697
        %v6816 = vadd.f32 %v6347, %v6700
        %v6817 = vadd.f32 %v6348, %v6705
        %v6818 = vadd.f32 %v6349, %v6708
        %v6819 = vadd.f32 %v6350, %v6713
        %v6820 = vadd.f32 %v6351, %v6716
        %v6821 = vadd.f32 %v6352, %v6721
        %v6822 = vadd.f32 %v6353, %v6724
        %v6823 = vadd.f32 %v6354, %v6729
        %v6824 = vadd.f32 %v6355, %v6732
        %v6825 = vadd.f32 %v6356, %v6737
        %v6826 = vadd.f32 %v6357, %v6740
        %v6827 = vadd.f32 %v6358, %v6745
        %v6828 = vadd.f32 %v6359, %v6748
        %v6829 = vadd.f32 %v6360, %v6753
        %v6830 = vadd.f32 %v6361, %v6756
        %v6831 = vadd.f32 %v6362, %v6761
        %v6832 = vadd.f32 %v6363, %v6764
        %v6833 = vadd.f32 %v6364, %v6769
        %v6834 = vadd.f32 %v6365, %v6772
        %v6835 = vadd.f32 %v6366, %v6777
        %v6836 = vadd.f32 %v6367, %v6780
        %v6837 = vadd.f32 %v6368, %v6785
        %v6838 = vadd.f32 %v6369, %v6788
        %v6839 = vadd.f32 %v6370, %v6793
        %v6840 = vadd.f32 %v6371, %v6796
        %v6841 = vadd.f32 %v6372, %v6801
        %v6842 = vadd.f32 %v6373, %v6804
        %v6843 = vld [vmem:[#allocation2 + $0x8] sm:$0xc]
        %v6844 = vld [vmem:[#allocation3 + $0x140] sm:$0xf]
        %v6845 = vld [vmem:[#allocation3 + $0x144] sm:$0xf]
        %v6846 = vld [vmem:[#allocation3 + $0x148] sm:$0xf]
        %v6847 = vld [vmem:[#allocation3 + $0x14c] sm:$0xf]
        %v6848 = vld [vmem:[#allocation3 + $0x150] sm:$0xf]
        %v6849 = vld [vmem:[#allocation3 + $0x154] sm:$0xf]
        %v6850 = vld [vmem:[#allocation3 + $0x158] sm:$0xf]
        %v6851 = vld [vmem:[#allocation3 + $0x15c] sm:$0xf]
        %v6852 = vld [vmem:[#allocation3 + $0x160] sm:$0xf]
        %v6853 = vld [vmem:[#allocation3 + $0x164] sm:$0xf]
        %v6854 = vld [vmem:[#allocation3 + $0x168] sm:$0xf]
        %v6855 = vld [vmem:[#allocation3 + $0x16c] sm:$0xf]
        %v6856 = vld [vmem:[#allocation3 + $0x170] sm:$0xf]
        %v6857 = vld [vmem:[#allocation3 + $0x174] sm:$0xf]
        %v6858 = vld [vmem:[#allocation3 + $0x178] sm:$0xf]
        %v6859 = vld [vmem:[#allocation3 + $0x17c] sm:$0xf]
        %v6861 = vunpack.c.l.b16 %v6843
        %v6862 = vpack.c.b16 %v6003, %v6861
        %v6863 = vrot.slane %v6862, 2
        %v6864 = vrot.slane %v6040, 2
        %v6865 = vsel %vm2708, %v6863, %v6864
        %v6866 = vrot.slane %v6041, 2
        %v6867 = vsel %vm2708, %v6864, %v6866
        %v6868 = vrot.slane %v6042, 2
        %v6869 = vsel %vm2708, %v6866, %v6868
        %v6870 = vrot.slane %v6043, 2
        %v6871 = vsel %vm2708, %v6868, %v6870
        %v6872 = vrot.slane %v6044, 2
        %v6873 = vsel %vm2708, %v6870, %v6872
        %v6874 = vrot.slane %v6045, 2
        %v6875 = vsel %vm2708, %v6872, %v6874
        %v6876 = vrot.slane %v6046, 2
        %v6877 = vsel %vm2708, %v6874, %v6876
        %v6878 = vrot.slane %v6047, 2
        %v6879 = vsel %vm2708, %v6876, %v6878
        %v6880 = vrot.slane %v6048, 2
        %v6881 = vsel %vm2708, %v6878, %v6880
        %v6882 = vrot.slane %v6049, 2
        %v6883 = vsel %vm2708, %v6880, %v6882
        %v6884 = vrot.slane %v6050, 2
        %v6885 = vsel %vm2708, %v6882, %v6884
        %v6886 = vrot.slane %v6051, 2
        %v6887 = vsel %vm2708, %v6884, %v6886
        %v6888 = vrot.slane %v6052, 2
        %v6889 = vsel %vm2708, %v6886, %v6888
        %v6890 = vrot.slane %v6053, 2
        %v6891 = vsel %vm2708, %v6888, %v6890
        %v6892 = vrot.slane %v6054, 2
        %v6893 = vsel %vm2708, %v6890, %v6892
        %v6894 = vrot.slane %v6055, 2
        %v6895 = vsel %vm2708, %v6892, %v6894
        %v6896 = vrot.slane %v6056, 2
        %v6897 = vsel %vm2708, %v6894, %v6896
        %v6898 = vrot.slane %v6393, 2
        %v6899 = vsel %vm2708, %v6896, %v6898
        %v6934 = vunpack.c.l.b16 %v6844
        %v6935 = vunpack.c.l.b16 %v6845
        %v6936 = vunpack.c.l.b16 %v6846
        %v6937 = vunpack.c.l.b16 %v6847
        %v6938 = vunpack.c.l.b16 %v6848
        %v6939 = vunpack.c.l.b16 %v6849
        %v6940 = vunpack.c.l.b16 %v6850
        %v6941 = vunpack.c.l.b16 %v6851
        %v6942 = vunpack.c.l.b16 %v6852
        %v6943 = vunpack.c.l.b16 %v6853
        %v6944 = vunpack.c.l.b16 %v6854
        %v6945 = vunpack.c.l.b16 %v6855
        %v6946 = vunpack.c.l.b16 %v6856
        %v6947 = vunpack.c.l.b16 %v6857
        %v6948 = vunpack.c.l.b16 %v6858
        %v6949 = vunpack.c.l.b16 %v6859
        %v6950 = vpack.c.b16 %v6935, %v6934
        %v6951 = vpack.c.b16 %v6937, %v6936
        %v6952 = vpack.c.b16 %v6939, %v6938
        %v6953 = vpack.c.b16 %v6941, %v6940
        %v6954 = vpack.c.b16 %v6943, %v6942
        %v6955 = vpack.c.b16 %v6945, %v6944
        %v6956 = vpack.c.b16 %v6947, %v6946
        %v6957 = vpack.c.b16 %v6949, %v6948
        %6966 = vmatprep.subr.bf16.mxu0 0
        %6967 = vmatpush1.bf16.msra.mxu0 %v6957
        %6968 = vmatprep.subr.bf16.mxu0 0
        %6969 = vmatpush1.bf16.msra.mxu0 %v6956
        %6970 = vmatprep.subr.bf16.mxu0 0
        %6971 = vmatpush1.bf16.msra.mxu0 %v6955
        %6972 = vmatprep.subr.bf16.mxu0 0
        %6973 = vmatpush1.bf16.msra.mxu0 %v6954
        %6974 = vmatprep.subr.bf16.mxu0 0
        %6975 = vmatpush1.bf16.msra.mxu0 %v6953
        %6976 = vmatprep.subr.bf16.mxu0 0
        %6977 = vmatpush1.bf16.msra.mxu0 %v6952
        %6978 = vmatprep.subr.bf16.mxu0 0
        %6979 = vmatpush1.bf16.msra.mxu0 %v6951
        %6980 = vmatprep.subr.bf16.mxu0 0
        %6981 = vmatpush1.bf16.msra.mxu0 %v6950
        %6982 = vmatprep.subr.bf16.mxu0 0
        %6983 = vmatpush2.bf16.msra.mxu0 0
        %6984 = vmatprep.subr.bf16.mxu0 0
        %6985 = vmatpush2.bf16.msra.mxu0 0
        %6986 = vmatprep.subr.bf16.mxu0 0
        %6987 = vmatpush2.bf16.msra.mxu0 0
        %6988 = vmatprep.subr.bf16.mxu0 0
        %6989 = vmatpush2.bf16.msra.mxu0 0
        %6990 = vmatprep.subr.bf16.mxu0 0
        %6991 = vmatpush2.bf16.msra.mxu0 0
        %6992 = vmatprep.subr.bf16.mxu0 0
        %6993 = vmatpush2.bf16.msra.mxu0 0
        %6994 = vmatprep.subr.bf16.mxu0 0
        %6995 = vmatpush2.bf16.msra.mxu0 0
        %6996 = vmatprep.subr.bf16.mxu0 0
        %6997 = vmatpush2.bf16.msra.mxu0 0
        %6998 = vmatprep.mubr.bf16.mxu0 0
        %6999 = vmatmul.mubr.bf16.gmra.mxu0 %v6865
        %v7000 = vpop.f32.mrf.mxu0
        %v7001 = vadd.f32 0.0, %v7000
        %v7002 = vpop.f32.mrf.mxu0
        %v7003 = vpop.f32.mrf.mxu0
        %v7004 = vadd.f32 0.0, %v7003
        %v7005 = vpop.f32.mrf.mxu0
        %7006 = vmatprep.mubr.bf16.mxu0 0
        %7007 = vmatmul.mubr.bf16.gmra.mxu0 %v6867
        %v7008 = vpop.f32.mrf.mxu0
        %v7009 = vadd.f32 0.0, %v7008
        %v7010 = vpop.f32.mrf.mxu0
        %v7011 = vpop.f32.mrf.mxu0
        %v7012 = vadd.f32 0.0, %v7011
        %v7013 = vpop.f32.mrf.mxu0
        %7014 = vmatprep.mubr.bf16.mxu0 0
        %7015 = vmatmul.mubr.bf16.gmra.mxu0 %v6869
        %v7016 = vpop.f32.mrf.mxu0
        %v7017 = vadd.f32 0.0, %v7016
        %v7018 = vpop.f32.mrf.mxu0
        %v7019 = vpop.f32.mrf.mxu0
        %v7020 = vadd.f32 0.0, %v7019
        %v7021 = vpop.f32.mrf.mxu0
        %7022 = vmatprep.mubr.bf16.mxu0 0
        %7023 = vmatmul.mubr.bf16.gmra.mxu0 %v6871
        %v7024 = vpop.f32.mrf.mxu0
        %v7025 = vadd.f32 0.0, %v7024
        %v7026 = vpop.f32.mrf.mxu0
        %v7027 = vpop.f32.mrf.mxu0
        %v7028 = vadd.f32 0.0, %v7027
        %v7029 = vpop.f32.mrf.mxu0
        %7030 = vmatprep.mubr.bf16.mxu0 0
        %7031 = vmatmul.mubr.bf16.gmra.mxu0 %v6873
        %v7032 = vpop.f32.mrf.mxu0
        %v7033 = vadd.f32 0.0, %v7032
        %v7034 = vpop.f32.mrf.mxu0
        %v7035 = vpop.f32.mrf.mxu0
        %v7036 = vadd.f32 0.0, %v7035
        %v7037 = vpop.f32.mrf.mxu0
        %7038 = vmatprep.mubr.bf16.mxu0 0
        %7039 = vmatmul.mubr.bf16.gmra.mxu0 %v6875
        %v7040 = vpop.f32.mrf.mxu0
        %v7041 = vadd.f32 0.0, %v7040
        %v7042 = vpop.f32.mrf.mxu0
        %v7043 = vpop.f32.mrf.mxu0
        %v7044 = vadd.f32 0.0, %v7043
        %v7045 = vpop.f32.mrf.mxu0
        %7046 = vmatprep.mubr.bf16.mxu0 0
        %7047 = vmatmul.mubr.bf16.gmra.mxu0 %v6877
        %v7048 = vpop.f32.mrf.mxu0
        %v7049 = vadd.f32 0.0, %v7048
        %v7050 = vpop.f32.mrf.mxu0
        %v7051 = vpop.f32.mrf.mxu0
        %v7052 = vadd.f32 0.0, %v7051
        %v7053 = vpop.f32.mrf.mxu0
        %7054 = vmatprep.mubr.bf16.mxu0 0
        %7055 = vmatmul.mubr.bf16.gmra.mxu0 %v6879
        %v7056 = vpop.f32.mrf.mxu0
        %v7057 = vadd.f32 0.0, %v7056
        %v7058 = vpop.f32.mrf.mxu0
        %v7059 = vpop.f32.mrf.mxu0
        %v7060 = vadd.f32 0.0, %v7059
        %v7061 = vpop.f32.mrf.mxu0
        %7062 = vmatprep.mubr.bf16.mxu0 0
        %7063 = vmatmul.mubr.bf16.gmra.mxu0 %v6881
        %v7064 = vpop.f32.mrf.mxu0
        %v7065 = vadd.f32 0.0, %v7064
        %v7066 = vpop.f32.mrf.mxu0
        %v7067 = vpop.f32.mrf.mxu0
        %v7068 = vadd.f32 0.0, %v7067
        %v7069 = vpop.f32.mrf.mxu0
        %7070 = vmatprep.mubr.bf16.mxu0 0
        %7071 = vmatmul.mubr.bf16.gmra.mxu0 %v6883
        %v7072 = vpop.f32.mrf.mxu0
        %v7073 = vadd.f32 0.0, %v7072
        %v7074 = vpop.f32.mrf.mxu0
        %v7075 = vpop.f32.mrf.mxu0
        %v7076 = vadd.f32 0.0, %v7075
        %v7077 = vpop.f32.mrf.mxu0
        %7078 = vmatprep.mubr.bf16.mxu0 0
        %7079 = vmatmul.mubr.bf16.gmra.mxu0 %v6885
        %v7080 = vpop.f32.mrf.mxu0
        %v7081 = vadd.f32 0.0, %v7080
        %v7082 = vpop.f32.mrf.mxu0
        %v7083 = vpop.f32.mrf.mxu0
        %v7084 = vadd.f32 0.0, %v7083
        %v7085 = vpop.f32.mrf.mxu0
        %7086 = vmatprep.mubr.bf16.mxu0 0
        %7087 = vmatmul.mubr.bf16.gmra.mxu0 %v6887
        %v7088 = vpop.f32.mrf.mxu0
        %v7089 = vadd.f32 0.0, %v7088
        %v7090 = vpop.f32.mrf.mxu0
        %v7091 = vpop.f32.mrf.mxu0
        %v7092 = vadd.f32 0.0, %v7091
        %v7093 = vpop.f32.mrf.mxu0
        %7094 = vmatprep.mubr.bf16.mxu0 0
        %7095 = vmatmul.mubr.bf16.gmra.mxu0 %v6889
        %v7096 = vpop.f32.mrf.mxu0
        %v7097 = vadd.f32 0.0, %v7096
        %v7098 = vpop.f32.mrf.mxu0
        %v7099 = vpop.f32.mrf.mxu0
        %v7100 = vadd.f32 0.0, %v7099
        %v7101 = vpop.f32.mrf.mxu0
        %7102 = vmatprep.mubr.bf16.mxu0 0
        %7103 = vmatmul.mubr.bf16.gmra.mxu0 %v6891
        %v7104 = vpop.f32.mrf.mxu0
        %v7105 = vadd.f32 0.0, %v7104
        %v7106 = vpop.f32.mrf.mxu0
        %v7107 = vpop.f32.mrf.mxu0
        %v7108 = vadd.f32 0.0, %v7107
        %v7109 = vpop.f32.mrf.mxu0
        %7110 = vmatprep.mubr.bf16.mxu0 0
        %7111 = vmatmul.mubr.bf16.gmra.mxu0 %v6893
        %v7112 = vpop.f32.mrf.mxu0
        %v7113 = vadd.f32 0.0, %v7112
        %v7114 = vpop.f32.mrf.mxu0
        %v7115 = vpop.f32.mrf.mxu0
        %v7116 = vadd.f32 0.0, %v7115
        %v7117 = vpop.f32.mrf.mxu0
        %7118 = vmatprep.mubr.bf16.mxu0 0
        %7119 = vmatmul.mubr.bf16.gmra.mxu0 %v6895
        %v7120 = vpop.f32.mrf.mxu0
        %v7121 = vadd.f32 0.0, %v7120
        %v7122 = vpop.f32.mrf.mxu0
        %v7123 = vpop.f32.mrf.mxu0
        %v7124 = vadd.f32 0.0, %v7123
        %v7125 = vpop.f32.mrf.mxu0
        %7126 = vmatprep.mubr.bf16.mxu0 0
        %7127 = vmatmul.mubr.bf16.gmra.mxu0 %v6897
        %v7128 = vpop.f32.mrf.mxu0
        %v7129 = vadd.f32 0.0, %v7128
        %v7130 = vpop.f32.mrf.mxu0
        %v7131 = vpop.f32.mrf.mxu0
        %v7132 = vadd.f32 0.0, %v7131
        %v7133 = vpop.f32.mrf.mxu0
        %7134 = vmatprep.mubr.bf16.mxu0 0
        %7135 = vmatmul.mubr.bf16.gmra.mxu0 %v6899
        %v7136 = vpop.f32.mrf.mxu0
        %v7137 = vadd.f32 0.0, %v7136
        %v7138 = vpop.f32.mrf.mxu0
        %v7139 = vpop.f32.mrf.mxu0
        %v7140 = vadd.f32 0.0, %v7139
        %v7141 = vpop.f32.mrf.mxu0
        %7142 = vdwg.mxu0
        %v7143 = vadd.f32 %v6807, %v7001
        %v7144 = vadd.f32 %v6808, %v7004
        %v7145 = vadd.f32 %v6809, %v7009
        %v7146 = vadd.f32 %v6810, %v7012
        %v7147 = vadd.f32 %v6811, %v7017
        %v7148 = vadd.f32 %v6812, %v7020
        %v7149 = vadd.f32 %v6813, %v7025
        %v7150 = vadd.f32 %v6814, %v7028
        %v7151 = vadd.f32 %v6815, %v7033
        %v7152 = vadd.f32 %v6816, %v7036
        %v7153 = vadd.f32 %v6817, %v7041
        %v7154 = vadd.f32 %v6818, %v7044
        %v7155 = vadd.f32 %v6819, %v7049
        %v7156 = vadd.f32 %v6820, %v7052
        %v7157 = vadd.f32 %v6821, %v7057
        %v7158 = vadd.f32 %v6822, %v7060
        %v7159 = vadd.f32 %v6823, %v7065
        %v7160 = vadd.f32 %v6824, %v7068
        %v7161 = vadd.f32 %v6825, %v7073
        %v7162 = vadd.f32 %v6826, %v7076
        %v7163 = vadd.f32 %v6827, %v7081
        %v7164 = vadd.f32 %v6828, %v7084
        %v7165 = vadd.f32 %v6829, %v7089
        %v7166 = vadd.f32 %v6830, %v7092
        %v7167 = vadd.f32 %v6831, %v7097
        %v7168 = vadd.f32 %v6832, %v7100
        %v7169 = vadd.f32 %v6833, %v7105
        %v7170 = vadd.f32 %v6834, %v7108
        %v7171 = vadd.f32 %v6835, %v7113
        %v7172 = vadd.f32 %v6836, %v7116
        %v7173 = vadd.f32 %v6837, %v7121
        %v7174 = vadd.f32 %v6838, %v7124
        %v7175 = vadd.f32 %v6839, %v7129
        %v7176 = vadd.f32 %v6840, %v7132
        %v7177 = vadd.f32 %v6841, %v7137
        %v7178 = vadd.f32 %v6842, %v7140
        %v7179 = vld [vmem:[#allocation2 + $0x10] sm:$0xc]
        %v7180 = vld [vmem:[#allocation2 + $0x14] sm:$0xf]
        %v7181 = vld [vmem:[#allocation2 + $0x18] sm:$0xf]
        %v7182 = vld [vmem:[#allocation2 + $0x1c] sm:$0xf]
        %v7183 = vld [vmem:[#allocation2 + $0x20] sm:$0xf]
        %v7184 = vld [vmem:[#allocation2 + $0x24] sm:$0xf]
        %v7185 = vld [vmem:[#allocation2 + $0x28] sm:$0xf]
        %v7186 = vld [vmem:[#allocation2 + $0x2c] sm:$0xf]
        %v7187 = vld [vmem:[#allocation2 + $0x30] sm:$0xf]
        %v7188 = vld [vmem:[#allocation2 + $0x34] sm:$0xf]
        %v7189 = vld [vmem:[#allocation2 + $0x38] sm:$0xf]
        %v7190 = vld [vmem:[#allocation2 + $0x3c] sm:$0xf]
        %v7191 = vld [vmem:[#allocation2 + $0x40] sm:$0xf]
        %v7192 = vld [vmem:[#allocation2 + $0x44] sm:$0xf]
        %v7193 = vld [vmem:[#allocation2 + $0x48] sm:$0xf]
        %v7194 = vld [vmem:[#allocation2 + $0x4c] sm:$0xf]
        %v7195 = vld [vmem:[#allocation2 + $0x50] sm:$0xf]
        %v7196 = vld [vmem:[#allocation2 + $0x54] sm:$0xf]
        %v7197 = vld [vmem:[#allocation2 + $0x58] sm:$0xf]
        %v7198 = vld [vmem:[#allocation2 + $0x5c] sm:$0xf]
        %v7199 = vld [vmem:[#allocation2 + $0x60] sm:$0xf]
        %v7200 = vld [vmem:[#allocation2 + $0x64] sm:$0xf]
        %v7201 = vld [vmem:[#allocation2 + $0x68] sm:$0xf]
        %v7202 = vld [vmem:[#allocation2 + $0x6c] sm:$0xf]
        %v7203 = vld [vmem:[#allocation2 + $0x70] sm:$0xf]
        %v7204 = vld [vmem:[#allocation2 + $0x74] sm:$0xf]
        %v7205 = vld [vmem:[#allocation2 + $0x78] sm:$0xf]
        %v7206 = vld [vmem:[#allocation2 + $0x7c] sm:$0xf]
        %v7207 = vld [vmem:[#allocation2 + $0x80] sm:$0xf]
        %v7208 = vld [vmem:[#allocation2 + $0x84] sm:$0xf]
        %v7209 = vld [vmem:[#allocation2 + $0x88] sm:$0xf]
        %v7210 = vld [vmem:[#allocation2 + $0x8c] sm:$0xf]
        %v7211 = vld [vmem:[#allocation2 + $0x90] sm:$0xf]
        %v7212 = vld [vmem:[#allocation2 + $0x94] sm:$0xf]
        %v7213 = vld [vmem:[#allocation2 + $0x98] sm:$0xf]
        %v7214 = vld [vmem:[#allocation2 + $0x9c] sm:$0xf]
        %v7215 = vld [vmem:[#allocation2 + $0xa0] sm:$0x3]
        %v7216 = vld [vmem:[#allocation3 + $0x180] sm:$0xf]
        %v7217 = vld [vmem:[#allocation3 + $0x184] sm:$0xf]
        %v7218 = vld [vmem:[#allocation3 + $0x188] sm:$0xf]
        %v7219 = vld [vmem:[#allocation3 + $0x18c] sm:$0xf]
        %v7220 = vld [vmem:[#allocation3 + $0x190] sm:$0xf]
        %v7221 = vld [vmem:[#allocation3 + $0x194] sm:$0xf]
        %v7222 = vld [vmem:[#allocation3 + $0x198] sm:$0xf]
        %v7223 = vld [vmem:[#allocation3 + $0x19c] sm:$0xf]
        %v7224 = vld [vmem:[#allocation3 + $0x1a0] sm:$0xf]
        %v7225 = vld [vmem:[#allocation3 + $0x1a4] sm:$0xf]
        %v7226 = vld [vmem:[#allocation3 + $0x1a8] sm:$0xf]
        %v7227 = vld [vmem:[#allocation3 + $0x1ac] sm:$0xf]
        %v7228 = vld [vmem:[#allocation3 + $0x1b0] sm:$0xf]
        %v7229 = vld [vmem:[#allocation3 + $0x1b4] sm:$0xf]
        %v7230 = vld [vmem:[#allocation3 + $0x1b8] sm:$0xf]
        %v7231 = vld [vmem:[#allocation3 + $0x1bc] sm:$0xf]
        %v7269 = vunpack.c.l.b16 %v7179
        %v7270 = vunpack.c.l.b16 %v7180
        %v7271 = vunpack.c.l.b16 %v7181
        %v7272 = vunpack.c.l.b16 %v7182
        %v7273 = vunpack.c.l.b16 %v7183
        %v7274 = vunpack.c.l.b16 %v7184
        %v7275 = vunpack.c.l.b16 %v7185
        %v7276 = vunpack.c.l.b16 %v7186
        %v7277 = vunpack.c.l.b16 %v7187
        %v7278 = vunpack.c.l.b16 %v7188
        %v7279 = vunpack.c.l.b16 %v7189
        %v7280 = vunpack.c.l.b16 %v7190
        %v7281 = vunpack.c.l.b16 %v7191
        %v7282 = vunpack.c.l.b16 %v7192
        %v7283 = vunpack.c.l.b16 %v7193
        %v7284 = vunpack.c.l.b16 %v7194
        %v7285 = vunpack.c.l.b16 %v7195
        %v7286 = vunpack.c.l.b16 %v7196
        %v7287 = vunpack.c.l.b16 %v7197
        %v7288 = vunpack.c.l.b16 %v7198
        %v7289 = vunpack.c.l.b16 %v7199
        %v7290 = vunpack.c.l.b16 %v7200
        %v7291 = vunpack.c.l.b16 %v7201
        %v7292 = vunpack.c.l.b16 %v7202
        %v7293 = vunpack.c.l.b16 %v7203
        %v7294 = vunpack.c.l.b16 %v7204
        %v7295 = vunpack.c.l.b16 %v7205
        %v7296 = vunpack.c.l.b16 %v7206
        %v7297 = vunpack.c.l.b16 %v7207
        %v7298 = vunpack.c.l.b16 %v7208
        %v7299 = vunpack.c.l.b16 %v7209
        %v7300 = vunpack.c.l.b16 %v7210
        %v7301 = vunpack.c.l.b16 %v7211
        %v7302 = vunpack.c.l.b16 %v7212
        %v7303 = vunpack.c.l.b16 %v7213
        %v7304 = vunpack.c.l.b16 %v7214
        %v7305 = vunpack.c.l.b16 %v7215
        %v7306 = vpack.c.b16 %v7270, %v7269
        %v7307 = vpack.c.b16 %v7272, %v7271
        %v7308 = vpack.c.b16 %v7274, %v7273
        %v7309 = vpack.c.b16 %v7276, %v7275
        %v7310 = vpack.c.b16 %v7278, %v7277
        %v7311 = vpack.c.b16 %v7280, %v7279
        %v7312 = vpack.c.b16 %v7282, %v7281
        %v7313 = vpack.c.b16 %v7284, %v7283
        %v7314 = vpack.c.b16 %v7286, %v7285
        %v7315 = vpack.c.b16 %v7288, %v7287
        %v7316 = vpack.c.b16 %v7290, %v7289
        %v7317 = vpack.c.b16 %v7292, %v7291
        %v7318 = vpack.c.b16 %v7294, %v7293
        %v7319 = vpack.c.b16 %v7296, %v7295
        %v7320 = vpack.c.b16 %v7298, %v7297
        %v7321 = vpack.c.b16 %v7300, %v7299
        %v7322 = vpack.c.b16 %v7302, %v7301
        %v7323 = vpack.c.b16 %v7304, %v7303
        %v7324 = vpack.c.b16 %v7305, %v7305
        %v7325 = vrot.slane %v7306, 2
        %v7326 = vrot.slane %v7307, 2
        %v7327 = vsel %vm2708, %v7325, %v7326
        %v7328 = vrot.slane %v7308, 2
        %v7329 = vsel %vm2708, %v7326, %v7328
        %v7330 = vrot.slane %v7309, 2
        %v7331 = vsel %vm2708, %v7328, %v7330
        %v7332 = vrot.slane %v7310, 2
        %v7333 = vsel %vm2708, %v7330, %v7332
        %v7334 = vrot.slane %v7311, 2
        %v7335 = vsel %vm2708, %v7332, %v7334
        %v7336 = vrot.slane %v7312, 2
        %v7337 = vsel %vm2708, %v7334, %v7336
        %v7338 = vrot.slane %v7313, 2
        %v7339 = vsel %vm2708, %v7336, %v7338
        %v7340 = vrot.slane %v7314, 2
        %v7341 = vsel %vm2708, %v7338, %v7340
        %v7342 = vrot.slane %v7315, 2
        %v7343 = vsel %vm2708, %v7340, %v7342
        %v7344 = vrot.slane %v7316, 2
        %v7345 = vsel %vm2708, %v7342, %v7344
        %v7346 = vrot.slane %v7317, 2
        %v7347 = vsel %vm2708, %v7344, %v7346
        %v7348 = vrot.slane %v7318, 2
        %v7349 = vsel %vm2708, %v7346, %v7348
        %v7350 = vrot.slane %v7319, 2
        %v7351 = vsel %vm2708, %v7348, %v7350
        %v7352 = vrot.slane %v7320, 2
        %v7353 = vsel %vm2708, %v7350, %v7352
        %v7354 = vrot.slane %v7321, 2
        %v7355 = vsel %vm2708, %v7352, %v7354
        %v7356 = vrot.slane %v7322, 2
        %v7357 = vsel %vm2708, %v7354, %v7356
        %v7358 = vrot.slane %v7323, 2
        %v7359 = vsel %vm2708, %v7356, %v7358
        %v7360 = vrot.slane %v7324, 2
        %v7361 = vsel %vm2708, %v7358, %v7360
        %v7396 = vunpack.c.l.b16 %v7216
        %v7397 = vunpack.c.l.b16 %v7217
        %v7398 = vunpack.c.l.b16 %v7218
        %v7399 = vunpack.c.l.b16 %v7219
        %v7400 = vunpack.c.l.b16 %v7220
        %v7401 = vunpack.c.l.b16 %v7221
        %v7402 = vunpack.c.l.b16 %v7222
        %v7403 = vunpack.c.l.b16 %v7223
        %v7404 = vunpack.c.l.b16 %v7224
        %v7405 = vunpack.c.l.b16 %v7225
        %v7406 = vunpack.c.l.b16 %v7226
        %v7407 = vunpack.c.l.b16 %v7227
        %v7408 = vunpack.c.l.b16 %v7228
        %v7409 = vunpack.c.l.b16 %v7229
        %v7410 = vunpack.c.l.b16 %v7230
        %v7411 = vunpack.c.l.b16 %v7231
        %v7412 = vpack.c.b16 %v7397, %v7396
        %v7413 = vpack.c.b16 %v7399, %v7398
        %v7414 = vpack.c.b16 %v7401, %v7400
        %v7415 = vpack.c.b16 %v7403, %v7402
        %v7416 = vpack.c.b16 %v7405, %v7404
        %v7417 = vpack.c.b16 %v7407, %v7406
        %v7418 = vpack.c.b16 %v7409, %v7408
        %v7419 = vpack.c.b16 %v7411, %v7410
        %7428 = vmatprep.subr.bf16.mxu0 0
        %7429 = vmatpush1.bf16.msra.mxu0 %v7419
        %7430 = vmatprep.subr.bf16.mxu0 0
        %7431 = vmatpush1.bf16.msra.mxu0 %v7418
        %7432 = vmatprep.subr.bf16.mxu0 0
        %7433 = vmatpush1.bf16.msra.mxu0 %v7417
        %7434 = vmatprep.subr.bf16.mxu0 0
        %7435 = vmatpush1.bf16.msra.mxu0 %v7416
        %7436 = vmatprep.subr.bf16.mxu0 0
        %7437 = vmatpush1.bf16.msra.mxu0 %v7415
        %7438 = vmatprep.subr.bf16.mxu0 0
        %7439 = vmatpush1.bf16.msra.mxu0 %v7414
        %7440 = vmatprep.subr.bf16.mxu0 0
        %7441 = vmatpush1.bf16.msra.mxu0 %v7413
        %7442 = vmatprep.subr.bf16.mxu0 0
        %7443 = vmatpush1.bf16.msra.mxu0 %v7412
        %7444 = vmatprep.subr.bf16.mxu0 0
        %7445 = vmatpush2.bf16.msra.mxu0 0
        %7446 = vmatprep.subr.bf16.mxu0 0
        %7447 = vmatpush2.bf16.msra.mxu0 0
        %7448 = vmatprep.subr.bf16.mxu0 0
        %7449 = vmatpush2.bf16.msra.mxu0 0
        %7450 = vmatprep.subr.bf16.mxu0 0
        %7451 = vmatpush2.bf16.msra.mxu0 0
        %7452 = vmatprep.subr.bf16.mxu0 0
        %7453 = vmatpush2.bf16.msra.mxu0 0
        %7454 = vmatprep.subr.bf16.mxu0 0
        %7455 = vmatpush2.bf16.msra.mxu0 0
        %7456 = vmatprep.subr.bf16.mxu0 0
        %7457 = vmatpush2.bf16.msra.mxu0 0
        %7458 = vmatprep.subr.bf16.mxu0 0
        %7459 = vmatpush2.bf16.msra.mxu0 0
        %7460 = vmatprep.mubr.bf16.mxu0 0
        %7461 = vmatmul.mubr.bf16.gmra.mxu0 %v7327
        %v7462 = vpop.f32.mrf.mxu0
        %v7463 = vadd.f32 0.0, %v7462
        %v7464 = vpop.f32.mrf.mxu0
        %v7465 = vpop.f32.mrf.mxu0
        %v7466 = vadd.f32 0.0, %v7465
        %v7467 = vpop.f32.mrf.mxu0
        %7468 = vmatprep.mubr.bf16.mxu0 0
        %7469 = vmatmul.mubr.bf16.gmra.mxu0 %v7329
        %v7470 = vpop.f32.mrf.mxu0
        %v7471 = vadd.f32 0.0, %v7470
        %v7472 = vpop.f32.mrf.mxu0
        %v7473 = vpop.f32.mrf.mxu0
        %v7474 = vadd.f32 0.0, %v7473
        %v7475 = vpop.f32.mrf.mxu0
        %7476 = vmatprep.mubr.bf16.mxu0 0
        %7477 = vmatmul.mubr.bf16.gmra.mxu0 %v7331
        %v7478 = vpop.f32.mrf.mxu0
        %v7479 = vadd.f32 0.0, %v7478
        %v7480 = vpop.f32.mrf.mxu0
        %v7481 = vpop.f32.mrf.mxu0
        %v7482 = vadd.f32 0.0, %v7481
        %v7483 = vpop.f32.mrf.mxu0
        %7484 = vmatprep.mubr.bf16.mxu0 0
        %7485 = vmatmul.mubr.bf16.gmra.mxu0 %v7333
        %v7486 = vpop.f32.mrf.mxu0
        %v7487 = vadd.f32 0.0, %v7486
        %v7488 = vpop.f32.mrf.mxu0
        %v7489 = vpop.f32.mrf.mxu0
        %v7490 = vadd.f32 0.0, %v7489
        %v7491 = vpop.f32.mrf.mxu0
        %7492 = vmatprep.mubr.bf16.mxu0 0
        %7493 = vmatmul.mubr.bf16.gmra.mxu0 %v7335
        %v7494 = vpop.f32.mrf.mxu0
        %v7495 = vadd.f32 0.0, %v7494
        %v7496 = vpop.f32.mrf.mxu0
        %v7497 = vpop.f32.mrf.mxu0
        %v7498 = vadd.f32 0.0, %v7497
        %v7499 = vpop.f32.mrf.mxu0
        %7500 = vmatprep.mubr.bf16.mxu0 0
        %7501 = vmatmul.mubr.bf16.gmra.mxu0 %v7337
        %v7502 = vpop.f32.mrf.mxu0
        %v7503 = vadd.f32 0.0, %v7502
        %v7504 = vpop.f32.mrf.mxu0
        %v7505 = vpop.f32.mrf.mxu0
        %v7506 = vadd.f32 0.0, %v7505
        %v7507 = vpop.f32.mrf.mxu0
        %7508 = vmatprep.mubr.bf16.mxu0 0
        %7509 = vmatmul.mubr.bf16.gmra.mxu0 %v7339
        %v7510 = vpop.f32.mrf.mxu0
        %v7511 = vadd.f32 0.0, %v7510
        %v7512 = vpop.f32.mrf.mxu0
        %v7513 = vpop.f32.mrf.mxu0
        %v7514 = vadd.f32 0.0, %v7513
        %v7515 = vpop.f32.mrf.mxu0
        %7516 = vmatprep.mubr.bf16.mxu0 0
        %7517 = vmatmul.mubr.bf16.gmra.mxu0 %v7341
        %v7518 = vpop.f32.mrf.mxu0
        %v7519 = vadd.f32 0.0, %v7518
        %v7520 = vpop.f32.mrf.mxu0
        %v7521 = vpop.f32.mrf.mxu0
        %v7522 = vadd.f32 0.0, %v7521
        %v7523 = vpop.f32.mrf.mxu0
        %7524 = vmatprep.mubr.bf16.mxu0 0
        %7525 = vmatmul.mubr.bf16.gmra.mxu0 %v7343
        %v7526 = vpop.f32.mrf.mxu0
        %v7527 = vadd.f32 0.0, %v7526
        %v7528 = vpop.f32.mrf.mxu0
        %v7529 = vpop.f32.mrf.mxu0
        %v7530 = vadd.f32 0.0, %v7529
        %v7531 = vpop.f32.mrf.mxu0
        %7532 = vmatprep.mubr.bf16.mxu0 0
        %7533 = vmatmul.mubr.bf16.gmra.mxu0 %v7345
        %v7534 = vpop.f32.mrf.mxu0
        %v7535 = vadd.f32 0.0, %v7534
        %v7536 = vpop.f32.mrf.mxu0
        %v7537 = vpop.f32.mrf.mxu0
        %v7538 = vadd.f32 0.0, %v7537
        %v7539 = vpop.f32.mrf.mxu0
        %7540 = vmatprep.mubr.bf16.mxu0 0
        %7541 = vmatmul.mubr.bf16.gmra.mxu0 %v7347
        %v7542 = vpop.f32.mrf.mxu0
        %v7543 = vadd.f32 0.0, %v7542
        %v7544 = vpop.f32.mrf.mxu0
        %v7545 = vpop.f32.mrf.mxu0
        %v7546 = vadd.f32 0.0, %v7545
        %v7547 = vpop.f32.mrf.mxu0
        %7548 = vmatprep.mubr.bf16.mxu0 0
        %7549 = vmatmul.mubr.bf16.gmra.mxu0 %v7349
        %v7550 = vpop.f32.mrf.mxu0
        %v7551 = vadd.f32 0.0, %v7550
        %v7552 = vpop.f32.mrf.mxu0
        %v7553 = vpop.f32.mrf.mxu0
        %v7554 = vadd.f32 0.0, %v7553
        %v7555 = vpop.f32.mrf.mxu0
        %7556 = vmatprep.mubr.bf16.mxu0 0
        %7557 = vmatmul.mubr.bf16.gmra.mxu0 %v7351
        %v7558 = vpop.f32.mrf.mxu0
        %v7559 = vadd.f32 0.0, %v7558
        %v7560 = vpop.f32.mrf.mxu0
        %v7561 = vpop.f32.mrf.mxu0
        %v7562 = vadd.f32 0.0, %v7561
        %v7563 = vpop.f32.mrf.mxu0
        %7564 = vmatprep.mubr.bf16.mxu0 0
        %7565 = vmatmul.mubr.bf16.gmra.mxu0 %v7353
        %v7566 = vpop.f32.mrf.mxu0
        %v7567 = vadd.f32 0.0, %v7566
        %v7568 = vpop.f32.mrf.mxu0
        %v7569 = vpop.f32.mrf.mxu0
        %v7570 = vadd.f32 0.0, %v7569
        %v7571 = vpop.f32.mrf.mxu0
        %7572 = vmatprep.mubr.bf16.mxu0 0
        %7573 = vmatmul.mubr.bf16.gmra.mxu0 %v7355
        %v7574 = vpop.f32.mrf.mxu0
        %v7575 = vadd.f32 0.0, %v7574
        %v7576 = vpop.f32.mrf.mxu0
        %v7577 = vpop.f32.mrf.mxu0
        %v7578 = vadd.f32 0.0, %v7577
        %v7579 = vpop.f32.mrf.mxu0
        %7580 = vmatprep.mubr.bf16.mxu0 0
        %7581 = vmatmul.mubr.bf16.gmra.mxu0 %v7357
        %v7582 = vpop.f32.mrf.mxu0
        %v7583 = vadd.f32 0.0, %v7582
        %v7584 = vpop.f32.mrf.mxu0
        %v7585 = vpop.f32.mrf.mxu0
        %v7586 = vadd.f32 0.0, %v7585
        %v7587 = vpop.f32.mrf.mxu0
        %7588 = vmatprep.mubr.bf16.mxu0 0
        %7589 = vmatmul.mubr.bf16.gmra.mxu0 %v7359
        %v7590 = vpop.f32.mrf.mxu0
        %v7591 = vadd.f32 0.0, %v7590
        %v7592 = vpop.f32.mrf.mxu0
        %v7593 = vpop.f32.mrf.mxu0
        %v7594 = vadd.f32 0.0, %v7593
        %v7595 = vpop.f32.mrf.mxu0
        %7596 = vmatprep.mubr.bf16.mxu0 0
        %7597 = vmatmul.mubr.bf16.gmra.mxu0 %v7361
        %v7598 = vpop.f32.mrf.mxu0
        %v7599 = vadd.f32 0.0, %v7598
        %v7600 = vpop.f32.mrf.mxu0
        %v7601 = vpop.f32.mrf.mxu0
        %v7602 = vadd.f32 0.0, %v7601
        %v7603 = vpop.f32.mrf.mxu0
        %7604 = vdwg.mxu0
        %v7605 = vadd.f32 %v7143, %v7463
        %v7606 = vadd.f32 %v7144, %v7466
        %v7607 = vadd.f32 %v7145, %v7471
        %v7608 = vadd.f32 %v7146, %v7474
        %v7609 = vadd.f32 %v7147, %v7479
        %v7610 = vadd.f32 %v7148, %v7482
        %v7611 = vadd.f32 %v7149, %v7487
        %v7612 = vadd.f32 %v7150, %v7490
        %v7613 = vadd.f32 %v7151, %v7495
        %v7614 = vadd.f32 %v7152, %v7498
        %v7615 = vadd.f32 %v7153, %v7503
        %v7616 = vadd.f32 %v7154, %v7506
        %v7617 = vadd.f32 %v7155, %v7511
        %v7618 = vadd.f32 %v7156, %v7514
        %v7619 = vadd.f32 %v7157, %v7519
        %v7620 = vadd.f32 %v7158, %v7522
        %v7621 = vadd.f32 %v7159, %v7527
        %v7622 = vadd.f32 %v7160, %v7530
        %v7623 = vadd.f32 %v7161, %v7535
        %v7624 = vadd.f32 %v7162, %v7538
        %v7625 = vadd.f32 %v7163, %v7543
        %v7626 = vadd.f32 %v7164, %v7546
        %v7627 = vadd.f32 %v7165, %v7551
        %v7628 = vadd.f32 %v7166, %v7554
        %v7629 = vadd.f32 %v7167, %v7559
        %v7630 = vadd.f32 %v7168, %v7562
        %v7631 = vadd.f32 %v7169, %v7567
        %v7632 = vadd.f32 %v7170, %v7570
        %v7633 = vadd.f32 %v7171, %v7575
        %v7634 = vadd.f32 %v7172, %v7578
        %v7635 = vadd.f32 %v7173, %v7583
        %v7636 = vadd.f32 %v7174, %v7586
        %v7637 = vadd.f32 %v7175, %v7591
        %v7638 = vadd.f32 %v7176, %v7594
        %v7639 = vadd.f32 %v7177, %v7599
        %v7640 = vadd.f32 %v7178, %v7602
        %v7641 = vld [vmem:[#allocation2 + $0xa0] sm:$0x7]
        %v7642 = vld [vmem:[#allocation3 + $0x1c0] sm:$0xf]
        %v7643 = vld [vmem:[#allocation3 + $0x1c4] sm:$0xf]
        %v7644 = vld [vmem:[#allocation3 + $0x1c8] sm:$0xf]
        %v7645 = vld [vmem:[#allocation3 + $0x1cc] sm:$0xf]
        %v7646 = vld [vmem:[#allocation3 + $0x1d0] sm:$0xf]
        %v7647 = vld [vmem:[#allocation3 + $0x1d4] sm:$0xf]
        %v7648 = vld [vmem:[#allocation3 + $0x1d8] sm:$0xf]
        %v7649 = vld [vmem:[#allocation3 + $0x1dc] sm:$0xf]
        %v7650 = vld [vmem:[#allocation3 + $0x1e0] sm:$0xf]
        %v7651 = vld [vmem:[#allocation3 + $0x1e4] sm:$0xf]
        %v7652 = vld [vmem:[#allocation3 + $0x1e8] sm:$0xf]
        %v7653 = vld [vmem:[#allocation3 + $0x1ec] sm:$0xf]
        %v7654 = vld [vmem:[#allocation3 + $0x1f0] sm:$0xf]
        %v7655 = vld [vmem:[#allocation3 + $0x1f4] sm:$0xf]
        %v7656 = vld [vmem:[#allocation3 + $0x1f8] sm:$0xf]
        %v7657 = vld [vmem:[#allocation3 + $0x1fc] sm:$0xf]
        %v7659 = vunpack.c.l.b16 %v7641
        %v7660 = vpack.c.b16 %v7659, %v7659
        %v7662 = vshrl.u32 %v7306, 16
        %v7664 = vrot.slane %v7662, 2
        %v7665 = vshll.u32 %v7306, 16
        %v7667 = vrot.slane %v7665, 3
        %v7668 = vor.u32 %v7664, %v7667
        %v7670 = vshrl.u32 %v7307, 16
        %v7672 = vrot.slane %v7670, 2
        %v7673 = vshll.u32 %v7307, 16
        %v7675 = vrot.slane %v7673, 3
        %v7676 = vor.u32 %v7672, %v7675
        %v7677 = vsel %vm3330, %v7668, %v7676
        %v7679 = vshrl.u32 %v7308, 16
        %v7681 = vrot.slane %v7679, 2
        %v7682 = vshll.u32 %v7308, 16
        %v7684 = vrot.slane %v7682, 3
        %v7685 = vor.u32 %v7681, %v7684
        %v7686 = vsel %vm3330, %v7676, %v7685
        %v7688 = vshrl.u32 %v7309, 16
        %v7690 = vrot.slane %v7688, 2
        %v7691 = vshll.u32 %v7309, 16
        %v7693 = vrot.slane %v7691, 3
        %v7694 = vor.u32 %v7690, %v7693
        %v7695 = vsel %vm3330, %v7685, %v7694
        %v7697 = vshrl.u32 %v7310, 16
        %v7699 = vrot.slane %v7697, 2
        %v7700 = vshll.u32 %v7310, 16
        %v7702 = vrot.slane %v7700, 3
        %v7703 = vor.u32 %v7699, %v7702
        %v7704 = vsel %vm3330, %v7694, %v7703
        %v7706 = vshrl.u32 %v7311, 16
        %v7708 = vrot.slane %v7706, 2
        %v7709 = vshll.u32 %v7311, 16
        %v7711 = vrot.slane %v7709, 3
        %v7712 = vor.u32 %v7708, %v7711
        %v7713 = vsel %vm3330, %v7703, %v7712
        %v7715 = vshrl.u32 %v7312, 16
        %v7717 = vrot.slane %v7715, 2
        %v7718 = vshll.u32 %v7312, 16
        %v7720 = vrot.slane %v7718, 3
        %v7721 = vor.u32 %v7717, %v7720
        %v7722 = vsel %vm3330, %v7712, %v7721
        %v7724 = vshrl.u32 %v7313, 16
        %v7726 = vrot.slane %v7724, 2
        %v7727 = vshll.u32 %v7313, 16
        %v7729 = vrot.slane %v7727, 3
        %v7730 = vor.u32 %v7726, %v7729
        %v7731 = vsel %vm3330, %v7721, %v7730
        %v7733 = vshrl.u32 %v7314, 16
        %v7735 = vrot.slane %v7733, 2
        %v7736 = vshll.u32 %v7314, 16
        %v7738 = vrot.slane %v7736, 3
        %v7739 = vor.u32 %v7735, %v7738
        %v7740 = vsel %vm3330, %v7730, %v7739
        %v7742 = vshrl.u32 %v7315, 16
        %v7744 = vrot.slane %v7742, 2
        %v7745 = vshll.u32 %v7315, 16
        %v7747 = vrot.slane %v7745, 3
        %v7748 = vor.u32 %v7744, %v7747
        %v7749 = vsel %vm3330, %v7739, %v7748
        %v7751 = vshrl.u32 %v7316, 16
        %v7753 = vrot.slane %v7751, 2
        %v7754 = vshll.u32 %v7316, 16
        %v7756 = vrot.slane %v7754, 3
        %v7757 = vor.u32 %v7753, %v7756
        %v7758 = vsel %vm3330, %v7748, %v7757
        %v7760 = vshrl.u32 %v7317, 16
        %v7762 = vrot.slane %v7760, 2
        %v7763 = vshll.u32 %v7317, 16
        %v7765 = vrot.slane %v7763, 3
        %v7766 = vor.u32 %v7762, %v7765
        %v7767 = vsel %vm3330, %v7757, %v7766
        %v7769 = vshrl.u32 %v7318, 16
        %v7771 = vrot.slane %v7769, 2
        %v7772 = vshll.u32 %v7318, 16
        %v7774 = vrot.slane %v7772, 3
        %v7775 = vor.u32 %v7771, %v7774
        %v7776 = vsel %vm3330, %v7766, %v7775
        %v7778 = vshrl.u32 %v7319, 16
        %v7780 = vrot.slane %v7778, 2
        %v7781 = vshll.u32 %v7319, 16
        %v7783 = vrot.slane %v7781, 3
        %v7784 = vor.u32 %v7780, %v7783
        %v7785 = vsel %vm3330, %v7775, %v7784
        %v7787 = vshrl.u32 %v7320, 16
        %v7789 = vrot.slane %v7787, 2
        %v7790 = vshll.u32 %v7320, 16
        %v7792 = vrot.slane %v7790, 3
        %v7793 = vor.u32 %v7789, %v7792
        %v7794 = vsel %vm3330, %v7784, %v7793
        %v7796 = vshrl.u32 %v7321, 16
        %v7798 = vrot.slane %v7796, 2
        %v7799 = vshll.u32 %v7321, 16
        %v7801 = vrot.slane %v7799, 3
        %v7802 = vor.u32 %v7798, %v7801
        %v7803 = vsel %vm3330, %v7793, %v7802
        %v7805 = vshrl.u32 %v7322, 16
        %v7807 = vrot.slane %v7805, 2
        %v7808 = vshll.u32 %v7322, 16
        %v7810 = vrot.slane %v7808, 3
        %v7811 = vor.u32 %v7807, %v7810
        %v7812 = vsel %vm3330, %v7802, %v7811
        %v7814 = vshrl.u32 %v7323, 16
        %v7816 = vrot.slane %v7814, 2
        %v7817 = vshll.u32 %v7323, 16
        %v7819 = vrot.slane %v7817, 3
        %v7820 = vor.u32 %v7816, %v7819
        %v7821 = vsel %vm3330, %v7811, %v7820
        %v7823 = vshrl.u32 %v7660, 16
        %v7825 = vrot.slane %v7823, 2
        %v7826 = vshll.u32 %v7660, 16
        %v7828 = vrot.slane %v7826, 3
        %v7829 = vor.u32 %v7825, %v7828
        %v7830 = vsel %vm3330, %v7820, %v7829
        %v7865 = vunpack.c.l.b16 %v7642
        %v7866 = vunpack.c.l.b16 %v7643
        %v7867 = vunpack.c.l.b16 %v7644
        %v7868 = vunpack.c.l.b16 %v7645
        %v7869 = vunpack.c.l.b16 %v7646
        %v7870 = vunpack.c.l.b16 %v7647
        %v7871 = vunpack.c.l.b16 %v7648
        %v7872 = vunpack.c.l.b16 %v7649
        %v7873 = vunpack.c.l.b16 %v7650
        %v7874 = vunpack.c.l.b16 %v7651
        %v7875 = vunpack.c.l.b16 %v7652
        %v7876 = vunpack.c.l.b16 %v7653
        %v7877 = vunpack.c.l.b16 %v7654
        %v7878 = vunpack.c.l.b16 %v7655
        %v7879 = vunpack.c.l.b16 %v7656
        %v7880 = vunpack.c.l.b16 %v7657
        %v7881 = vpack.c.b16 %v7866, %v7865
        %v7882 = vpack.c.b16 %v7868, %v7867
        %v7883 = vpack.c.b16 %v7870, %v7869
        %v7884 = vpack.c.b16 %v7872, %v7871
        %v7885 = vpack.c.b16 %v7874, %v7873
        %v7886 = vpack.c.b16 %v7876, %v7875
        %v7887 = vpack.c.b16 %v7878, %v7877
        %v7888 = vpack.c.b16 %v7880, %v7879
        %7897 = vmatprep.subr.bf16.mxu0 0
        %7898 = vmatpush1.bf16.msra.mxu0 %v7888
        %7899 = vmatprep.subr.bf16.mxu0 0
        %7900 = vmatpush1.bf16.msra.mxu0 %v7887
        %7901 = vmatprep.subr.bf16.mxu0 0
        %7902 = vmatpush1.bf16.msra.mxu0 %v7886
        %7903 = vmatprep.subr.bf16.mxu0 0
        %7904 = vmatpush1.bf16.msra.mxu0 %v7885
        %7905 = vmatprep.subr.bf16.mxu0 0
        %7906 = vmatpush1.bf16.msra.mxu0 %v7884
        %7907 = vmatprep.subr.bf16.mxu0 0
        %7908 = vmatpush1.bf16.msra.mxu0 %v7883
        %7909 = vmatprep.subr.bf16.mxu0 0
        %7910 = vmatpush1.bf16.msra.mxu0 %v7882
        %7911 = vmatprep.subr.bf16.mxu0 0
        %7912 = vmatpush1.bf16.msra.mxu0 %v7881
        %7913 = vmatprep.subr.bf16.mxu0 0
        %7914 = vmatpush2.bf16.msra.mxu0 0
        %7915 = vmatprep.subr.bf16.mxu0 0
        %7916 = vmatpush2.bf16.msra.mxu0 0
        %7917 = vmatprep.subr.bf16.mxu0 0
        %7918 = vmatpush2.bf16.msra.mxu0 0
        %7919 = vmatprep.subr.bf16.mxu0 0
        %7920 = vmatpush2.bf16.msra.mxu0 0
        %7921 = vmatprep.subr.bf16.mxu0 0
        %7922 = vmatpush2.bf16.msra.mxu0 0
        %7923 = vmatprep.subr.bf16.mxu0 0
        %7924 = vmatpush2.bf16.msra.mxu0 0
        %7925 = vmatprep.subr.bf16.mxu0 0
        %7926 = vmatpush2.bf16.msra.mxu0 0
        %7927 = vmatprep.subr.bf16.mxu0 0
        %7928 = vmatpush2.bf16.msra.mxu0 0
        %7929 = vmatprep.mubr.bf16.mxu0 0
        %7930 = vmatmul.mubr.bf16.gmra.mxu0 %v7677
        %v7931 = vpop.f32.mrf.mxu0
        %v7932 = vadd.f32 0.0, %v7931
        %v7933 = vpop.f32.mrf.mxu0
        %v7934 = vpop.f32.mrf.mxu0
        %v7935 = vadd.f32 0.0, %v7934
        %v7936 = vpop.f32.mrf.mxu0
        %7937 = vmatprep.mubr.bf16.mxu0 0
        %7938 = vmatmul.mubr.bf16.gmra.mxu0 %v7686
        %v7939 = vpop.f32.mrf.mxu0
        %v7940 = vadd.f32 0.0, %v7939
        %v7941 = vpop.f32.mrf.mxu0
        %v7942 = vpop.f32.mrf.mxu0
        %v7943 = vadd.f32 0.0, %v7942
        %v7944 = vpop.f32.mrf.mxu0
        %7945 = vmatprep.mubr.bf16.mxu0 0
        %7946 = vmatmul.mubr.bf16.gmra.mxu0 %v7695
        %v7947 = vpop.f32.mrf.mxu0
        %v7948 = vadd.f32 0.0, %v7947
        %v7949 = vpop.f32.mrf.mxu0
        %v7950 = vpop.f32.mrf.mxu0
        %v7951 = vadd.f32 0.0, %v7950
        %v7952 = vpop.f32.mrf.mxu0
        %7953 = vmatprep.mubr.bf16.mxu0 0
        %7954 = vmatmul.mubr.bf16.gmra.mxu0 %v7704
        %v7955 = vpop.f32.mrf.mxu0
        %v7956 = vadd.f32 0.0, %v7955
        %v7957 = vpop.f32.mrf.mxu0
        %v7958 = vpop.f32.mrf.mxu0
        %v7959 = vadd.f32 0.0, %v7958
        %v7960 = vpop.f32.mrf.mxu0
        %7961 = vmatprep.mubr.bf16.mxu0 0
        %7962 = vmatmul.mubr.bf16.gmra.mxu0 %v7713
        %v7963 = vpop.f32.mrf.mxu0
        %v7964 = vadd.f32 0.0, %v7963
        %v7965 = vpop.f32.mrf.mxu0
        %v7966 = vpop.f32.mrf.mxu0
        %v7967 = vadd.f32 0.0, %v7966
        %v7968 = vpop.f32.mrf.mxu0
        %7969 = vmatprep.mubr.bf16.mxu0 0
        %7970 = vmatmul.mubr.bf16.gmra.mxu0 %v7722
        %v7971 = vpop.f32.mrf.mxu0
        %v7972 = vadd.f32 0.0, %v7971
        %v7973 = vpop.f32.mrf.mxu0
        %v7974 = vpop.f32.mrf.mxu0
        %v7975 = vadd.f32 0.0, %v7974
        %v7976 = vpop.f32.mrf.mxu0
        %7977 = vmatprep.mubr.bf16.mxu0 0
        %7978 = vmatmul.mubr.bf16.gmra.mxu0 %v7731
        %v7979 = vpop.f32.mrf.mxu0
        %v7980 = vadd.f32 0.0, %v7979
        %v7981 = vpop.f32.mrf.mxu0
        %v7982 = vpop.f32.mrf.mxu0
        %v7983 = vadd.f32 0.0, %v7982
        %v7984 = vpop.f32.mrf.mxu0
        %7985 = vmatprep.mubr.bf16.mxu0 0
        %7986 = vmatmul.mubr.bf16.gmra.mxu0 %v7740
        %v7987 = vpop.f32.mrf.mxu0
        %v7988 = vadd.f32 0.0, %v7987
        %v7989 = vpop.f32.mrf.mxu0
        %v7990 = vpop.f32.mrf.mxu0
        %v7991 = vadd.f32 0.0, %v7990
        %v7992 = vpop.f32.mrf.mxu0
        %7993 = vmatprep.mubr.bf16.mxu0 0
        %7994 = vmatmul.mubr.bf16.gmra.mxu0 %v7749
        %v7995 = vpop.f32.mrf.mxu0
        %v7996 = vadd.f32 0.0, %v7995
        %v7997 = vpop.f32.mrf.mxu0
        %v7998 = vpop.f32.mrf.mxu0
        %v7999 = vadd.f32 0.0, %v7998
        %v8000 = vpop.f32.mrf.mxu0
        %8001 = vmatprep.mubr.bf16.mxu0 0
        %8002 = vmatmul.mubr.bf16.gmra.mxu0 %v7758
        %v8003 = vpop.f32.mrf.mxu0
        %v8004 = vadd.f32 0.0, %v8003
        %v8005 = vpop.f32.mrf.mxu0
        %v8006 = vpop.f32.mrf.mxu0
        %v8007 = vadd.f32 0.0, %v8006
        %v8008 = vpop.f32.mrf.mxu0
        %8009 = vmatprep.mubr.bf16.mxu0 0
        %8010 = vmatmul.mubr.bf16.gmra.mxu0 %v7767
        %v8011 = vpop.f32.mrf.mxu0
        %v8012 = vadd.f32 0.0, %v8011
        %v8013 = vpop.f32.mrf.mxu0
        %v8014 = vpop.f32.mrf.mxu0
        %v8015 = vadd.f32 0.0, %v8014
        %v8016 = vpop.f32.mrf.mxu0
        %8017 = vmatprep.mubr.bf16.mxu0 0
        %8018 = vmatmul.mubr.bf16.gmra.mxu0 %v7776
        %v8019 = vpop.f32.mrf.mxu0
        %v8020 = vadd.f32 0.0, %v8019
        %v8021 = vpop.f32.mrf.mxu0
        %v8022 = vpop.f32.mrf.mxu0
        %v8023 = vadd.f32 0.0, %v8022
        %v8024 = vpop.f32.mrf.mxu0
        %8025 = vmatprep.mubr.bf16.mxu0 0
        %8026 = vmatmul.mubr.bf16.gmra.mxu0 %v7785
        %v8027 = vpop.f32.mrf.mxu0
        %v8028 = vadd.f32 0.0, %v8027
        %v8029 = vpop.f32.mrf.mxu0
        %v8030 = vpop.f32.mrf.mxu0
        %v8031 = vadd.f32 0.0, %v8030
        %v8032 = vpop.f32.mrf.mxu0
        %8033 = vmatprep.mubr.bf16.mxu0 0
        %8034 = vmatmul.mubr.bf16.gmra.mxu0 %v7794
        %v8035 = vpop.f32.mrf.mxu0
        %v8036 = vadd.f32 0.0, %v8035
        %v8037 = vpop.f32.mrf.mxu0
        %v8038 = vpop.f32.mrf.mxu0
        %v8039 = vadd.f32 0.0, %v8038
        %v8040 = vpop.f32.mrf.mxu0
        %8041 = vmatprep.mubr.bf16.mxu0 0
        %8042 = vmatmul.mubr.bf16.gmra.mxu0 %v7803
        %v8043 = vpop.f32.mrf.mxu0
        %v8044 = vadd.f32 0.0, %v8043
        %v8045 = vpop.f32.mrf.mxu0
        %v8046 = vpop.f32.mrf.mxu0
        %v8047 = vadd.f32 0.0, %v8046
        %v8048 = vpop.f32.mrf.mxu0
        %8049 = vmatprep.mubr.bf16.mxu0 0
        %8050 = vmatmul.mubr.bf16.gmra.mxu0 %v7812
        %v8051 = vpop.f32.mrf.mxu0
        %v8052 = vadd.f32 0.0, %v8051
        %v8053 = vpop.f32.mrf.mxu0
        %v8054 = vpop.f32.mrf.mxu0
        %v8055 = vadd.f32 0.0, %v8054
        %v8056 = vpop.f32.mrf.mxu0
        %8057 = vmatprep.mubr.bf16.mxu0 0
        %8058 = vmatmul.mubr.bf16.gmra.mxu0 %v7821
        %v8059 = vpop.f32.mrf.mxu0
        %v8060 = vadd.f32 0.0, %v8059
        %v8061 = vpop.f32.mrf.mxu0
        %v8062 = vpop.f32.mrf.mxu0
        %v8063 = vadd.f32 0.0, %v8062
        %v8064 = vpop.f32.mrf.mxu0
        %8065 = vmatprep.mubr.bf16.mxu0 0
        %8066 = vmatmul.mubr.bf16.gmra.mxu0 %v7830
        %v8067 = vpop.f32.mrf.mxu0
        %v8068 = vadd.f32 0.0, %v8067
        %v8069 = vpop.f32.mrf.mxu0
        %v8070 = vpop.f32.mrf.mxu0
        %v8071 = vadd.f32 0.0, %v8070
        %v8072 = vpop.f32.mrf.mxu0
        %8073 = vdwg.mxu0
        %v8074 = vadd.f32 %v7605, %v7932
        %v8075 = vadd.f32 %v7606, %v7935
        %v8076 = vadd.f32 %v7607, %v7940
        %v8077 = vadd.f32 %v7608, %v7943
        %v8078 = vadd.f32 %v7609, %v7948
        %v8079 = vadd.f32 %v7610, %v7951
        %v8080 = vadd.f32 %v7611, %v7956
        %v8081 = vadd.f32 %v7612, %v7959
        %v8082 = vadd.f32 %v7613, %v7964
        %v8083 = vadd.f32 %v7614, %v7967
        %v8084 = vadd.f32 %v7615, %v7972
        %v8085 = vadd.f32 %v7616, %v7975
        %v8086 = vadd.f32 %v7617, %v7980
        %v8087 = vadd.f32 %v7618, %v7983
        %v8088 = vadd.f32 %v7619, %v7988
        %v8089 = vadd.f32 %v7620, %v7991
        %v8090 = vadd.f32 %v7621, %v7996
        %v8091 = vadd.f32 %v7622, %v7999
        %v8092 = vadd.f32 %v7623, %v8004
        %v8093 = vadd.f32 %v7624, %v8007
        %v8094 = vadd.f32 %v7625, %v8012
        %v8095 = vadd.f32 %v7626, %v8015
        %v8096 = vadd.f32 %v7627, %v8020
        %v8097 = vadd.f32 %v7628, %v8023
        %v8098 = vadd.f32 %v7629, %v8028
        %v8099 = vadd.f32 %v7630, %v8031
        %v8100 = vadd.f32 %v7631, %v8036
        %v8101 = vadd.f32 %v7632, %v8039
        %v8102 = vadd.f32 %v7633, %v8044
        %v8103 = vadd.f32 %v7634, %v8047
        %v8104 = vadd.f32 %v7635, %v8052
        %v8105 = vadd.f32 %v7636, %v8055
        %v8106 = vadd.f32 %v7637, %v8060
        %v8107 = vadd.f32 %v7638, %v8063
        %v8108 = vadd.f32 %v7639, %v8068
        %v8109 = vadd.f32 %v7640, %v8071
        %v8110 = vld [vmem:[#allocation2 + $0x10] sm:$0x8]
        %v8111 = vld [vmem:[#allocation3 + $0x200] sm:$0xf]
        %v8112 = vld [vmem:[#allocation3 + $0x204] sm:$0xf]
        %v8113 = vld [vmem:[#allocation3 + $0x208] sm:$0xf]
        %v8114 = vld [vmem:[#allocation3 + $0x20c] sm:$0xf]
        %v8115 = vld [vmem:[#allocation3 + $0x210] sm:$0xf]
        %v8116 = vld [vmem:[#allocation3 + $0x214] sm:$0xf]
        %v8117 = vld [vmem:[#allocation3 + $0x218] sm:$0xf]
        %v8118 = vld [vmem:[#allocation3 + $0x21c] sm:$0xf]
        %v8119 = vld [vmem:[#allocation3 + $0x220] sm:$0xf]
        %v8120 = vld [vmem:[#allocation3 + $0x224] sm:$0xf]
        %v8121 = vld [vmem:[#allocation3 + $0x228] sm:$0xf]
        %v8122 = vld [vmem:[#allocation3 + $0x22c] sm:$0xf]
        %v8123 = vld [vmem:[#allocation3 + $0x230] sm:$0xf]
        %v8124 = vld [vmem:[#allocation3 + $0x234] sm:$0xf]
        %v8125 = vld [vmem:[#allocation3 + $0x238] sm:$0xf]
        %v8126 = vld [vmem:[#allocation3 + $0x23c] sm:$0xf]
        %v8128 = vunpack.c.l.b16 %v8110
        %v8129 = vpack.c.b16 %v7270, %v8128
        %v8130 = vrot.slane %v8129, 3
        %v8131 = vrot.slane %v7307, 3
        %v8132 = vsel %vm3711, %v8130, %v8131
        %v8133 = vrot.slane %v7308, 3
        %v8134 = vsel %vm3711, %v8131, %v8133
        %v8135 = vrot.slane %v7309, 3
        %v8136 = vsel %vm3711, %v8133, %v8135
        %v8137 = vrot.slane %v7310, 3
        %v8138 = vsel %vm3711, %v8135, %v8137
        %v8139 = vrot.slane %v7311, 3
        %v8140 = vsel %vm3711, %v8137, %v8139
        %v8141 = vrot.slane %v7312, 3
        %v8142 = vsel %vm3711, %v8139, %v8141
        %v8143 = vrot.slane %v7313, 3
        %v8144 = vsel %vm3711, %v8141, %v8143
        %v8145 = vrot.slane %v7314, 3
        %v8146 = vsel %vm3711, %v8143, %v8145
        %v8147 = vrot.slane %v7315, 3
        %v8148 = vsel %vm3711, %v8145, %v8147
        %v8149 = vrot.slane %v7316, 3
        %v8150 = vsel %vm3711, %v8147, %v8149
        %v8151 = vrot.slane %v7317, 3
        %v8152 = vsel %vm3711, %v8149, %v8151
        %v8153 = vrot.slane %v7318, 3
        %v8154 = vsel %vm3711, %v8151, %v8153
        %v8155 = vrot.slane %v7319, 3
        %v8156 = vsel %vm3711, %v8153, %v8155
        %v8157 = vrot.slane %v7320, 3
        %v8158 = vsel %vm3711, %v8155, %v8157
        %v8159 = vrot.slane %v7321, 3
        %v8160 = vsel %vm3711, %v8157, %v8159
        %v8161 = vrot.slane %v7322, 3
        %v8162 = vsel %vm3711, %v8159, %v8161
        %v8163 = vrot.slane %v7323, 3
        %v8164 = vsel %vm3711, %v8161, %v8163
        %v8165 = vrot.slane %v7660, 3
        %v8166 = vsel %vm3711, %v8163, %v8165
        %v8201 = vunpack.c.l.b16 %v8111
        %v8202 = vunpack.c.l.b16 %v8112
        %v8203 = vunpack.c.l.b16 %v8113
        %v8204 = vunpack.c.l.b16 %v8114
        %v8205 = vunpack.c.l.b16 %v8115
        %v8206 = vunpack.c.l.b16 %v8116
        %v8207 = vunpack.c.l.b16 %v8117
        %v8208 = vunpack.c.l.b16 %v8118
        %v8209 = vunpack.c.l.b16 %v8119
        %v8210 = vunpack.c.l.b16 %v8120
        %v8211 = vunpack.c.l.b16 %v8121
        %v8212 = vunpack.c.l.b16 %v8122
        %v8213 = vunpack.c.l.b16 %v8123
        %v8214 = vunpack.c.l.b16 %v8124
        %v8215 = vunpack.c.l.b16 %v8125
        %v8216 = vunpack.c.l.b16 %v8126
        %v8217 = vpack.c.b16 %v8202, %v8201
        %v8218 = vpack.c.b16 %v8204, %v8203
        %v8219 = vpack.c.b16 %v8206, %v8205
        %v8220 = vpack.c.b16 %v8208, %v8207
        %v8221 = vpack.c.b16 %v8210, %v8209
        %v8222 = vpack.c.b16 %v8212, %v8211
        %v8223 = vpack.c.b16 %v8214, %v8213
        %v8224 = vpack.c.b16 %v8216, %v8215
        %8233 = vmatprep.subr.bf16.mxu0 0
        %8234 = vmatpush1.bf16.msra.mxu0 %v8224
        %8235 = vmatprep.subr.bf16.mxu0 0
        %8236 = vmatpush1.bf16.msra.mxu0 %v8223
        %8237 = vmatprep.subr.bf16.mxu0 0
        %8238 = vmatpush1.bf16.msra.mxu0 %v8222
        %8239 = vmatprep.subr.bf16.mxu0 0
        %8240 = vmatpush1.bf16.msra.mxu0 %v8221
        %8241 = vmatprep.subr.bf16.mxu0 0
        %8242 = vmatpush1.bf16.msra.mxu0 %v8220
        %8243 = vmatprep.subr.bf16.mxu0 0
        %8244 = vmatpush1.bf16.msra.mxu0 %v8219
        %8245 = vmatprep.subr.bf16.mxu0 0
        %8246 = vmatpush1.bf16.msra.mxu0 %v8218
        %8247 = vmatprep.subr.bf16.mxu0 0
        %8248 = vmatpush1.bf16.msra.mxu0 %v8217
        %8249 = vmatprep.subr.bf16.mxu0 0
        %8250 = vmatpush2.bf16.msra.mxu0 0
        %8251 = vmatprep.subr.bf16.mxu0 0
        %8252 = vmatpush2.bf16.msra.mxu0 0
        %8253 = vmatprep.subr.bf16.mxu0 0
        %8254 = vmatpush2.bf16.msra.mxu0 0
        %8255 = vmatprep.subr.bf16.mxu0 0
        %8256 = vmatpush2.bf16.msra.mxu0 0
        %8257 = vmatprep.subr.bf16.mxu0 0
        %8258 = vmatpush2.bf16.msra.mxu0 0
        %8259 = vmatprep.subr.bf16.mxu0 0
        %8260 = vmatpush2.bf16.msra.mxu0 0
        %8261 = vmatprep.subr.bf16.mxu0 0
        %8262 = vmatpush2.bf16.msra.mxu0 0
        %8263 = vmatprep.subr.bf16.mxu0 0
        %8264 = vmatpush2.bf16.msra.mxu0 0
        %8265 = vmatprep.mubr.bf16.mxu0 0
        %8266 = vmatmul.mubr.bf16.gmra.mxu0 %v8132
        %v8267 = vpop.f32.mrf.mxu0
        %v8268 = vadd.f32 0.0, %v8267
        %v8269 = vpop.f32.mrf.mxu0
        %v8270 = vpop.f32.mrf.mxu0
        %v8271 = vadd.f32 0.0, %v8270
        %v8272 = vpop.f32.mrf.mxu0
        %8273 = vmatprep.mubr.bf16.mxu0 0
        %8274 = vmatmul.mubr.bf16.gmra.mxu0 %v8134
        %v8275 = vpop.f32.mrf.mxu0
        %v8276 = vadd.f32 0.0, %v8275
        %v8277 = vpop.f32.mrf.mxu0
        %v8278 = vpop.f32.mrf.mxu0
        %v8279 = vadd.f32 0.0, %v8278
        %v8280 = vpop.f32.mrf.mxu0
        %8281 = vmatprep.mubr.bf16.mxu0 0
        %8282 = vmatmul.mubr.bf16.gmra.mxu0 %v8136
        %v8283 = vpop.f32.mrf.mxu0
        %v8284 = vadd.f32 0.0, %v8283
        %v8285 = vpop.f32.mrf.mxu0
        %v8286 = vpop.f32.mrf.mxu0
        %v8287 = vadd.f32 0.0, %v8286
        %v8288 = vpop.f32.mrf.mxu0
        %8289 = vmatprep.mubr.bf16.mxu0 0
        %8290 = vmatmul.mubr.bf16.gmra.mxu0 %v8138
        %v8291 = vpop.f32.mrf.mxu0
        %v8292 = vadd.f32 0.0, %v8291
        %v8293 = vpop.f32.mrf.mxu0
        %v8294 = vpop.f32.mrf.mxu0
        %v8295 = vadd.f32 0.0, %v8294
        %v8296 = vpop.f32.mrf.mxu0
        %8297 = vmatprep.mubr.bf16.mxu0 0
        %8298 = vmatmul.mubr.bf16.gmra.mxu0 %v8140
        %v8299 = vpop.f32.mrf.mxu0
        %v8300 = vadd.f32 0.0, %v8299
        %v8301 = vpop.f32.mrf.mxu0
        %v8302 = vpop.f32.mrf.mxu0
        %v8303 = vadd.f32 0.0, %v8302
        %v8304 = vpop.f32.mrf.mxu0
        %8305 = vmatprep.mubr.bf16.mxu0 0
        %8306 = vmatmul.mubr.bf16.gmra.mxu0 %v8142
        %v8307 = vpop.f32.mrf.mxu0
        %v8308 = vadd.f32 0.0, %v8307
        %v8309 = vpop.f32.mrf.mxu0
        %v8310 = vpop.f32.mrf.mxu0
        %v8311 = vadd.f32 0.0, %v8310
        %v8312 = vpop.f32.mrf.mxu0
        %8313 = vmatprep.mubr.bf16.mxu0 0
        %8314 = vmatmul.mubr.bf16.gmra.mxu0 %v8144
        %v8315 = vpop.f32.mrf.mxu0
        %v8316 = vadd.f32 0.0, %v8315
        %v8317 = vpop.f32.mrf.mxu0
        %v8318 = vpop.f32.mrf.mxu0
        %v8319 = vadd.f32 0.0, %v8318
        %v8320 = vpop.f32.mrf.mxu0
        %8321 = vmatprep.mubr.bf16.mxu0 0
        %8322 = vmatmul.mubr.bf16.gmra.mxu0 %v8146
        %v8323 = vpop.f32.mrf.mxu0
        %v8324 = vadd.f32 0.0, %v8323
        %v8325 = vpop.f32.mrf.mxu0
        %v8326 = vpop.f32.mrf.mxu0
        %v8327 = vadd.f32 0.0, %v8326
        %v8328 = vpop.f32.mrf.mxu0
        %8329 = vmatprep.mubr.bf16.mxu0 0
        %8330 = vmatmul.mubr.bf16.gmra.mxu0 %v8148
        %v8331 = vpop.f32.mrf.mxu0
        %v8332 = vadd.f32 0.0, %v8331
        %v8333 = vpop.f32.mrf.mxu0
        %v8334 = vpop.f32.mrf.mxu0
        %v8335 = vadd.f32 0.0, %v8334
        %v8336 = vpop.f32.mrf.mxu0
        %8337 = vmatprep.mubr.bf16.mxu0 0
        %8338 = vmatmul.mubr.bf16.gmra.mxu0 %v8150
        %v8339 = vpop.f32.mrf.mxu0
        %v8340 = vadd.f32 0.0, %v8339
        %v8341 = vpop.f32.mrf.mxu0
        %v8342 = vpop.f32.mrf.mxu0
        %v8343 = vadd.f32 0.0, %v8342
        %v8344 = vpop.f32.mrf.mxu0
        %8345 = vmatprep.mubr.bf16.mxu0 0
        %8346 = vmatmul.mubr.bf16.gmra.mxu0 %v8152
        %v8347 = vpop.f32.mrf.mxu0
        %v8348 = vadd.f32 0.0, %v8347
        %v8349 = vpop.f32.mrf.mxu0
        %v8350 = vpop.f32.mrf.mxu0
        %v8351 = vadd.f32 0.0, %v8350
        %v8352 = vpop.f32.mrf.mxu0
        %8353 = vmatprep.mubr.bf16.mxu0 0
        %8354 = vmatmul.mubr.bf16.gmra.mxu0 %v8154
        %v8355 = vpop.f32.mrf.mxu0
        %v8356 = vadd.f32 0.0, %v8355
        %v8357 = vpop.f32.mrf.mxu0
        %v8358 = vpop.f32.mrf.mxu0
        %v8359 = vadd.f32 0.0, %v8358
        %v8360 = vpop.f32.mrf.mxu0
        %8361 = vmatprep.mubr.bf16.mxu0 0
        %8362 = vmatmul.mubr.bf16.gmra.mxu0 %v8156
        %v8363 = vpop.f32.mrf.mxu0
        %v8364 = vadd.f32 0.0, %v8363
        %v8365 = vpop.f32.mrf.mxu0
        %v8366 = vpop.f32.mrf.mxu0
        %v8367 = vadd.f32 0.0, %v8366
        %v8368 = vpop.f32.mrf.mxu0
        %8369 = vmatprep.mubr.bf16.mxu0 0
        %8370 = vmatmul.mubr.bf16.gmra.mxu0 %v8158
        %v8371 = vpop.f32.mrf.mxu0
        %v8372 = vadd.f32 0.0, %v8371
        %v8373 = vpop.f32.mrf.mxu0
        %v8374 = vpop.f32.mrf.mxu0
        %v8375 = vadd.f32 0.0, %v8374
        %v8376 = vpop.f32.mrf.mxu0
        %8377 = vmatprep.mubr.bf16.mxu0 0
        %8378 = vmatmul.mubr.bf16.gmra.mxu0 %v8160
        %v8379 = vpop.f32.mrf.mxu0
        %v8380 = vadd.f32 0.0, %v8379
        %v8381 = vpop.f32.mrf.mxu0
        %v8382 = vpop.f32.mrf.mxu0
        %v8383 = vadd.f32 0.0, %v8382
        %v8384 = vpop.f32.mrf.mxu0
        %8385 = vmatprep.mubr.bf16.mxu0 0
        %8386 = vmatmul.mubr.bf16.gmra.mxu0 %v8162
        %v8387 = vpop.f32.mrf.mxu0
        %v8388 = vadd.f32 0.0, %v8387
        %v8389 = vpop.f32.mrf.mxu0
        %v8390 = vpop.f32.mrf.mxu0
        %v8391 = vadd.f32 0.0, %v8390
        %v8392 = vpop.f32.mrf.mxu0
        %8393 = vmatprep.mubr.bf16.mxu0 0
        %8394 = vmatmul.mubr.bf16.gmra.mxu0 %v8164
        %v8395 = vpop.f32.mrf.mxu0
        %v8396 = vadd.f32 0.0, %v8395
        %v8397 = vpop.f32.mrf.mxu0
        %v8398 = vpop.f32.mrf.mxu0
        %v8399 = vadd.f32 0.0, %v8398
        %v8400 = vpop.f32.mrf.mxu0
        %8401 = vmatprep.mubr.bf16.mxu0 0
        %8402 = vmatmul.mubr.bf16.gmra.mxu0 %v8166
        %v8403 = vpop.f32.mrf.mxu0
        %v8404 = vadd.f32 0.0, %v8403
        %v8405 = vpop.f32.mrf.mxu0
        %v8406 = vpop.f32.mrf.mxu0
        %v8407 = vadd.f32 0.0, %v8406
        %v8408 = vpop.f32.mrf.mxu0
        %8409 = vdwg.mxu0
        %v8410 = vadd.f32 %v8074, %v8268
        %v8411 = vadd.f32 %v8075, %v8271
        %v8412 = vadd.f32 %v8076, %v8276
        %v8413 = vadd.f32 %v8077, %v8279
        %v8414 = vadd.f32 %v8078, %v8284
        %v8415 = vadd.f32 %v8079, %v8287
        %v8416 = vadd.f32 %v8080, %v8292
        %v8417 = vadd.f32 %v8081, %v8295
        %v8418 = vadd.f32 %v8082, %v8300
        %v8419 = vadd.f32 %v8083, %v8303
        %v8420 = vadd.f32 %v8084, %v8308
        %v8421 = vadd.f32 %v8085, %v8311
        %v8422 = vadd.f32 %v8086, %v8316
        %v8423 = vadd.f32 %v8087, %v8319
        %v8424 = vadd.f32 %v8088, %v8324
        %v8425 = vadd.f32 %v8089, %v8327
        %v8426 = vadd.f32 %v8090, %v8332
        %v8427 = vadd.f32 %v8091, %v8335
        %v8428 = vadd.f32 %v8092, %v8340
        %v8429 = vadd.f32 %v8093, %v8343
        %v8430 = vadd.f32 %v8094, %v8348
        %v8431 = vadd.f32 %v8095, %v8351
        %v8432 = vadd.f32 %v8096, %v8356
        %v8433 = vadd.f32 %v8097, %v8359
        %v8434 = vadd.f32 %v8098, %v8364
        %v8435 = vadd.f32 %v8099, %v8367
        %v8436 = vadd.f32 %v8100, %v8372
        %v8437 = vadd.f32 %v8101, %v8375
        %v8438 = vadd.f32 %v8102, %v8380
        %v8439 = vadd.f32 %v8103, %v8383
        %v8440 = vadd.f32 %v8104, %v8388
        %v8441 = vadd.f32 %v8105, %v8391
        %v8442 = vadd.f32 %v8106, %v8396
        %v8443 = vadd.f32 %v8107, %v8399
        %v8444 = vadd.f32 %v8108, %v8404
        %v8445 = vadd.f32 %v8109, %v8407
        %v8446 = vunpack.c.l.bf16 %v241
        %v8447 = vunpack.c.l.bf16 %v242
        %v8448 = vunpack.c.l.bf16 %v243
        %v8449 = vunpack.c.l.bf16 %v244
        %v8450 = vunpack.c.l.bf16 %v245
        %v8451 = vunpack.c.l.bf16 %v246
        %v8452 = vunpack.c.l.bf16 %v247
        %v8453 = vunpack.c.l.bf16 %v248
        %v8454 = vunpack.c.l.bf16 %v249
        %v8455 = vunpack.c.l.bf16 %v250
        %v8456 = vunpack.c.l.bf16 %v251
        %v8457 = vunpack.c.l.bf16 %v252
        %v8458 = vunpack.c.l.bf16 %v253
        %v8459 = vunpack.c.l.bf16 %v254
        %v8460 = vunpack.c.l.bf16 %v255
        %v8461 = vunpack.c.l.bf16 %v256
        %v8462 = vunpack.c.l.bf16 %v257
        %v8463 = vunpack.c.l.bf16 %v258
        %v8464 = vunpack.c.l.bf16 %v259
        %v8465 = vunpack.c.l.bf16 %v260
        %v8466 = vunpack.c.l.bf16 %v261
        %v8467 = vunpack.c.l.bf16 %v262
        %v8468 = vunpack.c.l.bf16 %v263
        %v8469 = vunpack.c.l.bf16 %v264
        %v8470 = vunpack.c.l.bf16 %v265
        %v8471 = vunpack.c.l.bf16 %v266
        %v8472 = vunpack.c.l.bf16 %v267
        %v8473 = vunpack.c.l.bf16 %v268
        %v8474 = vunpack.c.l.bf16 %v269
        %v8475 = vunpack.c.l.bf16 %v270
        %v8476 = vunpack.c.l.bf16 %v271
        %v8477 = vunpack.c.l.bf16 %v272
        %v8478 = vunpack.c.l.bf16 %v273
        %v8479 = vunpack.c.l.bf16 %v274
        %v8480 = vunpack.c.l.bf16 %v275
        %v8481 = vunpack.c.l.bf16 %v276
        %v8482 = vunpack.c.l.bf16 %v277
        %v8483 = vld [vmem:[%s4] sm:$0x1]
        %v8485 = vlaneseq
        %v8486 = vshrl.u32 %v8485, 7
        %v8487 = vsub.s32 0, %v8486
        %v8488 = vrot.slane %v8483, %v8487
        %v8490 = vadd.f32 %v8410, %v8488
        %v8491 = vadd.f32 %v8411, %v8488
        %v8492 = vadd.f32 %v8412, %v8488
        %v8493 = vadd.f32 %v8413, %v8488
        %v8494 = vadd.f32 %v8414, %v8488
        %v8495 = vadd.f32 %v8415, %v8488
        %v8496 = vadd.f32 %v8416, %v8488
        %v8497 = vadd.f32 %v8417, %v8488
        %v8498 = vadd.f32 %v8418, %v8488
        %v8499 = vadd.f32 %v8419, %v8488
        %v8500 = vadd.f32 %v8420, %v8488
        %v8501 = vadd.f32 %v8421, %v8488
        %v8502 = vadd.f32 %v8422, %v8488
        %v8503 = vadd.f32 %v8423, %v8488
        %v8504 = vadd.f32 %v8424, %v8488
        %v8505 = vadd.f32 %v8425, %v8488
        %v8506 = vadd.f32 %v8426, %v8488
        %v8507 = vadd.f32 %v8427, %v8488
        %v8508 = vadd.f32 %v8428, %v8488
        %v8509 = vadd.f32 %v8429, %v8488
        %v8510 = vadd.f32 %v8430, %v8488
        %v8511 = vadd.f32 %v8431, %v8488
        %v8512 = vadd.f32 %v8432, %v8488
        %v8513 = vadd.f32 %v8433, %v8488
        %v8514 = vadd.f32 %v8434, %v8488
        %v8515 = vadd.f32 %v8435, %v8488
        %v8516 = vadd.f32 %v8436, %v8488
        %v8517 = vadd.f32 %v8437, %v8488
        %v8518 = vadd.f32 %v8438, %v8488
        %v8519 = vadd.f32 %v8439, %v8488
        %v8520 = vadd.f32 %v8440, %v8488
        %v8521 = vadd.f32 %v8441, %v8488
        %v8522 = vadd.f32 %v8442, %v8488
        %v8523 = vadd.f32 %v8443, %v8488
        %v8524 = vadd.f32 %v8444, %v8488
        %v8525 = vadd.f32 %v8445, %v8488
        %vm8563 = vcmask 1044480
        %v8564 = vrot.slane %v8446, 3
        %v8565 = vrot.slane %v8447, 3
        %v8566 = vsel %vm8563, %v8564, %v8565
        %v8567 = vrot.slane %v8448, 3
        %v8568 = vsel %vm8563, %v8565, %v8567
        %v8569 = vrot.slane %v8449, 3
        %v8570 = vsel %vm8563, %v8567, %v8569
        %v8571 = vrot.slane %v8450, 3
        %v8572 = vsel %vm8563, %v8569, %v8571
        %v8573 = vrot.slane %v8451, 3
        %v8574 = vsel %vm8563, %v8571, %v8573
        %v8575 = vrot.slane %v8452, 3
        %v8576 = vsel %vm8563, %v8573, %v8575
        %v8577 = vrot.slane %v8453, 3
        %v8578 = vsel %vm8563, %v8575, %v8577
        %v8579 = vrot.slane %v8454, 3
        %v8580 = vsel %vm8563, %v8577, %v8579
        %v8581 = vrot.slane %v8455, 3
        %v8582 = vsel %vm8563, %v8579, %v8581
        %v8583 = vrot.slane %v8456, 3
        %v8584 = vsel %vm8563, %v8581, %v8583
        %v8585 = vrot.slane %v8457, 3
        %v8586 = vsel %vm8563, %v8583, %v8585
        %v8587 = vrot.slane %v8458, 3
        %v8588 = vsel %vm8563, %v8585, %v8587
        %v8589 = vrot.slane %v8459, 3
        %v8590 = vsel %vm8563, %v8587, %v8589
        %v8591 = vrot.slane %v8460, 3
        %v8592 = vsel %vm8563, %v8589, %v8591
        %v8593 = vrot.slane %v8461, 3
        %v8594 = vsel %vm8563, %v8591, %v8593
        %v8595 = vrot.slane %v8462, 3
        %v8596 = vsel %vm8563, %v8593, %v8595
        %v8597 = vrot.slane %v8463, 3
        %v8598 = vsel %vm8563, %v8595, %v8597
        %v8599 = vrot.slane %v8464, 3
        %v8600 = vsel %vm8563, %v8597, %v8599
        %v8601 = vrot.slane %v8465, 3
        %v8602 = vsel %vm8563, %v8599, %v8601
        %v8603 = vrot.slane %v8466, 3
        %v8604 = vsel %vm8563, %v8601, %v8603
        %v8605 = vrot.slane %v8467, 3
        %v8606 = vsel %vm8563, %v8603, %v8605
        %v8607 = vrot.slane %v8468, 3
        %v8608 = vsel %vm8563, %v8605, %v8607
        %v8609 = vrot.slane %v8469, 3
        %v8610 = vsel %vm8563, %v8607, %v8609
        %v8611 = vrot.slane %v8470, 3
        %v8612 = vsel %vm8563, %v8609, %v8611
        %v8613 = vrot.slane %v8471, 3
        %v8614 = vsel %vm8563, %v8611, %v8613
        %v8615 = vrot.slane %v8472, 3
        %v8616 = vsel %vm8563, %v8613, %v8615
        %v8617 = vrot.slane %v8473, 3
        %v8618 = vsel %vm8563, %v8615, %v8617
        %v8619 = vrot.slane %v8474, 3
        %v8620 = vsel %vm8563, %v8617, %v8619
        %v8621 = vrot.slane %v8475, 3
        %v8622 = vsel %vm8563, %v8619, %v8621
        %v8623 = vrot.slane %v8476, 3
        %v8624 = vsel %vm8563, %v8621, %v8623
        %v8625 = vrot.slane %v8477, 3
        %v8626 = vsel %vm8563, %v8623, %v8625
        %v8627 = vrot.slane %v8478, 3
        %v8628 = vsel %vm8563, %v8625, %v8627
        %v8629 = vrot.slane %v8479, 3
        %v8630 = vsel %vm8563, %v8627, %v8629
        %v8631 = vrot.slane %v8480, 3
        %v8632 = vsel %vm8563, %v8629, %v8631
        %v8633 = vrot.slane %v8481, 3
        %v8634 = vsel %vm8563, %v8631, %v8633
        %v8635 = vrot.slane %v8482, 3
        %v8636 = vsel %vm8563, %v8633, %v8635
        %v8673 = vadd.f32 %v8490, %v8566
        %v8674 = vadd.f32 %v8491, %v8568
        %v8675 = vadd.f32 %v8492, %v8570
        %v8676 = vadd.f32 %v8493, %v8572
        %v8677 = vadd.f32 %v8494, %v8574
        %v8678 = vadd.f32 %v8495, %v8576
        %v8679 = vadd.f32 %v8496, %v8578
        %v8680 = vadd.f32 %v8497, %v8580
        %v8681 = vadd.f32 %v8498, %v8582
        %v8682 = vadd.f32 %v8499, %v8584
        %v8683 = vadd.f32 %v8500, %v8586
        %v8684 = vadd.f32 %v8501, %v8588
        %v8685 = vadd.f32 %v8502, %v8590
        %v8686 = vadd.f32 %v8503, %v8592
        %v8687 = vadd.f32 %v8504, %v8594
        %v8688 = vadd.f32 %v8505, %v8596
        %v8689 = vadd.f32 %v8506, %v8598
        %v8690 = vadd.f32 %v8507, %v8600
        %v8691 = vadd.f32 %v8508, %v8602
        %v8692 = vadd.f32 %v8509, %v8604
        %v8693 = vadd.f32 %v8510, %v8606
        %v8694 = vadd.f32 %v8511, %v8608
        %v8695 = vadd.f32 %v8512, %v8610
        %v8696 = vadd.f32 %v8513, %v8612
        %v8697 = vadd.f32 %v8514, %v8614
        %v8698 = vadd.f32 %v8515, %v8616
        %v8699 = vadd.f32 %v8516, %v8618
        %v8700 = vadd.f32 %v8517, %v8620
        %v8701 = vadd.f32 %v8518, %v8622
        %v8702 = vadd.f32 %v8519, %v8624
        %v8703 = vadd.f32 %v8520, %v8626
        %v8704 = vadd.f32 %v8521, %v8628
        %v8705 = vadd.f32 %v8522, %v8630
        %v8706 = vadd.f32 %v8523, %v8632
        %v8707 = vadd.f32 %v8524, %v8634
        %v8708 = vadd.f32 %v8525, %v8636
        %v8709 = vmax.f32 %v8673, 0.0
        %v8710 = vmax.f32 %v8674, 0.0
        %v8711 = vmax.f32 %v8675, 0.0
        %v8712 = vmax.f32 %v8676, 0.0
        %v8713 = vmax.f32 %v8677, 0.0
        %v8714 = vmax.f32 %v8678, 0.0
        %v8715 = vmax.f32 %v8679, 0.0
        %v8716 = vmax.f32 %v8680, 0.0
        %v8717 = vmax.f32 %v8681, 0.0
        %v8718 = vmax.f32 %v8682, 0.0
        %v8719 = vmax.f32 %v8683, 0.0
        %v8720 = vmax.f32 %v8684, 0.0
        %v8721 = vmax.f32 %v8685, 0.0
        %v8722 = vmax.f32 %v8686, 0.0
        %v8723 = vmax.f32 %v8687, 0.0
        %v8724 = vmax.f32 %v8688, 0.0
        %v8725 = vmax.f32 %v8689, 0.0
        %v8726 = vmax.f32 %v8690, 0.0
        %v8727 = vmax.f32 %v8691, 0.0
        %v8728 = vmax.f32 %v8692, 0.0
        %v8729 = vmax.f32 %v8693, 0.0
        %v8730 = vmax.f32 %v8694, 0.0
        %v8731 = vmax.f32 %v8695, 0.0
        %v8732 = vmax.f32 %v8696, 0.0
        %v8733 = vmax.f32 %v8697, 0.0
        %v8734 = vmax.f32 %v8698, 0.0
        %v8735 = vmax.f32 %v8699, 0.0
        %v8736 = vmax.f32 %v8700, 0.0
        %v8737 = vmax.f32 %v8701, 0.0
        %v8738 = vmax.f32 %v8702, 0.0
        %v8739 = vmax.f32 %v8703, 0.0
        %v8740 = vmax.f32 %v8704, 0.0
        %v8741 = vmax.f32 %v8705, 0.0
        %v8742 = vmax.f32 %v8706, 0.0
        %v8743 = vmax.f32 %v8707, 0.0
        %v8744 = vmax.f32 %v8708, 0.0
        %v8745 = vpack.c.bf16 %v8710, %v8709
        %v8746 = vpack.c.bf16 %v8712, %v8711
        %v8747 = vpack.c.bf16 %v8714, %v8713
        %v8748 = vpack.c.bf16 %v8716, %v8715
        %v8749 = vpack.c.bf16 %v8718, %v8717
        %v8750 = vpack.c.bf16 %v8720, %v8719
        %v8751 = vpack.c.bf16 %v8722, %v8721
        %v8752 = vpack.c.bf16 %v8724, %v8723
        %v8753 = vpack.c.bf16 %v8726, %v8725
        %v8754 = vpack.c.bf16 %v8728, %v8727
        %v8755 = vpack.c.bf16 %v8730, %v8729
        %v8756 = vpack.c.bf16 %v8732, %v8731
        %v8757 = vpack.c.bf16 %v8734, %v8733
        %v8758 = vpack.c.bf16 %v8736, %v8735
        %v8759 = vpack.c.bf16 %v8738, %v8737
        %v8760 = vpack.c.bf16 %v8740, %v8739
        %v8761 = vpack.c.bf16 %v8742, %v8741
        %v8762 = vpack.c.bf16 %v8744, %v8743
        %v8781 = vunpack.c.l.b16 %v8745
        %v8782 = vunpack.c.h.b16 %v8745
        %v8783 = vunpack.c.l.b16 %v8746
        %v8784 = vunpack.c.h.b16 %v8746
        %v8785 = vunpack.c.l.b16 %v8747
        %v8786 = vunpack.c.h.b16 %v8747
        %v8787 = vunpack.c.l.b16 %v8748
        %v8788 = vunpack.c.h.b16 %v8748
        %v8789 = vunpack.c.l.b16 %v8749
        %v8790 = vunpack.c.h.b16 %v8749
        %v8791 = vunpack.c.l.b16 %v8750
        %v8792 = vunpack.c.h.b16 %v8750
        %v8793 = vunpack.c.l.b16 %v8751
        %v8794 = vunpack.c.h.b16 %v8751
        %v8795 = vunpack.c.l.b16 %v8752
        %v8796 = vunpack.c.h.b16 %v8752
        %v8797 = vunpack.c.l.b16 %v8753
        %v8798 = vunpack.c.h.b16 %v8753
        %v8799 = vunpack.c.l.b16 %v8754
        %v8800 = vunpack.c.h.b16 %v8754
        %v8801 = vunpack.c.l.b16 %v8755
        %v8802 = vunpack.c.h.b16 %v8755
        %v8803 = vunpack.c.l.b16 %v8756
        %v8804 = vunpack.c.h.b16 %v8756
        %v8805 = vunpack.c.l.b16 %v8757
        %v8806 = vunpack.c.h.b16 %v8757
        %v8807 = vunpack.c.l.b16 %v8758
        %v8808 = vunpack.c.h.b16 %v8758
        %v8809 = vunpack.c.l.b16 %v8759
        %v8810 = vunpack.c.h.b16 %v8759
        %v8811 = vunpack.c.l.b16 %v8760
        %v8812 = vunpack.c.h.b16 %v8760
        %v8813 = vunpack.c.l.b16 %v8761
        %v8814 = vunpack.c.h.b16 %v8761
        %v8815 = vunpack.c.l.b16 %v8762
        %v8816 = vunpack.c.h.b16 %v8762
        %v8817 = vpack.c.b16 %v8781, %v8781
        %v8818 = vpack.c.b16 %v8782, %v8782
        %v8819 = vpack.c.b16 %v8783, %v8783
        %v8820 = vpack.c.b16 %v8784, %v8784
        %v8821 = vpack.c.b16 %v8785, %v8785
        %v8822 = vpack.c.b16 %v8786, %v8786
        %v8823 = vpack.c.b16 %v8787, %v8787
        %v8824 = vpack.c.b16 %v8788, %v8788
        %v8825 = vpack.c.b16 %v8789, %v8789
        %v8826 = vpack.c.b16 %v8790, %v8790
        %v8827 = vpack.c.b16 %v8791, %v8791
        %v8828 = vpack.c.b16 %v8792, %v8792
        %v8829 = vpack.c.b16 %v8793, %v8793
        %v8830 = vpack.c.b16 %v8794, %v8794
        %v8831 = vpack.c.b16 %v8795, %v8795
        %v8832 = vpack.c.b16 %v8796, %v8796
        %v8833 = vpack.c.b16 %v8797, %v8797
        %v8834 = vpack.c.b16 %v8798, %v8798
        %v8835 = vpack.c.b16 %v8799, %v8799
        %v8836 = vpack.c.b16 %v8800, %v8800
        %v8837 = vpack.c.b16 %v8801, %v8801
        %v8838 = vpack.c.b16 %v8802, %v8802
        %v8839 = vpack.c.b16 %v8803, %v8803
        %v8840 = vpack.c.b16 %v8804, %v8804
        %v8841 = vpack.c.b16 %v8805, %v8805
        %v8842 = vpack.c.b16 %v8806, %v8806
        %v8843 = vpack.c.b16 %v8807, %v8807
        %v8844 = vpack.c.b16 %v8808, %v8808
        %v8845 = vpack.c.b16 %v8809, %v8809
        %v8846 = vpack.c.b16 %v8810, %v8810
        %v8847 = vpack.c.b16 %v8811, %v8811
        %v8848 = vpack.c.b16 %v8812, %v8812
        %v8849 = vpack.c.b16 %v8813, %v8813
        %v8850 = vpack.c.b16 %v8814, %v8814
        %v8851 = vpack.c.b16 %v8815, %v8815
        %v8852 = vpack.c.b16 %v8816, %v8816
        %8889 = vst [vmem:[%s232] sm:$0xf] %v8817
        %8890 = vst [vmem:[%s232 + $0x4] sm:$0xf] %v8818
        %8891 = vst [vmem:[%s232 + $0x8] sm:$0xf] %v8819
        %8892 = vst [vmem:[%s232 + $0xc] sm:$0xf] %v8820
        %8893 = vst [vmem:[%s232 + $0x10] sm:$0xf] %v8821
        %8894 = vst [vmem:[%s232 + $0x14] sm:$0xf] %v8822
        %8895 = vst [vmem:[%s232 + $0x18] sm:$0xf] %v8823
        %8896 = vst [vmem:[%s232 + $0x1c] sm:$0xf] %v8824
        %8897 = vst [vmem:[%s232 + $0x20] sm:$0xf] %v8825
        %8898 = vst [vmem:[%s232 + $0x24] sm:$0xf] %v8826
        %8899 = vst [vmem:[%s232 + $0x28] sm:$0xf] %v8827
        %8900 = vst [vmem:[%s232 + $0x2c] sm:$0xf] %v8828
        %8901 = vst [vmem:[%s232 + $0x30] sm:$0xf] %v8829
        %8902 = vst [vmem:[%s232 + $0x34] sm:$0xf] %v8830
        %8903 = vst [vmem:[%s232 + $0x38] sm:$0xf] %v8831
        %8904 = vst [vmem:[%s232 + $0x3c] sm:$0xf] %v8832
        %8905 = vst [vmem:[%s232 + $0x40] sm:$0xf] %v8833
        %8906 = vst [vmem:[%s232 + $0x44] sm:$0xf] %v8834
        %8907 = vst [vmem:[%s232 + $0x48] sm:$0xf] %v8835
        %8908 = vst [vmem:[%s232 + $0x4c] sm:$0xf] %v8836
        %8909 = vst [vmem:[%s232 + $0x50] sm:$0xf] %v8837
        %8910 = vst [vmem:[%s232 + $0x54] sm:$0xf] %v8838
        %8911 = vst [vmem:[%s232 + $0x58] sm:$0xf] %v8839
        %8912 = vst [vmem:[%s232 + $0x5c] sm:$0xf] %v8840
        %8913 = vst [vmem:[%s232 + $0x60] sm:$0xf] %v8841
        %8914 = vst [vmem:[%s232 + $0x64] sm:$0xf] %v8842
        %8915 = vst [vmem:[%s232 + $0x68] sm:$0xf] %v8843
        %8916 = vst [vmem:[%s232 + $0x6c] sm:$0xf] %v8844
        %8917 = vst [vmem:[%s232 + $0x70] sm:$0xf] %v8845
        %8918 = vst [vmem:[%s232 + $0x74] sm:$0xf] %v8846
        %8919 = vst [vmem:[%s232 + $0x78] sm:$0xf] %v8847
        %8920 = vst [vmem:[%s232 + $0x7c] sm:$0xf] %v8848
        %8921 = vst [vmem:[%s232 + $0x80] sm:$0xf] %v8849
        %8922 = vst [vmem:[%s232 + $0x84] sm:$0xf] %v8850
        %8923 = vst [vmem:[%s232 + $0x88] sm:$0xf] %v8851
        %8924 = vst [vmem:[%s232 + $0x8c] sm:$0xf] %v8852
        %s8925 = sand.u32 %s138, 1
        %s8926 = scalar_lea.sflag [#allocation5], %s8925
        %s8927 = sand.u32 %s138, 1
        %s8928 = smul.addr %s8927, 144
        %s8929 = scalar_lea.vmem [#allocation6], %s8928
        // Predicated region
        $region45: #{tpu_custom_call.1} parent=39 // pred_check
          %p8930 = pneg %p148
        $region46: #{tpu_custom_call.1} parent=39 // pred_check_branch
          %8932 = sbr.rel (%p8930) target = $region48
        $region47: #{tpu_custom_call.1} parent=39 // pred_region
          %s8934 = ssub.s32 2304, 2304
          %8935 = vsyncadd %s8926, %s8934
          %s8936 = smul.addr %s20, 36
          %s8937 = smul.addr %s8936, 64
          %s8938 = scalar_lea.hbm %s5, %s8937
          %s8939 = sshll.u32 %s8929, 4
          %s8940 = int_to_ptr.vmem [resolvable:$true] %s8939
          %8945 = dma.vmem_to_hbm [thread:$0]  %s8940, 2304, %s8938, %s8926, 64, 64, 4
        $region48: #{tpu_custom_call.1} parent=39 // pred_fallthru
          _
      $region40: #{tpu_custom_call.1} parent=5 // pred_fallthru
        _
      %p8946 = scmp.le.s32.totalorder 2, %s15
      // Predicated region
      $region49: #{tpu_custom_call.1} parent=5 // pred_check
        %p8947 = pneg %p8946
      $region50: #{tpu_custom_call.1} parent=5 // pred_check_branch
        %8949 = sbr.rel (%p8947) target = $region52
      $region51: #{tpu_custom_call.1} parent=5 // pred_region
        %s8950 = ssub.s32 %s15, 2
        // Predicated region
        $region53: #{tpu_custom_call.1} parent=51 // pred_check
          %p8951 = pneg %p154
        $region54: #{tpu_custom_call.1} parent=51 // pred_check_branch
          %8953 = sbr.rel (%p8951) target = $region56
        $region55: #{tpu_custom_call.1} parent=51 // pred_region
          %s8954 = sand.u32 %s139, 1
          %s8955 = scalar_lea.sflag [#allocation5], %s8954
          %s8956 = sand.u32 %s139, 1
          %s8957 = smul.addr %s8956, 144
          %s8958 = scalar_lea.vmem [#allocation6], %s8957
          %8959 = dma.done %s8955, 2304
        $region56: #{tpu_custom_call.1} parent=51 // pred_fallthru
          _
      $region52: #{tpu_custom_call.1} parent=5 // pred_fallthru
        _
    $region6: #{tpu_custom_call.1} parent=1 // loop_footer
      %s19 = sadd.s32 1, %s15
    $region7: #{tpu_custom_call.1} parent=1 // loop_footer_branch
      %14 = sbr.rel target = $region3
    $region8: #{tpu_custom_call.1} parent=1 // loop_exit
      _
    %8960 = vsyncpa [#allocation4], 1
    %s8961 = scalar_lea.sflag [#allocation4], 1
    %8962 = vsyncpa %s8961, 1
    %8963 = vsyncpa [#allocation5], 1
    %s8964 = scalar_lea.sflag [#allocation5], 1
    %8965 = vsyncpa %s8964, 1

</llo_original>
